<compile_context>
chip_gen: v7x
topology: tpu7x:2x2x1
jax: 0.10.0
libtpu: 0.0.40
codegen_flags: <defaults>
</compile_context>

<pallas_src>
import jax
import jax.numpy as jnp
from jax.experimental import pallas as pl
from jax.experimental.pallas import tpu as pltpu  # noqa: F401

# ---------------------------------------------------------------------------
# Layout constants
# ---------------------------------------------------------------------------
B = 2          # batch size (folded onto the sublane axis inside the kernel)
P = 16         # per-sample channel pad (max channel width of the network)
BP = B * P     # sublane count of every activation: [BP, nodes]

ADJ_KEYS = ('centerFace', 'facePoint', 'pointCenter',
            'pp0', 'pp1', 'pp2', 'pp3',
            'pool01', 'unpool10', 'pool12', 'unpool21', 'pool23', 'unpool32')


# ---------------------------------------------------------------------------
# Single fused pallas_call over the whole U-Net (grid = (), channel-major)
# ---------------------------------------------------------------------------

def forward(xcc, xf, adjT, wpack, bpack, widx, bidx):
    """xcc: [B, Nc, 2], xf: [B, Nf, 4]  ->  [B, Nc, 1]."""
    Bb, Nc, Ccc = xcc.shape
    _, Nf, Cf = xf.shape
    Np0 = adjT['facePoint'].shape[1]
    Np1 = adjT['pool01'].shape[1]
    Np2 = adjT['pool12'].shape[1]
    Np3 = adjT['pool23'].shape[1]

    # Host-side (cheap XLA) layout prep: channel-major, pad channels to P,
    # fold batch onto sublanes -> [B*P, N].
    def to_cm(x, c):
        xt = jnp.transpose(x, (0, 2, 1))                 # [B, C, N]
        xt = jnp.pad(xt, ((0, 0), (0, P - c), (0, 0)))   # [B, P, N]
        return xt.reshape(Bb * P, x.shape[1])

    xcc_cm = to_cm(xcc, Ccc)      # [32, Nc]
    xf_cm = to_cm(xf, Cf)         # [32, Nf]

    adj_vals = [adjT[k] for k in ADJ_KEYS]
    n_adj = len(ADJ_KEYS)

    def kernel(xcc_ref, xf_ref, *rest):
        adj = dict(zip(ADJ_KEYS, rest[:n_adj]))
        wp_ref = rest[n_adj]
        bp_ref = rest[n_adj + 1]
        o_ref = rest[n_adj + 2]

        def W(name):                       # [BP, BP] block-diag weight slot
            return wp_ref[widx[name]]

        def Bv(name, n):                   # [BP, n] bias slab (lane-broadcast on host)
            return bp_ref[bidx[name]][:, :n]

        def mm(a, b):
            return jnp.dot(a, b, preferred_element_type=jnp.float32)

        def inorm(x):
            # InstanceNorm1d(affine=False): per (sample, channel) row over nodes (lanes).
            mean = jnp.mean(x, axis=1, keepdims=True)
            xc = x - mean
            var = jnp.mean(xc * xc, axis=1, keepdims=True)
            return xc * jax.lax.rsqrt(var + 1e-5)

        # Y = ReLU(A @ (X @ W) + b)  ==  channel-major  ReLU((W^T X^T) A^T + b)
        def gconv(a_ref, x, wname, bname, n_dst):
            return jnp.maximum(mm(mm(W(wname), x), a_ref[...]) + Bv(bname, n_dst), 0.0)

        def gconv_cat(a_ref, xa, xb, wa, wb, bname, n_dst):
            h = mm(W(wa), xa) + mm(W(wb), xb)
            return jnp.maximum(mm(h, a_ref[...]) + Bv(bname, n_dst), 0.0)

        # Y = ReLU(A @ (X @ Wn) + X @ Wr + b)
        def gconv_pp(a_ref, x, pre, n_dst):
            y = (mm(mm(W(pre + '_wn'), x), a_ref[...])
                 + mm(W(pre + '_wr'), x) + Bv(pre + '_b', n_dst))
            return jnp.maximum(y, 0.0)

        def gconv_pp_cat(a_ref, xa, xb, pre, n_dst):
            h = mm(W(pre + '_wna'), xa) + mm(W(pre + '_wnb'), xb)
            y = (mm(h, a_ref[...]) + mm(W(pre + '_wra'), xa)
                 + mm(W(pre + '_wrb'), xb) + Bv(pre + '_b', n_dst))
            return jnp.maximum(y, 0.0)

        def pool(a_ref, x):
            return mm(x, a_ref[...])

        # input instance norms
        xcc_v = inorm(xcc_ref[...])                                 # [32, Nc]
        xf_v = inorm(xf_ref[...])                                   # [32, Nf]

        # convN_1
        h = gconv(adj['centerFace'], xcc_v, 'c1_cf_w', 'c1_cf_b', Nf)
        h = gconv_cat(adj['facePoint'], h, xf_v, 'c1_fp_wa', 'c1_fp_wb', 'c1_fp_b', Np0)
        c1 = inorm(gconv_pp(adj['pp0'], h, 'c1_pp', Np0))           # [32, Np0]

        # convN_2 : pool -> 2x pointPoint
        h = pool(adj['pool01'], c1)
        h = gconv_pp(adj['pp1'], h, 'c2_l1', Np1)
        c2 = inorm(gconv_pp(adj['pp1'], h, 'c2_l2', Np1))           # [32, Np1]

        # convN_3
        h = pool(adj['pool12'], c2)
        h = gconv_pp(adj['pp2'], h, 'c3_l1', Np2)
        c3 = inorm(gconv_pp(adj['pp2'], h, 'c3_l2', Np2))           # [32, Np2]

        # convN_4 : pool -> 4 convs -> unpool
        h = pool(adj['pool23'], c3)
        h = gconv_pp(adj['pp3'], h, 'c4_l1', Np3)
        h = gconv_pp(adj['pp3'], h, 'c4_l2', Np3)
        h = gconv_pp(adj['pp3'], h, 'c4_l3', Np3)
        h = gconv_pp(adj['pp3'], h, 'c4_l4', Np3)
        c4 = inorm(pool(adj['unpool32'], h))                        # [32, Np2]

        # convN_7 : skip cat(c4, c3) -> 2 convs -> unpool
        h = gconv_pp_cat(adj['pp2'], c4, c3, 'c7_l1', Np2)
        h = gconv_pp(adj['pp2'], h, 'c7_l2', Np2)
        c7 = inorm(pool(adj['unpool21'], h))                        # [32, Np1]

        # convN_8 : skip cat(c7, c2) -> 2 convs -> unpool
        h = gconv_pp_cat(adj['pp1'], c7, c2, 'c8_l1', Np1)
        h = gconv_pp(adj['pp1'], h, 'c8_l2', Np1)
        c8 = inorm(pool(adj['unpool10'], h))                        # [32, Np0]

        # convN_9 : skip cat(c8, c1) -> pointPoint -> pointCenter (no norm)
        h = gconv_pp_cat(adj['pp0'], c8, c1, 'c9_l1', Np0)
        c9 = gconv(adj['pointCenter'], h, 'c9_l2_w', 'c9_l2_b', Nc) # [32, Nc]

        # final SelfLoopLayer; 'fin_w' routes sample-b channel-0 output to row b,
        # so rows 0..B-1 of y hold the lane-dense result.
        y = mm(W('fin_w'), c9) + Bv('fin_b', Nc)                    # [32, Nc]
        o_ref[...] = y[:B, :]                                       # [B, Nc]

    bytes_accessed = int(4 * (xcc_cm.size + xf_cm.size
                              + sum(a.size for a in adj_vals)
                              + wpack.size + bpack.size + Bb * Nc))

    out = pl.pallas_call(
        kernel,
        out_shape=jax.ShapeDtypeStruct((Bb, Nc), jnp.float32),
        cost_estimate=pl.CostEstimate(flops=15_000_000,
                                      transcendentals=1024,
                                      bytes_accessed=bytes_accessed),
    )(xcc_cm, xf_cm, *adj_vals, wpack, bpack)

    return out[:, :, None]   # restore PyTorch output layout [B, Nc, 1]


# ---------------------------------------------------------------------------
# Graph construction glue (edge_index / edge_attr -> dense weighted adjacency)
# ---------------------------------------------------------------------------

def make_edges(n_src, n_dst, deg, seed):
    dst = jnp.repeat(jnp.arange(n_dst, dtype=jnp.int32), deg)
    off = jnp.tile(jnp.arange(deg, dtype=jnp.int32), n_dst)
    src = (dst * 3 + off * 7 + seed) % n_src
    attr = 0.5 + 0.5 * jnp.cos(jnp.arange(dst.shape[0], dtype=jnp.float32) * 0.37 + seed)
    return src, dst, attr


def dense_adj(n_src, n_dst, deg, seed):
    src, dst, attr = make_edges(n_src, n_dst, deg, seed)
    A = jnp.zeros((n_dst, n_src), jnp.float32)
    return A.at[dst, src].add(attr)          # [n_dst, n_src]


# ---------------------------------------------------------------------------
# Parameter init + packing.  Weights are stored transposed (W^T, [Cout, Cin]),
# padded to [P, P] and replicated block-diagonally over the folded batch.
# Concatenated-input layers store their weights pre-split at the concat
# boundary (mathematically identical to applying the full weight to the cat).
# ---------------------------------------------------------------------------

def init_lin(key, cin, cout, scale=0.1):
    kw, kb = jax.random.split(key)
    w = jax.random.normal(kw, (cin, cout), jnp.float32) * scale
    b = jax.random.normal(kb, (1, cout), jnp.float32) * scale
    return w, b


def init_pp(key, cin, cout, scale=0.1):
    k1, k2, k3 = jax.random.split(key, 3)
    wn = jax.random.normal(k1, (cin, cout), jnp.float32) * scale
    wr = jax.random.normal(k2, (cin, cout), jnp.float32) * scale
    b = jax.random.normal(k3, (1, cout), jnp.float32) * scale
    return wn, wr, b


class ParamPack:
    def __init__(self):
        self.w_slots, self.widx = [], {}
        self.b_slots, self.bidx = [], {}

    def add_w(self, name, w):                      # w: [cin, cout]
        wt = jnp.zeros((P, P), jnp.float32).at[:w.shape[1], :w.shape[0]].set(w.T)
        slot = jnp.kron(jnp.eye(B, dtype=jnp.float32), wt)      # [BP, BP]
        self.widx[name] = len(self.w_slots)
        self.w_slots.append(slot)

    def add_w_raw(self, name, slot):
        self.widx[name] = len(self.w_slots)
        self.w_slots.append(slot)

    def add_b(self, name, b):                      # b: [1, cout]
        bp = jnp.zeros((P,), jnp.float32).at[:b.shape[1]].set(b[0])
        row = jnp.tile(bp, (B,))                                 # [BP]
        self.bidx[name] = len(self.b_slots)
        self.b_slots.append(jnp.broadcast_to(row[:, None], (BP, 128)))

    def add_b_raw(self, name, row):                # row: [BP]
        self.bidx[name] = len(self.b_slots)
        self.b_slots.append(jnp.broadcast_to(row[:, None], (BP, 128)))

    def finish(self):
        return (jnp.stack(self.w_slots), jnp.stack(self.b_slots),
                self.widx, self.bidx)


def init_params(key):
    ks = jax.random.split(key, 18)
    pk = ParamPack()

    # convN_1 : _ConvBlock1(2, 4, 4, 8)
    w, b = init_lin(ks[0], 2, 4)
    pk.add_w('c1_cf_w', w); pk.add_b('c1_cf_b', b)
    w, b = init_lin(ks[1], 4 + 4, 8)                       # facePoint on cat(4, 4)
    pk.add_w('c1_fp_wa', w[:4]); pk.add_w('c1_fp_wb', w[4:]); pk.add_b('c1_fp_b', b)
    wn, wr, b = init_pp(ks[2], 8, 8)
    pk.add_w('c1_pp_wn', wn); pk.add_w('c1_pp_wr', wr); pk.add_b('c1_pp_b', b)

    # convN_2 / convN_3 : _ConvBlock2/3(8, 8)
    for blk, kbase in (('c2', 3), ('c3', 5)):
        for li in (1, 2):
            wn, wr, b = init_pp(ks[kbase + li - 1], 8, 8)
            pk.add_w(f'{blk}_l{li}_wn', wn); pk.add_w(f'{blk}_l{li}_wr', wr)
            pk.add_b(f'{blk}_l{li}_b', b)

    # convN_4 : _ConvBlock4LessLayers(8, 16)
    cins = (8, 16, 16, 16)
    for li in range(1, 5):
        wn, wr, b = init_pp(ks[6 + li], cins[li - 1], 16)
        pk.add_w(f'c4_l{li}_wn', wn); pk.add_w(f'c4_l{li}_wr', wr)
        pk.add_b(f'c4_l{li}_b', b)

    # convN_7 : _ConvBlock7(24, 16)   input = cat(16, 8)
    wn, wr, b = init_pp(ks[11], 24, 16)
    pk.add_w('c7_l1_wna', wn[:16]); pk.add_w('c7_l1_wnb', wn[16:])
    pk.add_w('c7_l1_wra', wr[:16]); pk.add_w('c7_l1_wrb', wr[16:])
    pk.add_b('c7_l1_b', b)
    wn, wr, b = init_pp(ks[12], 16, 16)
    pk.add_w('c7_l2_wn', wn); pk.add_w('c7_l2_wr', wr); pk.add_b('c7_l2_b', b)

    # convN_8 : _ConvBlock8(24, 8)    input = cat(16, 8)
    wn, wr, b = init_pp(ks[13], 24, 8)
    pk.add_w('c8_l1_wna', wn[:16]); pk.add_w('c8_l1_wnb', wn[16:])
    pk.add_w('c8_l1_wra', wr[:16]); pk.add_w('c8_l1_wrb', wr[16:])
    pk.add_b('c8_l1_b', b)
    wn, wr, b = init_pp(ks[14], 8, 8)
    pk.add_w('c8_l2_wn', wn); pk.add_w('c8_l2_wr', wr); pk.add_b('c8_l2_b', b)

    # convN_9 : _ConvBlock9(16, 8)    input = cat(8, 8)
    wn, wr, b = init_pp(ks[15], 16, 8)
    pk.add_w('c9_l1_wna', wn[:8]); pk.add_w('c9_l1_wnb', wn[8:])
    pk.add_w('c9_l1_wra', wr[:8]); pk.add_w('c9_l1_wrb', wr[8:])
    pk.add_b('c9_l1_b', b)
    w, b = init_lin(ks[16], 8, 8)                          # CustomGraphConv pointCenter
    pk.add_w('c9_l2_w', w); pk.add_b('c9_l2_b', b)

    # final : _ConvBlock10(8, 1) -> SelfLoopLayer.  Special routing slot that
    # maps sample-b channel-0 output to row b (lane-dense 2-row result).
    wf, bf = init_lin(ks[17], 8, 1)
    slot = jnp.zeros((BP, BP), jnp.float32)
    row = jnp.zeros((BP,), jnp.float32)
    for s in range(B):
        slot = slot.at[s, s * P: s * P + 8].set(wf[:, 0])
        row = row.at[s].set(bf[0, 0])
    pk.add_w_raw('fin_w', slot)
    pk.add_b_raw('fin_b', row)

    return pk.finish()


# ---------------------------------------------------------------------------
# Main
# ---------------------------------------------------------------------------

if __name__ == "__main__":
    key = jax.random.PRNGKey(0)
    k_in1, k_in2, k_par = jax.random.split(key, 3)

    # node-set sizes (small synthetic mesh hierarchy)
    Nc, Nf = 64, 128                          # cell centers, faces
    Np0, Np1, Np2, Np3 = 128, 64, 32, 16      # point levels 0..3

    # inputs (PyTorch layout: [B, N, C])
    xCellCenters = jax.random.normal(k_in1, (B, Nc, 2), jnp.float32)
    xFace = jax.random.normal(k_in2, (B, Nf, 4), jnp.float32)

    # dense weighted adjacencies standing in for (edge_index, edge_attr);
    # kernel consumes the transpose A^T ([n_src, n_dst]) for channel-major matmuls.
    adj = {
        'centerFace':  dense_adj(Nc,  Nf,  4, 1),
        'facePoint':   dense_adj(Nf,  Np0, 4, 2),
        'pointCenter': dense_adj(Np0, Nc,  4, 3),
        'pp0':         dense_adj(Np0, Np0, 6, 4),
        'pp1':         dense_adj(Np1, Np1, 6, 5),
        'pp2':         dense_adj(Np2, Np2, 6, 6),
        'pp3':         dense_adj(Np3, Np3, 6, 7),
        'pool01':      dense_adj(Np0, Np1, 4, 8),
        'unpool10':    dense_adj(Np1, Np0, 2, 9),
        'pool12':      dense_adj(Np1, Np2, 4, 10),
        'unpool21':    dense_adj(Np2, Np1, 2, 11),
        'pool23':      dense_adj(Np2, Np3, 4, 12),
        'unpool32':    dense_adj(Np3, Np2, 2, 13),
    }
    adjT = {k: v.T for k, v in adj.items()}

    wpack, bpack, widx, bidx = init_params(k_par)

    fwd = jax.jit(lambda a, b: forward(a, b, adjT, wpack, bpack, widx, bidx))
    out = jax.block_until_ready(fwd(xCellCenters, xFace))   # [B, Nc, 1]

    assert out.shape == (B, Nc, 1)
    assert bool(jnp.all(jnp.isfinite(out)))
    print("KERNEL_OK")
</pallas_src>

<mosaic_0001>
module attributes {stable_mosaic.version = 11 : i64} {
  func.func @kernel(%arg0: memref<32x64xf32, #tpu.memory_space<vmem>>, %arg1: memref<32x128xf32, #tpu.memory_space<vmem>>, %arg2: memref<64x128xf32, #tpu.memory_space<vmem>>, %arg3: memref<128x128xf32, #tpu.memory_space<vmem>>, %arg4: memref<128x64xf32, #tpu.memory_space<vmem>>, %arg5: memref<128x128xf32, #tpu.memory_space<vmem>>, %arg6: memref<64x64xf32, #tpu.memory_space<vmem>>, %arg7: memref<32x32xf32, #tpu.memory_space<vmem>>, %arg8: memref<16x16xf32, #tpu.memory_space<vmem>>, %arg9: memref<128x64xf32, #tpu.memory_space<vmem>>, %arg10: memref<64x128xf32, #tpu.memory_space<vmem>>, %arg11: memref<64x32xf32, #tpu.memory_space<vmem>>, %arg12: memref<32x64xf32, #tpu.memory_space<vmem>>, %arg13: memref<32x16xf32, #tpu.memory_space<vmem>>, %arg14: memref<16x32xf32, #tpu.memory_space<vmem>>, %arg15: memref<39x32x32xf32, #tpu.memory_space<vmem>>, %arg16: memref<18x32x128xf32, #tpu.memory_space<vmem>>, %arg17: memref<2x64xf32, #tpu.memory_space<vmem>>) attributes {dimension_semantics = [], scalar_prefetch = 0 : i64, scratch_operands = 0 : i64, tpu.core_type = #tpu.core_type<tc>} {
    %c0 = arith.constant 0 : index
    %c0_0 = arith.constant 0 : index
    %0 = vector.load %arg0[%c0, %c0_0] : memref<32x64xf32, #tpu.memory_space<vmem>>, vector<32x64xf32>
    %cst = arith.constant dense<0.000000e+00> : vector<32xf32>
    %1 = vector.multi_reduction <add>, %0, %cst [1] : vector<32x64xf32> to vector<32xf32>
    %2 = vector.shape_cast %1 : vector<32xf32> to vector<32x1xf32>
    %cst_1 = arith.constant 6.400000e+01 : f32
    %3 = vector.broadcast %cst_1 : f32 to vector<32x1xf32>
    %4 = arith.divf %2, %3 : vector<32x1xf32>
    %5 = vector.broadcast %4 : vector<32x1xf32> to vector<32x64xf32>
    %6 = arith.subf %0, %5 : vector<32x64xf32>
    %7 = arith.mulf %6, %6 : vector<32x64xf32>
    %cst_2 = arith.constant dense<0.000000e+00> : vector<32xf32>
    %8 = vector.multi_reduction <add>, %7, %cst_2 [1] : vector<32x64xf32> to vector<32xf32>
    %9 = vector.shape_cast %8 : vector<32xf32> to vector<32x1xf32>
    %cst_3 = arith.constant 6.400000e+01 : f32
    %10 = vector.broadcast %cst_3 : f32 to vector<32x1xf32>
    %11 = arith.divf %9, %10 : vector<32x1xf32>
    %cst_4 = arith.constant 9.99999974E-6 : f32
    %12 = vector.broadcast %cst_4 : f32 to vector<32x1xf32>
    %13 = arith.addf %11, %12 : vector<32x1xf32>
    %14 = math.rsqrt %13 : vector<32x1xf32>
    %15 = vector.broadcast %14 : vector<32x1xf32> to vector<32x64xf32>
    %16 = arith.mulf %6, %15 : vector<32x64xf32>
    %c0_5 = arith.constant 0 : index
    %c0_6 = arith.constant 0 : index
    %17 = vector.load %arg1[%c0_5, %c0_6] : memref<32x128xf32, #tpu.memory_space<vmem>>, vector<32x128xf32>
    %cst_7 = arith.constant dense<0.000000e+00> : vector<32xf32>
    %18 = vector.multi_reduction <add>, %17, %cst_7 [1] : vector<32x128xf32> to vector<32xf32>
    %19 = vector.shape_cast %18 : vector<32xf32> to vector<32x1xf32>
    %cst_8 = arith.constant 1.280000e+02 : f32
    %20 = vector.broadcast %cst_8 : f32 to vector<32x1xf32>
    %21 = arith.divf %19, %20 : vector<32x1xf32>
    %22 = vector.broadcast %21 : vector<32x1xf32> to vector<32x128xf32>
    %23 = arith.subf %17, %22 : vector<32x128xf32>
    %24 = arith.mulf %23, %23 : vector<32x128xf32>
    %cst_9 = arith.constant dense<0.000000e+00> : vector<32xf32>
    %25 = vector.multi_reduction <add>, %24, %cst_9 [1] : vector<32x128xf32> to vector<32xf32>
    %26 = vector.shape_cast %25 : vector<32xf32> to vector<32x1xf32>
    %cst_10 = arith.constant 1.280000e+02 : f32
    %27 = vector.broadcast %cst_10 : f32 to vector<32x1xf32>
    %28 = arith.divf %26, %27 : vector<32x1xf32>
    %cst_11 = arith.constant 9.99999974E-6 : f32
    %29 = vector.broadcast %cst_11 : f32 to vector<32x1xf32>
    %30 = arith.addf %28, %29 : vector<32x1xf32>
    %31 = math.rsqrt %30 : vector<32x1xf32>
    %32 = vector.broadcast %31 : vector<32x1xf32> to vector<32x128xf32>
    %33 = arith.mulf %23, %32 : vector<32x128xf32>
    %c0_12 = arith.constant 0 : index
    %c0_13 = arith.constant 0 : index
    %c0_14 = arith.constant 0 : index
    %34 = vector.load %arg15[%c0_12, %c0_13, %c0_14] : memref<39x32x32xf32, #tpu.memory_space<vmem>>, vector<1x32x32xf32>
    %35 = vector.shape_cast %34 : vector<1x32x32xf32> to vector<32x32xf32>
    %cst_15 = arith.constant dense<0.000000e+00> : vector<32x64xf32>
    %36 = tpu.matmul %35, %16, %cst_15 {dimension_numbers = #tpu.dot_dimension_numbers<[1], [0], [0], [1], [0, 0, 1, 1], [], []>} : vector<32x32xf32>, vector<32x64xf32>, vector<32x64xf32> -> vector<32x64xf32>
    %c0_16 = arith.constant 0 : index
    %c0_17 = arith.constant 0 : index
    %37 = vector.load %arg2[%c0_16, %c0_17] : memref<64x128xf32, #tpu.memory_space<vmem>>, vector<64x128xf32>
    %cst_18 = arith.constant dense<0.000000e+00> : vector<32x128xf32>
    %38 = tpu.matmul %36, %37, %cst_18 {dimension_numbers = #tpu.dot_dimension_numbers<[1], [0], [0], [1], [0, 0, 1, 1], [], []>} : vector<32x64xf32>, vector<64x128xf32>, vector<32x128xf32> -> vector<32x128xf32>
    %c0_19 = arith.constant 0 : index
    %c0_20 = arith.constant 0 : index
    %c0_21 = arith.constant 0 : index
    %39 = vector.load %arg16[%c0_19, %c0_20, %c0_21] : memref<18x32x128xf32, #tpu.memory_space<vmem>>, vector<1x32x128xf32>
    %40 = vector.shape_cast %39 : vector<1x32x128xf32> to vector<32x128xf32>
    %41 = arith.addf %38, %40 : vector<32x128xf32>
    %cst_22 = arith.constant 0.000000e+00 : f32
    %42 = vector.broadcast %cst_22 : f32 to vector<32x128xf32>
    %43 = arith.maximumf %41, %42 : vector<32x128xf32>
    %c1 = arith.constant 1 : index
    %c0_23 = arith.constant 0 : index
    %c0_24 = arith.constant 0 : index
    %44 = vector.load %arg15[%c1, %c0_23, %c0_24] : memref<39x32x32xf32, #tpu.memory_space<vmem>>, vector<1x32x32xf32>
    %45 = vector.shape_cast %44 : vector<1x32x32xf32> to vector<32x32xf32>
    %cst_25 = arith.constant dense<0.000000e+00> : vector<32x128xf32>
    %46 = tpu.matmul %45, %43, %cst_25 {dimension_numbers = #tpu.dot_dimension_numbers<[1], [0], [0], [1], [0, 0, 1, 1], [], []>} : vector<32x32xf32>, vector<32x128xf32>, vector<32x128xf32> -> vector<32x128xf32>
    %c2 = arith.constant 2 : index
    %c0_26 = arith.constant 0 : index
    %c0_27 = arith.constant 0 : index
    %47 = vector.load %arg15[%c2, %c0_26, %c0_27] : memref<39x32x32xf32, #tpu.memory_space<vmem>>, vector<1x32x32xf32>
    %48 = vector.shape_cast %47 : vector<1x32x32xf32> to vector<32x32xf32>
    %cst_28 = arith.constant dense<0.000000e+00> : vector<32x128xf32>
    %49 = tpu.matmul %48, %33, %cst_28 {dimension_numbers = #tpu.dot_dimension_numbers<[1], [0], [0], [1], [0, 0, 1, 1], [], []>} : vector<32x32xf32>, vector<32x128xf32>, vector<32x128xf32> -> vector<32x128xf32>
    %50 = arith.addf %46, %49 : vector<32x128xf32>
    %c0_29 = arith.constant 0 : index
    %c0_30 = arith.constant 0 : index
    %51 = vector.load %arg3[%c0_29, %c0_30] : memref<128x128xf32, #tpu.memory_space<vmem>>, vector<128x128xf32>
    %cst_31 = arith.constant dense<0.000000e+00> : vector<32x128xf32>
    %52 = tpu.matmul %50, %51, %cst_31 {dimension_numbers = #tpu.dot_dimension_numbers<[1], [0], [0], [1], [0, 0, 1, 1], [], []>} : vector<32x128xf32>, vector<128x128xf32>, vector<32x128xf32> -> vector<32x128xf32>
    %c1_32 = arith.constant 1 : index
    %c0_33 = arith.constant 0 : index
    %c0_34 = arith.constant 0 : index
    %53 = vector.load %arg16[%c1_32, %c0_33, %c0_34] : memref<18x32x128xf32, #tpu.memory_space<vmem>>, vector<1x32x128xf32>
    %54 = vector.shape_cast %53 : vector<1x32x128xf32> to vector<32x128xf32>
    %55 = arith.addf %52, %54 : vector<32x128xf32>
    %cst_35 = arith.constant 0.000000e+00 : f32
    %56 = vector.broadcast %cst_35 : f32 to vector<32x128xf32>
    %57 = arith.maximumf %55, %56 : vector<32x128xf32>
    %c3 = arith.constant 3 : index
    %c0_36 = arith.constant 0 : index
    %c0_37 = arith.constant 0 : index
    %58 = vector.load %arg15[%c3, %c0_36, %c0_37] : memref<39x32x32xf32, #tpu.memory_space<vmem>>, vector<1x32x32xf32>
    %59 = vector.shape_cast %58 : vector<1x32x32xf32> to vector<32x32xf32>
    %cst_38 = arith.constant dense<0.000000e+00> : vector<32x128xf32>
    %60 = tpu.matmul %59, %57, %cst_38 {dimension_numbers = #tpu.dot_dimension_numbers<[1], [0], [0], [1], [0, 0, 1, 1], [], []>} : vector<32x32xf32>, vector<32x128xf32>, vector<32x128xf32> -> vector<32x128xf32>
    %c0_39 = arith.constant 0 : index
    %c0_40 = arith.constant 0 : index
    %61 = vector.load %arg5[%c0_39, %c0_40] : memref<128x128xf32, #tpu.memory_space<vmem>>, vector<128x128xf32>
    %cst_41 = arith.constant dense<0.000000e+00> : vector<32x128xf32>
    %62 = tpu.matmul %60, %61, %cst_41 {dimension_numbers = #tpu.dot_dimension_numbers<[1], [0], [0], [1], [0, 0, 1, 1], [], []>} : vector<32x128xf32>, vector<128x128xf32>, vector<32x128xf32> -> vector<32x128xf32>
    %c4 = arith.constant 4 : index
    %c0_42 = arith.constant 0 : index
    %c0_43 = arith.constant 0 : index
    %63 = vector.load %arg15[%c4, %c0_42, %c0_43] : memref<39x32x32xf32, #tpu.memory_space<vmem>>, vector<1x32x32xf32>
    %64 = vector.shape_cast %63 : vector<1x32x32xf32> to vector<32x32xf32>
    %cst_44 = arith.constant dense<0.000000e+00> : vector<32x128xf32>
    %65 = tpu.matmul %64, %57, %cst_44 {dimension_numbers = #tpu.dot_dimension_numbers<[1], [0], [0], [1], [0, 0, 1, 1], [], []>} : vector<32x32xf32>, vector<32x128xf32>, vector<32x128xf32> -> vector<32x128xf32>
    %66 = arith.addf %62, %65 : vector<32x128xf32>
    %c2_45 = arith.constant 2 : index
    %c0_46 = arith.constant 0 : index
    %c0_47 = arith.constant 0 : index
    %67 = vector.load %arg16[%c2_45, %c0_46, %c0_47] : memref<18x32x128xf32, #tpu.memory_space<vmem>>, vector<1x32x128xf32>
    %68 = vector.shape_cast %67 : vector<1x32x128xf32> to vector<32x128xf32>
    %69 = arith.addf %66, %68 : vector<32x128xf32>
    %cst_48 = arith.constant 0.000000e+00 : f32
    %70 = vector.broadcast %cst_48 : f32 to vector<32x128xf32>
    %71 = arith.maximumf %69, %70 : vector<32x128xf32>
    %cst_49 = arith.constant dense<0.000000e+00> : vector<32xf32>
    %72 = vector.multi_reduction <add>, %71, %cst_49 [1] : vector<32x128xf32> to vector<32xf32>
    %73 = vector.shape_cast %72 : vector<32xf32> to vector<32x1xf32>
    %cst_50 = arith.constant 1.280000e+02 : f32
    %74 = vector.broadcast %cst_50 : f32 to vector<32x1xf32>
    %75 = arith.divf %73, %74 : vector<32x1xf32>
    %76 = vector.broadcast %75 : vector<32x1xf32> to vector<32x128xf32>
    %77 = arith.subf %71, %76 : vector<32x128xf32>
    %78 = arith.mulf %77, %77 : vector<32x128xf32>
    %cst_51 = arith.constant dense<0.000000e+00> : vector<32xf32>
    %79 = vector.multi_reduction <add>, %78, %cst_51 [1] : vector<32x128xf32> to vector<32xf32>
    %80 = vector.shape_cast %79 : vector<32xf32> to vector<32x1xf32>
    %cst_52 = arith.constant 1.280000e+02 : f32
    %81 = vector.broadcast %cst_52 : f32 to vector<32x1xf32>
    %82 = arith.divf %80, %81 : vector<32x1xf32>
    %cst_53 = arith.constant 9.99999974E-6 : f32
    %83 = vector.broadcast %cst_53 : f32 to vector<32x1xf32>
    %84 = arith.addf %82, %83 : vector<32x1xf32>
    %85 = math.rsqrt %84 : vector<32x1xf32>
    %86 = vector.broadcast %85 : vector<32x1xf32> to vector<32x128xf32>
    %87 = arith.mulf %77, %86 : vector<32x128xf32>
    %c0_54 = arith.constant 0 : index
    %c0_55 = arith.constant 0 : index
    %88 = vector.load %arg9[%c0_54, %c0_55] : memref<128x64xf32, #tpu.memory_space<vmem>>, vector<128x64xf32>
    %cst_56 = arith.constant dense<0.000000e+00> : vector<32x64xf32>
    %89 = tpu.matmul %87, %88, %cst_56 {dimension_numbers = #tpu.dot_dimension_numbers<[1], [0], [0], [1], [0, 0, 1, 1], [], []>} : vector<32x128xf32>, vector<128x64xf32>, vector<32x64xf32> -> vector<32x64xf32>
    %c5 = arith.constant 5 : index
    %c0_57 = arith.constant 0 : index
    %c0_58 = arith.constant 0 : index
    %90 = vector.load %arg15[%c5, %c0_57, %c0_58] : memref<39x32x32xf32, #tpu.memory_space<vmem>>, vector<1x32x32xf32>
    %91 = vector.shape_cast %90 : vector<1x32x32xf32> to vector<32x32xf32>
    %cst_59 = arith.constant dense<0.000000e+00> : vector<32x64xf32>
    %92 = tpu.matmul %91, %89, %cst_59 {dimension_numbers = #tpu.dot_dimension_numbers<[1], [0], [0], [1], [0, 0, 1, 1], [], []>} : vector<32x32xf32>, vector<32x64xf32>, vector<32x64xf32> -> vector<32x64xf32>
    %c0_60 = arith.constant 0 : index
    %c0_61 = arith.constant 0 : index
    %93 = vector.load %arg6[%c0_60, %c0_61] : memref<64x64xf32, #tpu.memory_space<vmem>>, vector<64x64xf32>
    %cst_62 = arith.constant dense<0.000000e+00> : vector<32x64xf32>
    %94 = tpu.matmul %92, %93, %cst_62 {dimension_numbers = #tpu.dot_dimension_numbers<[1], [0], [0], [1], [0, 0, 1, 1], [], []>} : vector<32x64xf32>, vector<64x64xf32>, vector<32x64xf32> -> vector<32x64xf32>
    %c6 = arith.constant 6 : index
    %c0_63 = arith.constant 0 : index
    %c0_64 = arith.constant 0 : index
    %95 = vector.load %arg15[%c6, %c0_63, %c0_64] : memref<39x32x32xf32, #tpu.memory_space<vmem>>, vector<1x32x32xf32>
    %96 = vector.shape_cast %95 : vector<1x32x32xf32> to vector<32x32xf32>
    %cst_65 = arith.constant dense<0.000000e+00> : vector<32x64xf32>
    %97 = tpu.matmul %96, %89, %cst_65 {dimension_numbers = #tpu.dot_dimension_numbers<[1], [0], [0], [1], [0, 0, 1, 1], [], []>} : vector<32x32xf32>, vector<32x64xf32>, vector<32x64xf32> -> vector<32x64xf32>
    %98 = arith.addf %94, %97 : vector<32x64xf32>
    %c3_66 = arith.constant 3 : index
    %c0_67 = arith.constant 0 : index
    %c0_68 = arith.constant 0 : index
    %99 = vector.load %arg16[%c3_66, %c0_67, %c0_68] : memref<18x32x128xf32, #tpu.memory_space<vmem>>, vector<1x32x128xf32>
    %100 = vector.shape_cast %99 : vector<1x32x128xf32> to vector<32x128xf32>
    %101 = vector.extract_strided_slice %100 {offsets = [0, 0], sizes = [32, 64], strides = [1, 1]} : vector<32x128xf32> to vector<32x64xf32>
    %102 = arith.addf %98, %101 : vector<32x64xf32>
    %cst_69 = arith.constant 0.000000e+00 : f32
    %103 = vector.broadcast %cst_69 : f32 to vector<32x64xf32>
    %104 = arith.maximumf %102, %103 : vector<32x64xf32>
    %c7 = arith.constant 7 : index
    %c0_70 = arith.constant 0 : index
    %c0_71 = arith.constant 0 : index
    %105 = vector.load %arg15[%c7, %c0_70, %c0_71] : memref<39x32x32xf32, #tpu.memory_space<vmem>>, vector<1x32x32xf32>
    %106 = vector.shape_cast %105 : vector<1x32x32xf32> to vector<32x32xf32>
    %cst_72 = arith.constant dense<0.000000e+00> : vector<32x64xf32>
    %107 = tpu.matmul %106, %104, %cst_72 {dimension_numbers = #tpu.dot_dimension_numbers<[1], [0], [0], [1], [0, 0, 1, 1], [], []>} : vector<32x32xf32>, vector<32x64xf32>, vector<32x64xf32> -> vector<32x64xf32>
    %c0_73 = arith.constant 0 : index
    %c0_74 = arith.constant 0 : index
    %108 = vector.load %arg6[%c0_73, %c0_74] : memref<64x64xf32, #tpu.memory_space<vmem>>, vector<64x64xf32>
    %cst_75 = arith.constant dense<0.000000e+00> : vector<32x64xf32>
    %109 = tpu.matmul %107, %108, %cst_75 {dimension_numbers = #tpu.dot_dimension_numbers<[1], [0], [0], [1], [0, 0, 1, 1], [], []>} : vector<32x64xf32>, vector<64x64xf32>, vector<32x64xf32> -> vector<32x64xf32>
    %c8 = arith.constant 8 : index
    %c0_76 = arith.constant 0 : index
    %c0_77 = arith.constant 0 : index
    %110 = vector.load %arg15[%c8, %c0_76, %c0_77] : memref<39x32x32xf32, #tpu.memory_space<vmem>>, vector<1x32x32xf32>
    %111 = vector.shape_cast %110 : vector<1x32x32xf32> to vector<32x32xf32>
    %cst_78 = arith.constant dense<0.000000e+00> : vector<32x64xf32>
    %112 = tpu.matmul %111, %104, %cst_78 {dimension_numbers = #tpu.dot_dimension_numbers<[1], [0], [0], [1], [0, 0, 1, 1], [], []>} : vector<32x32xf32>, vector<32x64xf32>, vector<32x64xf32> -> vector<32x64xf32>
    %113 = arith.addf %109, %112 : vector<32x64xf32>
    %c4_79 = arith.constant 4 : index
    %c0_80 = arith.constant 0 : index
    %c0_81 = arith.constant 0 : index
    %114 = vector.load %arg16[%c4_79, %c0_80, %c0_81] : memref<18x32x128xf32, #tpu.memory_space<vmem>>, vector<1x32x128xf32>
    %115 = vector.shape_cast %114 : vector<1x32x128xf32> to vector<32x128xf32>
    %116 = vector.extract_strided_slice %115 {offsets = [0, 0], sizes = [32, 64], strides = [1, 1]} : vector<32x128xf32> to vector<32x64xf32>
    %117 = arith.addf %113, %116 : vector<32x64xf32>
    %cst_82 = arith.constant 0.000000e+00 : f32
    %118 = vector.broadcast %cst_82 : f32 to vector<32x64xf32>
    %119 = arith.maximumf %117, %118 : vector<32x64xf32>
    %cst_83 = arith.constant dense<0.000000e+00> : vector<32xf32>
    %120 = vector.multi_reduction <add>, %119, %cst_83 [1] : vector<32x64xf32> to vector<32xf32>
    %121 = vector.shape_cast %120 : vector<32xf32> to vector<32x1xf32>
    %cst_84 = arith.constant 6.400000e+01 : f32
    %122 = vector.broadcast %cst_84 : f32 to vector<32x1xf32>
    %123 = arith.divf %121, %122 : vector<32x1xf32>
    %124 = vector.broadcast %123 : vector<32x1xf32> to vector<32x64xf32>
    %125 = arith.subf %119, %124 : vector<32x64xf32>
    %126 = arith.mulf %125, %125 : vector<32x64xf32>
    %cst_85 = arith.constant dense<0.000000e+00> : vector<32xf32>
    %127 = vector.multi_reduction <add>, %126, %cst_85 [1] : vector<32x64xf32> to vector<32xf32>
    %128 = vector.shape_cast %127 : vector<32xf32> to vector<32x1xf32>
    %cst_86 = arith.constant 6.400000e+01 : f32
    %129 = vector.broadcast %cst_86 : f32 to vector<32x1xf32>
    %130 = arith.divf %128, %129 : vector<32x1xf32>
    %cst_87 = arith.constant 9.99999974E-6 : f32
    %131 = vector.broadcast %cst_87 : f32 to vector<32x1xf32>
    %132 = arith.addf %130, %131 : vector<32x1xf32>
    %133 = math.rsqrt %132 : vector<32x1xf32>
    %134 = vector.broadcast %133 : vector<32x1xf32> to vector<32x64xf32>
    %135 = arith.mulf %125, %134 : vector<32x64xf32>
    %c0_88 = arith.constant 0 : index
    %c0_89 = arith.constant 0 : index
    %136 = vector.load %arg11[%c0_88, %c0_89] : memref<64x32xf32, #tpu.memory_space<vmem>>, vector<64x32xf32>
    %cst_90 = arith.constant dense<0.000000e+00> : vector<32x32xf32>
    %137 = tpu.matmul %135, %136, %cst_90 {dimension_numbers = #tpu.dot_dimension_numbers<[1], [0], [0], [1], [0, 0, 1, 1], [], []>} : vector<32x64xf32>, vector<64x32xf32>, vector<32x32xf32> -> vector<32x32xf32>
    %c9 = arith.constant 9 : index
    %c0_91 = arith.constant 0 : index
    %c0_92 = arith.constant 0 : index
    %138 = vector.load %arg15[%c9, %c0_91, %c0_92] : memref<39x32x32xf32, #tpu.memory_space<vmem>>, vector<1x32x32xf32>
    %139 = vector.shape_cast %138 : vector<1x32x32xf32> to vector<32x32xf32>
    %cst_93 = arith.constant dense<0.000000e+00> : vector<32x32xf32>
    %140 = tpu.matmul %139, %137, %cst_93 {dimension_numbers = #tpu.dot_dimension_numbers<[1], [0], [0], [1], [0, 0, 1, 1], [], []>} : vector<32x32xf32>, vector<32x32xf32>, vector<32x32xf32> -> vector<32x32xf32>
    %c0_94 = arith.constant 0 : index
    %c0_95 = arith.constant 0 : index
    %141 = vector.load %arg7[%c0_94, %c0_95] : memref<32x32xf32, #tpu.memory_space<vmem>>, vector<32x32xf32>
    %cst_96 = arith.constant dense<0.000000e+00> : vector<32x32xf32>
    %142 = tpu.matmul %140, %141, %cst_96 {dimension_numbers = #tpu.dot_dimension_numbers<[1], [0], [0], [1], [0, 0, 1, 1], [], []>} : vector<32x32xf32>, vector<32x32xf32>, vector<32x32xf32> -> vector<32x32xf32>
    %c10 = arith.constant 10 : index
    %c0_97 = arith.constant 0 : index
    %c0_98 = arith.constant 0 : index
    %143 = vector.load %arg15[%c10, %c0_97, %c0_98] : memref<39x32x32xf32, #tpu.memory_space<vmem>>, vector<1x32x32xf32>
    %144 = vector.shape_cast %143 : vector<1x32x32xf32> to vector<32x32xf32>
    %cst_99 = arith.constant dense<0.000000e+00> : vector<32x32xf32>
    %145 = tpu.matmul %144, %137, %cst_99 {dimension_numbers = #tpu.dot_dimension_numbers<[1], [0], [0], [1], [0, 0, 1, 1], [], []>} : vector<32x32xf32>, vector<32x32xf32>, vector<32x32xf32> -> vector<32x32xf32>
    %146 = arith.addf %142, %145 : vector<32x32xf32>
    %c5_100 = arith.constant 5 : index
    %c0_101 = arith.constant 0 : index
    %c0_102 = arith.constant 0 : index
    %147 = vector.load %arg16[%c5_100, %c0_101, %c0_102] : memref<18x32x128xf32, #tpu.memory_space<vmem>>, vector<1x32x128xf32>
    %148 = vector.shape_cast %147 : vector<1x32x128xf32> to vector<32x128xf32>
    %149 = vector.extract_strided_slice %148 {offsets = [0, 0], sizes = [32, 32], strides = [1, 1]} : vector<32x128xf32> to vector<32x32xf32>
    %150 = arith.addf %146, %149 : vector<32x32xf32>
    %cst_103 = arith.constant 0.000000e+00 : f32
    %151 = vector.broadcast %cst_103 : f32 to vector<32x32xf32>
    %152 = arith.maximumf %150, %151 : vector<32x32xf32>
    %c11 = arith.constant 11 : index
    %c0_104 = arith.constant 0 : index
    %c0_105 = arith.constant 0 : index
    %153 = vector.load %arg15[%c11, %c0_104, %c0_105] : memref<39x32x32xf32, #tpu.memory_space<vmem>>, vector<1x32x32xf32>
    %154 = vector.shape_cast %153 : vector<1x32x32xf32> to vector<32x32xf32>
    %cst_106 = arith.constant dense<0.000000e+00> : vector<32x32xf32>
    %155 = tpu.matmul %154, %152, %cst_106 {dimension_numbers = #tpu.dot_dimension_numbers<[1], [0], [0], [1], [0, 0, 1, 1], [], []>} : vector<32x32xf32>, vector<32x32xf32>, vector<32x32xf32> -> vector<32x32xf32>
    %c0_107 = arith.constant 0 : index
    %c0_108 = arith.constant 0 : index
    %156 = vector.load %arg7[%c0_107, %c0_108] : memref<32x32xf32, #tpu.memory_space<vmem>>, vector<32x32xf32>
    %cst_109 = arith.constant dense<0.000000e+00> : vector<32x32xf32>
    %157 = tpu.matmul %155, %156, %cst_109 {dimension_numbers = #tpu.dot_dimension_numbers<[1], [0], [0], [1], [0, 0, 1, 1], [], []>} : vector<32x32xf32>, vector<32x32xf32>, vector<32x32xf32> -> vector<32x32xf32>
    %c12 = arith.constant 12 : index
    %c0_110 = arith.constant 0 : index
    %c0_111 = arith.constant 0 : index
    %158 = vector.load %arg15[%c12, %c0_110, %c0_111] : memref<39x32x32xf32, #tpu.memory_space<vmem>>, vector<1x32x32xf32>
    %159 = vector.shape_cast %158 : vector<1x32x32xf32> to vector<32x32xf32>
    %cst_112 = arith.constant dense<0.000000e+00> : vector<32x32xf32>
    %160 = tpu.matmul %159, %152, %cst_112 {dimension_numbers = #tpu.dot_dimension_numbers<[1], [0], [0], [1], [0, 0, 1, 1], [], []>} : vector<32x32xf32>, vector<32x32xf32>, vector<32x32xf32> -> vector<32x32xf32>
    %161 = arith.addf %157, %160 : vector<32x32xf32>
    %c6_113 = arith.constant 6 : index
    %c0_114 = arith.constant 0 : index
    %c0_115 = arith.constant 0 : index
    %162 = vector.load %arg16[%c6_113, %c0_114, %c0_115] : memref<18x32x128xf32, #tpu.memory_space<vmem>>, vector<1x32x128xf32>
    %163 = vector.shape_cast %162 : vector<1x32x128xf32> to vector<32x128xf32>
    %164 = vector.extract_strided_slice %163 {offsets = [0, 0], sizes = [32, 32], strides = [1, 1]} : vector<32x128xf32> to vector<32x32xf32>
    %165 = arith.addf %161, %164 : vector<32x32xf32>
    %cst_116 = arith.constant 0.000000e+00 : f32
    %166 = vector.broadcast %cst_116 : f32 to vector<32x32xf32>
    %167 = arith.maximumf %165, %166 : vector<32x32xf32>
    %cst_117 = arith.constant dense<0.000000e+00> : vector<32xf32>
    %168 = vector.multi_reduction <add>, %167, %cst_117 [1] : vector<32x32xf32> to vector<32xf32>
    %169 = vector.shape_cast %168 : vector<32xf32> to vector<32x1xf32>
    %cst_118 = arith.constant 3.200000e+01 : f32
    %170 = vector.broadcast %cst_118 : f32 to vector<32x1xf32>
    %171 = arith.divf %169, %170 : vector<32x1xf32>
    %172 = vector.broadcast %171 : vector<32x1xf32> to vector<32x32xf32>
    %173 = arith.subf %167, %172 : vector<32x32xf32>
    %174 = arith.mulf %173, %173 : vector<32x32xf32>
    %cst_119 = arith.constant dense<0.000000e+00> : vector<32xf32>
    %175 = vector.multi_reduction <add>, %174, %cst_119 [1] : vector<32x32xf32> to vector<32xf32>
    %176 = vector.shape_cast %175 : vector<32xf32> to vector<32x1xf32>
    %cst_120 = arith.constant 3.200000e+01 : f32
    %177 = vector.broadcast %cst_120 : f32 to vector<32x1xf32>
    %178 = arith.divf %176, %177 : vector<32x1xf32>
    %cst_121 = arith.constant 9.99999974E-6 : f32
    %179 = vector.broadcast %cst_121 : f32 to vector<32x1xf32>
    %180 = arith.addf %178, %179 : vector<32x1xf32>
    %181 = math.rsqrt %180 : vector<32x1xf32>
    %182 = vector.broadcast %181 : vector<32x1xf32> to vector<32x32xf32>
    %183 = arith.mulf %173, %182 : vector<32x32xf32>
    %c0_122 = arith.constant 0 : index
    %c0_123 = arith.constant 0 : index
    %184 = vector.load %arg13[%c0_122, %c0_123] : memref<32x16xf32, #tpu.memory_space<vmem>>, vector<32x16xf32>
    %cst_124 = arith.constant dense<0.000000e+00> : vector<32x16xf32>
    %185 = tpu.matmul %183, %184, %cst_124 {dimension_numbers = #tpu.dot_dimension_numbers<[1], [0], [0], [1], [0, 0, 1, 1], [], []>} : vector<32x32xf32>, vector<32x16xf32>, vector<32x16xf32> -> vector<32x16xf32>
    %c13 = arith.constant 13 : index
    %c0_125 = arith.constant 0 : index
    %c0_126 = arith.constant 0 : index
    %186 = vector.load %arg15[%c13, %c0_125, %c0_126] : memref<39x32x32xf32, #tpu.memory_space<vmem>>, vector<1x32x32xf32>
    %187 = vector.shape_cast %186 : vector<1x32x32xf32> to vector<32x32xf32>
    %cst_127 = arith.constant dense<0.000000e+00> : vector<32x16xf32>
    %188 = tpu.matmul %187, %185, %cst_127 {dimension_numbers = #tpu.dot_dimension_numbers<[1], [0], [0], [1], [0, 0, 1, 1], [], []>} : vector<32x32xf32>, vector<32x16xf32>, vector<32x16xf32> -> vector<32x16xf32>
    %c0_128 = arith.constant 0 : index
    %c0_129 = arith.constant 0 : index
    %189 = vector.load %arg8[%c0_128, %c0_129] : memref<16x16xf32, #tpu.memory_space<vmem>>, vector<16x16xf32>
    %cst_130 = arith.constant dense<0.000000e+00> : vector<32x16xf32>
    %190 = tpu.matmul %188, %189, %cst_130 {dimension_numbers = #tpu.dot_dimension_numbers<[1], [0], [0], [1], [0, 0, 1, 1], [], []>} : vector<32x16xf32>, vector<16x16xf32>, vector<32x16xf32> -> vector<32x16xf32>
    %c14 = arith.constant 14 : index
    %c0_131 = arith.constant 0 : index
    %c0_132 = arith.constant 0 : index
    %191 = vector.load %arg15[%c14, %c0_131, %c0_132] : memref<39x32x32xf32, #tpu.memory_space<vmem>>, vector<1x32x32xf32>
    %192 = vector.shape_cast %191 : vector<1x32x32xf32> to vector<32x32xf32>
    %cst_133 = arith.constant dense<0.000000e+00> : vector<32x16xf32>
    %193 = tpu.matmul %192, %185, %cst_133 {dimension_numbers = #tpu.dot_dimension_numbers<[1], [0], [0], [1], [0, 0, 1, 1], [], []>} : vector<32x32xf32>, vector<32x16xf32>, vector<32x16xf32> -> vector<32x16xf32>
    %194 = arith.addf %190, %193 : vector<32x16xf32>
    %c7_134 = arith.constant 7 : index
    %c0_135 = arith.constant 0 : index
    %c0_136 = arith.constant 0 : index
    %195 = vector.load %arg16[%c7_134, %c0_135, %c0_136] : memref<18x32x128xf32, #tpu.memory_space<vmem>>, vector<1x32x128xf32>
    %196 = vector.shape_cast %195 : vector<1x32x128xf32> to vector<32x128xf32>
    %197 = vector.extract_strided_slice %196 {offsets = [0, 0], sizes = [32, 16], strides = [1, 1]} : vector<32x128xf32> to vector<32x16xf32>
    %198 = arith.addf %194, %197 : vector<32x16xf32>
    %cst_137 = arith.constant 0.000000e+00 : f32
    %199 = vector.broadcast %cst_137 : f32 to vector<32x16xf32>
    %200 = arith.maximumf %198, %199 : vector<32x16xf32>
    %c15 = arith.constant 15 : index
    %c0_138 = arith.constant 0 : index
    %c0_139 = arith.constant 0 : index
    %201 = vector.load %arg15[%c15, %c0_138, %c0_139] : memref<39x32x32xf32, #tpu.memory_space<vmem>>, vector<1x32x32xf32>
    %202 = vector.shape_cast %201 : vector<1x32x32xf32> to vector<32x32xf32>
    %cst_140 = arith.constant dense<0.000000e+00> : vector<32x16xf32>
    %203 = tpu.matmul %202, %200, %cst_140 {dimension_numbers = #tpu.dot_dimension_numbers<[1], [0], [0], [1], [0, 0, 1, 1], [], []>} : vector<32x32xf32>, vector<32x16xf32>, vector<32x16xf32> -> vector<32x16xf32>
    %c0_141 = arith.constant 0 : index
    %c0_142 = arith.constant 0 : index
    %204 = vector.load %arg8[%c0_141, %c0_142] : memref<16x16xf32, #tpu.memory_space<vmem>>, vector<16x16xf32>
    %cst_143 = arith.constant dense<0.000000e+00> : vector<32x16xf32>
    %205 = tpu.matmul %203, %204, %cst_143 {dimension_numbers = #tpu.dot_dimension_numbers<[1], [0], [0], [1], [0, 0, 1, 1], [], []>} : vector<32x16xf32>, vector<16x16xf32>, vector<32x16xf32> -> vector<32x16xf32>
    %c16 = arith.constant 16 : index
    %c0_144 = arith.constant 0 : index
    %c0_145 = arith.constant 0 : index
    %206 = vector.load %arg15[%c16, %c0_144, %c0_145] : memref<39x32x32xf32, #tpu.memory_space<vmem>>, vector<1x32x32xf32>
    %207 = vector.shape_cast %206 : vector<1x32x32xf32> to vector<32x32xf32>
    %cst_146 = arith.constant dense<0.000000e+00> : vector<32x16xf32>
    %208 = tpu.matmul %207, %200, %cst_146 {dimension_numbers = #tpu.dot_dimension_numbers<[1], [0], [0], [1], [0, 0, 1, 1], [], []>} : vector<32x32xf32>, vector<32x16xf32>, vector<32x16xf32> -> vector<32x16xf32>
    %209 = arith.addf %205, %208 : vector<32x16xf32>
    %c8_147 = arith.constant 8 : index
    %c0_148 = arith.constant 0 : index
    %c0_149 = arith.constant 0 : index
    %210 = vector.load %arg16[%c8_147, %c0_148, %c0_149] : memref<18x32x128xf32, #tpu.memory_space<vmem>>, vector<1x32x128xf32>
    %211 = vector.shape_cast %210 : vector<1x32x128xf32> to vector<32x128xf32>
    %212 = vector.extract_strided_slice %211 {offsets = [0, 0], sizes = [32, 16], strides = [1, 1]} : vector<32x128xf32> to vector<32x16xf32>
    %213 = arith.addf %209, %212 : vector<32x16xf32>
    %cst_150 = arith.constant 0.000000e+00 : f32
    %214 = vector.broadcast %cst_150 : f32 to vector<32x16xf32>
    %215 = arith.maximumf %213, %214 : vector<32x16xf32>
    %c17 = arith.constant 17 : index
    %c0_151 = arith.constant 0 : index
    %c0_152 = arith.constant 0 : index
    %216 = vector.load %arg15[%c17, %c0_151, %c0_152] : memref<39x32x32xf32, #tpu.memory_space<vmem>>, vector<1x32x32xf32>
    %217 = vector.shape_cast %216 : vector<1x32x32xf32> to vector<32x32xf32>
    %cst_153 = arith.constant dense<0.000000e+00> : vector<32x16xf32>
    %218 = tpu.matmul %217, %215, %cst_153 {dimension_numbers = #tpu.dot_dimension_numbers<[1], [0], [0], [1], [0, 0, 1, 1], [], []>} : vector<32x32xf32>, vector<32x16xf32>, vector<32x16xf32> -> vector<32x16xf32>
    %c0_154 = arith.constant 0 : index
    %c0_155 = arith.constant 0 : index
    %219 = vector.load %arg8[%c0_154, %c0_155] : memref<16x16xf32, #tpu.memory_space<vmem>>, vector<16x16xf32>
    %cst_156 = arith.constant dense<0.000000e+00> : vector<32x16xf32>
    %220 = tpu.matmul %218, %219, %cst_156 {dimension_numbers = #tpu.dot_dimension_numbers<[1], [0], [0], [1], [0, 0, 1, 1], [], []>} : vector<32x16xf32>, vector<16x16xf32>, vector<32x16xf32> -> vector<32x16xf32>
    %c18 = arith.constant 18 : index
    %c0_157 = arith.constant 0 : index
    %c0_158 = arith.constant 0 : index
    %221 = vector.load %arg15[%c18, %c0_157, %c0_158] : memref<39x32x32xf32, #tpu.memory_space<vmem>>, vector<1x32x32xf32>
    %222 = vector.shape_cast %221 : vector<1x32x32xf32> to vector<32x32xf32>
    %cst_159 = arith.constant dense<0.000000e+00> : vector<32x16xf32>
    %223 = tpu.matmul %222, %215, %cst_159 {dimension_numbers = #tpu.dot_dimension_numbers<[1], [0], [0], [1], [0, 0, 1, 1], [], []>} : vector<32x32xf32>, vector<32x16xf32>, vector<32x16xf32> -> vector<32x16xf32>
    %224 = arith.addf %220, %223 : vector<32x16xf32>
    %c9_160 = arith.constant 9 : index
    %c0_161 = arith.constant 0 : index
    %c0_162 = arith.constant 0 : index
    %225 = vector.load %arg16[%c9_160, %c0_161, %c0_162] : memref<18x32x128xf32, #tpu.memory_space<vmem>>, vector<1x32x128xf32>
    %226 = vector.shape_cast %225 : vector<1x32x128xf32> to vector<32x128xf32>
    %227 = vector.extract_strided_slice %226 {offsets = [0, 0], sizes = [32, 16], strides = [1, 1]} : vector<32x128xf32> to vector<32x16xf32>
    %228 = arith.addf %224, %227 : vector<32x16xf32>
    %cst_163 = arith.constant 0.000000e+00 : f32
    %229 = vector.broadcast %cst_163 : f32 to vector<32x16xf32>
    %230 = arith.maximumf %228, %229 : vector<32x16xf32>
    %c19 = arith.constant 19 : index
    %c0_164 = arith.constant 0 : index
    %c0_165 = arith.constant 0 : index
    %231 = vector.load %arg15[%c19, %c0_164, %c0_165] : memref<39x32x32xf32, #tpu.memory_space<vmem>>, vector<1x32x32xf32>
    %232 = vector.shape_cast %231 : vector<1x32x32xf32> to vector<32x32xf32>
    %cst_166 = arith.constant dense<0.000000e+00> : vector<32x16xf32>
    %233 = tpu.matmul %232, %230, %cst_166 {dimension_numbers = #tpu.dot_dimension_numbers<[1], [0], [0], [1], [0, 0, 1, 1], [], []>} : vector<32x32xf32>, vector<32x16xf32>, vector<32x16xf32> -> vector<32x16xf32>
    %c0_167 = arith.constant 0 : index
    %c0_168 = arith.constant 0 : index
    %234 = vector.load %arg8[%c0_167, %c0_168] : memref<16x16xf32, #tpu.memory_space<vmem>>, vector<16x16xf32>
    %cst_169 = arith.constant dense<0.000000e+00> : vector<32x16xf32>
    %235 = tpu.matmul %233, %234, %cst_169 {dimension_numbers = #tpu.dot_dimension_numbers<[1], [0], [0], [1], [0, 0, 1, 1], [], []>} : vector<32x16xf32>, vector<16x16xf32>, vector<32x16xf32> -> vector<32x16xf32>
    %c20 = arith.constant 20 : index
    %c0_170 = arith.constant 0 : index
    %c0_171 = arith.constant 0 : index
    %236 = vector.load %arg15[%c20, %c0_170, %c0_171] : memref<39x32x32xf32, #tpu.memory_space<vmem>>, vector<1x32x32xf32>
    %237 = vector.shape_cast %236 : vector<1x32x32xf32> to vector<32x32xf32>
    %cst_172 = arith.constant dense<0.000000e+00> : vector<32x16xf32>
    %238 = tpu.matmul %237, %230, %cst_172 {dimension_numbers = #tpu.dot_dimension_numbers<[1], [0], [0], [1], [0, 0, 1, 1], [], []>} : vector<32x32xf32>, vector<32x16xf32>, vector<32x16xf32> -> vector<32x16xf32>
    %239 = arith.addf %235, %238 : vector<32x16xf32>
    %c10_173 = arith.constant 10 : index
    %c0_174 = arith.constant 0 : index
    %c0_175 = arith.constant 0 : index
    %240 = vector.load %arg16[%c10_173, %c0_174, %c0_175] : memref<18x32x128xf32, #tpu.memory_space<vmem>>, vector<1x32x128xf32>
    %241 = vector.shape_cast %240 : vector<1x32x128xf32> to vector<32x128xf32>
    %242 = vector.extract_strided_slice %241 {offsets = [0, 0], sizes = [32, 16], strides = [1, 1]} : vector<32x128xf32> to vector<32x16xf32>
    %243 = arith.addf %239, %242 : vector<32x16xf32>
    %cst_176 = arith.constant 0.000000e+00 : f32
    %244 = vector.broadcast %cst_176 : f32 to vector<32x16xf32>
    %245 = arith.maximumf %243, %244 : vector<32x16xf32>
    %c0_177 = arith.constant 0 : index
    %c0_178 = arith.constant 0 : index
    %246 = vector.load %arg14[%c0_177, %c0_178] : memref<16x32xf32, #tpu.memory_space<vmem>>, vector<16x32xf32>
    %cst_179 = arith.constant dense<0.000000e+00> : vector<32x32xf32>
    %247 = tpu.matmul %245, %246, %cst_179 {dimension_numbers = #tpu.dot_dimension_numbers<[1], [0], [0], [1], [0, 0, 1, 1], [], []>} : vector<32x16xf32>, vector<16x32xf32>, vector<32x32xf32> -> vector<32x32xf32>
    %cst_180 = arith.constant dense<0.000000e+00> : vector<32xf32>
    %248 = vector.multi_reduction <add>, %247, %cst_180 [1] : vector<32x32xf32> to vector<32xf32>
    %249 = vector.shape_cast %248 : vector<32xf32> to vector<32x1xf32>
    %cst_181 = arith.constant 3.200000e+01 : f32
    %250 = vector.broadcast %cst_181 : f32 to vector<32x1xf32>
    %251 = arith.divf %249, %250 : vector<32x1xf32>
    %252 = vector.broadcast %251 : vector<32x1xf32> to vector<32x32xf32>
    %253 = arith.subf %247, %252 : vector<32x32xf32>
    %254 = arith.mulf %253, %253 : vector<32x32xf32>
    %cst_182 = arith.constant dense<0.000000e+00> : vector<32xf32>
    %255 = vector.multi_reduction <add>, %254, %cst_182 [1] : vector<32x32xf32> to vector<32xf32>
    %256 = vector.shape_cast %255 : vector<32xf32> to vector<32x1xf32>
    %cst_183 = arith.constant 3.200000e+01 : f32
    %257 = vector.broadcast %cst_183 : f32 to vector<32x1xf32>
    %258 = arith.divf %256, %257 : vector<32x1xf32>
    %cst_184 = arith.constant 9.99999974E-6 : f32
    %259 = vector.broadcast %cst_184 : f32 to vector<32x1xf32>
    %260 = arith.addf %258, %259 : vector<32x1xf32>
    %261 = math.rsqrt %260 : vector<32x1xf32>
    %262 = vector.broadcast %261 : vector<32x1xf32> to vector<32x32xf32>
    %263 = arith.mulf %253, %262 : vector<32x32xf32>
    %c21 = arith.constant 21 : index
    %c0_185 = arith.constant 0 : index
    %c0_186 = arith.constant 0 : index
    %264 = vector.load %arg15[%c21, %c0_185, %c0_186] : memref<39x32x32xf32, #tpu.memory_space<vmem>>, vector<1x32x32xf32>
    %265 = vector.shape_cast %264 : vector<1x32x32xf32> to vector<32x32xf32>
    %cst_187 = arith.constant dense<0.000000e+00> : vector<32x32xf32>
    %266 = tpu.matmul %265, %263, %cst_187 {dimension_numbers = #tpu.dot_dimension_numbers<[1], [0], [0], [1], [0, 0, 1, 1], [], []>} : vector<32x32xf32>, vector<32x32xf32>, vector<32x32xf32> -> vector<32x32xf32>
    %c22 = arith.constant 22 : index
    %c0_188 = arith.constant 0 : index
    %c0_189 = arith.constant 0 : index
    %267 = vector.load %arg15[%c22, %c0_188, %c0_189] : memref<39x32x32xf32, #tpu.memory_space<vmem>>, vector<1x32x32xf32>
    %268 = vector.shape_cast %267 : vector<1x32x32xf32> to vector<32x32xf32>
    %cst_190 = arith.constant dense<0.000000e+00> : vector<32x32xf32>
    %269 = tpu.matmul %268, %183, %cst_190 {dimension_numbers = #tpu.dot_dimension_numbers<[1], [0], [0], [1], [0, 0, 1, 1], [], []>} : vector<32x32xf32>, vector<32x32xf32>, vector<32x32xf32> -> vector<32x32xf32>
    %270 = arith.addf %266, %269 : vector<32x32xf32>
    %c0_191 = arith.constant 0 : index
    %c0_192 = arith.constant 0 : index
    %271 = vector.load %arg7[%c0_191, %c0_192] : memref<32x32xf32, #tpu.memory_space<vmem>>, vector<32x32xf32>
    %cst_193 = arith.constant dense<0.000000e+00> : vector<32x32xf32>
    %272 = tpu.matmul %270, %271, %cst_193 {dimension_numbers = #tpu.dot_dimension_numbers<[1], [0], [0], [1], [0, 0, 1, 1], [], []>} : vector<32x32xf32>, vector<32x32xf32>, vector<32x32xf32> -> vector<32x32xf32>
    %c23 = arith.constant 23 : index
    %c0_194 = arith.constant 0 : index
    %c0_195 = arith.constant 0 : index
    %273 = vector.load %arg15[%c23, %c0_194, %c0_195] : memref<39x32x32xf32, #tpu.memory_space<vmem>>, vector<1x32x32xf32>
    %274 = vector.shape_cast %273 : vector<1x32x32xf32> to vector<32x32xf32>
    %cst_196 = arith.constant dense<0.000000e+00> : vector<32x32xf32>
    %275 = tpu.matmul %274, %263, %cst_196 {dimension_numbers = #tpu.dot_dimension_numbers<[1], [0], [0], [1], [0, 0, 1, 1], [], []>} : vector<32x32xf32>, vector<32x32xf32>, vector<32x32xf32> -> vector<32x32xf32>
    %276 = arith.addf %272, %275 : vector<32x32xf32>
    %c24 = arith.constant 24 : index
    %c0_197 = arith.constant 0 : index
    %c0_198 = arith.constant 0 : index
    %277 = vector.load %arg15[%c24, %c0_197, %c0_198] : memref<39x32x32xf32, #tpu.memory_space<vmem>>, vector<1x32x32xf32>
    %278 = vector.shape_cast %277 : vector<1x32x32xf32> to vector<32x32xf32>
    %cst_199 = arith.constant dense<0.000000e+00> : vector<32x32xf32>
    %279 = tpu.matmul %278, %183, %cst_199 {dimension_numbers = #tpu.dot_dimension_numbers<[1], [0], [0], [1], [0, 0, 1, 1], [], []>} : vector<32x32xf32>, vector<32x32xf32>, vector<32x32xf32> -> vector<32x32xf32>
    %280 = arith.addf %276, %279 : vector<32x32xf32>
    %c11_200 = arith.constant 11 : index
    %c0_201 = arith.constant 0 : index
    %c0_202 = arith.constant 0 : index
    %281 = vector.load %arg16[%c11_200, %c0_201, %c0_202] : memref<18x32x128xf32, #tpu.memory_space<vmem>>, vector<1x32x128xf32>
    %282 = vector.shape_cast %281 : vector<1x32x128xf32> to vector<32x128xf32>
    %283 = vector.extract_strided_slice %282 {offsets = [0, 0], sizes = [32, 32], strides = [1, 1]} : vector<32x128xf32> to vector<32x32xf32>
    %284 = arith.addf %280, %283 : vector<32x32xf32>
    %cst_203 = arith.constant 0.000000e+00 : f32
    %285 = vector.broadcast %cst_203 : f32 to vector<32x32xf32>
    %286 = arith.maximumf %284, %285 : vector<32x32xf32>
    %c25 = arith.constant 25 : index
    %c0_204 = arith.constant 0 : index
    %c0_205 = arith.constant 0 : index
    %287 = vector.load %arg15[%c25, %c0_204, %c0_205] : memref<39x32x32xf32, #tpu.memory_space<vmem>>, vector<1x32x32xf32>
    %288 = vector.shape_cast %287 : vector<1x32x32xf32> to vector<32x32xf32>
    %cst_206 = arith.constant dense<0.000000e+00> : vector<32x32xf32>
    %289 = tpu.matmul %288, %286, %cst_206 {dimension_numbers = #tpu.dot_dimension_numbers<[1], [0], [0], [1], [0, 0, 1, 1], [], []>} : vector<32x32xf32>, vector<32x32xf32>, vector<32x32xf32> -> vector<32x32xf32>
    %c0_207 = arith.constant 0 : index
    %c0_208 = arith.constant 0 : index
    %290 = vector.load %arg7[%c0_207, %c0_208] : memref<32x32xf32, #tpu.memory_space<vmem>>, vector<32x32xf32>
    %cst_209 = arith.constant dense<0.000000e+00> : vector<32x32xf32>
    %291 = tpu.matmul %289, %290, %cst_209 {dimension_numbers = #tpu.dot_dimension_numbers<[1], [0], [0], [1], [0, 0, 1, 1], [], []>} : vector<32x32xf32>, vector<32x32xf32>, vector<32x32xf32> -> vector<32x32xf32>
    %c26 = arith.constant 26 : index
    %c0_210 = arith.constant 0 : index
    %c0_211 = arith.constant 0 : index
    %292 = vector.load %arg15[%c26, %c0_210, %c0_211] : memref<39x32x32xf32, #tpu.memory_space<vmem>>, vector<1x32x32xf32>
    %293 = vector.shape_cast %292 : vector<1x32x32xf32> to vector<32x32xf32>
    %cst_212 = arith.constant dense<0.000000e+00> : vector<32x32xf32>
    %294 = tpu.matmul %293, %286, %cst_212 {dimension_numbers = #tpu.dot_dimension_numbers<[1], [0], [0], [1], [0, 0, 1, 1], [], []>} : vector<32x32xf32>, vector<32x32xf32>, vector<32x32xf32> -> vector<32x32xf32>
    %295 = arith.addf %291, %294 : vector<32x32xf32>
    %c12_213 = arith.constant 12 : index
    %c0_214 = arith.constant 0 : index
    %c0_215 = arith.constant 0 : index
    %296 = vector.load %arg16[%c12_213, %c0_214, %c0_215] : memref<18x32x128xf32, #tpu.memory_space<vmem>>, vector<1x32x128xf32>
    %297 = vector.shape_cast %296 : vector<1x32x128xf32> to vector<32x128xf32>
    %298 = vector.extract_strided_slice %297 {offsets = [0, 0], sizes = [32, 32], strides = [1, 1]} : vector<32x128xf32> to vector<32x32xf32>
    %299 = arith.addf %295, %298 : vector<32x32xf32>
    %cst_216 = arith.constant 0.000000e+00 : f32
    %300 = vector.broadcast %cst_216 : f32 to vector<32x32xf32>
    %301 = arith.maximumf %299, %300 : vector<32x32xf32>
    %c0_217 = arith.constant 0 : index
    %c0_218 = arith.constant 0 : index
    %302 = vector.load %arg12[%c0_217, %c0_218] : memref<32x64xf32, #tpu.memory_space<vmem>>, vector<32x64xf32>
    %cst_219 = arith.constant dense<0.000000e+00> : vector<32x64xf32>
    %303 = tpu.matmul %301, %302, %cst_219 {dimension_numbers = #tpu.dot_dimension_numbers<[1], [0], [0], [1], [0, 0, 1, 1], [], []>} : vector<32x32xf32>, vector<32x64xf32>, vector<32x64xf32> -> vector<32x64xf32>
    %cst_220 = arith.constant dense<0.000000e+00> : vector<32xf32>
    %304 = vector.multi_reduction <add>, %303, %cst_220 [1] : vector<32x64xf32> to vector<32xf32>
    %305 = vector.shape_cast %304 : vector<32xf32> to vector<32x1xf32>
    %cst_221 = arith.constant 6.400000e+01 : f32
    %306 = vector.broadcast %cst_221 : f32 to vector<32x1xf32>
    %307 = arith.divf %305, %306 : vector<32x1xf32>
    %308 = vector.broadcast %307 : vector<32x1xf32> to vector<32x64xf32>
    %309 = arith.subf %303, %308 : vector<32x64xf32>
    %310 = arith.mulf %309, %309 : vector<32x64xf32>
    %cst_222 = arith.constant dense<0.000000e+00> : vector<32xf32>
    %311 = vector.multi_reduction <add>, %310, %cst_222 [1] : vector<32x64xf32> to vector<32xf32>
    %312 = vector.shape_cast %311 : vector<32xf32> to vector<32x1xf32>
    %cst_223 = arith.constant 6.400000e+01 : f32
    %313 = vector.broadcast %cst_223 : f32 to vector<32x1xf32>
    %314 = arith.divf %312, %313 : vector<32x1xf32>
    %cst_224 = arith.constant 9.99999974E-6 : f32
    %315 = vector.broadcast %cst_224 : f32 to vector<32x1xf32>
    %316 = arith.addf %314, %315 : vector<32x1xf32>
    %317 = math.rsqrt %316 : vector<32x1xf32>
    %318 = vector.broadcast %317 : vector<32x1xf32> to vector<32x64xf32>
    %319 = arith.mulf %309, %318 : vector<32x64xf32>
    %c27 = arith.constant 27 : index
    %c0_225 = arith.constant 0 : index
    %c0_226 = arith.constant 0 : index
    %320 = vector.load %arg15[%c27, %c0_225, %c0_226] : memref<39x32x32xf32, #tpu.memory_space<vmem>>, vector<1x32x32xf32>
    %321 = vector.shape_cast %320 : vector<1x32x32xf32> to vector<32x32xf32>
    %cst_227 = arith.constant dense<0.000000e+00> : vector<32x64xf32>
    %322 = tpu.matmul %321, %319, %cst_227 {dimension_numbers = #tpu.dot_dimension_numbers<[1], [0], [0], [1], [0, 0, 1, 1], [], []>} : vector<32x32xf32>, vector<32x64xf32>, vector<32x64xf32> -> vector<32x64xf32>
    %c28 = arith.constant 28 : index
    %c0_228 = arith.constant 0 : index
    %c0_229 = arith.constant 0 : index
    %323 = vector.load %arg15[%c28, %c0_228, %c0_229] : memref<39x32x32xf32, #tpu.memory_space<vmem>>, vector<1x32x32xf32>
    %324 = vector.shape_cast %323 : vector<1x32x32xf32> to vector<32x32xf32>
    %cst_230 = arith.constant dense<0.000000e+00> : vector<32x64xf32>
    %325 = tpu.matmul %324, %135, %cst_230 {dimension_numbers = #tpu.dot_dimension_numbers<[1], [0], [0], [1], [0, 0, 1, 1], [], []>} : vector<32x32xf32>, vector<32x64xf32>, vector<32x64xf32> -> vector<32x64xf32>
    %326 = arith.addf %322, %325 : vector<32x64xf32>
    %c0_231 = arith.constant 0 : index
    %c0_232 = arith.constant 0 : index
    %327 = vector.load %arg6[%c0_231, %c0_232] : memref<64x64xf32, #tpu.memory_space<vmem>>, vector<64x64xf32>
    %cst_233 = arith.constant dense<0.000000e+00> : vector<32x64xf32>
    %328 = tpu.matmul %326, %327, %cst_233 {dimension_numbers = #tpu.dot_dimension_numbers<[1], [0], [0], [1], [0, 0, 1, 1], [], []>} : vector<32x64xf32>, vector<64x64xf32>, vector<32x64xf32> -> vector<32x64xf32>
    %c29 = arith.constant 29 : index
    %c0_234 = arith.constant 0 : index
    %c0_235 = arith.constant 0 : index
    %329 = vector.load %arg15[%c29, %c0_234, %c0_235] : memref<39x32x32xf32, #tpu.memory_space<vmem>>, vector<1x32x32xf32>
    %330 = vector.shape_cast %329 : vector<1x32x32xf32> to vector<32x32xf32>
    %cst_236 = arith.constant dense<0.000000e+00> : vector<32x64xf32>
    %331 = tpu.matmul %330, %319, %cst_236 {dimension_numbers = #tpu.dot_dimension_numbers<[1], [0], [0], [1], [0, 0, 1, 1], [], []>} : vector<32x32xf32>, vector<32x64xf32>, vector<32x64xf32> -> vector<32x64xf32>
    %332 = arith.addf %328, %331 : vector<32x64xf32>
    %c30 = arith.constant 30 : index
    %c0_237 = arith.constant 0 : index
    %c0_238 = arith.constant 0 : index
    %333 = vector.load %arg15[%c30, %c0_237, %c0_238] : memref<39x32x32xf32, #tpu.memory_space<vmem>>, vector<1x32x32xf32>
    %334 = vector.shape_cast %333 : vector<1x32x32xf32> to vector<32x32xf32>
    %cst_239 = arith.constant dense<0.000000e+00> : vector<32x64xf32>
    %335 = tpu.matmul %334, %135, %cst_239 {dimension_numbers = #tpu.dot_dimension_numbers<[1], [0], [0], [1], [0, 0, 1, 1], [], []>} : vector<32x32xf32>, vector<32x64xf32>, vector<32x64xf32> -> vector<32x64xf32>
    %336 = arith.addf %332, %335 : vector<32x64xf32>
    %c13_240 = arith.constant 13 : index
    %c0_241 = arith.constant 0 : index
    %c0_242 = arith.constant 0 : index
    %337 = vector.load %arg16[%c13_240, %c0_241, %c0_242] : memref<18x32x128xf32, #tpu.memory_space<vmem>>, vector<1x32x128xf32>
    %338 = vector.shape_cast %337 : vector<1x32x128xf32> to vector<32x128xf32>
    %339 = vector.extract_strided_slice %338 {offsets = [0, 0], sizes = [32, 64], strides = [1, 1]} : vector<32x128xf32> to vector<32x64xf32>
    %340 = arith.addf %336, %339 : vector<32x64xf32>
    %cst_243 = arith.constant 0.000000e+00 : f32
    %341 = vector.broadcast %cst_243 : f32 to vector<32x64xf32>
    %342 = arith.maximumf %340, %341 : vector<32x64xf32>
    %c31 = arith.constant 31 : index
    %c0_244 = arith.constant 0 : index
    %c0_245 = arith.constant 0 : index
    %343 = vector.load %arg15[%c31, %c0_244, %c0_245] : memref<39x32x32xf32, #tpu.memory_space<vmem>>, vector<1x32x32xf32>
    %344 = vector.shape_cast %343 : vector<1x32x32xf32> to vector<32x32xf32>
    %cst_246 = arith.constant dense<0.000000e+00> : vector<32x64xf32>
    %345 = tpu.matmul %344, %342, %cst_246 {dimension_numbers = #tpu.dot_dimension_numbers<[1], [0], [0], [1], [0, 0, 1, 1], [], []>} : vector<32x32xf32>, vector<32x64xf32>, vector<32x64xf32> -> vector<32x64xf32>
    %c0_247 = arith.constant 0 : index
    %c0_248 = arith.constant 0 : index
    %346 = vector.load %arg6[%c0_247, %c0_248] : memref<64x64xf32, #tpu.memory_space<vmem>>, vector<64x64xf32>
    %cst_249 = arith.constant dense<0.000000e+00> : vector<32x64xf32>
    %347 = tpu.matmul %345, %346, %cst_249 {dimension_numbers = #tpu.dot_dimension_numbers<[1], [0], [0], [1], [0, 0, 1, 1], [], []>} : vector<32x64xf32>, vector<64x64xf32>, vector<32x64xf32> -> vector<32x64xf32>
    %c32 = arith.constant 32 : index
    %c0_250 = arith.constant 0 : index
    %c0_251 = arith.constant 0 : index
    %348 = vector.load %arg15[%c32, %c0_250, %c0_251] : memref<39x32x32xf32, #tpu.memory_space<vmem>>, vector<1x32x32xf32>
    %349 = vector.shape_cast %348 : vector<1x32x32xf32> to vector<32x32xf32>
    %cst_252 = arith.constant dense<0.000000e+00> : vector<32x64xf32>
    %350 = tpu.matmul %349, %342, %cst_252 {dimension_numbers = #tpu.dot_dimension_numbers<[1], [0], [0], [1], [0, 0, 1, 1], [], []>} : vector<32x32xf32>, vector<32x64xf32>, vector<32x64xf32> -> vector<32x64xf32>
    %351 = arith.addf %347, %350 : vector<32x64xf32>
    %c14_253 = arith.constant 14 : index
    %c0_254 = arith.constant 0 : index
    %c0_255 = arith.constant 0 : index
    %352 = vector.load %arg16[%c14_253, %c0_254, %c0_255] : memref<18x32x128xf32, #tpu.memory_space<vmem>>, vector<1x32x128xf32>
    %353 = vector.shape_cast %352 : vector<1x32x128xf32> to vector<32x128xf32>
    %354 = vector.extract_strided_slice %353 {offsets = [0, 0], sizes = [32, 64], strides = [1, 1]} : vector<32x128xf32> to vector<32x64xf32>
    %355 = arith.addf %351, %354 : vector<32x64xf32>
    %cst_256 = arith.constant 0.000000e+00 : f32
    %356 = vector.broadcast %cst_256 : f32 to vector<32x64xf32>
    %357 = arith.maximumf %355, %356 : vector<32x64xf32>
    %c0_257 = arith.constant 0 : index
    %c0_258 = arith.constant 0 : index
    %358 = vector.load %arg10[%c0_257, %c0_258] : memref<64x128xf32, #tpu.memory_space<vmem>>, vector<64x128xf32>
    %cst_259 = arith.constant dense<0.000000e+00> : vector<32x128xf32>
    %359 = tpu.matmul %357, %358, %cst_259 {dimension_numbers = #tpu.dot_dimension_numbers<[1], [0], [0], [1], [0, 0, 1, 1], [], []>} : vector<32x64xf32>, vector<64x128xf32>, vector<32x128xf32> -> vector<32x128xf32>
    %cst_260 = arith.constant dense<0.000000e+00> : vector<32xf32>
    %360 = vector.multi_reduction <add>, %359, %cst_260 [1] : vector<32x128xf32> to vector<32xf32>
    %361 = vector.shape_cast %360 : vector<32xf32> to vector<32x1xf32>
    %cst_261 = arith.constant 1.280000e+02 : f32
    %362 = vector.broadcast %cst_261 : f32 to vector<32x1xf32>
    %363 = arith.divf %361, %362 : vector<32x1xf32>
    %364 = vector.broadcast %363 : vector<32x1xf32> to vector<32x128xf32>
    %365 = arith.subf %359, %364 : vector<32x128xf32>
    %366 = arith.mulf %365, %365 : vector<32x128xf32>
    %cst_262 = arith.constant dense<0.000000e+00> : vector<32xf32>
    %367 = vector.multi_reduction <add>, %366, %cst_262 [1] : vector<32x128xf32> to vector<32xf32>
    %368 = vector.shape_cast %367 : vector<32xf32> to vector<32x1xf32>
    %cst_263 = arith.constant 1.280000e+02 : f32
    %369 = vector.broadcast %cst_263 : f32 to vector<32x1xf32>
    %370 = arith.divf %368, %369 : vector<32x1xf32>
    %cst_264 = arith.constant 9.99999974E-6 : f32
    %371 = vector.broadcast %cst_264 : f32 to vector<32x1xf32>
    %372 = arith.addf %370, %371 : vector<32x1xf32>
    %373 = math.rsqrt %372 : vector<32x1xf32>
    %374 = vector.broadcast %373 : vector<32x1xf32> to vector<32x128xf32>
    %375 = arith.mulf %365, %374 : vector<32x128xf32>
    %c33 = arith.constant 33 : index
    %c0_265 = arith.constant 0 : index
    %c0_266 = arith.constant 0 : index
    %376 = vector.load %arg15[%c33, %c0_265, %c0_266] : memref<39x32x32xf32, #tpu.memory_space<vmem>>, vector<1x32x32xf32>
    %377 = vector.shape_cast %376 : vector<1x32x32xf32> to vector<32x32xf32>
    %cst_267 = arith.constant dense<0.000000e+00> : vector<32x128xf32>
    %378 = tpu.matmul %377, %375, %cst_267 {dimension_numbers = #tpu.dot_dimension_numbers<[1], [0], [0], [1], [0, 0, 1, 1], [], []>} : vector<32x32xf32>, vector<32x128xf32>, vector<32x128xf32> -> vector<32x128xf32>
    %c34 = arith.constant 34 : index
    %c0_268 = arith.constant 0 : index
    %c0_269 = arith.constant 0 : index
    %379 = vector.load %arg15[%c34, %c0_268, %c0_269] : memref<39x32x32xf32, #tpu.memory_space<vmem>>, vector<1x32x32xf32>
    %380 = vector.shape_cast %379 : vector<1x32x32xf32> to vector<32x32xf32>
    %cst_270 = arith.constant dense<0.000000e+00> : vector<32x128xf32>
    %381 = tpu.matmul %380, %87, %cst_270 {dimension_numbers = #tpu.dot_dimension_numbers<[1], [0], [0], [1], [0, 0, 1, 1], [], []>} : vector<32x32xf32>, vector<32x128xf32>, vector<32x128xf32> -> vector<32x128xf32>
    %382 = arith.addf %378, %381 : vector<32x128xf32>
    %c0_271 = arith.constant 0 : index
    %c0_272 = arith.constant 0 : index
    %383 = vector.load %arg5[%c0_271, %c0_272] : memref<128x128xf32, #tpu.memory_space<vmem>>, vector<128x128xf32>
    %cst_273 = arith.constant dense<0.000000e+00> : vector<32x128xf32>
    %384 = tpu.matmul %382, %383, %cst_273 {dimension_numbers = #tpu.dot_dimension_numbers<[1], [0], [0], [1], [0, 0, 1, 1], [], []>} : vector<32x128xf32>, vector<128x128xf32>, vector<32x128xf32> -> vector<32x128xf32>
    %c35 = arith.constant 35 : index
    %c0_274 = arith.constant 0 : index
    %c0_275 = arith.constant 0 : index
    %385 = vector.load %arg15[%c35, %c0_274, %c0_275] : memref<39x32x32xf32, #tpu.memory_space<vmem>>, vector<1x32x32xf32>
    %386 = vector.shape_cast %385 : vector<1x32x32xf32> to vector<32x32xf32>
    %cst_276 = arith.constant dense<0.000000e+00> : vector<32x128xf32>
    %387 = tpu.matmul %386, %375, %cst_276 {dimension_numbers = #tpu.dot_dimension_numbers<[1], [0], [0], [1], [0, 0, 1, 1], [], []>} : vector<32x32xf32>, vector<32x128xf32>, vector<32x128xf32> -> vector<32x128xf32>
    %388 = arith.addf %384, %387 : vector<32x128xf32>
    %c36 = arith.constant 36 : index
    %c0_277 = arith.constant 0 : index
    %c0_278 = arith.constant 0 : index
    %389 = vector.load %arg15[%c36, %c0_277, %c0_278] : memref<39x32x32xf32, #tpu.memory_space<vmem>>, vector<1x32x32xf32>
    %390 = vector.shape_cast %389 : vector<1x32x32xf32> to vector<32x32xf32>
    %cst_279 = arith.constant dense<0.000000e+00> : vector<32x128xf32>
    %391 = tpu.matmul %390, %87, %cst_279 {dimension_numbers = #tpu.dot_dimension_numbers<[1], [0], [0], [1], [0, 0, 1, 1], [], []>} : vector<32x32xf32>, vector<32x128xf32>, vector<32x128xf32> -> vector<32x128xf32>
    %392 = arith.addf %388, %391 : vector<32x128xf32>
    %c15_280 = arith.constant 15 : index
    %c0_281 = arith.constant 0 : index
    %c0_282 = arith.constant 0 : index
    %393 = vector.load %arg16[%c15_280, %c0_281, %c0_282] : memref<18x32x128xf32, #tpu.memory_space<vmem>>, vector<1x32x128xf32>
    %394 = vector.shape_cast %393 : vector<1x32x128xf32> to vector<32x128xf32>
    %395 = arith.addf %392, %394 : vector<32x128xf32>
    %cst_283 = arith.constant 0.000000e+00 : f32
    %396 = vector.broadcast %cst_283 : f32 to vector<32x128xf32>
    %397 = arith.maximumf %395, %396 : vector<32x128xf32>
    %c37 = arith.constant 37 : index
    %c0_284 = arith.constant 0 : index
    %c0_285 = arith.constant 0 : index
    %398 = vector.load %arg15[%c37, %c0_284, %c0_285] : memref<39x32x32xf32, #tpu.memory_space<vmem>>, vector<1x32x32xf32>
    %399 = vector.shape_cast %398 : vector<1x32x32xf32> to vector<32x32xf32>
    %cst_286 = arith.constant dense<0.000000e+00> : vector<32x128xf32>
    %400 = tpu.matmul %399, %397, %cst_286 {dimension_numbers = #tpu.dot_dimension_numbers<[1], [0], [0], [1], [0, 0, 1, 1], [], []>} : vector<32x32xf32>, vector<32x128xf32>, vector<32x128xf32> -> vector<32x128xf32>
    %c0_287 = arith.constant 0 : index
    %c0_288 = arith.constant 0 : index
    %401 = vector.load %arg4[%c0_287, %c0_288] : memref<128x64xf32, #tpu.memory_space<vmem>>, vector<128x64xf32>
    %cst_289 = arith.constant dense<0.000000e+00> : vector<32x64xf32>
    %402 = tpu.matmul %400, %401, %cst_289 {dimension_numbers = #tpu.dot_dimension_numbers<[1], [0], [0], [1], [0, 0, 1, 1], [], []>} : vector<32x128xf32>, vector<128x64xf32>, vector<32x64xf32> -> vector<32x64xf32>
    %c16_290 = arith.constant 16 : index
    %c0_291 = arith.constant 0 : index
    %c0_292 = arith.constant 0 : index
    %403 = vector.load %arg16[%c16_290, %c0_291, %c0_292] : memref<18x32x128xf32, #tpu.memory_space<vmem>>, vector<1x32x128xf32>
    %404 = vector.shape_cast %403 : vector<1x32x128xf32> to vector<32x128xf32>
    %405 = vector.extract_strided_slice %404 {offsets = [0, 0], sizes = [32, 64], strides = [1, 1]} : vector<32x128xf32> to vector<32x64xf32>
    %406 = arith.addf %402, %405 : vector<32x64xf32>
    %cst_293 = arith.constant 0.000000e+00 : f32
    %407 = vector.broadcast %cst_293 : f32 to vector<32x64xf32>
    %408 = arith.maximumf %406, %407 : vector<32x64xf32>
    %c38 = arith.constant 38 : index
    %c0_294 = arith.constant 0 : index
    %c0_295 = arith.constant 0 : index
    %409 = vector.load %arg15[%c38, %c0_294, %c0_295] : memref<39x32x32xf32, #tpu.memory_space<vmem>>, vector<1x32x32xf32>
    %410 = vector.shape_cast %409 : vector<1x32x32xf32> to vector<32x32xf32>
    %cst_296 = arith.constant dense<0.000000e+00> : vector<32x64xf32>
    %411 = tpu.matmul %410, %408, %cst_296 {dimension_numbers = #tpu.dot_dimension_numbers<[1], [0], [0], [1], [0, 0, 1, 1], [], []>} : vector<32x32xf32>, vector<32x64xf32>, vector<32x64xf32> -> vector<32x64xf32>
    %c17_297 = arith.constant 17 : index
    %c0_298 = arith.constant 0 : index
    %c0_299 = arith.constant 0 : index
    %412 = vector.load %arg16[%c17_297, %c0_298, %c0_299] : memref<18x32x128xf32, #tpu.memory_space<vmem>>, vector<1x32x128xf32>
    %413 = vector.shape_cast %412 : vector<1x32x128xf32> to vector<32x128xf32>
    %414 = vector.extract_strided_slice %413 {offsets = [0, 0], sizes = [32, 64], strides = [1, 1]} : vector<32x128xf32> to vector<32x64xf32>
    %415 = arith.addf %411, %414 : vector<32x64xf32>
    %416 = vector.extract_strided_slice %415 {offsets = [0, 0], sizes = [2, 64], strides = [1, 1]} : vector<32x64xf32> to vector<2x64xf32>
    %c0_300 = arith.constant 0 : index
    %c0_301 = arith.constant 0 : index
    %417 = vector.load %arg17[%c0_300, %c0_301] : memref<2x64xf32, #tpu.memory_space<vmem>>, vector<2x64xf32>
    tpu.vector_store %arg17[%c0_300, %c0_301], %416 {strides = array<i32>} : memref<2x64xf32, #tpu.memory_space<vmem>>, vector<2x64xf32>,
    return
  }
}

</mosaic_0001>

<llo_original>
// kernel: _lambda_.1
$region0: #{_lambda_.1}
  #allocation0 [shape = 'u32[]', space=smem, size = 0x4, offset = 0x4, fixed_abs, tag = 'smem constant byte address 0x4 - core index']
  #allocation1 [shape = 'u32[144,128]{1,0:T(1,128)}', space=vmem, size = 0x12000, scoped, tag = 'internal scratch']
  %s0 = inlined_call_operand.vmem [shape: f32[32,64], index: 0, kind: input, shape index: {}]
  %s1 = inlined_call_operand.vmem [shape: f32[32,128], index: 1, kind: input, shape index: {}]
  %s2 = inlined_call_operand.hbm [shape: f32[64,128], index: 2, kind: input, shape index: {}]
  %s3 = inlined_call_operand.hbm [shape: f32[128,128], index: 3, kind: input, shape index: {}]
  %s4 = inlined_call_operand.hbm [shape: f32[128,64], index: 4, kind: input, shape index: {}]
  %s5 = inlined_call_operand.hbm [shape: f32[128,128], index: 5, kind: input, shape index: {}]
  %s6 = inlined_call_operand.hbm [shape: f32[64,64], index: 6, kind: input, shape index: {}]
  %s7 = inlined_call_operand.hbm [shape: f32[32,32], index: 7, kind: input, shape index: {}]
  %s8 = inlined_call_operand.hbm [shape: f32[16,16], index: 8, kind: input, shape index: {}]
  %s9 = inlined_call_operand.hbm [shape: f32[128,64], index: 9, kind: input, shape index: {}]
  %s10 = inlined_call_operand.vmem [shape: f32[64,128], index: 10, kind: input, shape index: {}]
  %s11 = inlined_call_operand.vmem [shape: f32[64,32], index: 11, kind: input, shape index: {}]
  %s12 = inlined_call_operand.hbm [shape: f32[32,64], index: 12, kind: input, shape index: {}]
  %s13 = inlined_call_operand.hbm [shape: f32[32,16], index: 13, kind: input, shape index: {}]
  %s14 = inlined_call_operand.vmem [shape: f32[16,32], index: 14, kind: input, shape index: {}]
  %s15 = inlined_call_operand.hbm [shape: f32[39,32,32], index: 15, kind: input, shape index: {}]
  %s16 = inlined_call_operand.hbm [shape: f32[18,32,128], index: 16, kind: input, shape index: {}]
  %s17 = inlined_call_operand.hbm [shape: f32[2,64], index: 17, kind: output, shape index: {}]
  %s18 = sld [smem:[#allocation0]]
  $region126: #{_lambda_.1} parent=0
    _
  %s20 = ssub.s32 1, %s18
  %s21 = scalar_select 0, %s20, %s18
  $region1: #{_lambda_.1} parent=0
    #allocation2 [shape = 'u8[32768]{0}', space=vmem, size = 0x8000, scoped, tag = 'input window, operand 2, single buffered']
    #allocation3 [shape = 's32[1]{0}', space=sflag, size = 0x4, scoped, tag = 'scoped memory for _lambda_.1']
    #allocation4 [shape = 's32[1]{0}', space=sflag, size = 0x4, scoped, tag = 'scoped memory for _lambda_.1']
    #allocation5 [shape = 'u8[65536]{0}', space=vmem, size = 0x10000, scoped, tag = 'input window, operand 3, single buffered']
    #allocation6 [shape = 's32[1]{0}', space=sflag, size = 0x4, scoped, tag = 'scoped memory for _lambda_.1']
    #allocation7 [shape = 'u8[65536]{0}', space=vmem, size = 0x10000, scoped, tag = 'input window, operand 4, single buffered']
    #allocation8 [shape = 'u8[65536]{0}', space=vmem, size = 0x10000, scoped, tag = 'input window, operand 5, single buffered']
    #allocation9 [shape = 's32[1]{0}', space=sflag, size = 0x4, scoped, tag = 'scoped memory for _lambda_.1']
    #allocation10 [shape = 'u8[32768]{0}', space=vmem, size = 0x8000, scoped, tag = 'input window, operand 6, single buffered']
    #allocation11 [shape = 'u8[16384]{0}', space=vmem, size = 0x4000, scoped, tag = 'input window, operand 7, single buffered']
    #allocation12 [shape = 's32[1]{0}', space=sflag, size = 0x4, scoped, tag = 'scoped memory for _lambda_.1']
    #allocation13 [shape = 'u8[8192]{0}', space=vmem, size = 0x2000, scoped, tag = 'input window, operand 8, single buffered']
    #allocation14 [shape = 'u8[65536]{0}', space=vmem, size = 0x10000, scoped, tag = 'input window, operand 9, single buffered']
    #allocation15 [shape = 's32[1]{0}', space=sflag, size = 0x4, scoped, tag = 'scoped memory for _lambda_.1']
    #allocation16 [shape = 'u8[16384]{0}', space=vmem, size = 0x4000, scoped, tag = 'input window, operand 12, single buffered']
    #allocation17 [shape = 'u8[16384]{0}', space=vmem, size = 0x4000, scoped, tag = 'input window, operand 13, single buffered']
    #allocation18 [shape = 's32[1]{0}', space=sflag, size = 0x4, scoped, tag = 'scoped memory for _lambda_.1']
    #allocation19 [shape = 'u8[638976]{0}', space=vmem, size = 0x9c000, scoped, tag = 'input window, operand 15, single buffered']
    #allocation20 [shape = 'u8[294912]{0}', space=vmem, size = 0x48000, scoped, tag = 'input window, operand 16, single buffered']
    #allocation21 [shape = 's32[1]{0}', space=sflag, size = 0x4, scoped, tag = 'scoped memory for _lambda_.1']
    #allocation22 [shape = 'u8[1024]{0}', space=vmem, size = 0x400, scoped, tag = 'output window, operand 0, single buffered']
    %22 = vsyncpa [#allocation3], 0
    %23 = vsyncpa [#allocation6], 0
    %24 = vsyncpa [#allocation9], 0
    %25 = vsyncpa [#allocation12], 0
    %26 = vsyncpa [#allocation15], 0
    %27 = vsyncpa [#allocation18], 0
    %28 = vsyncpa [#allocation21], 0
    %29 = vsyncpa [#allocation4], 0
    // Predicated region
    $region2: #{_lambda_.1} parent=1 // pred_check
      _
    $region3: #{_lambda_.1} parent=1 // pred_check_branch
      %31 = sbr.rel (0) target = $region5
    $region4: #{_lambda_.1} parent=1 // pred_region
      _
    $region5: #{_lambda_.1} parent=1 // pred_fallthru
      _
    // Predicated region
    $region6: #{_lambda_.1} parent=1 // pred_check
      _
    $region7: #{_lambda_.1} parent=1 // pred_check_branch
      %33 = sbr.rel (0) target = $region9
    $region8: #{_lambda_.1} parent=1 // pred_region
      _
    $region9: #{_lambda_.1} parent=1 // pred_fallthru
      _
    // Predicated region
    $region10: #{_lambda_.1} parent=1 // pred_check
      _
    $region11: #{_lambda_.1} parent=1 // pred_check_branch
      %35 = sbr.rel (0) target = $region13
    $region12: #{_lambda_.1} parent=1 // pred_region
      %s37 = ssub.s32 1024, 1024
      %38 = vsyncadd [#allocation3], %s37
      %s39 = sshll.u32 [#allocation2], 4
      %s40 = int_to_ptr.vmem [resolvable:$true] %s39
      %45 = dma.hbm_to_vmem [thread:$0]  %s2, 1024, %s40, [#allocation3], 128, 128, 8
    $region13: #{_lambda_.1} parent=1 // pred_fallthru
      _
    // Predicated region
    $region14: #{_lambda_.1} parent=1 // pred_check
      _
    $region15: #{_lambda_.1} parent=1 // pred_check_branch
      %47 = sbr.rel (0) target = $region17
    $region16: #{_lambda_.1} parent=1 // pred_region
      %s49 = ssub.s32 2048, 2048
      %50 = vsyncadd [#allocation6], %s49
      %s51 = sshll.u32 [#allocation5], 4
      %s52 = int_to_ptr.vmem [resolvable:$true] %s51
      %57 = dma.hbm_to_vmem [thread:$0]  %s3, 2048, %s52, [#allocation6], 128, 128, 8
    $region17: #{_lambda_.1} parent=1 // pred_fallthru
      _
    // Predicated region
    $region18: #{_lambda_.1} parent=1 // pred_check
      _
    $region19: #{_lambda_.1} parent=1 // pred_check_branch
      %59 = sbr.rel (0) target = $region21
    $region20: #{_lambda_.1} parent=1 // pred_region
      %s61 = ssub.s32 2048, 2048
      %62 = vsyncadd [#allocation6], %s61
      %s63 = sshll.u32 [#allocation7], 4
      %s64 = int_to_ptr.vmem [resolvable:$true] %s63
      %69 = dma.hbm_to_vmem [thread:$0]  %s4, 2048, %s64, [#allocation6], 128, 128, 8
    $region21: #{_lambda_.1} parent=1 // pred_fallthru
      _
    // Predicated region
    $region22: #{_lambda_.1} parent=1 // pred_check
      _
    $region23: #{_lambda_.1} parent=1 // pred_check_branch
      %71 = sbr.rel (0) target = $region25
    $region24: #{_lambda_.1} parent=1 // pred_region
      %s73 = ssub.s32 2048, 2048
      %74 = vsyncadd [#allocation9], %s73
      %s75 = sshll.u32 [#allocation8], 4
      %s76 = int_to_ptr.vmem [resolvable:$true] %s75
      %81 = dma.hbm_to_vmem [thread:$0]  %s5, 2048, %s76, [#allocation9], 128, 128, 8
    $region25: #{_lambda_.1} parent=1 // pred_fallthru
      _
    // Predicated region
    $region26: #{_lambda_.1} parent=1 // pred_check
      _
    $region27: #{_lambda_.1} parent=1 // pred_check_branch
      %83 = sbr.rel (0) target = $region29
    $region28: #{_lambda_.1} parent=1 // pred_region
      %s85 = ssub.s32 1024, 1024
      %86 = vsyncadd [#allocation9], %s85
      %s87 = sshll.u32 [#allocation10], 4
      %s88 = int_to_ptr.vmem [resolvable:$true] %s87
      %93 = dma.hbm_to_vmem [thread:$0]  %s6, 1024, %s88, [#allocation9], 128, 128, 8
    $region29: #{_lambda_.1} parent=1 // pred_fallthru
      _
    // Predicated region
    $region30: #{_lambda_.1} parent=1 // pred_check
      _
    $region31: #{_lambda_.1} parent=1 // pred_check_branch
      %95 = sbr.rel (0) target = $region33
    $region32: #{_lambda_.1} parent=1 // pred_region
      %s97 = ssub.s32 512, 512
      %98 = vsyncadd [#allocation12], %s97
      %s99 = sshll.u32 [#allocation11], 4
      %s100 = int_to_ptr.vmem [resolvable:$true] %s99
      %105 = dma.hbm_to_vmem [thread:$0]  %s7, 512, %s100, [#allocation12], 128, 128, 8
    $region33: #{_lambda_.1} parent=1 // pred_fallthru
      _
    // Predicated region
    $region34: #{_lambda_.1} parent=1 // pred_check
      _
    $region35: #{_lambda_.1} parent=1 // pred_check_branch
      %107 = sbr.rel (0) target = $region37
    $region36: #{_lambda_.1} parent=1 // pred_region
      %s109 = ssub.s32 256, 256
      %110 = vsyncadd [#allocation12], %s109
      %s111 = sshll.u32 [#allocation13], 4
      %s112 = int_to_ptr.vmem [resolvable:$true] %s111
      %117 = dma.hbm_to_vmem [thread:$0]  %s8, 256, %s112, [#allocation12], 128, 128, 8
    $region37: #{_lambda_.1} parent=1 // pred_fallthru
      _
    // Predicated region
    $region38: #{_lambda_.1} parent=1 // pred_check
      _
    $region39: #{_lambda_.1} parent=1 // pred_check_branch
      %119 = sbr.rel (0) target = $region41
    $region40: #{_lambda_.1} parent=1 // pred_region
      %s121 = ssub.s32 2048, 2048
      %122 = vsyncadd [#allocation15], %s121
      %s123 = sshll.u32 [#allocation14], 4
      %s124 = int_to_ptr.vmem [resolvable:$true] %s123
      %129 = dma.hbm_to_vmem [thread:$0]  %s9, 2048, %s124, [#allocation15], 128, 128, 8
    $region41: #{_lambda_.1} parent=1 // pred_fallthru
      _
    // Predicated region
    $region42: #{_lambda_.1} parent=1 // pred_check
      _
    $region43: #{_lambda_.1} parent=1 // pred_check_branch
      %131 = sbr.rel (0) target = $region45
    $region44: #{_lambda_.1} parent=1 // pred_region
      _
    $region45: #{_lambda_.1} parent=1 // pred_fallthru
      _
    // Predicated region
    $region46: #{_lambda_.1} parent=1 // pred_check
      _
    $region47: #{_lambda_.1} parent=1 // pred_check_branch
      %133 = sbr.rel (0) target = $region49
    $region48: #{_lambda_.1} parent=1 // pred_region
      _
    $region49: #{_lambda_.1} parent=1 // pred_fallthru
      _
    // Predicated region
    $region50: #{_lambda_.1} parent=1 // pred_check
      _
    $region51: #{_lambda_.1} parent=1 // pred_check_branch
      %135 = sbr.rel (0) target = $region53
    $region52: #{_lambda_.1} parent=1 // pred_region
      %s137 = ssub.s32 512, 512
      %138 = vsyncadd [#allocation15], %s137
      %s139 = sshll.u32 [#allocation16], 4
      %s140 = int_to_ptr.vmem [resolvable:$true] %s139
      %145 = dma.hbm_to_vmem [thread:$0]  %s12, 512, %s140, [#allocation15], 128, 128, 8
    $region53: #{_lambda_.1} parent=1 // pred_fallthru
      _
    // Predicated region
    $region54: #{_lambda_.1} parent=1 // pred_check
      _
    $region55: #{_lambda_.1} parent=1 // pred_check_branch
      %147 = sbr.rel (0) target = $region57
    $region56: #{_lambda_.1} parent=1 // pred_region
      %s149 = ssub.s32 512, 512
      %150 = vsyncadd [#allocation18], %s149
      %s151 = sshll.u32 [#allocation17], 4
      %s152 = int_to_ptr.vmem [resolvable:$true] %s151
      %157 = dma.hbm_to_vmem [thread:$0]  %s13, 512, %s152, [#allocation18], 128, 128, 8
    $region57: #{_lambda_.1} parent=1 // pred_fallthru
      _
    // Predicated region
    $region58: #{_lambda_.1} parent=1 // pred_check
      _
    $region59: #{_lambda_.1} parent=1 // pred_check_branch
      %159 = sbr.rel (0) target = $region61
    $region60: #{_lambda_.1} parent=1 // pred_region
      _
    $region61: #{_lambda_.1} parent=1 // pred_fallthru
      _
    // Predicated region
    $region62: #{_lambda_.1} parent=1 // pred_check
      _
    $region63: #{_lambda_.1} parent=1 // pred_check_branch
      %161 = sbr.rel (0) target = $region65
    $region64: #{_lambda_.1} parent=1 // pred_region
      %s163 = ssub.s32 19968, 19968
      %164 = vsyncadd [#allocation18], %s163
      %s165 = sshll.u32 [#allocation19], 4
      %s166 = int_to_ptr.vmem [resolvable:$true] %s165
      %171 = dma.hbm_to_vmem [thread:$0]  %s15, 19968, %s166, [#allocation18], 128, 128, 8
    $region65: #{_lambda_.1} parent=1 // pred_fallthru
      _
    // Predicated region
    $region66: #{_lambda_.1} parent=1 // pred_check
      _
    $region67: #{_lambda_.1} parent=1 // pred_check_branch
      %173 = sbr.rel (0) target = $region69
    $region68: #{_lambda_.1} parent=1 // pred_region
      %s175 = ssub.s32 9216, 9216
      %176 = vsyncadd [#allocation21], %s175
      %s177 = sshll.u32 [#allocation20], 4
      %s178 = int_to_ptr.vmem [resolvable:$true] %s177
      %183 = dma.hbm_to_vmem [thread:$0]  %s16, 9216, %s178, [#allocation21], 128, 128, 8
    $region69: #{_lambda_.1} parent=1 // pred_fallthru
      _
    // Predicated region
    $region70: #{_lambda_.1} parent=1 // pred_check
      _
    $region71: #{_lambda_.1} parent=1 // pred_check_branch
      %185 = sbr.rel (0) target = $region73
    $region72: #{_lambda_.1} parent=1 // pred_region
      %186 = dma.done [#allocation3], 1024
    $region73: #{_lambda_.1} parent=1 // pred_fallthru
      _
    // Predicated region
    $region74: #{_lambda_.1} parent=1 // pred_check
      _
    $region75: #{_lambda_.1} parent=1 // pred_check_branch
      %188 = sbr.rel (0) target = $region77
    $region76: #{_lambda_.1} parent=1 // pred_region
      %189 = dma.done [#allocation6], 2048
    $region77: #{_lambda_.1} parent=1 // pred_fallthru
      _
    // Predicated region
    $region78: #{_lambda_.1} parent=1 // pred_check
      _
    $region79: #{_lambda_.1} parent=1 // pred_check_branch
      %191 = sbr.rel (0) target = $region81
    $region80: #{_lambda_.1} parent=1 // pred_region
      %192 = dma.done [#allocation6], 2048
    $region81: #{_lambda_.1} parent=1 // pred_fallthru
      _
    // Predicated region
    $region82: #{_lambda_.1} parent=1 // pred_check
      _
    $region83: #{_lambda_.1} parent=1 // pred_check_branch
      %194 = sbr.rel (0) target = $region85
    $region84: #{_lambda_.1} parent=1 // pred_region
      %195 = dma.done [#allocation9], 2048
    $region85: #{_lambda_.1} parent=1 // pred_fallthru
      _
    // Predicated region
    $region86: #{_lambda_.1} parent=1 // pred_check
      _
    $region87: #{_lambda_.1} parent=1 // pred_check_branch
      %197 = sbr.rel (0) target = $region89
    $region88: #{_lambda_.1} parent=1 // pred_region
      %198 = dma.done [#allocation9], 1024
    $region89: #{_lambda_.1} parent=1 // pred_fallthru
      _
    // Predicated region
    $region90: #{_lambda_.1} parent=1 // pred_check
      _
    $region91: #{_lambda_.1} parent=1 // pred_check_branch
      %200 = sbr.rel (0) target = $region93
    $region92: #{_lambda_.1} parent=1 // pred_region
      %201 = dma.done [#allocation12], 512
    $region93: #{_lambda_.1} parent=1 // pred_fallthru
      _
    // Predicated region
    $region94: #{_lambda_.1} parent=1 // pred_check
      _
    $region95: #{_lambda_.1} parent=1 // pred_check_branch
      %203 = sbr.rel (0) target = $region97
    $region96: #{_lambda_.1} parent=1 // pred_region
      %204 = dma.done [#allocation12], 256
    $region97: #{_lambda_.1} parent=1 // pred_fallthru
      _
    // Predicated region
    $region98: #{_lambda_.1} parent=1 // pred_check
      _
    $region99: #{_lambda_.1} parent=1 // pred_check_branch
      %206 = sbr.rel (0) target = $region101
    $region100: #{_lambda_.1} parent=1 // pred_region
      %207 = dma.done [#allocation15], 2048
    $region101: #{_lambda_.1} parent=1 // pred_fallthru
      _
    // Predicated region
    $region102: #{_lambda_.1} parent=1 // pred_check
      _
    $region103: #{_lambda_.1} parent=1 // pred_check_branch
      %209 = sbr.rel (0) target = $region105
    $region104: #{_lambda_.1} parent=1 // pred_region
      %210 = dma.done [#allocation15], 512
    $region105: #{_lambda_.1} parent=1 // pred_fallthru
      _
    // Predicated region
    $region106: #{_lambda_.1} parent=1 // pred_check
      _
    $region107: #{_lambda_.1} parent=1 // pred_check_branch
      %212 = sbr.rel (0) target = $region109
    $region108: #{_lambda_.1} parent=1 // pred_region
      %213 = dma.done [#allocation18], 512
    $region109: #{_lambda_.1} parent=1 // pred_fallthru
      _
    // Predicated region
    $region110: #{_lambda_.1} parent=1 // pred_check
      _
    $region111: #{_lambda_.1} parent=1 // pred_check_branch
      %215 = sbr.rel (0) target = $region113
    $region112: #{_lambda_.1} parent=1 // pred_region
      %216 = dma.done [#allocation18], 19968
    $region113: #{_lambda_.1} parent=1 // pred_fallthru
      _
    // Predicated region
    $region114: #{_lambda_.1} parent=1 // pred_check
      _
    $region115: #{_lambda_.1} parent=1 // pred_check_branch
      %218 = sbr.rel (0) target = $region117
    $region116: #{_lambda_.1} parent=1 // pred_region
      %219 = dma.done [#allocation21], 9216
    $region117: #{_lambda_.1} parent=1 // pred_fallthru
      _
    %v220 = vld [vmem:[%s0] sm:$0xff]
    %v221 = vld [vmem:[%s0 + $0x8] sm:$0xff]
    %v222 = vld [vmem:[%s0 + $0x10] sm:$0xff]
    %v223 = vld [vmem:[%s0 + $0x18] sm:$0xff]
    %vm224 = vcmask 523264
    %v225 = vsel %vm224, %v220, 0.0
    %226 = vadd.xlane.f32.xlu0 %v225
    %v227 = vpop.xlane.xlu0 %226
    %v228 = vsel %vm224, %v221, 0.0
    %229 = vadd.xlane.f32.xlu0 %v228
    %v230 = vpop.xlane.xlu0 %229
    %v231 = vsel %vm224, %v222, 0.0
    %232 = vadd.xlane.f32.xlu0 %v231
    %v233 = vpop.xlane.xlu0 %232
    %v234 = vsel %vm224, %v223, 0.0
    %235 = vadd.xlane.f32.xlu0 %v234
    %v236 = vpop.xlane.xlu0 %235
    %v237 = vrcp.pop 64.0
    %v238 = vmul.f32 %v227, %v237
    %v239 = vmul.f32 %v230, %v237
    %v240 = vmul.f32 %v233, %v237
    %v241 = vmul.f32 %v236, %v237
    %v242 = vsub.f32 %v220, %v238
    %v243 = vsub.f32 %v221, %v239
    %v244 = vsub.f32 %v222, %v240
    %v245 = vsub.f32 %v223, %v241
    %v246 = vmul.f32 %v242, %v242
    %v247 = vmul.f32 %v243, %v243
    %v248 = vmul.f32 %v244, %v244
    %v249 = vmul.f32 %v245, %v245
    %v250 = vsel %vm224, %v246, 0.0
    %251 = vadd.xlane.f32.xlu0 %v250
    %v252 = vpop.xlane.xlu0 %251
    %v253 = vsel %vm224, %v247, 0.0
    %254 = vadd.xlane.f32.xlu0 %v253
    %v255 = vpop.xlane.xlu0 %254
    %v256 = vsel %vm224, %v248, 0.0
    %257 = vadd.xlane.f32.xlu0 %v256
    %v258 = vpop.xlane.xlu0 %257
    %v259 = vsel %vm224, %v249, 0.0
    %260 = vadd.xlane.f32.xlu0 %v259
    %v261 = vpop.xlane.xlu0 %260
    %v262 = vmul.f32 %v252, %v237
    %v263 = vmul.f32 %v255, %v237
    %v264 = vmul.f32 %v258, %v237
    %v265 = vmul.f32 %v261, %v237
    %v266 = vadd.f32 %v262, 1e-05
    %v267 = vadd.f32 %v263, 1e-05
    %v268 = vadd.f32 %v264, 1e-05
    %v269 = vadd.f32 %v265, 1e-05
    %v270 = vrsqrt.pop %v266
    %v271 = vrsqrt.pop %v267
    %v272 = vrsqrt.pop %v268
    %v273 = vrsqrt.pop %v269
    %v274 = vmul.f32 %v242, %v270
    %v275 = vmul.f32 %v243, %v271
    %v276 = vmul.f32 %v244, %v272
    %v277 = vmul.f32 %v245, %v273
    %v278 = vld [vmem:[%s1] sm:$0xff]
    %v279 = vld [vmem:[%s1 + $0x8] sm:$0xff]
    %v280 = vld [vmem:[%s1 + $0x10] sm:$0xff]
    %v281 = vld [vmem:[%s1 + $0x18] sm:$0xff]
    %282 = vadd.xlane.f32.xlu0 %v278
    %v283 = vpop.xlane.xlu0 %282
    %284 = vadd.xlane.f32.xlu0 %v279
    %v285 = vpop.xlane.xlu0 %284
    %286 = vadd.xlane.f32.xlu0 %v280
    %v287 = vpop.xlane.xlu0 %286
    %288 = vadd.xlane.f32.xlu0 %v281
    %v289 = vpop.xlane.xlu0 %288
    %v290 = vrcp.pop 128.0
    %v291 = vmul.f32 %v283, %v290
    %v292 = vmul.f32 %v285, %v290
    %v293 = vmul.f32 %v287, %v290
    %v294 = vmul.f32 %v289, %v290
    %v295 = vsub.f32 %v278, %v291
    %v296 = vsub.f32 %v279, %v292
    %v297 = vsub.f32 %v280, %v293
    %v298 = vsub.f32 %v281, %v294
    %v299 = vmul.f32 %v295, %v295
    %v300 = vmul.f32 %v296, %v296
    %v301 = vmul.f32 %v297, %v297
    %v302 = vmul.f32 %v298, %v298
    %303 = vadd.xlane.f32.xlu0 %v299
    %v304 = vpop.xlane.xlu0 %303
    %305 = vadd.xlane.f32.xlu0 %v300
    %v306 = vpop.xlane.xlu0 %305
    %307 = vadd.xlane.f32.xlu0 %v301
    %v308 = vpop.xlane.xlu0 %307
    %309 = vadd.xlane.f32.xlu0 %v302
    %v310 = vpop.xlane.xlu0 %309
    %v311 = vmul.f32 %v304, %v290
    %v312 = vmul.f32 %v306, %v290
    %v313 = vmul.f32 %v308, %v290
    %v314 = vmul.f32 %v310, %v290
    %v315 = vadd.f32 %v311, 1e-05
    %v316 = vadd.f32 %v312, 1e-05
    %v317 = vadd.f32 %v313, 1e-05
    %v318 = vadd.f32 %v314, 1e-05
    %v319 = vrsqrt.pop %v315
    %v320 = vrsqrt.pop %v316
    %v321 = vrsqrt.pop %v317
    %v322 = vrsqrt.pop %v318
    %v323 = vmul.f32 %v295, %v319
    %v324 = vmul.f32 %v296, %v320
    %v325 = vmul.f32 %v297, %v321
    %v326 = vmul.f32 %v298, %v322
    %v327 = vld [vmem:[#allocation19] sm:$0xff]
    %v328 = vld [vmem:[#allocation19 + $0x8] sm:$0xff]
    %v329 = vld [vmem:[#allocation19 + $0x10] sm:$0xff]
    %v330 = vld [vmem:[#allocation19 + $0x18] sm:$0xff]
    %vm331 = vcmask 261120
    %v333 = vsel %vm331, %v327, 0
    %v336 = vsel %vm331, %v328, 0
    %v339 = vsel %vm331, %v329, 0
    %v342 = vsel %vm331, %v330, 0
    %344 = vmatprep.subr.mxu0 0.0
    %345 = vmatpush1.msra.mxu0 %v274
    %346 = vmatprep.subr.mxu0 0.0
    %347 = vmatpush1.msra.mxu0 %v275
    %348 = vmatprep.subr.mxu0 0.0
    %349 = vmatpush1.msra.mxu0 %v276
    %350 = vmatprep.subr.mxu0 0.0
    %351 = vmatpush1.msra.mxu0 %v277
    %352 = vmatprep.subr.mxu0 0.0
    %353 = vmatpush1.msra.mxu0 0.0
    %354 = vmatprep.subr.mxu0 0.0
    %355 = vmatpush1.msra.mxu0 0.0
    %356 = vmatprep.subr.mxu0 0.0
    %357 = vmatpush1.msra.mxu0 0.0
    %358 = vmatprep.subr.mxu0 0.0
    %359 = vmatpush1.msra.mxu0 0.0
    %360 = vmatprep.subr.mxu0 0.0
    %361 = vmatpush1.msra.mxu0 0.0
    %362 = vmatprep.subr.mxu0 0.0
    %363 = vmatpush1.msra.mxu0 0.0
    %364 = vmatprep.subr.mxu0 0.0
    %365 = vmatpush1.msra.mxu0 0.0
    %366 = vmatprep.subr.mxu0 0.0
    %367 = vmatpush1.msra.mxu0 0.0
    %368 = vmatprep.subr.mxu0 0.0
    %369 = vmatpush1.msra.mxu0 0.0
    %370 = vmatprep.subr.mxu0 0.0
    %371 = vmatpush1.msra.mxu0 0.0
    %372 = vmatprep.subr.mxu0 0.0
    %373 = vmatpush1.msra.mxu0 0.0
    %374 = vmatprep.subr.mxu0 0.0
    %375 = vmatpush1.msra.mxu0 0.0
    %376 = vmatprep.subr.mxu0 0.0
    %377 = vmatpush1.msra.mxu0 0.0
    %378 = vmatprep.subr.mxu0 0.0
    %379 = vmatpush1.msra.mxu0 0.0
    %380 = vmatprep.subr.mxu0 0.0
    %381 = vmatpush1.msra.mxu0 0.0
    %382 = vmatprep.subr.mxu0 0.0
    %383 = vmatpush1.msra.mxu0 0.0
    %384 = vmatprep.subr.mxu0 0.0
    %385 = vmatpush1.msra.mxu0 0.0
    %386 = vmatprep.subr.mxu0 0.0
    %387 = vmatpush1.msra.mxu0 0.0
    %388 = vmatprep.subr.mxu0 0.0
    %389 = vmatpush1.msra.mxu0 0.0
    %390 = vmatprep.subr.mxu0 0.0
    %391 = vmatpush1.msra.mxu0 0.0
    %392 = vmatprep.subr.mxu0 0.0
    %393 = vmatpush1.msra.mxu0 0.0
    %394 = vmatprep.subr.mxu0 0.0
    %395 = vmatpush1.msra.mxu0 0.0
    %396 = vmatprep.subr.mxu0 0.0
    %397 = vmatpush1.msra.mxu0 0.0
    %398 = vmatprep.subr.mxu0 0.0
    %399 = vmatpush1.msra.mxu0 0.0
    %400 = vmatprep.subr.mxu0 0.0
    %401 = vmatpush1.msra.mxu0 0.0
    %402 = vmatprep.subr.mxu0 0.0
    %403 = vmatpush1.msra.mxu0 0.0
    %404 = vmatprep.subr.mxu0 0.0
    %405 = vmatpush1.msra.mxu0 0.0
    %406 = vmatprep.subr.mxu0 0.0
    %407 = vmatpush1.msra.mxu0 0.0
    %408 = vmatprep.mubr.f32.mxu0 0.0
    %409 = vmatmul.mubr.f32.gmra.mrb[0].mxu0 %v333
    %v410 = vpop.f32.mrb[0].mxu0
    %v411 = vadd.f32 0.0, %v410
    %v412 = vpop.f32.mrb[0].mxu0
    %413 = vmatprep.mubr.f32.mxu0 0.0
    %414 = vmatmul.mubr.f32.gmra.mrb[0].mxu0 %v336
    %v415 = vpop.f32.mrb[0].mxu0
    %v416 = vadd.f32 0.0, %v415
    %v417 = vpop.f32.mrb[0].mxu0
    %418 = vmatprep.mubr.f32.mxu0 0.0
    %419 = vmatmul.mubr.f32.gmra.mrb[0].mxu0 %v339
    %v420 = vpop.f32.mrb[0].mxu0
    %v421 = vadd.f32 0.0, %v420
    %v422 = vpop.f32.mrb[0].mxu0
    %423 = vmatprep.mubr.f32.mxu0 0.0
    %424 = vmatmul.mubr.f32.gmra.mrb[0].mxu0 %v342
    %v425 = vpop.f32.mrb[0].mxu0
    %v426 = vadd.f32 0.0, %v425
    %v427 = vpop.f32.mrb[0].mxu0
    %428 = vdwg.mxu0
    %v429 = vld [vmem:[#allocation2] sm:$0xff]
    %v430 = vld [vmem:[#allocation2 + $0x8] sm:$0xff]
    %v431 = vld [vmem:[#allocation2 + $0x10] sm:$0xff]
    %v432 = vld [vmem:[#allocation2 + $0x18] sm:$0xff]
    %v433 = vld [vmem:[#allocation2 + $0x20] sm:$0xff]
    %v434 = vld [vmem:[#allocation2 + $0x28] sm:$0xff]
    %v435 = vld [vmem:[#allocation2 + $0x30] sm:$0xff]
    %v436 = vld [vmem:[#allocation2 + $0x38] sm:$0xff]
    %v437 = vld [vmem:[#allocation20] sm:$0xff]
    %v438 = vld [vmem:[#allocation20 + $0x8] sm:$0xff]
    %v439 = vld [vmem:[#allocation20 + $0x10] sm:$0xff]
    %v440 = vld [vmem:[#allocation20 + $0x18] sm:$0xff]
    %v442 = vsel %vm224, %v411, 0
    %v445 = vsel %vm224, %v416, 0
    %v448 = vsel %vm224, %v421, 0
    %v451 = vsel %vm224, %v426, 0
    %453 = vmatprep.subr.mxu0 0.0
    %454 = vmatpush1.msra.mxu0 %v429
    %455 = vmatprep.subr.mxu0 0.0
    %456 = vmatpush1.msra.mxu0 %v430
    %457 = vmatprep.subr.mxu0 0.0
    %458 = vmatpush1.msra.mxu0 %v431
    %459 = vmatprep.subr.mxu0 0.0
    %460 = vmatpush1.msra.mxu0 %v432
    %461 = vmatprep.subr.mxu0 0.0
    %462 = vmatpush1.msra.mxu0 %v433
    %463 = vmatprep.subr.mxu0 0.0
    %464 = vmatpush1.msra.mxu0 %v434
    %465 = vmatprep.subr.mxu0 0.0
    %466 = vmatpush1.msra.mxu0 %v435
    %467 = vmatprep.subr.mxu0 0.0
    %468 = vmatpush1.msra.mxu0 %v436
    %469 = vmatprep.subr.mxu0 0.0
    %470 = vmatpush1.msra.mxu0 0.0
    %471 = vmatprep.subr.mxu0 0.0
    %472 = vmatpush1.msra.mxu0 0.0
    %473 = vmatprep.subr.mxu0 0.0
    %474 = vmatpush1.msra.mxu0 0.0
    %475 = vmatprep.subr.mxu0 0.0
    %476 = vmatpush1.msra.mxu0 0.0
    %477 = vmatprep.subr.mxu0 0.0
    %478 = vmatpush1.msra.mxu0 0.0
    %479 = vmatprep.subr.mxu0 0.0
    %480 = vmatpush1.msra.mxu0 0.0
    %481 = vmatprep.subr.mxu0 0.0
    %482 = vmatpush1.msra.mxu0 0.0
    %483 = vmatprep.subr.mxu0 0.0
    %484 = vmatpush1.msra.mxu0 0.0
    %485 = vmatprep.subr.mxu0 0.0
    %486 = vmatpush1.msra.mxu0 0.0
    %487 = vmatprep.subr.mxu0 0.0
    %488 = vmatpush1.msra.mxu0 0.0
    %489 = vmatprep.subr.mxu0 0.0
    %490 = vmatpush1.msra.mxu0 0.0
    %491 = vmatprep.subr.mxu0 0.0
    %492 = vmatpush1.msra.mxu0 0.0
    %493 = vmatprep.subr.mxu0 0.0
    %494 = vmatpush1.msra.mxu0 0.0
    %495 = vmatprep.subr.mxu0 0.0
    %496 = vmatpush1.msra.mxu0 0.0
    %497 = vmatprep.subr.mxu0 0.0
    %498 = vmatpush1.msra.mxu0 0.0
    %499 = vmatprep.subr.mxu0 0.0
    %500 = vmatpush1.msra.mxu0 0.0
    %501 = vmatprep.subr.mxu0 0.0
    %502 = vmatpush1.msra.mxu0 0.0
    %503 = vmatprep.subr.mxu0 0.0
    %504 = vmatpush1.msra.mxu0 0.0
    %505 = vmatprep.subr.mxu0 0.0
    %506 = vmatpush1.msra.mxu0 0.0
    %507 = vmatprep.subr.mxu0 0.0
    %508 = vmatpush1.msra.mxu0 0.0
    %509 = vmatprep.subr.mxu0 0.0
    %510 = vmatpush1.msra.mxu0 0.0
    %511 = vmatprep.subr.mxu0 0.0
    %512 = vmatpush1.msra.mxu0 0.0
    %513 = vmatprep.subr.mxu0 0.0
    %514 = vmatpush1.msra.mxu0 0.0
    %515 = vmatprep.subr.mxu0 0.0
    %516 = vmatpush1.msra.mxu0 0.0
    %517 = vmatprep.mubr.f32.mxu0 0.0
    %518 = vmatmul.mubr.f32.gmra.mrb[0].mxu0 %v442
    %v519 = vpop.f32.mrb[0].mxu0
    %v520 = vadd.f32 %v437, %v519
    %v521 = vpop.f32.mrb[0].mxu0
    %522 = vmatprep.mubr.f32.mxu0 0.0
    %523 = vmatmul.mubr.f32.gmra.mrb[0].mxu0 %v445
    %v524 = vpop.f32.mrb[0].mxu0
    %v525 = vadd.f32 %v438, %v524
    %v526 = vpop.f32.mrb[0].mxu0
    %527 = vmatprep.mubr.f32.mxu0 0.0
    %528 = vmatmul.mubr.f32.gmra.mrb[0].mxu0 %v448
    %v529 = vpop.f32.mrb[0].mxu0
    %v530 = vadd.f32 %v439, %v529
    %v531 = vpop.f32.mrb[0].mxu0
    %532 = vmatprep.mubr.f32.mxu0 0.0
    %533 = vmatmul.mubr.f32.gmra.mrb[0].mxu0 %v451
    %v534 = vpop.f32.mrb[0].mxu0
    %v535 = vadd.f32 %v440, %v534
    %v536 = vpop.f32.mrb[0].mxu0
    %537 = vdwg.mxu0
    %v538 = vmax.f32 %v520, 0.0
    %v539 = vmax.f32 %v525, 0.0
    %v540 = vmax.f32 %v530, 0.0
    %v541 = vmax.f32 %v535, 0.0
    %s542 = scalar_lea.vmem [#allocation19], 32
    %v543 = vld [vmem:[%s542] sm:$0xff]
    %v544 = vld [vmem:[%s542 + $0x8] sm:$0xff]
    %v545 = vld [vmem:[%s542 + $0x10] sm:$0xff]
    %v546 = vld [vmem:[%s542 + $0x18] sm:$0xff]
    %s547 = scalar_lea.vmem [#allocation19], 64
    %v548 = vld [vmem:[%s547] sm:$0xff]
    %v549 = vld [vmem:[%s547 + $0x8] sm:$0xff]
    %v550 = vld [vmem:[%s547 + $0x10] sm:$0xff]
    %v551 = vld [vmem:[%s547 + $0x18] sm:$0xff]
    %v553 = vsel %vm331, %v548, 0
    %v556 = vsel %vm331, %v549, 0
    %v559 = vsel %vm331, %v550, 0
    %v562 = vsel %vm331, %v551, 0
    %564 = vmatprep.subr.mxu0 0.0
    %565 = vmatpush1.msra.mxu0 %v323
    %566 = vmatprep.subr.mxu0 0.0
    %567 = vmatpush1.msra.mxu0 %v324
    %568 = vmatprep.subr.mxu0 0.0
    %569 = vmatpush1.msra.mxu0 %v325
    %570 = vmatprep.subr.mxu0 0.0
    %571 = vmatpush1.msra.mxu0 %v326
    %572 = vmatprep.subr.mxu0 0.0
    %573 = vmatpush1.msra.mxu0 0.0
    %574 = vmatprep.subr.mxu0 0.0
    %575 = vmatpush1.msra.mxu0 0.0
    %576 = vmatprep.subr.mxu0 0.0
    %577 = vmatpush1.msra.mxu0 0.0
    %578 = vmatprep.subr.mxu0 0.0
    %579 = vmatpush1.msra.mxu0 0.0
    %580 = vmatprep.subr.mxu0 0.0
    %581 = vmatpush1.msra.mxu0 0.0
    %582 = vmatprep.subr.mxu0 0.0
    %583 = vmatpush1.msra.mxu0 0.0
    %584 = vmatprep.subr.mxu0 0.0
    %585 = vmatpush1.msra.mxu0 0.0
    %586 = vmatprep.subr.mxu0 0.0
    %587 = vmatpush1.msra.mxu0 0.0
    %588 = vmatprep.subr.mxu0 0.0
    %589 = vmatpush1.msra.mxu0 0.0
    %590 = vmatprep.subr.mxu0 0.0
    %591 = vmatpush1.msra.mxu0 0.0
    %592 = vmatprep.subr.mxu0 0.0
    %593 = vmatpush1.msra.mxu0 0.0
    %594 = vmatprep.subr.mxu0 0.0
    %595 = vmatpush1.msra.mxu0 0.0
    %596 = vmatprep.subr.mxu0 0.0
    %597 = vmatpush1.msra.mxu0 0.0
    %598 = vmatprep.subr.mxu0 0.0
    %599 = vmatpush1.msra.mxu0 0.0
    %600 = vmatprep.subr.mxu0 0.0
    %601 = vmatpush1.msra.mxu0 0.0
    %602 = vmatprep.subr.mxu0 0.0
    %603 = vmatpush1.msra.mxu0 0.0
    %604 = vmatprep.subr.mxu0 0.0
    %605 = vmatpush1.msra.mxu0 0.0
    %606 = vmatprep.subr.mxu0 0.0
    %607 = vmatpush1.msra.mxu0 0.0
    %608 = vmatprep.subr.mxu0 0.0
    %609 = vmatpush1.msra.mxu0 0.0
    %610 = vmatprep.subr.mxu0 0.0
    %611 = vmatpush1.msra.mxu0 0.0
    %612 = vmatprep.subr.mxu0 0.0
    %613 = vmatpush1.msra.mxu0 0.0
    %614 = vmatprep.subr.mxu0 0.0
    %615 = vmatpush1.msra.mxu0 0.0
    %616 = vmatprep.subr.mxu0 0.0
    %617 = vmatpush1.msra.mxu0 0.0
    %618 = vmatprep.subr.mxu0 0.0
    %619 = vmatpush1.msra.mxu0 0.0
    %620 = vmatprep.subr.mxu0 0.0
    %621 = vmatpush1.msra.mxu0 0.0
    %622 = vmatprep.subr.mxu0 0.0
    %623 = vmatpush1.msra.mxu0 0.0
    %624 = vmatprep.subr.mxu0 0.0
    %625 = vmatpush1.msra.mxu0 0.0
    %626 = vmatprep.subr.mxu0 0.0
    %627 = vmatpush1.msra.mxu0 0.0
    %628 = vmatprep.mubr.f32.mxu0 0.0
    %629 = vmatmul.mubr.f32.gmra.mrb[0].mxu0 %v553
    %v630 = vpop.f32.mrb[0].mxu0
    %v631 = vadd.f32 0.0, %v630
    %v632 = vpop.f32.mrb[0].mxu0
    %633 = vmatprep.mubr.f32.mxu0 0.0
    %634 = vmatmul.mubr.f32.gmra.mrb[0].mxu0 %v556
    %v635 = vpop.f32.mrb[0].mxu0
    %v636 = vadd.f32 0.0, %v635
    %v637 = vpop.f32.mrb[0].mxu0
    %638 = vmatprep.mubr.f32.mxu0 0.0
    %639 = vmatmul.mubr.f32.gmra.mrb[0].mxu0 %v559
    %v640 = vpop.f32.mrb[0].mxu0
    %v641 = vadd.f32 0.0, %v640
    %v642 = vpop.f32.mrb[0].mxu0
    %643 = vmatprep.mubr.f32.mxu0 0.0
    %644 = vmatmul.mubr.f32.gmra.mrb[0].mxu0 %v562
    %v645 = vpop.f32.mrb[0].mxu0
    %v646 = vadd.f32 0.0, %v645
    %v647 = vpop.f32.mrb[0].mxu0
    %648 = vdwg.mxu0
    %v650 = vsel %vm331, %v543, 0
    %v653 = vsel %vm331, %v544, 0
    %v656 = vsel %vm331, %v545, 0
    %v659 = vsel %vm331, %v546, 0
    %661 = vmatprep.subr.mxu0 0.0
    %662 = vmatpush1.msra.mxu0 %v538
    %663 = vmatprep.subr.mxu0 0.0
    %664 = vmatpush1.msra.mxu0 %v539
    %665 = vmatprep.subr.mxu0 0.0
    %666 = vmatpush1.msra.mxu0 %v540
    %667 = vmatprep.subr.mxu0 0.0
    %668 = vmatpush1.msra.mxu0 %v541
    %669 = vmatprep.subr.mxu0 0.0
    %670 = vmatpush1.msra.mxu0 0.0
    %671 = vmatprep.subr.mxu0 0.0
    %672 = vmatpush1.msra.mxu0 0.0
    %673 = vmatprep.subr.mxu0 0.0
    %674 = vmatpush1.msra.mxu0 0.0
    %675 = vmatprep.subr.mxu0 0.0
    %676 = vmatpush1.msra.mxu0 0.0
    %677 = vmatprep.subr.mxu0 0.0
    %678 = vmatpush1.msra.mxu0 0.0
    %679 = vmatprep.subr.mxu0 0.0
    %680 = vmatpush1.msra.mxu0 0.0
    %681 = vmatprep.subr.mxu0 0.0
    %682 = vmatpush1.msra.mxu0 0.0
    %683 = vmatprep.subr.mxu0 0.0
    %684 = vmatpush1.msra.mxu0 0.0
    %685 = vmatprep.subr.mxu0 0.0
    %686 = vmatpush1.msra.mxu0 0.0
    %687 = vmatprep.subr.mxu0 0.0
    %688 = vmatpush1.msra.mxu0 0.0
    %689 = vmatprep.subr.mxu0 0.0
    %690 = vmatpush1.msra.mxu0 0.0
    %691 = vmatprep.subr.mxu0 0.0
    %692 = vmatpush1.msra.mxu0 0.0
    %693 = vmatprep.subr.mxu0 0.0
    %694 = vmatpush1.msra.mxu0 0.0
    %695 = vmatprep.subr.mxu0 0.0
    %696 = vmatpush1.msra.mxu0 0.0
    %697 = vmatprep.subr.mxu0 0.0
    %698 = vmatpush1.msra.mxu0 0.0
    %699 = vmatprep.subr.mxu0 0.0
    %700 = vmatpush1.msra.mxu0 0.0
    %701 = vmatprep.subr.mxu0 0.0
    %702 = vmatpush1.msra.mxu0 0.0
    %703 = vmatprep.subr.mxu0 0.0
    %704 = vmatpush1.msra.mxu0 0.0
    %705 = vmatprep.subr.mxu0 0.0
    %706 = vmatpush1.msra.mxu0 0.0
    %707 = vmatprep.subr.mxu0 0.0
    %708 = vmatpush1.msra.mxu0 0.0
    %709 = vmatprep.subr.mxu0 0.0
    %710 = vmatpush1.msra.mxu0 0.0
    %711 = vmatprep.subr.mxu0 0.0
    %712 = vmatpush1.msra.mxu0 0.0
    %713 = vmatprep.subr.mxu0 0.0
    %714 = vmatpush1.msra.mxu0 0.0
    %715 = vmatprep.subr.mxu0 0.0
    %716 = vmatpush1.msra.mxu0 0.0
    %717 = vmatprep.subr.mxu0 0.0
    %718 = vmatpush1.msra.mxu0 0.0
    %719 = vmatprep.subr.mxu0 0.0
    %720 = vmatpush1.msra.mxu0 0.0
    %721 = vmatprep.subr.mxu0 0.0
    %722 = vmatpush1.msra.mxu0 0.0
    %723 = vmatprep.subr.mxu0 0.0
    %724 = vmatpush1.msra.mxu0 0.0
    %725 = vmatprep.mubr.f32.mxu0 0.0
    %726 = vmatmul.mubr.f32.gmra.mrb[0].mxu0 %v650
    %v727 = vpop.f32.mrb[0].mxu0
    %v728 = vadd.f32 %v631, %v727
    %v729 = vpop.f32.mrb[0].mxu0
    %730 = vmatprep.mubr.f32.mxu0 0.0
    %731 = vmatmul.mubr.f32.gmra.mrb[0].mxu0 %v653
    %v732 = vpop.f32.mrb[0].mxu0
    %v733 = vadd.f32 %v636, %v732
    %v734 = vpop.f32.mrb[0].mxu0
    %735 = vmatprep.mubr.f32.mxu0 0.0
    %736 = vmatmul.mubr.f32.gmra.mrb[0].mxu0 %v656
    %v737 = vpop.f32.mrb[0].mxu0
    %v738 = vadd.f32 %v641, %v737
    %v739 = vpop.f32.mrb[0].mxu0
    %740 = vmatprep.mubr.f32.mxu0 0.0
    %741 = vmatmul.mubr.f32.gmra.mrb[0].mxu0 %v659
    %v742 = vpop.f32.mrb[0].mxu0
    %v743 = vadd.f32 %v646, %v742
    %v744 = vpop.f32.mrb[0].mxu0
    %745 = vdwg.mxu0
    %v746 = vld [vmem:[#allocation5] sm:$0xff]
    %v747 = vld [vmem:[#allocation5 + $0x8] sm:$0xff]
    %v748 = vld [vmem:[#allocation5 + $0x10] sm:$0xff]
    %v749 = vld [vmem:[#allocation5 + $0x18] sm:$0xff]
    %v750 = vld [vmem:[#allocation5 + $0x20] sm:$0xff]
    %v751 = vld [vmem:[#allocation5 + $0x28] sm:$0xff]
    %v752 = vld [vmem:[#allocation5 + $0x30] sm:$0xff]
    %v753 = vld [vmem:[#allocation5 + $0x38] sm:$0xff]
    %v754 = vld [vmem:[#allocation5 + $0x40] sm:$0xff]
    %v755 = vld [vmem:[#allocation5 + $0x48] sm:$0xff]
    %v756 = vld [vmem:[#allocation5 + $0x50] sm:$0xff]
    %v757 = vld [vmem:[#allocation5 + $0x58] sm:$0xff]
    %v758 = vld [vmem:[#allocation5 + $0x60] sm:$0xff]
    %v759 = vld [vmem:[#allocation5 + $0x68] sm:$0xff]
    %v760 = vld [vmem:[#allocation5 + $0x70] sm:$0xff]
    %v761 = vld [vmem:[#allocation5 + $0x78] sm:$0xff]
    %s762 = scalar_lea.vmem [#allocation20], 32
    %v763 = vld [vmem:[%s762] sm:$0xff]
    %v764 = vld [vmem:[%s762 + $0x8] sm:$0xff]
    %v765 = vld [vmem:[%s762 + $0x10] sm:$0xff]
    %v766 = vld [vmem:[%s762 + $0x18] sm:$0xff]
    %767 = vmatprep.subr.mxu0 0.0
    %768 = vmatpush1.msra.mxu0 %v746
    %769 = vmatprep.subr.mxu0 0.0
    %770 = vmatpush1.msra.mxu0 %v747
    %771 = vmatprep.subr.mxu0 0.0
    %772 = vmatpush1.msra.mxu0 %v748
    %773 = vmatprep.subr.mxu0 0.0
    %774 = vmatpush1.msra.mxu0 %v749
    %775 = vmatprep.subr.mxu0 0.0
    %776 = vmatpush1.msra.mxu0 %v750
    %777 = vmatprep.subr.mxu0 0.0
    %778 = vmatpush1.msra.mxu0 %v751
    %779 = vmatprep.subr.mxu0 0.0
    %780 = vmatpush1.msra.mxu0 %v752
    %781 = vmatprep.subr.mxu0 0.0
    %782 = vmatpush1.msra.mxu0 %v753
    %783 = vmatprep.subr.mxu0 0.0
    %784 = vmatpush1.msra.mxu0 %v754
    %785 = vmatprep.subr.mxu0 0.0
    %786 = vmatpush1.msra.mxu0 %v755
    %787 = vmatprep.subr.mxu0 0.0
    %788 = vmatpush1.msra.mxu0 %v756
    %789 = vmatprep.subr.mxu0 0.0
    %790 = vmatpush1.msra.mxu0 %v757
    %791 = vmatprep.subr.mxu0 0.0
    %792 = vmatpush1.msra.mxu0 %v758
    %793 = vmatprep.subr.mxu0 0.0
    %794 = vmatpush1.msra.mxu0 %v759
    %795 = vmatprep.subr.mxu0 0.0
    %796 = vmatpush1.msra.mxu0 %v760
    %797 = vmatprep.subr.mxu0 0.0
    %798 = vmatpush1.msra.mxu0 %v761
    %799 = vmatprep.subr.mxu0 0.0
    %800 = vmatpush1.msra.mxu0 0.0
    %801 = vmatprep.subr.mxu0 0.0
    %802 = vmatpush1.msra.mxu0 0.0
    %803 = vmatprep.subr.mxu0 0.0
    %804 = vmatpush1.msra.mxu0 0.0
    %805 = vmatprep.subr.mxu0 0.0
    %806 = vmatpush1.msra.mxu0 0.0
    %807 = vmatprep.subr.mxu0 0.0
    %808 = vmatpush1.msra.mxu0 0.0
    %809 = vmatprep.subr.mxu0 0.0
    %810 = vmatpush1.msra.mxu0 0.0
    %811 = vmatprep.subr.mxu0 0.0
    %812 = vmatpush1.msra.mxu0 0.0
    %813 = vmatprep.subr.mxu0 0.0
    %814 = vmatpush1.msra.mxu0 0.0
    %815 = vmatprep.subr.mxu0 0.0
    %816 = vmatpush1.msra.mxu0 0.0
    %817 = vmatprep.subr.mxu0 0.0
    %818 = vmatpush1.msra.mxu0 0.0
    %819 = vmatprep.subr.mxu0 0.0
    %820 = vmatpush1.msra.mxu0 0.0
    %821 = vmatprep.subr.mxu0 0.0
    %822 = vmatpush1.msra.mxu0 0.0
    %823 = vmatprep.subr.mxu0 0.0
    %824 = vmatpush1.msra.mxu0 0.0
    %825 = vmatprep.subr.mxu0 0.0
    %826 = vmatpush1.msra.mxu0 0.0
    %827 = vmatprep.subr.mxu0 0.0
    %828 = vmatpush1.msra.mxu0 0.0
    %829 = vmatprep.subr.mxu0 0.0
    %830 = vmatpush1.msra.mxu0 0.0
    %831 = vmatprep.mubr.f32.mxu0 0.0
    %832 = vmatmul.mubr.f32.gmra.mrb[0].mxu0 %v728
    %v833 = vpop.f32.mrb[0].mxu0
    %v834 = vadd.f32 %v763, %v833
    %v835 = vpop.f32.mrb[0].mxu0
    %836 = vmatprep.mubr.f32.mxu0 0.0
    %837 = vmatmul.mubr.f32.gmra.mrb[0].mxu0 %v733
    %v838 = vpop.f32.mrb[0].mxu0
    %v839 = vadd.f32 %v764, %v838
    %v840 = vpop.f32.mrb[0].mxu0
    %841 = vmatprep.mubr.f32.mxu0 0.0
    %842 = vmatmul.mubr.f32.gmra.mrb[0].mxu0 %v738
    %v843 = vpop.f32.mrb[0].mxu0
    %v844 = vadd.f32 %v765, %v843
    %v845 = vpop.f32.mrb[0].mxu0
    %846 = vmatprep.mubr.f32.mxu0 0.0
    %847 = vmatmul.mubr.f32.gmra.mrb[0].mxu0 %v743
    %v848 = vpop.f32.mrb[0].mxu0
    %v849 = vadd.f32 %v766, %v848
    %v850 = vpop.f32.mrb[0].mxu0
    %851 = vdwg.mxu0
    %v852 = vmax.f32 %v834, 0.0
    %v853 = vmax.f32 %v839, 0.0
    %v854 = vmax.f32 %v844, 0.0
    %v855 = vmax.f32 %v849, 0.0
    %s856 = scalar_lea.vmem [#allocation19], 96
    %v857 = vld [vmem:[%s856] sm:$0xff]
    %v858 = vld [vmem:[%s856 + $0x8] sm:$0xff]
    %v859 = vld [vmem:[%s856 + $0x10] sm:$0xff]
    %v860 = vld [vmem:[%s856 + $0x18] sm:$0xff]
    %v862 = vsel %vm331, %v857, 0
    %v865 = vsel %vm331, %v858, 0
    %v868 = vsel %vm331, %v859, 0
    %v871 = vsel %vm331, %v860, 0
    %873 = vmatprep.subr.mxu0 0.0
    %874 = vmatpush1.msra.mxu0 %v852
    %875 = vmatprep.subr.mxu0 0.0
    %876 = vmatpush1.msra.mxu0 %v853
    %877 = vmatprep.subr.mxu0 0.0
    %878 = vmatpush1.msra.mxu0 %v854
    %879 = vmatprep.subr.mxu0 0.0
    %880 = vmatpush1.msra.mxu0 %v855
    %881 = vmatprep.subr.mxu0 0.0
    %882 = vmatpush1.msra.mxu0 0.0
    %883 = vmatprep.subr.mxu0 0.0
    %884 = vmatpush1.msra.mxu0 0.0
    %885 = vmatprep.subr.mxu0 0.0
    %886 = vmatpush1.msra.mxu0 0.0
    %887 = vmatprep.subr.mxu0 0.0
    %888 = vmatpush1.msra.mxu0 0.0
    %889 = vmatprep.subr.mxu0 0.0
    %890 = vmatpush1.msra.mxu0 0.0
    %891 = vmatprep.subr.mxu0 0.0
    %892 = vmatpush1.msra.mxu0 0.0
    %893 = vmatprep.subr.mxu0 0.0
    %894 = vmatpush1.msra.mxu0 0.0
    %895 = vmatprep.subr.mxu0 0.0
    %896 = vmatpush1.msra.mxu0 0.0
    %897 = vmatprep.subr.mxu0 0.0
    %898 = vmatpush1.msra.mxu0 0.0
    %899 = vmatprep.subr.mxu0 0.0
    %900 = vmatpush1.msra.mxu0 0.0
    %901 = vmatprep.subr.mxu0 0.0
    %902 = vmatpush1.msra.mxu0 0.0
    %903 = vmatprep.subr.mxu0 0.0
    %904 = vmatpush1.msra.mxu0 0.0
    %905 = vmatprep.subr.mxu0 0.0
    %906 = vmatpush1.msra.mxu0 0.0
    %907 = vmatprep.subr.mxu0 0.0
    %908 = vmatpush1.msra.mxu0 0.0
    %909 = vmatprep.subr.mxu0 0.0
    %910 = vmatpush1.msra.mxu0 0.0
    %911 = vmatprep.subr.mxu0 0.0
    %912 = vmatpush1.msra.mxu0 0.0
    %913 = vmatprep.subr.mxu0 0.0
    %914 = vmatpush1.msra.mxu0 0.0
    %915 = vmatprep.subr.mxu0 0.0
    %916 = vmatpush1.msra.mxu0 0.0
    %917 = vmatprep.subr.mxu0 0.0
    %918 = vmatpush1.msra.mxu0 0.0
    %919 = vmatprep.subr.mxu0 0.0
    %920 = vmatpush1.msra.mxu0 0.0
    %921 = vmatprep.subr.mxu0 0.0
    %922 = vmatpush1.msra.mxu0 0.0
    %923 = vmatprep.subr.mxu0 0.0
    %924 = vmatpush1.msra.mxu0 0.0
    %925 = vmatprep.subr.mxu0 0.0
    %926 = vmatpush1.msra.mxu0 0.0
    %927 = vmatprep.subr.mxu0 0.0
    %928 = vmatpush1.msra.mxu0 0.0
    %929 = vmatprep.subr.mxu0 0.0
    %930 = vmatpush1.msra.mxu0 0.0
    %931 = vmatprep.subr.mxu0 0.0
    %932 = vmatpush1.msra.mxu0 0.0
    %933 = vmatprep.subr.mxu0 0.0
    %934 = vmatpush1.msra.mxu0 0.0
    %935 = vmatprep.subr.mxu0 0.0
    %936 = vmatpush1.msra.mxu0 0.0
    %937 = vmatprep.mubr.f32.mxu0 0.0
    %938 = vmatmul.mubr.f32.gmra.mrb[0].mxu0 %v862
    %v939 = vpop.f32.mrb[0].mxu0
    %v940 = vadd.f32 0.0, %v939
    %v941 = vpop.f32.mrb[0].mxu0
    %942 = vmatprep.mubr.f32.mxu0 0.0
    %943 = vmatmul.mubr.f32.gmra.mrb[0].mxu0 %v865
    %v944 = vpop.f32.mrb[0].mxu0
    %v945 = vadd.f32 0.0, %v944
    %v946 = vpop.f32.mrb[0].mxu0
    %947 = vmatprep.mubr.f32.mxu0 0.0
    %948 = vmatmul.mubr.f32.gmra.mrb[0].mxu0 %v868
    %v949 = vpop.f32.mrb[0].mxu0
    %v950 = vadd.f32 0.0, %v949
    %v951 = vpop.f32.mrb[0].mxu0
    %952 = vmatprep.mubr.f32.mxu0 0.0
    %953 = vmatmul.mubr.f32.gmra.mrb[0].mxu0 %v871
    %v954 = vpop.f32.mrb[0].mxu0
    %v955 = vadd.f32 0.0, %v954
    %v956 = vpop.f32.mrb[0].mxu0
    %957 = vdwg.mxu0
    %v958 = vld [vmem:[#allocation8] sm:$0xff]
    %v959 = vld [vmem:[#allocation8 + $0x8] sm:$0xff]
    %v960 = vld [vmem:[#allocation8 + $0x10] sm:$0xff]
    %v961 = vld [vmem:[#allocation8 + $0x18] sm:$0xff]
    %v962 = vld [vmem:[#allocation8 + $0x20] sm:$0xff]
    %v963 = vld [vmem:[#allocation8 + $0x28] sm:$0xff]
    %v964 = vld [vmem:[#allocation8 + $0x30] sm:$0xff]
    %v965 = vld [vmem:[#allocation8 + $0x38] sm:$0xff]
    %v966 = vld [vmem:[#allocation8 + $0x40] sm:$0xff]
    %v967 = vld [vmem:[#allocation8 + $0x48] sm:$0xff]
    %v968 = vld [vmem:[#allocation8 + $0x50] sm:$0xff]
    %v969 = vld [vmem:[#allocation8 + $0x58] sm:$0xff]
    %v970 = vld [vmem:[#allocation8 + $0x60] sm:$0xff]
    %v971 = vld [vmem:[#allocation8 + $0x68] sm:$0xff]
    %v972 = vld [vmem:[#allocation8 + $0x70] sm:$0xff]
    %v973 = vld [vmem:[#allocation8 + $0x78] sm:$0xff]
    %s974 = scalar_lea.vmem [#allocation19], 128
    %v975 = vld [vmem:[%s974] sm:$0xff]
    %v976 = vld [vmem:[%s974 + $0x8] sm:$0xff]
    %v977 = vld [vmem:[%s974 + $0x10] sm:$0xff]
    %v978 = vld [vmem:[%s974 + $0x18] sm:$0xff]
    %v980 = vsel %vm331, %v975, 0
    %v983 = vsel %vm331, %v976, 0
    %v986 = vsel %vm331, %v977, 0
    %v989 = vsel %vm331, %v978, 0
    %991 = vmatprep.subr.mxu0 0.0
    %992 = vmatpush1.msra.mxu0 %v852
    %993 = vmatprep.subr.mxu0 0.0
    %994 = vmatpush1.msra.mxu0 %v853
    %995 = vmatprep.subr.mxu0 0.0
    %996 = vmatpush1.msra.mxu0 %v854
    %997 = vmatprep.subr.mxu0 0.0
    %998 = vmatpush1.msra.mxu0 %v855
    %999 = vmatprep.subr.mxu0 0.0
    %1000 = vmatpush1.msra.mxu0 0.0
    %1001 = vmatprep.subr.mxu0 0.0
    %1002 = vmatpush1.msra.mxu0 0.0
    %1003 = vmatprep.subr.mxu0 0.0
    %1004 = vmatpush1.msra.mxu0 0.0
    %1005 = vmatprep.subr.mxu0 0.0
    %1006 = vmatpush1.msra.mxu0 0.0
    %1007 = vmatprep.subr.mxu0 0.0
    %1008 = vmatpush1.msra.mxu0 0.0
    %1009 = vmatprep.subr.mxu0 0.0
    %1010 = vmatpush1.msra.mxu0 0.0
    %1011 = vmatprep.subr.mxu0 0.0
    %1012 = vmatpush1.msra.mxu0 0.0
    %1013 = vmatprep.subr.mxu0 0.0
    %1014 = vmatpush1.msra.mxu0 0.0
    %1015 = vmatprep.subr.mxu0 0.0
    %1016 = vmatpush1.msra.mxu0 0.0
    %1017 = vmatprep.subr.mxu0 0.0
    %1018 = vmatpush1.msra.mxu0 0.0
    %1019 = vmatprep.subr.mxu0 0.0
    %1020 = vmatpush1.msra.mxu0 0.0
    %1021 = vmatprep.subr.mxu0 0.0
    %1022 = vmatpush1.msra.mxu0 0.0
    %1023 = vmatprep.subr.mxu0 0.0
    %1024 = vmatpush1.msra.mxu0 0.0
    %1025 = vmatprep.subr.mxu0 0.0
    %1026 = vmatpush1.msra.mxu0 0.0
    %1027 = vmatprep.subr.mxu0 0.0
    %1028 = vmatpush1.msra.mxu0 0.0
    %1029 = vmatprep.subr.mxu0 0.0
    %1030 = vmatpush1.msra.mxu0 0.0
    %1031 = vmatprep.subr.mxu0 0.0
    %1032 = vmatpush1.msra.mxu0 0.0
    %1033 = vmatprep.subr.mxu0 0.0
    %1034 = vmatpush1.msra.mxu0 0.0
    %1035 = vmatprep.subr.mxu0 0.0
    %1036 = vmatpush1.msra.mxu0 0.0
    %1037 = vmatprep.subr.mxu0 0.0
    %1038 = vmatpush1.msra.mxu0 0.0
    %1039 = vmatprep.subr.mxu0 0.0
    %1040 = vmatpush1.msra.mxu0 0.0
    %1041 = vmatprep.subr.mxu0 0.0
    %1042 = vmatpush1.msra.mxu0 0.0
    %1043 = vmatprep.subr.mxu0 0.0
    %1044 = vmatpush1.msra.mxu0 0.0
    %1045 = vmatprep.subr.mxu0 0.0
    %1046 = vmatpush1.msra.mxu0 0.0
    %1047 = vmatprep.subr.mxu0 0.0
    %1048 = vmatpush1.msra.mxu0 0.0
    %1049 = vmatprep.subr.mxu0 0.0
    %1050 = vmatpush1.msra.mxu0 0.0
    %1051 = vmatprep.subr.mxu0 0.0
    %1052 = vmatpush1.msra.mxu0 0.0
    %1053 = vmatprep.subr.mxu0 0.0
    %1054 = vmatpush1.msra.mxu0 0.0
    %1055 = vmatprep.mubr.f32.mxu0 0.0
    %1056 = vmatmul.mubr.f32.gmra.mrb[0].mxu0 %v980
    %v1057 = vpop.f32.mrb[0].mxu0
    %v1058 = vadd.f32 0.0, %v1057
    %v1059 = vpop.f32.mrb[0].mxu0
    %1060 = vmatprep.mubr.f32.mxu0 0.0
    %1061 = vmatmul.mubr.f32.gmra.mrb[0].mxu0 %v983
    %v1062 = vpop.f32.mrb[0].mxu0
    %v1063 = vadd.f32 0.0, %v1062
    %v1064 = vpop.f32.mrb[0].mxu0
    %1065 = vmatprep.mubr.f32.mxu0 0.0
    %1066 = vmatmul.mubr.f32.gmra.mrb[0].mxu0 %v986
    %v1067 = vpop.f32.mrb[0].mxu0
    %v1068 = vadd.f32 0.0, %v1067
    %v1069 = vpop.f32.mrb[0].mxu0
    %1070 = vmatprep.mubr.f32.mxu0 0.0
    %1071 = vmatmul.mubr.f32.gmra.mrb[0].mxu0 %v989
    %v1072 = vpop.f32.mrb[0].mxu0
    %v1073 = vadd.f32 0.0, %v1072
    %v1074 = vpop.f32.mrb[0].mxu0
    %1075 = vdwg.mxu0
    %1076 = vmatprep.subr.mxu0 0.0
    %1077 = vmatpush1.msra.mxu0 %v958
    %1078 = vmatprep.subr.mxu0 0.0
    %1079 = vmatpush1.msra.mxu0 %v959
    %1080 = vmatprep.subr.mxu0 0.0
    %1081 = vmatpush1.msra.mxu0 %v960
    %1082 = vmatprep.subr.mxu0 0.0
    %1083 = vmatpush1.msra.mxu0 %v961
    %1084 = vmatprep.subr.mxu0 0.0
    %1085 = vmatpush1.msra.mxu0 %v962
    %1086 = vmatprep.subr.mxu0 0.0
    %1087 = vmatpush1.msra.mxu0 %v963
    %1088 = vmatprep.subr.mxu0 0.0
    %1089 = vmatpush1.msra.mxu0 %v964
    %1090 = vmatprep.subr.mxu0 0.0
    %1091 = vmatpush1.msra.mxu0 %v965
    %1092 = vmatprep.subr.mxu0 0.0
    %1093 = vmatpush1.msra.mxu0 %v966
    %1094 = vmatprep.subr.mxu0 0.0
    %1095 = vmatpush1.msra.mxu0 %v967
    %1096 = vmatprep.subr.mxu0 0.0
    %1097 = vmatpush1.msra.mxu0 %v968
    %1098 = vmatprep.subr.mxu0 0.0
    %1099 = vmatpush1.msra.mxu0 %v969
    %1100 = vmatprep.subr.mxu0 0.0
    %1101 = vmatpush1.msra.mxu0 %v970
    %1102 = vmatprep.subr.mxu0 0.0
    %1103 = vmatpush1.msra.mxu0 %v971
    %1104 = vmatprep.subr.mxu0 0.0
    %1105 = vmatpush1.msra.mxu0 %v972
    %1106 = vmatprep.subr.mxu0 0.0
    %1107 = vmatpush1.msra.mxu0 %v973
    %1108 = vmatprep.subr.mxu0 0.0
    %1109 = vmatpush1.msra.mxu0 0.0
    %1110 = vmatprep.subr.mxu0 0.0
    %1111 = vmatpush1.msra.mxu0 0.0
    %1112 = vmatprep.subr.mxu0 0.0
    %1113 = vmatpush1.msra.mxu0 0.0
    %1114 = vmatprep.subr.mxu0 0.0
    %1115 = vmatpush1.msra.mxu0 0.0
    %1116 = vmatprep.subr.mxu0 0.0
    %1117 = vmatpush1.msra.mxu0 0.0
    %1118 = vmatprep.subr.mxu0 0.0
    %1119 = vmatpush1.msra.mxu0 0.0
    %1120 = vmatprep.subr.mxu0 0.0
    %1121 = vmatpush1.msra.mxu0 0.0
    %1122 = vmatprep.subr.mxu0 0.0
    %1123 = vmatpush1.msra.mxu0 0.0
    %1124 = vmatprep.subr.mxu0 0.0
    %1125 = vmatpush1.msra.mxu0 0.0
    %1126 = vmatprep.subr.mxu0 0.0
    %1127 = vmatpush1.msra.mxu0 0.0
    %1128 = vmatprep.subr.mxu0 0.0
    %1129 = vmatpush1.msra.mxu0 0.0
    %1130 = vmatprep.subr.mxu0 0.0
    %1131 = vmatpush1.msra.mxu0 0.0
    %1132 = vmatprep.subr.mxu0 0.0
    %1133 = vmatpush1.msra.mxu0 0.0
    %1134 = vmatprep.subr.mxu0 0.0
    %1135 = vmatpush1.msra.mxu0 0.0
    %1136 = vmatprep.subr.mxu0 0.0
    %1137 = vmatpush1.msra.mxu0 0.0
    %1138 = vmatprep.subr.mxu0 0.0
    %1139 = vmatpush1.msra.mxu0 0.0
    %1140 = vmatprep.mubr.f32.mxu0 0.0
    %1141 = vmatmul.mubr.f32.gmra.mrb[0].mxu0 %v940
    %v1142 = vpop.f32.mrb[0].mxu0
    %v1143 = vadd.f32 %v1058, %v1142
    %v1144 = vpop.f32.mrb[0].mxu0
    %1145 = vmatprep.mubr.f32.mxu0 0.0
    %1146 = vmatmul.mubr.f32.gmra.mrb[0].mxu0 %v945
    %v1147 = vpop.f32.mrb[0].mxu0
    %v1148 = vadd.f32 %v1063, %v1147
    %v1149 = vpop.f32.mrb[0].mxu0
    %1150 = vmatprep.mubr.f32.mxu0 0.0
    %1151 = vmatmul.mubr.f32.gmra.mrb[0].mxu0 %v950
    %v1152 = vpop.f32.mrb[0].mxu0
    %v1153 = vadd.f32 %v1068, %v1152
    %v1154 = vpop.f32.mrb[0].mxu0
    %1155 = vmatprep.mubr.f32.mxu0 0.0
    %1156 = vmatmul.mubr.f32.gmra.mrb[0].mxu0 %v955
    %v1157 = vpop.f32.mrb[0].mxu0
    %v1158 = vadd.f32 %v1073, %v1157
    %v1159 = vpop.f32.mrb[0].mxu0
    %1160 = vdwg.mxu0
    %s1161 = scalar_lea.vmem [#allocation20], 64
    %v1162 = vld [vmem:[%s1161] sm:$0xff]
    %v1163 = vld [vmem:[%s1161 + $0x8] sm:$0xff]
    %v1164 = vld [vmem:[%s1161 + $0x10] sm:$0xff]
    %v1165 = vld [vmem:[%s1161 + $0x18] sm:$0xff]
    %v1166 = vadd.f32 %v1143, %v1162
    %v1167 = vadd.f32 %v1148, %v1163
    %v1168 = vadd.f32 %v1153, %v1164
    %v1169 = vadd.f32 %v1158, %v1165
    %v1170 = vmax.f32 %v1166, 0.0
    %v1171 = vmax.f32 %v1167, 0.0
    %v1172 = vmax.f32 %v1168, 0.0
    %v1173 = vmax.f32 %v1169, 0.0
    %1174 = vadd.xlane.f32.xlu0 %v1170
    %v1175 = vpop.xlane.xlu0 %1174
    %1176 = vadd.xlane.f32.xlu0 %v1171
    %v1177 = vpop.xlane.xlu0 %1176
    %1178 = vadd.xlane.f32.xlu0 %v1172
    %v1179 = vpop.xlane.xlu0 %1178
    %1180 = vadd.xlane.f32.xlu0 %v1173
    %v1181 = vpop.xlane.xlu0 %1180
    %v1182 = vmul.f32 %v1175, %v290
    %v1183 = vmul.f32 %v1177, %v290
    %v1184 = vmul.f32 %v1179, %v290
    %v1185 = vmul.f32 %v1181, %v290
    %v1186 = vsub.f32 %v1170, %v1182
    %v1187 = vsub.f32 %v1171, %v1183
    %v1188 = vsub.f32 %v1172, %v1184
    %v1189 = vsub.f32 %v1173, %v1185
    %v1190 = vmul.f32 %v1186, %v1186
    %v1191 = vmul.f32 %v1187, %v1187
    %v1192 = vmul.f32 %v1188, %v1188
    %v1193 = vmul.f32 %v1189, %v1189
    %1194 = vadd.xlane.f32.xlu0 %v1190
    %v1195 = vpop.xlane.xlu0 %1194
    %1196 = vadd.xlane.f32.xlu0 %v1191
    %v1197 = vpop.xlane.xlu0 %1196
    %1198 = vadd.xlane.f32.xlu0 %v1192
    %v1199 = vpop.xlane.xlu0 %1198
    %1200 = vadd.xlane.f32.xlu0 %v1193
    %v1201 = vpop.xlane.xlu0 %1200
    %v1202 = vmul.f32 %v1195, %v290
    %v1203 = vmul.f32 %v1197, %v290
    %v1204 = vmul.f32 %v1199, %v290
    %v1205 = vmul.f32 %v1201, %v290
    %v1206 = vadd.f32 %v1202, 1e-05
    %v1207 = vadd.f32 %v1203, 1e-05
    %v1208 = vadd.f32 %v1204, 1e-05
    %v1209 = vadd.f32 %v1205, 1e-05
    %v1210 = vrsqrt.pop %v1206
    %v1211 = vrsqrt.pop %v1207
    %v1212 = vrsqrt.pop %v1208
    %v1213 = vrsqrt.pop %v1209
    %v1214 = vmul.f32 %v1186, %v1210
    %v1215 = vmul.f32 %v1187, %v1211
    %v1216 = vmul.f32 %v1188, %v1212
    %v1217 = vmul.f32 %v1189, %v1213
    %v1218 = vld [vmem:[#allocation14] sm:$0xff]
    %v1219 = vld [vmem:[#allocation14 + $0x8] sm:$0xff]
    %v1220 = vld [vmem:[#allocation14 + $0x10] sm:$0xff]
    %v1221 = vld [vmem:[#allocation14 + $0x18] sm:$0xff]
    %v1222 = vld [vmem:[#allocation14 + $0x20] sm:$0xff]
    %v1223 = vld [vmem:[#allocation14 + $0x28] sm:$0xff]
    %v1224 = vld [vmem:[#allocation14 + $0x30] sm:$0xff]
    %v1225 = vld [vmem:[#allocation14 + $0x38] sm:$0xff]
    %v1226 = vld [vmem:[#allocation14 + $0x40] sm:$0xff]
    %v1227 = vld [vmem:[#allocation14 + $0x48] sm:$0xff]
    %v1228 = vld [vmem:[#allocation14 + $0x50] sm:$0xff]
    %v1229 = vld [vmem:[#allocation14 + $0x58] sm:$0xff]
    %v1230 = vld [vmem:[#allocation14 + $0x60] sm:$0xff]
    %v1231 = vld [vmem:[#allocation14 + $0x68] sm:$0xff]
    %v1232 = vld [vmem:[#allocation14 + $0x70] sm:$0xff]
    %v1233 = vld [vmem:[#allocation14 + $0x78] sm:$0xff]
    %1234 = vmatprep.subr.mxu0 0.0
    %1235 = vmatpush1.msra.mxu0 %v1218
    %1236 = vmatprep.subr.mxu0 0.0
    %1237 = vmatpush1.msra.mxu0 %v1219
    %1238 = vmatprep.subr.mxu0 0.0
    %1239 = vmatpush1.msra.mxu0 %v1220
    %1240 = vmatprep.subr.mxu0 0.0
    %1241 = vmatpush1.msra.mxu0 %v1221
    %1242 = vmatprep.subr.mxu0 0.0
    %1243 = vmatpush1.msra.mxu0 %v1222
    %1244 = vmatprep.subr.mxu0 0.0
    %1245 = vmatpush1.msra.mxu0 %v1223
    %1246 = vmatprep.subr.mxu0 0.0
    %1247 = vmatpush1.msra.mxu0 %v1224
    %1248 = vmatprep.subr.mxu0 0.0
    %1249 = vmatpush1.msra.mxu0 %v1225
    %1250 = vmatprep.subr.mxu0 0.0
    %1251 = vmatpush1.msra.mxu0 %v1226
    %1252 = vmatprep.subr.mxu0 0.0
    %1253 = vmatpush1.msra.mxu0 %v1227
    %1254 = vmatprep.subr.mxu0 0.0
    %1255 = vmatpush1.msra.mxu0 %v1228
    %1256 = vmatprep.subr.mxu0 0.0
    %1257 = vmatpush1.msra.mxu0 %v1229
    %1258 = vmatprep.subr.mxu0 0.0
    %1259 = vmatpush1.msra.mxu0 %v1230
    %1260 = vmatprep.subr.mxu0 0.0
    %1261 = vmatpush1.msra.mxu0 %v1231
    %1262 = vmatprep.subr.mxu0 0.0
    %1263 = vmatpush1.msra.mxu0 %v1232
    %1264 = vmatprep.subr.mxu0 0.0
    %1265 = vmatpush1.msra.mxu0 %v1233
    %1266 = vmatprep.subr.mxu0 0.0
    %1267 = vmatpush1.msra.mxu0 0.0
    %1268 = vmatprep.subr.mxu0 0.0
    %1269 = vmatpush1.msra.mxu0 0.0
    %1270 = vmatprep.subr.mxu0 0.0
    %1271 = vmatpush1.msra.mxu0 0.0
    %1272 = vmatprep.subr.mxu0 0.0
    %1273 = vmatpush1.msra.mxu0 0.0
    %1274 = vmatprep.subr.mxu0 0.0
    %1275 = vmatpush1.msra.mxu0 0.0
    %1276 = vmatprep.subr.mxu0 0.0
    %1277 = vmatpush1.msra.mxu0 0.0
    %1278 = vmatprep.subr.mxu0 0.0
    %1279 = vmatpush1.msra.mxu0 0.0
    %1280 = vmatprep.subr.mxu0 0.0
    %1281 = vmatpush1.msra.mxu0 0.0
    %1282 = vmatprep.subr.mxu0 0.0
    %1283 = vmatpush1.msra.mxu0 0.0
    %1284 = vmatprep.subr.mxu0 0.0
    %1285 = vmatpush1.msra.mxu0 0.0
    %1286 = vmatprep.subr.mxu0 0.0
    %1287 = vmatpush1.msra.mxu0 0.0
    %1288 = vmatprep.subr.mxu0 0.0
    %1289 = vmatpush1.msra.mxu0 0.0
    %1290 = vmatprep.subr.mxu0 0.0
    %1291 = vmatpush1.msra.mxu0 0.0
    %1292 = vmatprep.subr.mxu0 0.0
    %1293 = vmatpush1.msra.mxu0 0.0
    %1294 = vmatprep.subr.mxu0 0.0
    %1295 = vmatpush1.msra.mxu0 0.0
    %1296 = vmatprep.subr.mxu0 0.0
    %1297 = vmatpush1.msra.mxu0 0.0
    %1298 = vmatprep.mubr.f32.mxu0 0.0
    %1299 = vmatmul.mubr.f32.gmra.mrb[0].mxu0 %v1214
    %v1300 = vpop.f32.mrb[0].mxu0
    %v1301 = vadd.f32 0.0, %v1300
    %v1302 = vpop.f32.mrb[0].mxu0
    %1303 = vmatprep.mubr.f32.mxu0 0.0
    %1304 = vmatmul.mubr.f32.gmra.mrb[0].mxu0 %v1215
    %v1305 = vpop.f32.mrb[0].mxu0
    %v1306 = vadd.f32 0.0, %v1305
    %v1307 = vpop.f32.mrb[0].mxu0
    %1308 = vmatprep.mubr.f32.mxu0 0.0
    %1309 = vmatmul.mubr.f32.gmra.mrb[0].mxu0 %v1216
    %v1310 = vpop.f32.mrb[0].mxu0
    %v1311 = vadd.f32 0.0, %v1310
    %v1312 = vpop.f32.mrb[0].mxu0
    %1313 = vmatprep.mubr.f32.mxu0 0.0
    %1314 = vmatmul.mubr.f32.gmra.mrb[0].mxu0 %v1217
    %v1315 = vpop.f32.mrb[0].mxu0
    %v1316 = vadd.f32 0.0, %v1315
    %v1317 = vpop.f32.mrb[0].mxu0
    %1318 = vdwg.mxu0
    %s1319 = scalar_lea.vmem [#allocation19], 160
    %v1320 = vld [vmem:[%s1319] sm:$0xff]
    %v1321 = vld [vmem:[%s1319 + $0x8] sm:$0xff]
    %v1322 = vld [vmem:[%s1319 + $0x10] sm:$0xff]
    %v1323 = vld [vmem:[%s1319 + $0x18] sm:$0xff]
    %v1325 = vsel %vm331, %v1320, 0
    %v1328 = vsel %vm331, %v1321, 0
    %v1331 = vsel %vm331, %v1322, 0
    %v1334 = vsel %vm331, %v1323, 0
    %1336 = vmatprep.subr.mxu0 0.0
    %1337 = vmatpush1.msra.mxu0 %v1301
    %1338 = vmatprep.subr.mxu0 0.0
    %1339 = vmatpush1.msra.mxu0 %v1306
    %1340 = vmatprep.subr.mxu0 0.0
    %1341 = vmatpush1.msra.mxu0 %v1311
    %1342 = vmatprep.subr.mxu0 0.0
    %1343 = vmatpush1.msra.mxu0 %v1316
    %1344 = vmatprep.subr.mxu0 0.0
    %1345 = vmatpush1.msra.mxu0 0.0
    %1346 = vmatprep.subr.mxu0 0.0
    %1347 = vmatpush1.msra.mxu0 0.0
    %1348 = vmatprep.subr.mxu0 0.0
    %1349 = vmatpush1.msra.mxu0 0.0
    %1350 = vmatprep.subr.mxu0 0.0
    %1351 = vmatpush1.msra.mxu0 0.0
    %1352 = vmatprep.subr.mxu0 0.0
    %1353 = vmatpush1.msra.mxu0 0.0
    %1354 = vmatprep.subr.mxu0 0.0
    %1355 = vmatpush1.msra.mxu0 0.0
    %1356 = vmatprep.subr.mxu0 0.0
    %1357 = vmatpush1.msra.mxu0 0.0
    %1358 = vmatprep.subr.mxu0 0.0
    %1359 = vmatpush1.msra.mxu0 0.0
    %1360 = vmatprep.subr.mxu0 0.0
    %1361 = vmatpush1.msra.mxu0 0.0
    %1362 = vmatprep.subr.mxu0 0.0
    %1363 = vmatpush1.msra.mxu0 0.0
    %1364 = vmatprep.subr.mxu0 0.0
    %1365 = vmatpush1.msra.mxu0 0.0
    %1366 = vmatprep.subr.mxu0 0.0
    %1367 = vmatpush1.msra.mxu0 0.0
    %1368 = vmatprep.subr.mxu0 0.0
    %1369 = vmatpush1.msra.mxu0 0.0
    %1370 = vmatprep.subr.mxu0 0.0
    %1371 = vmatpush1.msra.mxu0 0.0
    %1372 = vmatprep.subr.mxu0 0.0
    %1373 = vmatpush1.msra.mxu0 0.0
    %1374 = vmatprep.subr.mxu0 0.0
    %1375 = vmatpush1.msra.mxu0 0.0
    %1376 = vmatprep.subr.mxu0 0.0
    %1377 = vmatpush1.msra.mxu0 0.0
    %1378 = vmatprep.subr.mxu0 0.0
    %1379 = vmatpush1.msra.mxu0 0.0
    %1380 = vmatprep.subr.mxu0 0.0
    %1381 = vmatpush1.msra.mxu0 0.0
    %1382 = vmatprep.subr.mxu0 0.0
    %1383 = vmatpush1.msra.mxu0 0.0
    %1384 = vmatprep.subr.mxu0 0.0
    %1385 = vmatpush1.msra.mxu0 0.0
    %1386 = vmatprep.subr.mxu0 0.0
    %1387 = vmatpush1.msra.mxu0 0.0
    %1388 = vmatprep.subr.mxu0 0.0
    %1389 = vmatpush1.msra.mxu0 0.0
    %1390 = vmatprep.subr.mxu0 0.0
    %1391 = vmatpush1.msra.mxu0 0.0
    %1392 = vmatprep.subr.mxu0 0.0
    %1393 = vmatpush1.msra.mxu0 0.0
    %1394 = vmatprep.subr.mxu0 0.0
    %1395 = vmatpush1.msra.mxu0 0.0
    %1396 = vmatprep.subr.mxu0 0.0
    %1397 = vmatpush1.msra.mxu0 0.0
    %1398 = vmatprep.subr.mxu0 0.0
    %1399 = vmatpush1.msra.mxu0 0.0
    %1400 = vmatprep.mubr.f32.mxu0 0.0
    %1401 = vmatmul.mubr.f32.gmra.mrb[0].mxu0 %v1325
    %v1402 = vpop.f32.mrb[0].mxu0
    %v1403 = vadd.f32 0.0, %v1402
    %v1404 = vpop.f32.mrb[0].mxu0
    %1405 = vmatprep.mubr.f32.mxu0 0.0
    %1406 = vmatmul.mubr.f32.gmra.mrb[0].mxu0 %v1328
    %v1407 = vpop.f32.mrb[0].mxu0
    %v1408 = vadd.f32 0.0, %v1407
    %v1409 = vpop.f32.mrb[0].mxu0
    %1410 = vmatprep.mubr.f32.mxu0 0.0
    %1411 = vmatmul.mubr.f32.gmra.mrb[0].mxu0 %v1331
    %v1412 = vpop.f32.mrb[0].mxu0
    %v1413 = vadd.f32 0.0, %v1412
    %v1414 = vpop.f32.mrb[0].mxu0
    %1415 = vmatprep.mubr.f32.mxu0 0.0
    %1416 = vmatmul.mubr.f32.gmra.mrb[0].mxu0 %v1334
    %v1417 = vpop.f32.mrb[0].mxu0
    %v1418 = vadd.f32 0.0, %v1417
    %v1419 = vpop.f32.mrb[0].mxu0
    %1420 = vdwg.mxu0
    %v1421 = vld [vmem:[#allocation10] sm:$0xff]
    %v1422 = vld [vmem:[#allocation10 + $0x8] sm:$0xff]
    %v1423 = vld [vmem:[#allocation10 + $0x10] sm:$0xff]
    %v1424 = vld [vmem:[#allocation10 + $0x18] sm:$0xff]
    %v1425 = vld [vmem:[#allocation10 + $0x20] sm:$0xff]
    %v1426 = vld [vmem:[#allocation10 + $0x28] sm:$0xff]
    %v1427 = vld [vmem:[#allocation10 + $0x30] sm:$0xff]
    %v1428 = vld [vmem:[#allocation10 + $0x38] sm:$0xff]
    %s1429 = scalar_lea.vmem [#allocation19], 192
    %v1430 = vld [vmem:[%s1429] sm:$0xff]
    %v1431 = vld [vmem:[%s1429 + $0x8] sm:$0xff]
    %v1432 = vld [vmem:[%s1429 + $0x10] sm:$0xff]
    %v1433 = vld [vmem:[%s1429 + $0x18] sm:$0xff]
    %v1435 = vsel %vm331, %v1430, 0
    %v1438 = vsel %vm331, %v1431, 0
    %v1441 = vsel %vm331, %v1432, 0
    %v1444 = vsel %vm331, %v1433, 0
    %1446 = vmatprep.subr.mxu0 0.0
    %1447 = vmatpush1.msra.mxu0 %v1301
    %1448 = vmatprep.subr.mxu0 0.0
    %1449 = vmatpush1.msra.mxu0 %v1306
    %1450 = vmatprep.subr.mxu0 0.0
    %1451 = vmatpush1.msra.mxu0 %v1311
    %1452 = vmatprep.subr.mxu0 0.0
    %1453 = vmatpush1.msra.mxu0 %v1316
    %1454 = vmatprep.subr.mxu0 0.0
    %1455 = vmatpush1.msra.mxu0 0.0
    %1456 = vmatprep.subr.mxu0 0.0
    %1457 = vmatpush1.msra.mxu0 0.0
    %1458 = vmatprep.subr.mxu0 0.0
    %1459 = vmatpush1.msra.mxu0 0.0
    %1460 = vmatprep.subr.mxu0 0.0
    %1461 = vmatpush1.msra.mxu0 0.0
    %1462 = vmatprep.subr.mxu0 0.0
    %1463 = vmatpush1.msra.mxu0 0.0
    %1464 = vmatprep.subr.mxu0 0.0
    %1465 = vmatpush1.msra.mxu0 0.0
    %1466 = vmatprep.subr.mxu0 0.0
    %1467 = vmatpush1.msra.mxu0 0.0
    %1468 = vmatprep.subr.mxu0 0.0
    %1469 = vmatpush1.msra.mxu0 0.0
    %1470 = vmatprep.subr.mxu0 0.0
    %1471 = vmatpush1.msra.mxu0 0.0
    %1472 = vmatprep.subr.mxu0 0.0
    %1473 = vmatpush1.msra.mxu0 0.0
    %1474 = vmatprep.subr.mxu0 0.0
    %1475 = vmatpush1.msra.mxu0 0.0
    %1476 = vmatprep.subr.mxu0 0.0
    %1477 = vmatpush1.msra.mxu0 0.0
    %1478 = vmatprep.subr.mxu0 0.0
    %1479 = vmatpush1.msra.mxu0 0.0
    %1480 = vmatprep.subr.mxu0 0.0
    %1481 = vmatpush1.msra.mxu0 0.0
    %1482 = vmatprep.subr.mxu0 0.0
    %1483 = vmatpush1.msra.mxu0 0.0
    %1484 = vmatprep.subr.mxu0 0.0
    %1485 = vmatpush1.msra.mxu0 0.0
    %1486 = vmatprep.subr.mxu0 0.0
    %1487 = vmatpush1.msra.mxu0 0.0
    %1488 = vmatprep.subr.mxu0 0.0
    %1489 = vmatpush1.msra.mxu0 0.0
    %1490 = vmatprep.subr.mxu0 0.0
    %1491 = vmatpush1.msra.mxu0 0.0
    %1492 = vmatprep.subr.mxu0 0.0
    %1493 = vmatpush1.msra.mxu0 0.0
    %1494 = vmatprep.subr.mxu0 0.0
    %1495 = vmatpush1.msra.mxu0 0.0
    %1496 = vmatprep.subr.mxu0 0.0
    %1497 = vmatpush1.msra.mxu0 0.0
    %1498 = vmatprep.subr.mxu0 0.0
    %1499 = vmatpush1.msra.mxu0 0.0
    %1500 = vmatprep.subr.mxu0 0.0
    %1501 = vmatpush1.msra.mxu0 0.0
    %1502 = vmatprep.subr.mxu0 0.0
    %1503 = vmatpush1.msra.mxu0 0.0
    %1504 = vmatprep.subr.mxu0 0.0
    %1505 = vmatpush1.msra.mxu0 0.0
    %1506 = vmatprep.subr.mxu0 0.0
    %1507 = vmatpush1.msra.mxu0 0.0
    %1508 = vmatprep.subr.mxu0 0.0
    %1509 = vmatpush1.msra.mxu0 0.0
    %1510 = vmatprep.mubr.f32.mxu0 0.0
    %1511 = vmatmul.mubr.f32.gmra.mrb[0].mxu0 %v1435
    %v1512 = vpop.f32.mrb[0].mxu0
    %v1513 = vadd.f32 0.0, %v1512
    %v1514 = vpop.f32.mrb[0].mxu0
    %1515 = vmatprep.mubr.f32.mxu0 0.0
    %1516 = vmatmul.mubr.f32.gmra.mrb[0].mxu0 %v1438
    %v1517 = vpop.f32.mrb[0].mxu0
    %v1518 = vadd.f32 0.0, %v1517
    %v1519 = vpop.f32.mrb[0].mxu0
    %1520 = vmatprep.mubr.f32.mxu0 0.0
    %1521 = vmatmul.mubr.f32.gmra.mrb[0].mxu0 %v1441
    %v1522 = vpop.f32.mrb[0].mxu0
    %v1523 = vadd.f32 0.0, %v1522
    %v1524 = vpop.f32.mrb[0].mxu0
    %1525 = vmatprep.mubr.f32.mxu0 0.0
    %1526 = vmatmul.mubr.f32.gmra.mrb[0].mxu0 %v1444
    %v1527 = vpop.f32.mrb[0].mxu0
    %v1528 = vadd.f32 0.0, %v1527
    %v1529 = vpop.f32.mrb[0].mxu0
    %1530 = vdwg.mxu0
    %v1532 = vsel %vm224, %v1403, 0
    %v1535 = vsel %vm224, %v1408, 0
    %v1538 = vsel %vm224, %v1413, 0
    %v1541 = vsel %vm224, %v1418, 0
    %1543 = vmatprep.subr.mxu0 0.0
    %1544 = vmatpush1.msra.mxu0 %v1421
    %1545 = vmatprep.subr.mxu0 0.0
    %1546 = vmatpush1.msra.mxu0 %v1422
    %1547 = vmatprep.subr.mxu0 0.0
    %1548 = vmatpush1.msra.mxu0 %v1423
    %1549 = vmatprep.subr.mxu0 0.0
    %1550 = vmatpush1.msra.mxu0 %v1424
    %1551 = vmatprep.subr.mxu0 0.0
    %1552 = vmatpush1.msra.mxu0 %v1425
    %1553 = vmatprep.subr.mxu0 0.0
    %1554 = vmatpush1.msra.mxu0 %v1426
    %1555 = vmatprep.subr.mxu0 0.0
    %1556 = vmatpush1.msra.mxu0 %v1427
    %1557 = vmatprep.subr.mxu0 0.0
    %1558 = vmatpush1.msra.mxu0 %v1428
    %1559 = vmatprep.subr.mxu0 0.0
    %1560 = vmatpush1.msra.mxu0 0.0
    %1561 = vmatprep.subr.mxu0 0.0
    %1562 = vmatpush1.msra.mxu0 0.0
    %1563 = vmatprep.subr.mxu0 0.0
    %1564 = vmatpush1.msra.mxu0 0.0
    %1565 = vmatprep.subr.mxu0 0.0
    %1566 = vmatpush1.msra.mxu0 0.0
    %1567 = vmatprep.subr.mxu0 0.0
    %1568 = vmatpush1.msra.mxu0 0.0
    %1569 = vmatprep.subr.mxu0 0.0
    %1570 = vmatpush1.msra.mxu0 0.0
    %1571 = vmatprep.subr.mxu0 0.0
    %1572 = vmatpush1.msra.mxu0 0.0
    %1573 = vmatprep.subr.mxu0 0.0
    %1574 = vmatpush1.msra.mxu0 0.0
    %1575 = vmatprep.subr.mxu0 0.0
    %1576 = vmatpush1.msra.mxu0 0.0
    %1577 = vmatprep.subr.mxu0 0.0
    %1578 = vmatpush1.msra.mxu0 0.0
    %1579 = vmatprep.subr.mxu0 0.0
    %1580 = vmatpush1.msra.mxu0 0.0
    %1581 = vmatprep.subr.mxu0 0.0
    %1582 = vmatpush1.msra.mxu0 0.0
    %1583 = vmatprep.subr.mxu0 0.0
    %1584 = vmatpush1.msra.mxu0 0.0
    %1585 = vmatprep.subr.mxu0 0.0
    %1586 = vmatpush1.msra.mxu0 0.0
    %1587 = vmatprep.subr.mxu0 0.0
    %1588 = vmatpush1.msra.mxu0 0.0
    %1589 = vmatprep.subr.mxu0 0.0
    %1590 = vmatpush1.msra.mxu0 0.0
    %1591 = vmatprep.subr.mxu0 0.0
    %1592 = vmatpush1.msra.mxu0 0.0
    %1593 = vmatprep.subr.mxu0 0.0
    %1594 = vmatpush1.msra.mxu0 0.0
    %1595 = vmatprep.subr.mxu0 0.0
    %1596 = vmatpush1.msra.mxu0 0.0
    %1597 = vmatprep.subr.mxu0 0.0
    %1598 = vmatpush1.msra.mxu0 0.0
    %1599 = vmatprep.subr.mxu0 0.0
    %1600 = vmatpush1.msra.mxu0 0.0
    %1601 = vmatprep.subr.mxu0 0.0
    %1602 = vmatpush1.msra.mxu0 0.0
    %1603 = vmatprep.subr.mxu0 0.0
    %1604 = vmatpush1.msra.mxu0 0.0
    %1605 = vmatprep.subr.mxu0 0.0
    %1606 = vmatpush1.msra.mxu0 0.0
    %1607 = vmatprep.mubr.f32.mxu0 0.0
    %1608 = vmatmul.mubr.f32.gmra.mrb[0].mxu0 %v1532
    %v1609 = vpop.f32.mrb[0].mxu0
    %v1610 = vadd.f32 %v1513, %v1609
    %v1611 = vpop.f32.mrb[0].mxu0
    %1612 = vmatprep.mubr.f32.mxu0 0.0
    %1613 = vmatmul.mubr.f32.gmra.mrb[0].mxu0 %v1535
    %v1614 = vpop.f32.mrb[0].mxu0
    %v1615 = vadd.f32 %v1518, %v1614
    %v1616 = vpop.f32.mrb[0].mxu0
    %1617 = vmatprep.mubr.f32.mxu0 0.0
    %1618 = vmatmul.mubr.f32.gmra.mrb[0].mxu0 %v1538
    %v1619 = vpop.f32.mrb[0].mxu0
    %v1620 = vadd.f32 %v1523, %v1619
    %v1621 = vpop.f32.mrb[0].mxu0
    %1622 = vmatprep.mubr.f32.mxu0 0.0
    %1623 = vmatmul.mubr.f32.gmra.mrb[0].mxu0 %v1541
    %v1624 = vpop.f32.mrb[0].mxu0
    %v1625 = vadd.f32 %v1528, %v1624
    %v1626 = vpop.f32.mrb[0].mxu0
    %1627 = vdwg.mxu0
    %s1628 = scalar_lea.vmem [#allocation20], 96
    %v1629 = vld [vmem:[%s1628] sm:$0xff]
    %v1630 = vld [vmem:[%s1628 + $0x8] sm:$0xff]
    %v1631 = vld [vmem:[%s1628 + $0x10] sm:$0xff]
    %v1632 = vld [vmem:[%s1628 + $0x18] sm:$0xff]
    %v1633 = vadd.f32 %v1610, %v1629
    %v1634 = vadd.f32 %v1615, %v1630
    %v1635 = vadd.f32 %v1620, %v1631
    %v1636 = vadd.f32 %v1625, %v1632
    %v1637 = vmax.f32 %v1633, 0.0
    %v1638 = vmax.f32 %v1634, 0.0
    %v1639 = vmax.f32 %v1635, 0.0
    %v1640 = vmax.f32 %v1636, 0.0
    %s1641 = scalar_lea.vmem [#allocation19], 224
    %v1642 = vld [vmem:[%s1641] sm:$0xff]
    %v1643 = vld [vmem:[%s1641 + $0x8] sm:$0xff]
    %v1644 = vld [vmem:[%s1641 + $0x10] sm:$0xff]
    %v1645 = vld [vmem:[%s1641 + $0x18] sm:$0xff]
    %v1647 = vsel %vm331, %v1642, 0
    %v1650 = vsel %vm331, %v1643, 0
    %v1653 = vsel %vm331, %v1644, 0
    %v1656 = vsel %vm331, %v1645, 0
    %1658 = vmatprep.subr.mxu0 0.0
    %1659 = vmatpush1.msra.mxu0 %v1637
    %1660 = vmatprep.subr.mxu0 0.0
    %1661 = vmatpush1.msra.mxu0 %v1638
    %1662 = vmatprep.subr.mxu0 0.0
    %1663 = vmatpush1.msra.mxu0 %v1639
    %1664 = vmatprep.subr.mxu0 0.0
    %1665 = vmatpush1.msra.mxu0 %v1640
    %1666 = vmatprep.subr.mxu0 0.0
    %1667 = vmatpush1.msra.mxu0 0.0
    %1668 = vmatprep.subr.mxu0 0.0
    %1669 = vmatpush1.msra.mxu0 0.0
    %1670 = vmatprep.subr.mxu0 0.0
    %1671 = vmatpush1.msra.mxu0 0.0
    %1672 = vmatprep.subr.mxu0 0.0
    %1673 = vmatpush1.msra.mxu0 0.0
    %1674 = vmatprep.subr.mxu0 0.0
    %1675 = vmatpush1.msra.mxu0 0.0
    %1676 = vmatprep.subr.mxu0 0.0
    %1677 = vmatpush1.msra.mxu0 0.0
    %1678 = vmatprep.subr.mxu0 0.0
    %1679 = vmatpush1.msra.mxu0 0.0
    %1680 = vmatprep.subr.mxu0 0.0
    %1681 = vmatpush1.msra.mxu0 0.0
    %1682 = vmatprep.subr.mxu0 0.0
    %1683 = vmatpush1.msra.mxu0 0.0
    %1684 = vmatprep.subr.mxu0 0.0
    %1685 = vmatpush1.msra.mxu0 0.0
    %1686 = vmatprep.subr.mxu0 0.0
    %1687 = vmatpush1.msra.mxu0 0.0
    %1688 = vmatprep.subr.mxu0 0.0
    %1689 = vmatpush1.msra.mxu0 0.0
    %1690 = vmatprep.subr.mxu0 0.0
    %1691 = vmatpush1.msra.mxu0 0.0
    %1692 = vmatprep.subr.mxu0 0.0
    %1693 = vmatpush1.msra.mxu0 0.0
    %1694 = vmatprep.subr.mxu0 0.0
    %1695 = vmatpush1.msra.mxu0 0.0
    %1696 = vmatprep.subr.mxu0 0.0
    %1697 = vmatpush1.msra.mxu0 0.0
    %1698 = vmatprep.subr.mxu0 0.0
    %1699 = vmatpush1.msra.mxu0 0.0
    %1700 = vmatprep.subr.mxu0 0.0
    %1701 = vmatpush1.msra.mxu0 0.0
    %1702 = vmatprep.subr.mxu0 0.0
    %1703 = vmatpush1.msra.mxu0 0.0
    %1704 = vmatprep.subr.mxu0 0.0
    %1705 = vmatpush1.msra.mxu0 0.0
    %1706 = vmatprep.subr.mxu0 0.0
    %1707 = vmatpush1.msra.mxu0 0.0
    %1708 = vmatprep.subr.mxu0 0.0
    %1709 = vmatpush1.msra.mxu0 0.0
    %1710 = vmatprep.subr.mxu0 0.0
    %1711 = vmatpush1.msra.mxu0 0.0
    %1712 = vmatprep.subr.mxu0 0.0
    %1713 = vmatpush1.msra.mxu0 0.0
    %1714 = vmatprep.subr.mxu0 0.0
    %1715 = vmatpush1.msra.mxu0 0.0
    %1716 = vmatprep.subr.mxu0 0.0
    %1717 = vmatpush1.msra.mxu0 0.0
    %1718 = vmatprep.subr.mxu0 0.0
    %1719 = vmatpush1.msra.mxu0 0.0
    %1720 = vmatprep.subr.mxu0 0.0
    %1721 = vmatpush1.msra.mxu0 0.0
    %1722 = vmatprep.mubr.f32.mxu0 0.0
    %1723 = vmatmul.mubr.f32.gmra.mrb[0].mxu0 %v1647
    %v1724 = vpop.f32.mrb[0].mxu0
    %v1725 = vadd.f32 0.0, %v1724
    %v1726 = vpop.f32.mrb[0].mxu0
    %1727 = vmatprep.mubr.f32.mxu0 0.0
    %1728 = vmatmul.mubr.f32.gmra.mrb[0].mxu0 %v1650
    %v1729 = vpop.f32.mrb[0].mxu0
    %v1730 = vadd.f32 0.0, %v1729
    %v1731 = vpop.f32.mrb[0].mxu0
    %1732 = vmatprep.mubr.f32.mxu0 0.0
    %1733 = vmatmul.mubr.f32.gmra.mrb[0].mxu0 %v1653
    %v1734 = vpop.f32.mrb[0].mxu0
    %v1735 = vadd.f32 0.0, %v1734
    %v1736 = vpop.f32.mrb[0].mxu0
    %1737 = vmatprep.mubr.f32.mxu0 0.0
    %1738 = vmatmul.mubr.f32.gmra.mrb[0].mxu0 %v1656
    %v1739 = vpop.f32.mrb[0].mxu0
    %v1740 = vadd.f32 0.0, %v1739
    %v1741 = vpop.f32.mrb[0].mxu0
    %1742 = vdwg.mxu0
    %s1743 = scalar_lea.vmem [#allocation19], 256
    %v1744 = vld [vmem:[%s1743] sm:$0xff]
    %v1745 = vld [vmem:[%s1743 + $0x8] sm:$0xff]
    %v1746 = vld [vmem:[%s1743 + $0x10] sm:$0xff]
    %v1747 = vld [vmem:[%s1743 + $0x18] sm:$0xff]
    %v1749 = vsel %vm331, %v1744, 0
    %v1752 = vsel %vm331, %v1745, 0
    %v1755 = vsel %vm331, %v1746, 0
    %v1758 = vsel %vm331, %v1747, 0
    %1760 = vmatprep.subr.mxu0 0.0
    %1761 = vmatpush1.msra.mxu0 %v1637
    %1762 = vmatprep.subr.mxu0 0.0
    %1763 = vmatpush1.msra.mxu0 %v1638
    %1764 = vmatprep.subr.mxu0 0.0
    %1765 = vmatpush1.msra.mxu0 %v1639
    %1766 = vmatprep.subr.mxu0 0.0
    %1767 = vmatpush1.msra.mxu0 %v1640
    %1768 = vmatprep.subr.mxu0 0.0
    %1769 = vmatpush1.msra.mxu0 0.0
    %1770 = vmatprep.subr.mxu0 0.0
    %1771 = vmatpush1.msra.mxu0 0.0
    %1772 = vmatprep.subr.mxu0 0.0
    %1773 = vmatpush1.msra.mxu0 0.0
    %1774 = vmatprep.subr.mxu0 0.0
    %1775 = vmatpush1.msra.mxu0 0.0
    %1776 = vmatprep.subr.mxu0 0.0
    %1777 = vmatpush1.msra.mxu0 0.0
    %1778 = vmatprep.subr.mxu0 0.0
    %1779 = vmatpush1.msra.mxu0 0.0
    %1780 = vmatprep.subr.mxu0 0.0
    %1781 = vmatpush1.msra.mxu0 0.0
    %1782 = vmatprep.subr.mxu0 0.0
    %1783 = vmatpush1.msra.mxu0 0.0
    %1784 = vmatprep.subr.mxu0 0.0
    %1785 = vmatpush1.msra.mxu0 0.0
    %1786 = vmatprep.subr.mxu0 0.0
    %1787 = vmatpush1.msra.mxu0 0.0
    %1788 = vmatprep.subr.mxu0 0.0
    %1789 = vmatpush1.msra.mxu0 0.0
    %1790 = vmatprep.subr.mxu0 0.0
    %1791 = vmatpush1.msra.mxu0 0.0
    %1792 = vmatprep.subr.mxu0 0.0
    %1793 = vmatpush1.msra.mxu0 0.0
    %1794 = vmatprep.subr.mxu0 0.0
    %1795 = vmatpush1.msra.mxu0 0.0
    %1796 = vmatprep.subr.mxu0 0.0
    %1797 = vmatpush1.msra.mxu0 0.0
    %1798 = vmatprep.subr.mxu0 0.0
    %1799 = vmatpush1.msra.mxu0 0.0
    %1800 = vmatprep.subr.mxu0 0.0
    %1801 = vmatpush1.msra.mxu0 0.0
    %1802 = vmatprep.subr.mxu0 0.0
    %1803 = vmatpush1.msra.mxu0 0.0
    %1804 = vmatprep.subr.mxu0 0.0
    %1805 = vmatpush1.msra.mxu0 0.0
    %1806 = vmatprep.subr.mxu0 0.0
    %1807 = vmatpush1.msra.mxu0 0.0
    %1808 = vmatprep.subr.mxu0 0.0
    %1809 = vmatpush1.msra.mxu0 0.0
    %1810 = vmatprep.subr.mxu0 0.0
    %1811 = vmatpush1.msra.mxu0 0.0
    %1812 = vmatprep.subr.mxu0 0.0
    %1813 = vmatpush1.msra.mxu0 0.0
    %1814 = vmatprep.subr.mxu0 0.0
    %1815 = vmatpush1.msra.mxu0 0.0
    %1816 = vmatprep.subr.mxu0 0.0
    %1817 = vmatpush1.msra.mxu0 0.0
    %1818 = vmatprep.subr.mxu0 0.0
    %1819 = vmatpush1.msra.mxu0 0.0
    %1820 = vmatprep.subr.mxu0 0.0
    %1821 = vmatpush1.msra.mxu0 0.0
    %1822 = vmatprep.subr.mxu0 0.0
    %1823 = vmatpush1.msra.mxu0 0.0
    %1824 = vmatprep.mubr.f32.mxu0 0.0
    %1825 = vmatmul.mubr.f32.gmra.mrb[0].mxu0 %v1749
    %v1826 = vpop.f32.mrb[0].mxu0
    %v1827 = vadd.f32 0.0, %v1826
    %v1828 = vpop.f32.mrb[0].mxu0
    %1829 = vmatprep.mubr.f32.mxu0 0.0
    %1830 = vmatmul.mubr.f32.gmra.mrb[0].mxu0 %v1752
    %v1831 = vpop.f32.mrb[0].mxu0
    %v1832 = vadd.f32 0.0, %v1831
    %v1833 = vpop.f32.mrb[0].mxu0
    %1834 = vmatprep.mubr.f32.mxu0 0.0
    %1835 = vmatmul.mubr.f32.gmra.mrb[0].mxu0 %v1755
    %v1836 = vpop.f32.mrb[0].mxu0
    %v1837 = vadd.f32 0.0, %v1836
    %v1838 = vpop.f32.mrb[0].mxu0
    %1839 = vmatprep.mubr.f32.mxu0 0.0
    %1840 = vmatmul.mubr.f32.gmra.mrb[0].mxu0 %v1758
    %v1841 = vpop.f32.mrb[0].mxu0
    %v1842 = vadd.f32 0.0, %v1841
    %v1843 = vpop.f32.mrb[0].mxu0
    %1844 = vdwg.mxu0
    %v1846 = vsel %vm224, %v1725, 0
    %v1849 = vsel %vm224, %v1730, 0
    %v1852 = vsel %vm224, %v1735, 0
    %v1855 = vsel %vm224, %v1740, 0
    %1857 = vmatprep.subr.mxu0 0.0
    %1858 = vmatpush1.msra.mxu0 %v1421
    %1859 = vmatprep.subr.mxu0 0.0
    %1860 = vmatpush1.msra.mxu0 %v1422
    %1861 = vmatprep.subr.mxu0 0.0
    %1862 = vmatpush1.msra.mxu0 %v1423
    %1863 = vmatprep.subr.mxu0 0.0
    %1864 = vmatpush1.msra.mxu0 %v1424
    %1865 = vmatprep.subr.mxu0 0.0
    %1866 = vmatpush1.msra.mxu0 %v1425
    %1867 = vmatprep.subr.mxu0 0.0
    %1868 = vmatpush1.msra.mxu0 %v1426
    %1869 = vmatprep.subr.mxu0 0.0
    %1870 = vmatpush1.msra.mxu0 %v1427
    %1871 = vmatprep.subr.mxu0 0.0
    %1872 = vmatpush1.msra.mxu0 %v1428
    %1873 = vmatprep.subr.mxu0 0.0
    %1874 = vmatpush1.msra.mxu0 0.0
    %1875 = vmatprep.subr.mxu0 0.0
    %1876 = vmatpush1.msra.mxu0 0.0
    %1877 = vmatprep.subr.mxu0 0.0
    %1878 = vmatpush1.msra.mxu0 0.0
    %1879 = vmatprep.subr.mxu0 0.0
    %1880 = vmatpush1.msra.mxu0 0.0
    %1881 = vmatprep.subr.mxu0 0.0
    %1882 = vmatpush1.msra.mxu0 0.0
    %1883 = vmatprep.subr.mxu0 0.0
    %1884 = vmatpush1.msra.mxu0 0.0
    %1885 = vmatprep.subr.mxu0 0.0
    %1886 = vmatpush1.msra.mxu0 0.0
    %1887 = vmatprep.subr.mxu0 0.0
    %1888 = vmatpush1.msra.mxu0 0.0
    %1889 = vmatprep.subr.mxu0 0.0
    %1890 = vmatpush1.msra.mxu0 0.0
    %1891 = vmatprep.subr.mxu0 0.0
    %1892 = vmatpush1.msra.mxu0 0.0
    %1893 = vmatprep.subr.mxu0 0.0
    %1894 = vmatpush1.msra.mxu0 0.0
    %1895 = vmatprep.subr.mxu0 0.0
    %1896 = vmatpush1.msra.mxu0 0.0
    %1897 = vmatprep.subr.mxu0 0.0
    %1898 = vmatpush1.msra.mxu0 0.0
    %1899 = vmatprep.subr.mxu0 0.0
    %1900 = vmatpush1.msra.mxu0 0.0
    %1901 = vmatprep.subr.mxu0 0.0
    %1902 = vmatpush1.msra.mxu0 0.0
    %1903 = vmatprep.subr.mxu0 0.0
    %1904 = vmatpush1.msra.mxu0 0.0
    %1905 = vmatprep.subr.mxu0 0.0
    %1906 = vmatpush1.msra.mxu0 0.0
    %1907 = vmatprep.subr.mxu0 0.0
    %1908 = vmatpush1.msra.mxu0 0.0
    %1909 = vmatprep.subr.mxu0 0.0
    %1910 = vmatpush1.msra.mxu0 0.0
    %1911 = vmatprep.subr.mxu0 0.0
    %1912 = vmatpush1.msra.mxu0 0.0
    %1913 = vmatprep.subr.mxu0 0.0
    %1914 = vmatpush1.msra.mxu0 0.0
    %1915 = vmatprep.subr.mxu0 0.0
    %1916 = vmatpush1.msra.mxu0 0.0
    %1917 = vmatprep.subr.mxu0 0.0
    %1918 = vmatpush1.msra.mxu0 0.0
    %1919 = vmatprep.subr.mxu0 0.0
    %1920 = vmatpush1.msra.mxu0 0.0
    %1921 = vmatprep.mubr.f32.mxu0 0.0
    %1922 = vmatmul.mubr.f32.gmra.mrb[0].mxu0 %v1846
    %v1923 = vpop.f32.mrb[0].mxu0
    %v1924 = vadd.f32 %v1827, %v1923
    %v1925 = vpop.f32.mrb[0].mxu0
    %1926 = vmatprep.mubr.f32.mxu0 0.0
    %1927 = vmatmul.mubr.f32.gmra.mrb[0].mxu0 %v1849
    %v1928 = vpop.f32.mrb[0].mxu0
    %v1929 = vadd.f32 %v1832, %v1928
    %v1930 = vpop.f32.mrb[0].mxu0
    %1931 = vmatprep.mubr.f32.mxu0 0.0
    %1932 = vmatmul.mubr.f32.gmra.mrb[0].mxu0 %v1852
    %v1933 = vpop.f32.mrb[0].mxu0
    %v1934 = vadd.f32 %v1837, %v1933
    %v1935 = vpop.f32.mrb[0].mxu0
    %1936 = vmatprep.mubr.f32.mxu0 0.0
    %1937 = vmatmul.mubr.f32.gmra.mrb[0].mxu0 %v1855
    %v1938 = vpop.f32.mrb[0].mxu0
    %v1939 = vadd.f32 %v1842, %v1938
    %v1940 = vpop.f32.mrb[0].mxu0
    %1941 = vdwg.mxu0
    %s1942 = scalar_lea.vmem [#allocation20], 128
    %v1943 = vld [vmem:[%s1942] sm:$0xff]
    %v1944 = vld [vmem:[%s1942 + $0x8] sm:$0xff]
    %v1945 = vld [vmem:[%s1942 + $0x10] sm:$0xff]
    %v1946 = vld [vmem:[%s1942 + $0x18] sm:$0xff]
    %v1947 = vadd.f32 %v1924, %v1943
    %v1948 = vadd.f32 %v1929, %v1944
    %v1949 = vadd.f32 %v1934, %v1945
    %v1950 = vadd.f32 %v1939, %v1946
    %v1951 = vmax.f32 %v1947, 0.0
    %v1952 = vmax.f32 %v1948, 0.0
    %v1953 = vmax.f32 %v1949, 0.0
    %v1954 = vmax.f32 %v1950, 0.0
    %v1955 = vsel %vm224, %v1951, 0.0
    %1956 = vadd.xlane.f32.xlu0 %v1955
    %v1957 = vpop.xlane.xlu0 %1956
    %v1958 = vsel %vm224, %v1952, 0.0
    %1959 = vadd.xlane.f32.xlu0 %v1958
    %v1960 = vpop.xlane.xlu0 %1959
    %v1961 = vsel %vm224, %v1953, 0.0
    %1962 = vadd.xlane.f32.xlu0 %v1961
    %v1963 = vpop.xlane.xlu0 %1962
    %v1964 = vsel %vm224, %v1954, 0.0
    %1965 = vadd.xlane.f32.xlu0 %v1964
    %v1966 = vpop.xlane.xlu0 %1965
    %v1967 = vmul.f32 %v1957, %v237
    %v1968 = vmul.f32 %v1960, %v237
    %v1969 = vmul.f32 %v1963, %v237
    %v1970 = vmul.f32 %v1966, %v237
    %v1971 = vsub.f32 %v1951, %v1967
    %v1972 = vsub.f32 %v1952, %v1968
    %v1973 = vsub.f32 %v1953, %v1969
    %v1974 = vsub.f32 %v1954, %v1970
    %v1975 = vmul.f32 %v1971, %v1971
    %v1976 = vmul.f32 %v1972, %v1972
    %v1977 = vmul.f32 %v1973, %v1973
    %v1978 = vmul.f32 %v1974, %v1974
    %v1979 = vsel %vm224, %v1975, 0.0
    %1980 = vadd.xlane.f32.xlu0 %v1979
    %v1981 = vpop.xlane.xlu0 %1980
    %v1982 = vsel %vm224, %v1976, 0.0
    %1983 = vadd.xlane.f32.xlu0 %v1982
    %v1984 = vpop.xlane.xlu0 %1983
    %v1985 = vsel %vm224, %v1977, 0.0
    %1986 = vadd.xlane.f32.xlu0 %v1985
    %v1987 = vpop.xlane.xlu0 %1986
    %v1988 = vsel %vm224, %v1978, 0.0
    %1989 = vadd.xlane.f32.xlu0 %v1988
    %v1990 = vpop.xlane.xlu0 %1989
    %v1991 = vmul.f32 %v1981, %v237
    %v1992 = vmul.f32 %v1984, %v237
    %v1993 = vmul.f32 %v1987, %v237
    %v1994 = vmul.f32 %v1990, %v237
    %v1995 = vadd.f32 %v1991, 1e-05
    %v1996 = vadd.f32 %v1992, 1e-05
    %v1997 = vadd.f32 %v1993, 1e-05
    %v1998 = vadd.f32 %v1994, 1e-05
    %v1999 = vrsqrt.pop %v1995
    %v2000 = vrsqrt.pop %v1996
    %v2001 = vrsqrt.pop %v1997
    %v2002 = vrsqrt.pop %v1998
    %v2003 = vmul.f32 %v1971, %v1999
    %v2004 = vmul.f32 %v1972, %v2000
    %v2005 = vmul.f32 %v1973, %v2001
    %v2006 = vmul.f32 %v1974, %v2002
    %v2007 = vld [vmem:[%s11] sm:$0xff]
    %v2008 = vld [vmem:[%s11 + $0x8] sm:$0xff]
    %v2009 = vld [vmem:[%s11 + $0x10] sm:$0xff]
    %v2010 = vld [vmem:[%s11 + $0x18] sm:$0xff]
    %v2011 = vld [vmem:[%s11 + $0x20] sm:$0xff]
    %v2012 = vld [vmem:[%s11 + $0x28] sm:$0xff]
    %v2013 = vld [vmem:[%s11 + $0x30] sm:$0xff]
    %v2014 = vld [vmem:[%s11 + $0x38] sm:$0xff]
    %v2016 = vsel %vm224, %v2003, 0
    %v2019 = vsel %vm224, %v2004, 0
    %v2022 = vsel %vm224, %v2005, 0
    %v2025 = vsel %vm224, %v2006, 0
    %2027 = vmatprep.subr.mxu0 0.0
    %2028 = vmatpush1.msra.mxu0 %v2007
    %2029 = vmatprep.subr.mxu0 0.0
    %2030 = vmatpush1.msra.mxu0 %v2008
    %2031 = vmatprep.subr.mxu0 0.0
    %2032 = vmatpush1.msra.mxu0 %v2009
    %2033 = vmatprep.subr.mxu0 0.0
    %2034 = vmatpush1.msra.mxu0 %v2010
    %2035 = vmatprep.subr.mxu0 0.0
    %2036 = vmatpush1.msra.mxu0 %v2011
    %2037 = vmatprep.subr.mxu0 0.0
    %2038 = vmatpush1.msra.mxu0 %v2012
    %2039 = vmatprep.subr.mxu0 0.0
    %2040 = vmatpush1.msra.mxu0 %v2013
    %2041 = vmatprep.subr.mxu0 0.0
    %2042 = vmatpush1.msra.mxu0 %v2014
    %2043 = vmatprep.subr.mxu0 0.0
    %2044 = vmatpush1.msra.mxu0 0.0
    %2045 = vmatprep.subr.mxu0 0.0
    %2046 = vmatpush1.msra.mxu0 0.0
    %2047 = vmatprep.subr.mxu0 0.0
    %2048 = vmatpush1.msra.mxu0 0.0
    %2049 = vmatprep.subr.mxu0 0.0
    %2050 = vmatpush1.msra.mxu0 0.0
    %2051 = vmatprep.subr.mxu0 0.0
    %2052 = vmatpush1.msra.mxu0 0.0
    %2053 = vmatprep.subr.mxu0 0.0
    %2054 = vmatpush1.msra.mxu0 0.0
    %2055 = vmatprep.subr.mxu0 0.0
    %2056 = vmatpush1.msra.mxu0 0.0
    %2057 = vmatprep.subr.mxu0 0.0
    %2058 = vmatpush1.msra.mxu0 0.0
    %2059 = vmatprep.subr.mxu0 0.0
    %2060 = vmatpush1.msra.mxu0 0.0
    %2061 = vmatprep.subr.mxu0 0.0
    %2062 = vmatpush1.msra.mxu0 0.0
    %2063 = vmatprep.subr.mxu0 0.0
    %2064 = vmatpush1.msra.mxu0 0.0
    %2065 = vmatprep.subr.mxu0 0.0
    %2066 = vmatpush1.msra.mxu0 0.0
    %2067 = vmatprep.subr.mxu0 0.0
    %2068 = vmatpush1.msra.mxu0 0.0
    %2069 = vmatprep.subr.mxu0 0.0
    %2070 = vmatpush1.msra.mxu0 0.0
    %2071 = vmatprep.subr.mxu0 0.0
    %2072 = vmatpush1.msra.mxu0 0.0
    %2073 = vmatprep.subr.mxu0 0.0
    %2074 = vmatpush1.msra.mxu0 0.0
    %2075 = vmatprep.subr.mxu0 0.0
    %2076 = vmatpush1.msra.mxu0 0.0
    %2077 = vmatprep.subr.mxu0 0.0
    %2078 = vmatpush1.msra.mxu0 0.0
    %2079 = vmatprep.subr.mxu0 0.0
    %2080 = vmatpush1.msra.mxu0 0.0
    %2081 = vmatprep.subr.mxu0 0.0
    %2082 = vmatpush1.msra.mxu0 0.0
    %2083 = vmatprep.subr.mxu0 0.0
    %2084 = vmatpush1.msra.mxu0 0.0
    %2085 = vmatprep.subr.mxu0 0.0
    %2086 = vmatpush1.msra.mxu0 0.0
    %2087 = vmatprep.subr.mxu0 0.0
    %2088 = vmatpush1.msra.mxu0 0.0
    %2089 = vmatprep.subr.mxu0 0.0
    %2090 = vmatpush1.msra.mxu0 0.0
    %2091 = vmatprep.mubr.f32.mxu0 0.0
    %2092 = vmatmul.mubr.f32.gmra.mrb[0].mxu0 %v2016
    %v2093 = vpop.f32.mrb[0].mxu0
    %v2094 = vadd.f32 0.0, %v2093
    %v2095 = vpop.f32.mrb[0].mxu0
    %2096 = vmatprep.mubr.f32.mxu0 0.0
    %2097 = vmatmul.mubr.f32.gmra.mrb[0].mxu0 %v2019
    %v2098 = vpop.f32.mrb[0].mxu0
    %v2099 = vadd.f32 0.0, %v2098
    %v2100 = vpop.f32.mrb[0].mxu0
    %2101 = vmatprep.mubr.f32.mxu0 0.0
    %2102 = vmatmul.mubr.f32.gmra.mrb[0].mxu0 %v2022
    %v2103 = vpop.f32.mrb[0].mxu0
    %v2104 = vadd.f32 0.0, %v2103
    %v2105 = vpop.f32.mrb[0].mxu0
    %2106 = vmatprep.mubr.f32.mxu0 0.0
    %2107 = vmatmul.mubr.f32.gmra.mrb[0].mxu0 %v2025
    %v2108 = vpop.f32.mrb[0].mxu0
    %v2109 = vadd.f32 0.0, %v2108
    %v2110 = vpop.f32.mrb[0].mxu0
    %2111 = vdwg.mxu0
    %s2112 = scalar_lea.vmem [#allocation19], 288
    %v2113 = vld [vmem:[%s2112] sm:$0xff]
    %v2114 = vld [vmem:[%s2112 + $0x8] sm:$0xff]
    %v2115 = vld [vmem:[%s2112 + $0x10] sm:$0xff]
    %v2116 = vld [vmem:[%s2112 + $0x18] sm:$0xff]
    %v2118 = vsel %vm331, %v2113, 0
    %v2121 = vsel %vm331, %v2114, 0
    %v2124 = vsel %vm331, %v2115, 0
    %v2127 = vsel %vm331, %v2116, 0
    %2129 = vmatprep.subr.mxu0 0.0
    %2130 = vmatpush1.msra.mxu0 %v2094
    %2131 = vmatprep.subr.mxu0 0.0
    %2132 = vmatpush1.msra.mxu0 %v2099
    %2133 = vmatprep.subr.mxu0 0.0
    %2134 = vmatpush1.msra.mxu0 %v2104
    %2135 = vmatprep.subr.mxu0 0.0
    %2136 = vmatpush1.msra.mxu0 %v2109
    %2137 = vmatprep.subr.mxu0 0.0
    %2138 = vmatpush1.msra.mxu0 0.0
    %2139 = vmatprep.subr.mxu0 0.0
    %2140 = vmatpush1.msra.mxu0 0.0
    %2141 = vmatprep.subr.mxu0 0.0
    %2142 = vmatpush1.msra.mxu0 0.0
    %2143 = vmatprep.subr.mxu0 0.0
    %2144 = vmatpush1.msra.mxu0 0.0
    %2145 = vmatprep.subr.mxu0 0.0
    %2146 = vmatpush1.msra.mxu0 0.0
    %2147 = vmatprep.subr.mxu0 0.0
    %2148 = vmatpush1.msra.mxu0 0.0
    %2149 = vmatprep.subr.mxu0 0.0
    %2150 = vmatpush1.msra.mxu0 0.0
    %2151 = vmatprep.subr.mxu0 0.0
    %2152 = vmatpush1.msra.mxu0 0.0
    %2153 = vmatprep.subr.mxu0 0.0
    %2154 = vmatpush1.msra.mxu0 0.0
    %2155 = vmatprep.subr.mxu0 0.0
    %2156 = vmatpush1.msra.mxu0 0.0
    %2157 = vmatprep.subr.mxu0 0.0
    %2158 = vmatpush1.msra.mxu0 0.0
    %2159 = vmatprep.subr.mxu0 0.0
    %2160 = vmatpush1.msra.mxu0 0.0
    %2161 = vmatprep.subr.mxu0 0.0
    %2162 = vmatpush1.msra.mxu0 0.0
    %2163 = vmatprep.subr.mxu0 0.0
    %2164 = vmatpush1.msra.mxu0 0.0
    %2165 = vmatprep.subr.mxu0 0.0
    %2166 = vmatpush1.msra.mxu0 0.0
    %2167 = vmatprep.subr.mxu0 0.0
    %2168 = vmatpush1.msra.mxu0 0.0
    %2169 = vmatprep.subr.mxu0 0.0
    %2170 = vmatpush1.msra.mxu0 0.0
    %2171 = vmatprep.subr.mxu0 0.0
    %2172 = vmatpush1.msra.mxu0 0.0
    %2173 = vmatprep.subr.mxu0 0.0
    %2174 = vmatpush1.msra.mxu0 0.0
    %2175 = vmatprep.subr.mxu0 0.0
    %2176 = vmatpush1.msra.mxu0 0.0
    %2177 = vmatprep.subr.mxu0 0.0
    %2178 = vmatpush1.msra.mxu0 0.0
    %2179 = vmatprep.subr.mxu0 0.0
    %2180 = vmatpush1.msra.mxu0 0.0
    %2181 = vmatprep.subr.mxu0 0.0
    %2182 = vmatpush1.msra.mxu0 0.0
    %2183 = vmatprep.subr.mxu0 0.0
    %2184 = vmatpush1.msra.mxu0 0.0
    %2185 = vmatprep.subr.mxu0 0.0
    %2186 = vmatpush1.msra.mxu0 0.0
    %2187 = vmatprep.subr.mxu0 0.0
    %2188 = vmatpush1.msra.mxu0 0.0
    %2189 = vmatprep.subr.mxu0 0.0
    %2190 = vmatpush1.msra.mxu0 0.0
    %2191 = vmatprep.subr.mxu0 0.0
    %2192 = vmatpush1.msra.mxu0 0.0
    %2193 = vmatprep.mubr.f32.mxu0 0.0
    %2194 = vmatmul.mubr.f32.gmra.mrb[0].mxu0 %v2118
    %v2195 = vpop.f32.mrb[0].mxu0
    %v2196 = vadd.f32 0.0, %v2195
    %v2197 = vpop.f32.mrb[0].mxu0
    %2198 = vmatprep.mubr.f32.mxu0 0.0
    %2199 = vmatmul.mubr.f32.gmra.mrb[0].mxu0 %v2121
    %v2200 = vpop.f32.mrb[0].mxu0
    %v2201 = vadd.f32 0.0, %v2200
    %v2202 = vpop.f32.mrb[0].mxu0
    %2203 = vmatprep.mubr.f32.mxu0 0.0
    %2204 = vmatmul.mubr.f32.gmra.mrb[0].mxu0 %v2124
    %v2205 = vpop.f32.mrb[0].mxu0
    %v2206 = vadd.f32 0.0, %v2205
    %v2207 = vpop.f32.mrb[0].mxu0
    %2208 = vmatprep.mubr.f32.mxu0 0.0
    %2209 = vmatmul.mubr.f32.gmra.mrb[0].mxu0 %v2127
    %v2210 = vpop.f32.mrb[0].mxu0
    %v2211 = vadd.f32 0.0, %v2210
    %v2212 = vpop.f32.mrb[0].mxu0
    %2213 = vdwg.mxu0
    %v2214 = vld [vmem:[#allocation11] sm:$0xff]
    %v2215 = vld [vmem:[#allocation11 + $0x8] sm:$0xff]
    %v2216 = vld [vmem:[#allocation11 + $0x10] sm:$0xff]
    %v2217 = vld [vmem:[#allocation11 + $0x18] sm:$0xff]
    %s2218 = scalar_lea.vmem [#allocation19], 320
    %v2219 = vld [vmem:[%s2218] sm:$0xff]
    %v2220 = vld [vmem:[%s2218 + $0x8] sm:$0xff]
    %v2221 = vld [vmem:[%s2218 + $0x10] sm:$0xff]
    %v2222 = vld [vmem:[%s2218 + $0x18] sm:$0xff]
    %v2224 = vsel %vm331, %v2219, 0
    %v2227 = vsel %vm331, %v2220, 0
    %v2230 = vsel %vm331, %v2221, 0
    %v2233 = vsel %vm331, %v2222, 0
    %2235 = vmatprep.subr.mxu0 0.0
    %2236 = vmatpush1.msra.mxu0 %v2094
    %2237 = vmatprep.subr.mxu0 0.0
    %2238 = vmatpush1.msra.mxu0 %v2099
    %2239 = vmatprep.subr.mxu0 0.0
    %2240 = vmatpush1.msra.mxu0 %v2104
    %2241 = vmatprep.subr.mxu0 0.0
    %2242 = vmatpush1.msra.mxu0 %v2109
    %2243 = vmatprep.subr.mxu0 0.0
    %2244 = vmatpush1.msra.mxu0 0.0
    %2245 = vmatprep.subr.mxu0 0.0
    %2246 = vmatpush1.msra.mxu0 0.0
    %2247 = vmatprep.subr.mxu0 0.0
    %2248 = vmatpush1.msra.mxu0 0.0
    %2249 = vmatprep.subr.mxu0 0.0
    %2250 = vmatpush1.msra.mxu0 0.0
    %2251 = vmatprep.subr.mxu0 0.0
    %2252 = vmatpush1.msra.mxu0 0.0
    %2253 = vmatprep.subr.mxu0 0.0
    %2254 = vmatpush1.msra.mxu0 0.0
    %2255 = vmatprep.subr.mxu0 0.0
    %2256 = vmatpush1.msra.mxu0 0.0
    %2257 = vmatprep.subr.mxu0 0.0
    %2258 = vmatpush1.msra.mxu0 0.0
    %2259 = vmatprep.subr.mxu0 0.0
    %2260 = vmatpush1.msra.mxu0 0.0
    %2261 = vmatprep.subr.mxu0 0.0
    %2262 = vmatpush1.msra.mxu0 0.0
    %2263 = vmatprep.subr.mxu0 0.0
    %2264 = vmatpush1.msra.mxu0 0.0
    %2265 = vmatprep.subr.mxu0 0.0
    %2266 = vmatpush1.msra.mxu0 0.0
    %2267 = vmatprep.subr.mxu0 0.0
    %2268 = vmatpush1.msra.mxu0 0.0
    %2269 = vmatprep.subr.mxu0 0.0
    %2270 = vmatpush1.msra.mxu0 0.0
    %2271 = vmatprep.subr.mxu0 0.0
    %2272 = vmatpush1.msra.mxu0 0.0
    %2273 = vmatprep.subr.mxu0 0.0
    %2274 = vmatpush1.msra.mxu0 0.0
    %2275 = vmatprep.subr.mxu0 0.0
    %2276 = vmatpush1.msra.mxu0 0.0
    %2277 = vmatprep.subr.mxu0 0.0
    %2278 = vmatpush1.msra.mxu0 0.0
    %2279 = vmatprep.subr.mxu0 0.0
    %2280 = vmatpush1.msra.mxu0 0.0
    %2281 = vmatprep.subr.mxu0 0.0
    %2282 = vmatpush1.msra.mxu0 0.0
    %2283 = vmatprep.subr.mxu0 0.0
    %2284 = vmatpush1.msra.mxu0 0.0
    %2285 = vmatprep.subr.mxu0 0.0
    %2286 = vmatpush1.msra.mxu0 0.0
    %2287 = vmatprep.subr.mxu0 0.0
    %2288 = vmatpush1.msra.mxu0 0.0
    %2289 = vmatprep.subr.mxu0 0.0
    %2290 = vmatpush1.msra.mxu0 0.0
    %2291 = vmatprep.subr.mxu0 0.0
    %2292 = vmatpush1.msra.mxu0 0.0
    %2293 = vmatprep.subr.mxu0 0.0
    %2294 = vmatpush1.msra.mxu0 0.0
    %2295 = vmatprep.subr.mxu0 0.0
    %2296 = vmatpush1.msra.mxu0 0.0
    %2297 = vmatprep.subr.mxu0 0.0
    %2298 = vmatpush1.msra.mxu0 0.0
    %2299 = vmatprep.mubr.f32.mxu0 0.0
    %2300 = vmatmul.mubr.f32.gmra.mrb[0].mxu0 %v2224
    %v2301 = vpop.f32.mrb[0].mxu0
    %v2302 = vadd.f32 0.0, %v2301
    %v2303 = vpop.f32.mrb[0].mxu0
    %2304 = vmatprep.mubr.f32.mxu0 0.0
    %2305 = vmatmul.mubr.f32.gmra.mrb[0].mxu0 %v2227
    %v2306 = vpop.f32.mrb[0].mxu0
    %v2307 = vadd.f32 0.0, %v2306
    %v2308 = vpop.f32.mrb[0].mxu0
    %2309 = vmatprep.mubr.f32.mxu0 0.0
    %2310 = vmatmul.mubr.f32.gmra.mrb[0].mxu0 %v2230
    %v2311 = vpop.f32.mrb[0].mxu0
    %v2312 = vadd.f32 0.0, %v2311
    %v2313 = vpop.f32.mrb[0].mxu0
    %2314 = vmatprep.mubr.f32.mxu0 0.0
    %2315 = vmatmul.mubr.f32.gmra.mrb[0].mxu0 %v2233
    %v2316 = vpop.f32.mrb[0].mxu0
    %v2317 = vadd.f32 0.0, %v2316
    %v2318 = vpop.f32.mrb[0].mxu0
    %2319 = vdwg.mxu0
    %v2321 = vsel %vm331, %v2196, 0
    %v2324 = vsel %vm331, %v2201, 0
    %v2327 = vsel %vm331, %v2206, 0
    %v2330 = vsel %vm331, %v2211, 0
    %2332 = vmatprep.subr.mxu0 0.0
    %2333 = vmatpush1.msra.mxu0 %v2214
    %2334 = vmatprep.subr.mxu0 0.0
    %2335 = vmatpush1.msra.mxu0 %v2215
    %2336 = vmatprep.subr.mxu0 0.0
    %2337 = vmatpush1.msra.mxu0 %v2216
    %2338 = vmatprep.subr.mxu0 0.0
    %2339 = vmatpush1.msra.mxu0 %v2217
    %2340 = vmatprep.subr.mxu0 0.0
    %2341 = vmatpush1.msra.mxu0 0.0
    %2342 = vmatprep.subr.mxu0 0.0
    %2343 = vmatpush1.msra.mxu0 0.0
    %2344 = vmatprep.subr.mxu0 0.0
    %2345 = vmatpush1.msra.mxu0 0.0
    %2346 = vmatprep.subr.mxu0 0.0
    %2347 = vmatpush1.msra.mxu0 0.0
    %2348 = vmatprep.subr.mxu0 0.0
    %2349 = vmatpush1.msra.mxu0 0.0
    %2350 = vmatprep.subr.mxu0 0.0
    %2351 = vmatpush1.msra.mxu0 0.0
    %2352 = vmatprep.subr.mxu0 0.0
    %2353 = vmatpush1.msra.mxu0 0.0
    %2354 = vmatprep.subr.mxu0 0.0
    %2355 = vmatpush1.msra.mxu0 0.0
    %2356 = vmatprep.subr.mxu0 0.0
    %2357 = vmatpush1.msra.mxu0 0.0
    %2358 = vmatprep.subr.mxu0 0.0
    %2359 = vmatpush1.msra.mxu0 0.0
    %2360 = vmatprep.subr.mxu0 0.0
    %2361 = vmatpush1.msra.mxu0 0.0
    %2362 = vmatprep.subr.mxu0 0.0
    %2363 = vmatpush1.msra.mxu0 0.0
    %2364 = vmatprep.subr.mxu0 0.0
    %2365 = vmatpush1.msra.mxu0 0.0
    %2366 = vmatprep.subr.mxu0 0.0
    %2367 = vmatpush1.msra.mxu0 0.0
    %2368 = vmatprep.subr.mxu0 0.0
    %2369 = vmatpush1.msra.mxu0 0.0
    %2370 = vmatprep.subr.mxu0 0.0
    %2371 = vmatpush1.msra.mxu0 0.0
    %2372 = vmatprep.subr.mxu0 0.0
    %2373 = vmatpush1.msra.mxu0 0.0
    %2374 = vmatprep.subr.mxu0 0.0
    %2375 = vmatpush1.msra.mxu0 0.0
    %2376 = vmatprep.subr.mxu0 0.0
    %2377 = vmatpush1.msra.mxu0 0.0
    %2378 = vmatprep.subr.mxu0 0.0
    %2379 = vmatpush1.msra.mxu0 0.0
    %2380 = vmatprep.subr.mxu0 0.0
    %2381 = vmatpush1.msra.mxu0 0.0
    %2382 = vmatprep.subr.mxu0 0.0
    %2383 = vmatpush1.msra.mxu0 0.0
    %2384 = vmatprep.subr.mxu0 0.0
    %2385 = vmatpush1.msra.mxu0 0.0
    %2386 = vmatprep.subr.mxu0 0.0
    %2387 = vmatpush1.msra.mxu0 0.0
    %2388 = vmatprep.subr.mxu0 0.0
    %2389 = vmatpush1.msra.mxu0 0.0
    %2390 = vmatprep.subr.mxu0 0.0
    %2391 = vmatpush1.msra.mxu0 0.0
    %2392 = vmatprep.subr.mxu0 0.0
    %2393 = vmatpush1.msra.mxu0 0.0
    %2394 = vmatprep.subr.mxu0 0.0
    %2395 = vmatpush1.msra.mxu0 0.0
    %2396 = vmatprep.mubr.f32.mxu0 0.0
    %2397 = vmatmul.mubr.f32.gmra.mrb[0].mxu0 %v2321
    %v2398 = vpop.f32.mrb[0].mxu0
    %v2399 = vadd.f32 %v2302, %v2398
    %v2400 = vpop.f32.mrb[0].mxu0
    %2401 = vmatprep.mubr.f32.mxu0 0.0
    %2402 = vmatmul.mubr.f32.gmra.mrb[0].mxu0 %v2324
    %v2403 = vpop.f32.mrb[0].mxu0
    %v2404 = vadd.f32 %v2307, %v2403
    %v2405 = vpop.f32.mrb[0].mxu0
    %2406 = vmatprep.mubr.f32.mxu0 0.0
    %2407 = vmatmul.mubr.f32.gmra.mrb[0].mxu0 %v2327
    %v2408 = vpop.f32.mrb[0].mxu0
    %v2409 = vadd.f32 %v2312, %v2408
    %v2410 = vpop.f32.mrb[0].mxu0
    %2411 = vmatprep.mubr.f32.mxu0 0.0
    %2412 = vmatmul.mubr.f32.gmra.mrb[0].mxu0 %v2330
    %v2413 = vpop.f32.mrb[0].mxu0
    %v2414 = vadd.f32 %v2317, %v2413
    %v2415 = vpop.f32.mrb[0].mxu0
    %2416 = vdwg.mxu0
    %s2417 = scalar_lea.vmem [#allocation20], 160
    %v2418 = vld [vmem:[%s2417] sm:$0xff]
    %v2419 = vld [vmem:[%s2417 + $0x8] sm:$0xff]
    %v2420 = vld [vmem:[%s2417 + $0x10] sm:$0xff]
    %v2421 = vld [vmem:[%s2417 + $0x18] sm:$0xff]
    %v2422 = vadd.f32 %v2399, %v2418
    %v2423 = vadd.f32 %v2404, %v2419
    %v2424 = vadd.f32 %v2409, %v2420
    %v2425 = vadd.f32 %v2414, %v2421
    %v2426 = vmax.f32 %v2422, 0.0
    %v2427 = vmax.f32 %v2423, 0.0
    %v2428 = vmax.f32 %v2424, 0.0
    %v2429 = vmax.f32 %v2425, 0.0
    %s2430 = scalar_lea.vmem [#allocation19], 352
    %v2431 = vld [vmem:[%s2430] sm:$0xff]
    %v2432 = vld [vmem:[%s2430 + $0x8] sm:$0xff]
    %v2433 = vld [vmem:[%s2430 + $0x10] sm:$0xff]
    %v2434 = vld [vmem:[%s2430 + $0x18] sm:$0xff]
    %v2436 = vsel %vm331, %v2431, 0
    %v2439 = vsel %vm331, %v2432, 0
    %v2442 = vsel %vm331, %v2433, 0
    %v2445 = vsel %vm331, %v2434, 0
    %2447 = vmatprep.subr.mxu0 0.0
    %2448 = vmatpush1.msra.mxu0 %v2426
    %2449 = vmatprep.subr.mxu0 0.0
    %2450 = vmatpush1.msra.mxu0 %v2427
    %2451 = vmatprep.subr.mxu0 0.0
    %2452 = vmatpush1.msra.mxu0 %v2428
    %2453 = vmatprep.subr.mxu0 0.0
    %2454 = vmatpush1.msra.mxu0 %v2429
    %2455 = vmatprep.subr.mxu0 0.0
    %2456 = vmatpush1.msra.mxu0 0.0
    %2457 = vmatprep.subr.mxu0 0.0
    %2458 = vmatpush1.msra.mxu0 0.0
    %2459 = vmatprep.subr.mxu0 0.0
    %2460 = vmatpush1.msra.mxu0 0.0
    %2461 = vmatprep.subr.mxu0 0.0
    %2462 = vmatpush1.msra.mxu0 0.0
    %2463 = vmatprep.subr.mxu0 0.0
    %2464 = vmatpush1.msra.mxu0 0.0
    %2465 = vmatprep.subr.mxu0 0.0
    %2466 = vmatpush1.msra.mxu0 0.0
    %2467 = vmatprep.subr.mxu0 0.0
    %2468 = vmatpush1.msra.mxu0 0.0
    %2469 = vmatprep.subr.mxu0 0.0
    %2470 = vmatpush1.msra.mxu0 0.0
    %2471 = vmatprep.subr.mxu0 0.0
    %2472 = vmatpush1.msra.mxu0 0.0
    %2473 = vmatprep.subr.mxu0 0.0
    %2474 = vmatpush1.msra.mxu0 0.0
    %2475 = vmatprep.subr.mxu0 0.0
    %2476 = vmatpush1.msra.mxu0 0.0
    %2477 = vmatprep.subr.mxu0 0.0
    %2478 = vmatpush1.msra.mxu0 0.0
    %2479 = vmatprep.subr.mxu0 0.0
    %2480 = vmatpush1.msra.mxu0 0.0
    %2481 = vmatprep.subr.mxu0 0.0
    %2482 = vmatpush1.msra.mxu0 0.0
    %2483 = vmatprep.subr.mxu0 0.0
    %2484 = vmatpush1.msra.mxu0 0.0
    %2485 = vmatprep.subr.mxu0 0.0
    %2486 = vmatpush1.msra.mxu0 0.0
    %2487 = vmatprep.subr.mxu0 0.0
    %2488 = vmatpush1.msra.mxu0 0.0
    %2489 = vmatprep.subr.mxu0 0.0
    %2490 = vmatpush1.msra.mxu0 0.0
    %2491 = vmatprep.subr.mxu0 0.0
    %2492 = vmatpush1.msra.mxu0 0.0
    %2493 = vmatprep.subr.mxu0 0.0
    %2494 = vmatpush1.msra.mxu0 0.0
    %2495 = vmatprep.subr.mxu0 0.0
    %2496 = vmatpush1.msra.mxu0 0.0
    %2497 = vmatprep.subr.mxu0 0.0
    %2498 = vmatpush1.msra.mxu0 0.0
    %2499 = vmatprep.subr.mxu0 0.0
    %2500 = vmatpush1.msra.mxu0 0.0
    %2501 = vmatprep.subr.mxu0 0.0
    %2502 = vmatpush1.msra.mxu0 0.0
    %2503 = vmatprep.subr.mxu0 0.0
    %2504 = vmatpush1.msra.mxu0 0.0
    %2505 = vmatprep.subr.mxu0 0.0
    %2506 = vmatpush1.msra.mxu0 0.0
    %2507 = vmatprep.subr.mxu0 0.0
    %2508 = vmatpush1.msra.mxu0 0.0
    %2509 = vmatprep.subr.mxu0 0.0
    %2510 = vmatpush1.msra.mxu0 0.0
    %2511 = vmatprep.mubr.f32.mxu0 0.0
    %2512 = vmatmul.mubr.f32.gmra.mrb[0].mxu0 %v2436
    %v2513 = vpop.f32.mrb[0].mxu0
    %v2514 = vadd.f32 0.0, %v2513
    %v2515 = vpop.f32.mrb[0].mxu0
    %2516 = vmatprep.mubr.f32.mxu0 0.0
    %2517 = vmatmul.mubr.f32.gmra.mrb[0].mxu0 %v2439
    %v2518 = vpop.f32.mrb[0].mxu0
    %v2519 = vadd.f32 0.0, %v2518
    %v2520 = vpop.f32.mrb[0].mxu0
    %2521 = vmatprep.mubr.f32.mxu0 0.0
    %2522 = vmatmul.mubr.f32.gmra.mrb[0].mxu0 %v2442
    %v2523 = vpop.f32.mrb[0].mxu0
    %v2524 = vadd.f32 0.0, %v2523
    %v2525 = vpop.f32.mrb[0].mxu0
    %2526 = vmatprep.mubr.f32.mxu0 0.0
    %2527 = vmatmul.mubr.f32.gmra.mrb[0].mxu0 %v2445
    %v2528 = vpop.f32.mrb[0].mxu0
    %v2529 = vadd.f32 0.0, %v2528
    %v2530 = vpop.f32.mrb[0].mxu0
    %2531 = vdwg.mxu0
    %s2532 = scalar_lea.vmem [#allocation19], 384
    %v2533 = vld [vmem:[%s2532] sm:$0xff]
    %v2534 = vld [vmem:[%s2532 + $0x8] sm:$0xff]
    %v2535 = vld [vmem:[%s2532 + $0x10] sm:$0xff]
    %v2536 = vld [vmem:[%s2532 + $0x18] sm:$0xff]
    %v2538 = vsel %vm331, %v2533, 0
    %v2541 = vsel %vm331, %v2534, 0
    %v2544 = vsel %vm331, %v2535, 0
    %v2547 = vsel %vm331, %v2536, 0
    %2549 = vmatprep.subr.mxu0 0.0
    %2550 = vmatpush1.msra.mxu0 %v2426
    %2551 = vmatprep.subr.mxu0 0.0
    %2552 = vmatpush1.msra.mxu0 %v2427
    %2553 = vmatprep.subr.mxu0 0.0
    %2554 = vmatpush1.msra.mxu0 %v2428
    %2555 = vmatprep.subr.mxu0 0.0
    %2556 = vmatpush1.msra.mxu0 %v2429
    %2557 = vmatprep.subr.mxu0 0.0
    %2558 = vmatpush1.msra.mxu0 0.0
    %2559 = vmatprep.subr.mxu0 0.0
    %2560 = vmatpush1.msra.mxu0 0.0
    %2561 = vmatprep.subr.mxu0 0.0
    %2562 = vmatpush1.msra.mxu0 0.0
    %2563 = vmatprep.subr.mxu0 0.0
    %2564 = vmatpush1.msra.mxu0 0.0
    %2565 = vmatprep.subr.mxu0 0.0
    %2566 = vmatpush1.msra.mxu0 0.0
    %2567 = vmatprep.subr.mxu0 0.0
    %2568 = vmatpush1.msra.mxu0 0.0
    %2569 = vmatprep.subr.mxu0 0.0
    %2570 = vmatpush1.msra.mxu0 0.0
    %2571 = vmatprep.subr.mxu0 0.0
    %2572 = vmatpush1.msra.mxu0 0.0
    %2573 = vmatprep.subr.mxu0 0.0
    %2574 = vmatpush1.msra.mxu0 0.0
    %2575 = vmatprep.subr.mxu0 0.0
    %2576 = vmatpush1.msra.mxu0 0.0
    %2577 = vmatprep.subr.mxu0 0.0
    %2578 = vmatpush1.msra.mxu0 0.0
    %2579 = vmatprep.subr.mxu0 0.0
    %2580 = vmatpush1.msra.mxu0 0.0
    %2581 = vmatprep.subr.mxu0 0.0
    %2582 = vmatpush1.msra.mxu0 0.0
    %2583 = vmatprep.subr.mxu0 0.0
    %2584 = vmatpush1.msra.mxu0 0.0
    %2585 = vmatprep.subr.mxu0 0.0
    %2586 = vmatpush1.msra.mxu0 0.0
    %2587 = vmatprep.subr.mxu0 0.0
    %2588 = vmatpush1.msra.mxu0 0.0
    %2589 = vmatprep.subr.mxu0 0.0
    %2590 = vmatpush1.msra.mxu0 0.0
    %2591 = vmatprep.subr.mxu0 0.0
    %2592 = vmatpush1.msra.mxu0 0.0
    %2593 = vmatprep.subr.mxu0 0.0
    %2594 = vmatpush1.msra.mxu0 0.0
    %2595 = vmatprep.subr.mxu0 0.0
    %2596 = vmatpush1.msra.mxu0 0.0
    %2597 = vmatprep.subr.mxu0 0.0
    %2598 = vmatpush1.msra.mxu0 0.0
    %2599 = vmatprep.subr.mxu0 0.0
    %2600 = vmatpush1.msra.mxu0 0.0
    %2601 = vmatprep.subr.mxu0 0.0
    %2602 = vmatpush1.msra.mxu0 0.0
    %2603 = vmatprep.subr.mxu0 0.0
    %2604 = vmatpush1.msra.mxu0 0.0
    %2605 = vmatprep.subr.mxu0 0.0
    %2606 = vmatpush1.msra.mxu0 0.0
    %2607 = vmatprep.subr.mxu0 0.0
    %2608 = vmatpush1.msra.mxu0 0.0
    %2609 = vmatprep.subr.mxu0 0.0
    %2610 = vmatpush1.msra.mxu0 0.0
    %2611 = vmatprep.subr.mxu0 0.0
    %2612 = vmatpush1.msra.mxu0 0.0
    %2613 = vmatprep.mubr.f32.mxu0 0.0
    %2614 = vmatmul.mubr.f32.gmra.mrb[0].mxu0 %v2538
    %v2615 = vpop.f32.mrb[0].mxu0
    %v2616 = vadd.f32 0.0, %v2615
    %v2617 = vpop.f32.mrb[0].mxu0
    %2618 = vmatprep.mubr.f32.mxu0 0.0
    %2619 = vmatmul.mubr.f32.gmra.mrb[0].mxu0 %v2541
    %v2620 = vpop.f32.mrb[0].mxu0
    %v2621 = vadd.f32 0.0, %v2620
    %v2622 = vpop.f32.mrb[0].mxu0
    %2623 = vmatprep.mubr.f32.mxu0 0.0
    %2624 = vmatmul.mubr.f32.gmra.mrb[0].mxu0 %v2544
    %v2625 = vpop.f32.mrb[0].mxu0
    %v2626 = vadd.f32 0.0, %v2625
    %v2627 = vpop.f32.mrb[0].mxu0
    %2628 = vmatprep.mubr.f32.mxu0 0.0
    %2629 = vmatmul.mubr.f32.gmra.mrb[0].mxu0 %v2547
    %v2630 = vpop.f32.mrb[0].mxu0
    %v2631 = vadd.f32 0.0, %v2630
    %v2632 = vpop.f32.mrb[0].mxu0
    %2633 = vdwg.mxu0
    %v2635 = vsel %vm331, %v2514, 0
    %v2638 = vsel %vm331, %v2519, 0
    %v2641 = vsel %vm331, %v2524, 0
    %v2644 = vsel %vm331, %v2529, 0
    %2646 = vmatprep.subr.mxu0 0.0
    %2647 = vmatpush1.msra.mxu0 %v2214
    %2648 = vmatprep.subr.mxu0 0.0
    %2649 = vmatpush1.msra.mxu0 %v2215
    %2650 = vmatprep.subr.mxu0 0.0
    %2651 = vmatpush1.msra.mxu0 %v2216
    %2652 = vmatprep.subr.mxu0 0.0
    %2653 = vmatpush1.msra.mxu0 %v2217
    %2654 = vmatprep.subr.mxu0 0.0
    %2655 = vmatpush1.msra.mxu0 0.0
    %2656 = vmatprep.subr.mxu0 0.0
    %2657 = vmatpush1.msra.mxu0 0.0
    %2658 = vmatprep.subr.mxu0 0.0
    %2659 = vmatpush1.msra.mxu0 0.0
    %2660 = vmatprep.subr.mxu0 0.0
    %2661 = vmatpush1.msra.mxu0 0.0
    %2662 = vmatprep.subr.mxu0 0.0
    %2663 = vmatpush1.msra.mxu0 0.0
    %2664 = vmatprep.subr.mxu0 0.0
    %2665 = vmatpush1.msra.mxu0 0.0
    %2666 = vmatprep.subr.mxu0 0.0
    %2667 = vmatpush1.msra.mxu0 0.0
    %2668 = vmatprep.subr.mxu0 0.0
    %2669 = vmatpush1.msra.mxu0 0.0
    %2670 = vmatprep.subr.mxu0 0.0
    %2671 = vmatpush1.msra.mxu0 0.0
    %2672 = vmatprep.subr.mxu0 0.0
    %2673 = vmatpush1.msra.mxu0 0.0
    %2674 = vmatprep.subr.mxu0 0.0
    %2675 = vmatpush1.msra.mxu0 0.0
    %2676 = vmatprep.subr.mxu0 0.0
    %2677 = vmatpush1.msra.mxu0 0.0
    %2678 = vmatprep.subr.mxu0 0.0
    %2679 = vmatpush1.msra.mxu0 0.0
    %2680 = vmatprep.subr.mxu0 0.0
    %2681 = vmatpush1.msra.mxu0 0.0
    %2682 = vmatprep.subr.mxu0 0.0
    %2683 = vmatpush1.msra.mxu0 0.0
    %2684 = vmatprep.subr.mxu0 0.0
    %2685 = vmatpush1.msra.mxu0 0.0
    %2686 = vmatprep.subr.mxu0 0.0
    %2687 = vmatpush1.msra.mxu0 0.0
    %2688 = vmatprep.subr.mxu0 0.0
    %2689 = vmatpush1.msra.mxu0 0.0
    %2690 = vmatprep.subr.mxu0 0.0
    %2691 = vmatpush1.msra.mxu0 0.0
    %2692 = vmatprep.subr.mxu0 0.0
    %2693 = vmatpush1.msra.mxu0 0.0
    %2694 = vmatprep.subr.mxu0 0.0
    %2695 = vmatpush1.msra.mxu0 0.0
    %2696 = vmatprep.subr.mxu0 0.0
    %2697 = vmatpush1.msra.mxu0 0.0
    %2698 = vmatprep.subr.mxu0 0.0
    %2699 = vmatpush1.msra.mxu0 0.0
    %2700 = vmatprep.subr.mxu0 0.0
    %2701 = vmatpush1.msra.mxu0 0.0
    %2702 = vmatprep.subr.mxu0 0.0
    %2703 = vmatpush1.msra.mxu0 0.0
    %2704 = vmatprep.subr.mxu0 0.0
    %2705 = vmatpush1.msra.mxu0 0.0
    %2706 = vmatprep.subr.mxu0 0.0
    %2707 = vmatpush1.msra.mxu0 0.0
    %2708 = vmatprep.subr.mxu0 0.0
    %2709 = vmatpush1.msra.mxu0 0.0
    %2710 = vmatprep.mubr.f32.mxu0 0.0
    %2711 = vmatmul.mubr.f32.gmra.mrb[0].mxu0 %v2635
    %v2712 = vpop.f32.mrb[0].mxu0
    %v2713 = vadd.f32 %v2616, %v2712
    %v2714 = vpop.f32.mrb[0].mxu0
    %2715 = vmatprep.mubr.f32.mxu0 0.0
    %2716 = vmatmul.mubr.f32.gmra.mrb[0].mxu0 %v2638
    %v2717 = vpop.f32.mrb[0].mxu0
    %v2718 = vadd.f32 %v2621, %v2717
    %v2719 = vpop.f32.mrb[0].mxu0
    %2720 = vmatprep.mubr.f32.mxu0 0.0
    %2721 = vmatmul.mubr.f32.gmra.mrb[0].mxu0 %v2641
    %v2722 = vpop.f32.mrb[0].mxu0
    %v2723 = vadd.f32 %v2626, %v2722
    %v2724 = vpop.f32.mrb[0].mxu0
    %2725 = vmatprep.mubr.f32.mxu0 0.0
    %2726 = vmatmul.mubr.f32.gmra.mrb[0].mxu0 %v2644
    %v2727 = vpop.f32.mrb[0].mxu0
    %v2728 = vadd.f32 %v2631, %v2727
    %v2729 = vpop.f32.mrb[0].mxu0
    %2730 = vdwg.mxu0
    %s2731 = scalar_lea.vmem [#allocation20], 192
    %v2732 = vld [vmem:[%s2731] sm:$0xff]
    %v2733 = vld [vmem:[%s2731 + $0x8] sm:$0xff]
    %v2734 = vld [vmem:[%s2731 + $0x10] sm:$0xff]
    %v2735 = vld [vmem:[%s2731 + $0x18] sm:$0xff]
    %v2736 = vadd.f32 %v2713, %v2732
    %v2737 = vadd.f32 %v2718, %v2733
    %v2738 = vadd.f32 %v2723, %v2734
    %v2739 = vadd.f32 %v2728, %v2735
    %v2740 = vmax.f32 %v2736, 0.0
    %v2741 = vmax.f32 %v2737, 0.0
    %v2742 = vmax.f32 %v2738, 0.0
    %v2743 = vmax.f32 %v2739, 0.0
    %v2744 = vsel %vm331, %v2740, 0.0
    %2745 = vadd.xlane.f32.xlu0 %v2744
    %v2746 = vpop.xlane.xlu0 %2745
    %v2747 = vsel %vm331, %v2741, 0.0
    %2748 = vadd.xlane.f32.xlu0 %v2747
    %v2749 = vpop.xlane.xlu0 %2748
    %v2750 = vsel %vm331, %v2742, 0.0
    %2751 = vadd.xlane.f32.xlu0 %v2750
    %v2752 = vpop.xlane.xlu0 %2751
    %v2753 = vsel %vm331, %v2743, 0.0
    %2754 = vadd.xlane.f32.xlu0 %v2753
    %v2755 = vpop.xlane.xlu0 %2754
    %v2756 = vrcp.pop 32.0
    %v2757 = vmul.f32 %v2746, %v2756
    %v2758 = vmul.f32 %v2749, %v2756
    %v2759 = vmul.f32 %v2752, %v2756
    %v2760 = vmul.f32 %v2755, %v2756
    %v2761 = vsub.f32 %v2740, %v2757
    %v2762 = vsub.f32 %v2741, %v2758
    %v2763 = vsub.f32 %v2742, %v2759
    %v2764 = vsub.f32 %v2743, %v2760
    %v2765 = vmul.f32 %v2761, %v2761
    %v2766 = vmul.f32 %v2762, %v2762
    %v2767 = vmul.f32 %v2763, %v2763
    %v2768 = vmul.f32 %v2764, %v2764
    %v2769 = vsel %vm331, %v2765, 0.0
    %2770 = vadd.xlane.f32.xlu0 %v2769
    %v2771 = vpop.xlane.xlu0 %2770
    %v2772 = vsel %vm331, %v2766, 0.0
    %2773 = vadd.xlane.f32.xlu0 %v2772
    %v2774 = vpop.xlane.xlu0 %2773
    %v2775 = vsel %vm331, %v2767, 0.0
    %2776 = vadd.xlane.f32.xlu0 %v2775
    %v2777 = vpop.xlane.xlu0 %2776
    %v2778 = vsel %vm331, %v2768, 0.0
    %2779 = vadd.xlane.f32.xlu0 %v2778
    %v2780 = vpop.xlane.xlu0 %2779
    %v2781 = vmul.f32 %v2771, %v2756
    %v2782 = vmul.f32 %v2774, %v2756
    %v2783 = vmul.f32 %v2777, %v2756
    %v2784 = vmul.f32 %v2780, %v2756
    %v2785 = vadd.f32 %v2781, 1e-05
    %v2786 = vadd.f32 %v2782, 1e-05
    %v2787 = vadd.f32 %v2783, 1e-05
    %v2788 = vadd.f32 %v2784, 1e-05
    %v2789 = vrsqrt.pop %v2785
    %v2790 = vrsqrt.pop %v2786
    %v2791 = vrsqrt.pop %v2787
    %v2792 = vrsqrt.pop %v2788
    %v2793 = vmul.f32 %v2761, %v2789
    %v2794 = vmul.f32 %v2762, %v2790
    %v2795 = vmul.f32 %v2763, %v2791
    %v2796 = vmul.f32 %v2764, %v2792
    %v2797 = vld [vmem:[#allocation17] sm:$0xff]
    %v2798 = vld [vmem:[#allocation17 + $0x8] sm:$0xff]
    %v2799 = vld [vmem:[#allocation17 + $0x10] sm:$0xff]
    %v2800 = vld [vmem:[#allocation17 + $0x18] sm:$0xff]
    %v2802 = vsel %vm331, %v2793, 0
    %v2805 = vsel %vm331, %v2794, 0
    %v2808 = vsel %vm331, %v2795, 0
    %v2811 = vsel %vm331, %v2796, 0
    %2813 = vmatprep.subr.mxu0 0.0
    %2814 = vmatpush1.msra.mxu0 %v2797
    %2815 = vmatprep.subr.mxu0 0.0
    %2816 = vmatpush1.msra.mxu0 %v2798
    %2817 = vmatprep.subr.mxu0 0.0
    %2818 = vmatpush1.msra.mxu0 %v2799
    %2819 = vmatprep.subr.mxu0 0.0
    %2820 = vmatpush1.msra.mxu0 %v2800
    %2821 = vmatprep.subr.mxu0 0.0
    %2822 = vmatpush1.msra.mxu0 0.0
    %2823 = vmatprep.subr.mxu0 0.0
    %2824 = vmatpush1.msra.mxu0 0.0
    %2825 = vmatprep.subr.mxu0 0.0
    %2826 = vmatpush1.msra.mxu0 0.0
    %2827 = vmatprep.subr.mxu0 0.0
    %2828 = vmatpush1.msra.mxu0 0.0
    %2829 = vmatprep.subr.mxu0 0.0
    %2830 = vmatpush1.msra.mxu0 0.0
    %2831 = vmatprep.subr.mxu0 0.0
    %2832 = vmatpush1.msra.mxu0 0.0
    %2833 = vmatprep.subr.mxu0 0.0
    %2834 = vmatpush1.msra.mxu0 0.0
    %2835 = vmatprep.subr.mxu0 0.0
    %2836 = vmatpush1.msra.mxu0 0.0
    %2837 = vmatprep.subr.mxu0 0.0
    %2838 = vmatpush1.msra.mxu0 0.0
    %2839 = vmatprep.subr.mxu0 0.0
    %2840 = vmatpush1.msra.mxu0 0.0
    %2841 = vmatprep.subr.mxu0 0.0
    %2842 = vmatpush1.msra.mxu0 0.0
    %2843 = vmatprep.subr.mxu0 0.0
    %2844 = vmatpush1.msra.mxu0 0.0
    %2845 = vmatprep.subr.mxu0 0.0
    %2846 = vmatpush1.msra.mxu0 0.0
    %2847 = vmatprep.subr.mxu0 0.0
    %2848 = vmatpush1.msra.mxu0 0.0
    %2849 = vmatprep.subr.mxu0 0.0
    %2850 = vmatpush1.msra.mxu0 0.0
    %2851 = vmatprep.subr.mxu0 0.0
    %2852 = vmatpush1.msra.mxu0 0.0
    %2853 = vmatprep.subr.mxu0 0.0
    %2854 = vmatpush1.msra.mxu0 0.0
    %2855 = vmatprep.subr.mxu0 0.0
    %2856 = vmatpush1.msra.mxu0 0.0
    %2857 = vmatprep.subr.mxu0 0.0
    %2858 = vmatpush1.msra.mxu0 0.0
    %2859 = vmatprep.subr.mxu0 0.0
    %2860 = vmatpush1.msra.mxu0 0.0
    %2861 = vmatprep.subr.mxu0 0.0
    %2862 = vmatpush1.msra.mxu0 0.0
    %2863 = vmatprep.subr.mxu0 0.0
    %2864 = vmatpush1.msra.mxu0 0.0
    %2865 = vmatprep.subr.mxu0 0.0
    %2866 = vmatpush1.msra.mxu0 0.0
    %2867 = vmatprep.subr.mxu0 0.0
    %2868 = vmatpush1.msra.mxu0 0.0
    %2869 = vmatprep.subr.mxu0 0.0
    %2870 = vmatpush1.msra.mxu0 0.0
    %2871 = vmatprep.subr.mxu0 0.0
    %2872 = vmatpush1.msra.mxu0 0.0
    %2873 = vmatprep.subr.mxu0 0.0
    %2874 = vmatpush1.msra.mxu0 0.0
    %2875 = vmatprep.subr.mxu0 0.0
    %2876 = vmatpush1.msra.mxu0 0.0
    %2877 = vmatprep.mubr.f32.mxu0 0.0
    %2878 = vmatmul.mubr.f32.gmra.mrb[0].mxu0 %v2802
    %v2879 = vpop.f32.mrb[0].mxu0
    %v2880 = vadd.f32 0.0, %v2879
    %v2881 = vpop.f32.mrb[0].mxu0
    %2882 = vmatprep.mubr.f32.mxu0 0.0
    %2883 = vmatmul.mubr.f32.gmra.mrb[0].mxu0 %v2805
    %v2884 = vpop.f32.mrb[0].mxu0
    %v2885 = vadd.f32 0.0, %v2884
    %v2886 = vpop.f32.mrb[0].mxu0
    %2887 = vmatprep.mubr.f32.mxu0 0.0
    %2888 = vmatmul.mubr.f32.gmra.mrb[0].mxu0 %v2808
    %v2889 = vpop.f32.mrb[0].mxu0
    %v2890 = vadd.f32 0.0, %v2889
    %v2891 = vpop.f32.mrb[0].mxu0
    %2892 = vmatprep.mubr.f32.mxu0 0.0
    %2893 = vmatmul.mubr.f32.gmra.mrb[0].mxu0 %v2811
    %v2894 = vpop.f32.mrb[0].mxu0
    %v2895 = vadd.f32 0.0, %v2894
    %v2896 = vpop.f32.mrb[0].mxu0
    %2897 = vdwg.mxu0
    %s2898 = scalar_lea.vmem [#allocation19], 416
    %v2899 = vld [vmem:[%s2898] sm:$0xff]
    %v2900 = vld [vmem:[%s2898 + $0x8] sm:$0xff]
    %v2901 = vld [vmem:[%s2898 + $0x10] sm:$0xff]
    %v2902 = vld [vmem:[%s2898 + $0x18] sm:$0xff]
    %v2904 = vsel %vm331, %v2899, 0
    %v2907 = vsel %vm331, %v2900, 0
    %v2910 = vsel %vm331, %v2901, 0
    %v2913 = vsel %vm331, %v2902, 0
    %2915 = vmatprep.subr.mxu0 0.0
    %2916 = vmatpush1.msra.mxu0 %v2880
    %2917 = vmatprep.subr.mxu0 0.0
    %2918 = vmatpush1.msra.mxu0 %v2885
    %2919 = vmatprep.subr.mxu0 0.0
    %2920 = vmatpush1.msra.mxu0 %v2890
    %2921 = vmatprep.subr.mxu0 0.0
    %2922 = vmatpush1.msra.mxu0 %v2895
    %2923 = vmatprep.subr.mxu0 0.0
    %2924 = vmatpush1.msra.mxu0 0.0
    %2925 = vmatprep.subr.mxu0 0.0
    %2926 = vmatpush1.msra.mxu0 0.0
    %2927 = vmatprep.subr.mxu0 0.0
    %2928 = vmatpush1.msra.mxu0 0.0
    %2929 = vmatprep.subr.mxu0 0.0
    %2930 = vmatpush1.msra.mxu0 0.0
    %2931 = vmatprep.subr.mxu0 0.0
    %2932 = vmatpush1.msra.mxu0 0.0
    %2933 = vmatprep.subr.mxu0 0.0
    %2934 = vmatpush1.msra.mxu0 0.0
    %2935 = vmatprep.subr.mxu0 0.0
    %2936 = vmatpush1.msra.mxu0 0.0
    %2937 = vmatprep.subr.mxu0 0.0
    %2938 = vmatpush1.msra.mxu0 0.0
    %2939 = vmatprep.subr.mxu0 0.0
    %2940 = vmatpush1.msra.mxu0 0.0
    %2941 = vmatprep.subr.mxu0 0.0
    %2942 = vmatpush1.msra.mxu0 0.0
    %2943 = vmatprep.subr.mxu0 0.0
    %2944 = vmatpush1.msra.mxu0 0.0
    %2945 = vmatprep.subr.mxu0 0.0
    %2946 = vmatpush1.msra.mxu0 0.0
    %2947 = vmatprep.subr.mxu0 0.0
    %2948 = vmatpush1.msra.mxu0 0.0
    %2949 = vmatprep.subr.mxu0 0.0
    %2950 = vmatpush1.msra.mxu0 0.0
    %2951 = vmatprep.subr.mxu0 0.0
    %2952 = vmatpush1.msra.mxu0 0.0
    %2953 = vmatprep.subr.mxu0 0.0
    %2954 = vmatpush1.msra.mxu0 0.0
    %2955 = vmatprep.subr.mxu0 0.0
    %2956 = vmatpush1.msra.mxu0 0.0
    %2957 = vmatprep.subr.mxu0 0.0
    %2958 = vmatpush1.msra.mxu0 0.0
    %2959 = vmatprep.subr.mxu0 0.0
    %2960 = vmatpush1.msra.mxu0 0.0
    %2961 = vmatprep.subr.mxu0 0.0
    %2962 = vmatpush1.msra.mxu0 0.0
    %2963 = vmatprep.subr.mxu0 0.0
    %2964 = vmatpush1.msra.mxu0 0.0
    %2965 = vmatprep.subr.mxu0 0.0
    %2966 = vmatpush1.msra.mxu0 0.0
    %2967 = vmatprep.subr.mxu0 0.0
    %2968 = vmatpush1.msra.mxu0 0.0
    %2969 = vmatprep.subr.mxu0 0.0
    %2970 = vmatpush1.msra.mxu0 0.0
    %2971 = vmatprep.subr.mxu0 0.0
    %2972 = vmatpush1.msra.mxu0 0.0
    %2973 = vmatprep.subr.mxu0 0.0
    %2974 = vmatpush1.msra.mxu0 0.0
    %2975 = vmatprep.subr.mxu0 0.0
    %2976 = vmatpush1.msra.mxu0 0.0
    %2977 = vmatprep.subr.mxu0 0.0
    %2978 = vmatpush1.msra.mxu0 0.0
    %2979 = vmatprep.mubr.f32.mxu0 0.0
    %2980 = vmatmul.mubr.f32.gmra.mrb[0].mxu0 %v2904
    %v2981 = vpop.f32.mrb[0].mxu0
    %v2982 = vadd.f32 0.0, %v2981
    %v2983 = vpop.f32.mrb[0].mxu0
    %2984 = vmatprep.mubr.f32.mxu0 0.0
    %2985 = vmatmul.mubr.f32.gmra.mrb[0].mxu0 %v2907
    %v2986 = vpop.f32.mrb[0].mxu0
    %v2987 = vadd.f32 0.0, %v2986
    %v2988 = vpop.f32.mrb[0].mxu0
    %2989 = vmatprep.mubr.f32.mxu0 0.0
    %2990 = vmatmul.mubr.f32.gmra.mrb[0].mxu0 %v2910
    %v2991 = vpop.f32.mrb[0].mxu0
    %v2992 = vadd.f32 0.0, %v2991
    %v2993 = vpop.f32.mrb[0].mxu0
    %2994 = vmatprep.mubr.f32.mxu0 0.0
    %2995 = vmatmul.mubr.f32.gmra.mrb[0].mxu0 %v2913
    %v2996 = vpop.f32.mrb[0].mxu0
    %v2997 = vadd.f32 0.0, %v2996
    %v2998 = vpop.f32.mrb[0].mxu0
    %2999 = vdwg.mxu0
    %v3000 = vld [vmem:[#allocation13] sm:$0xff]
    %v3001 = vld [vmem:[#allocation13 + $0x8] sm:$0xff]
    %s3002 = scalar_lea.vmem [#allocation19], 448
    %v3003 = vld [vmem:[%s3002] sm:$0xff]
    %v3004 = vld [vmem:[%s3002 + $0x8] sm:$0xff]
    %v3005 = vld [vmem:[%s3002 + $0x10] sm:$0xff]
    %v3006 = vld [vmem:[%s3002 + $0x18] sm:$0xff]
    %v3008 = vsel %vm331, %v3003, 0
    %v3011 = vsel %vm331, %v3004, 0
    %v3014 = vsel %vm331, %v3005, 0
    %v3017 = vsel %vm331, %v3006, 0
    %3019 = vmatprep.subr.mxu0 0.0
    %3020 = vmatpush1.msra.mxu0 %v2880
    %3021 = vmatprep.subr.mxu0 0.0
    %3022 = vmatpush1.msra.mxu0 %v2885
    %3023 = vmatprep.subr.mxu0 0.0
    %3024 = vmatpush1.msra.mxu0 %v2890
    %3025 = vmatprep.subr.mxu0 0.0
    %3026 = vmatpush1.msra.mxu0 %v2895
    %3027 = vmatprep.subr.mxu0 0.0
    %3028 = vmatpush1.msra.mxu0 0.0
    %3029 = vmatprep.subr.mxu0 0.0
    %3030 = vmatpush1.msra.mxu0 0.0
    %3031 = vmatprep.subr.mxu0 0.0
    %3032 = vmatpush1.msra.mxu0 0.0
    %3033 = vmatprep.subr.mxu0 0.0
    %3034 = vmatpush1.msra.mxu0 0.0
    %3035 = vmatprep.subr.mxu0 0.0
    %3036 = vmatpush1.msra.mxu0 0.0
    %3037 = vmatprep.subr.mxu0 0.0
    %3038 = vmatpush1.msra.mxu0 0.0
    %3039 = vmatprep.subr.mxu0 0.0
    %3040 = vmatpush1.msra.mxu0 0.0
    %3041 = vmatprep.subr.mxu0 0.0
    %3042 = vmatpush1.msra.mxu0 0.0
    %3043 = vmatprep.subr.mxu0 0.0
    %3044 = vmatpush1.msra.mxu0 0.0
    %3045 = vmatprep.subr.mxu0 0.0
    %3046 = vmatpush1.msra.mxu0 0.0
    %3047 = vmatprep.subr.mxu0 0.0
    %3048 = vmatpush1.msra.mxu0 0.0
    %3049 = vmatprep.subr.mxu0 0.0
    %3050 = vmatpush1.msra.mxu0 0.0
    %3051 = vmatprep.subr.mxu0 0.0
    %3052 = vmatpush1.msra.mxu0 0.0
    %3053 = vmatprep.subr.mxu0 0.0
    %3054 = vmatpush1.msra.mxu0 0.0
    %3055 = vmatprep.subr.mxu0 0.0
    %3056 = vmatpush1.msra.mxu0 0.0
    %3057 = vmatprep.subr.mxu0 0.0
    %3058 = vmatpush1.msra.mxu0 0.0
    %3059 = vmatprep.subr.mxu0 0.0
    %3060 = vmatpush1.msra.mxu0 0.0
    %3061 = vmatprep.subr.mxu0 0.0
    %3062 = vmatpush1.msra.mxu0 0.0
    %3063 = vmatprep.subr.mxu0 0.0
    %3064 = vmatpush1.msra.mxu0 0.0
    %3065 = vmatprep.subr.mxu0 0.0
    %3066 = vmatpush1.msra.mxu0 0.0
    %3067 = vmatprep.subr.mxu0 0.0
    %3068 = vmatpush1.msra.mxu0 0.0
    %3069 = vmatprep.subr.mxu0 0.0
    %3070 = vmatpush1.msra.mxu0 0.0
    %3071 = vmatprep.subr.mxu0 0.0
    %3072 = vmatpush1.msra.mxu0 0.0
    %3073 = vmatprep.subr.mxu0 0.0
    %3074 = vmatpush1.msra.mxu0 0.0
    %3075 = vmatprep.subr.mxu0 0.0
    %3076 = vmatpush1.msra.mxu0 0.0
    %3077 = vmatprep.subr.mxu0 0.0
    %3078 = vmatpush1.msra.mxu0 0.0
    %3079 = vmatprep.subr.mxu0 0.0
    %3080 = vmatpush1.msra.mxu0 0.0
    %3081 = vmatprep.subr.mxu0 0.0
    %3082 = vmatpush1.msra.mxu0 0.0
    %3083 = vmatprep.mubr.f32.mxu0 0.0
    %3084 = vmatmul.mubr.f32.gmra.mrb[0].mxu0 %v3008
    %v3085 = vpop.f32.mrb[0].mxu0
    %v3086 = vadd.f32 0.0, %v3085
    %v3087 = vpop.f32.mrb[0].mxu0
    %3088 = vmatprep.mubr.f32.mxu0 0.0
    %3089 = vmatmul.mubr.f32.gmra.mrb[0].mxu0 %v3011
    %v3090 = vpop.f32.mrb[0].mxu0
    %v3091 = vadd.f32 0.0, %v3090
    %v3092 = vpop.f32.mrb[0].mxu0
    %3093 = vmatprep.mubr.f32.mxu0 0.0
    %3094 = vmatmul.mubr.f32.gmra.mrb[0].mxu0 %v3014
    %v3095 = vpop.f32.mrb[0].mxu0
    %v3096 = vadd.f32 0.0, %v3095
    %v3097 = vpop.f32.mrb[0].mxu0
    %3098 = vmatprep.mubr.f32.mxu0 0.0
    %3099 = vmatmul.mubr.f32.gmra.mrb[0].mxu0 %v3017
    %v3100 = vpop.f32.mrb[0].mxu0
    %v3101 = vadd.f32 0.0, %v3100
    %v3102 = vpop.f32.mrb[0].mxu0
    %3103 = vdwg.mxu0
    %vm3104 = vcmask 130048
    %v3106 = vsel %vm3104, %v2982, 0
    %v3109 = vsel %vm3104, %v2987, 0
    %v3112 = vsel %vm3104, %v2992, 0
    %v3115 = vsel %vm3104, %v2997, 0
    %3117 = vmatprep.subr.mxu0 0.0
    %3118 = vmatpush1.msra.mxu0 %v3000
    %3119 = vmatprep.subr.mxu0 0.0
    %3120 = vmatpush1.msra.mxu0 %v3001
    %3121 = vmatprep.subr.mxu0 0.0
    %3122 = vmatpush1.msra.mxu0 0.0
    %3123 = vmatprep.subr.mxu0 0.0
    %3124 = vmatpush1.msra.mxu0 0.0
    %3125 = vmatprep.subr.mxu0 0.0
    %3126 = vmatpush1.msra.mxu0 0.0
    %3127 = vmatprep.subr.mxu0 0.0
    %3128 = vmatpush1.msra.mxu0 0.0
    %3129 = vmatprep.subr.mxu0 0.0
    %3130 = vmatpush1.msra.mxu0 0.0
    %3131 = vmatprep.subr.mxu0 0.0
    %3132 = vmatpush1.msra.mxu0 0.0
    %3133 = vmatprep.subr.mxu0 0.0
    %3134 = vmatpush1.msra.mxu0 0.0
    %3135 = vmatprep.subr.mxu0 0.0
    %3136 = vmatpush1.msra.mxu0 0.0
    %3137 = vmatprep.subr.mxu0 0.0
    %3138 = vmatpush1.msra.mxu0 0.0
    %3139 = vmatprep.subr.mxu0 0.0
    %3140 = vmatpush1.msra.mxu0 0.0
    %3141 = vmatprep.subr.mxu0 0.0
    %3142 = vmatpush1.msra.mxu0 0.0
    %3143 = vmatprep.subr.mxu0 0.0
    %3144 = vmatpush1.msra.mxu0 0.0
    %3145 = vmatprep.subr.mxu0 0.0
    %3146 = vmatpush1.msra.mxu0 0.0
    %3147 = vmatprep.subr.mxu0 0.0
    %3148 = vmatpush1.msra.mxu0 0.0
    %3149 = vmatprep.subr.mxu0 0.0
    %3150 = vmatpush1.msra.mxu0 0.0
    %3151 = vmatprep.subr.mxu0 0.0
    %3152 = vmatpush1.msra.mxu0 0.0
    %3153 = vmatprep.subr.mxu0 0.0
    %3154 = vmatpush1.msra.mxu0 0.0
    %3155 = vmatprep.subr.mxu0 0.0
    %3156 = vmatpush1.msra.mxu0 0.0
    %3157 = vmatprep.subr.mxu0 0.0
    %3158 = vmatpush1.msra.mxu0 0.0
    %3159 = vmatprep.subr.mxu0 0.0
    %3160 = vmatpush1.msra.mxu0 0.0
    %3161 = vmatprep.subr.mxu0 0.0
    %3162 = vmatpush1.msra.mxu0 0.0
    %3163 = vmatprep.subr.mxu0 0.0
    %3164 = vmatpush1.msra.mxu0 0.0
    %3165 = vmatprep.subr.mxu0 0.0
    %3166 = vmatpush1.msra.mxu0 0.0
    %3167 = vmatprep.subr.mxu0 0.0
    %3168 = vmatpush1.msra.mxu0 0.0
    %3169 = vmatprep.subr.mxu0 0.0
    %3170 = vmatpush1.msra.mxu0 0.0
    %3171 = vmatprep.subr.mxu0 0.0
    %3172 = vmatpush1.msra.mxu0 0.0
    %3173 = vmatprep.subr.mxu0 0.0
    %3174 = vmatpush1.msra.mxu0 0.0
    %3175 = vmatprep.subr.mxu0 0.0
    %3176 = vmatpush1.msra.mxu0 0.0
    %3177 = vmatprep.subr.mxu0 0.0
    %3178 = vmatpush1.msra.mxu0 0.0
    %3179 = vmatprep.subr.mxu0 0.0
    %3180 = vmatpush1.msra.mxu0 0.0
    %3181 = vmatprep.mubr.f32.mxu0 0.0
    %3182 = vmatmul.mubr.f32.gmra.mrb[0].mxu0 %v3106
    %v3183 = vpop.f32.mrb[0].mxu0
    %v3184 = vadd.f32 %v3086, %v3183
    %v3185 = vpop.f32.mrb[0].mxu0
    %3186 = vmatprep.mubr.f32.mxu0 0.0
    %3187 = vmatmul.mubr.f32.gmra.mrb[0].mxu0 %v3109
    %v3188 = vpop.f32.mrb[0].mxu0
    %v3189 = vadd.f32 %v3091, %v3188
    %v3190 = vpop.f32.mrb[0].mxu0
    %3191 = vmatprep.mubr.f32.mxu0 0.0
    %3192 = vmatmul.mubr.f32.gmra.mrb[0].mxu0 %v3112
    %v3193 = vpop.f32.mrb[0].mxu0
    %v3194 = vadd.f32 %v3096, %v3193
    %v3195 = vpop.f32.mrb[0].mxu0
    %3196 = vmatprep.mubr.f32.mxu0 0.0
    %3197 = vmatmul.mubr.f32.gmra.mrb[0].mxu0 %v3115
    %v3198 = vpop.f32.mrb[0].mxu0
    %v3199 = vadd.f32 %v3101, %v3198
    %v3200 = vpop.f32.mrb[0].mxu0
    %3201 = vdwg.mxu0
    %s3202 = scalar_lea.vmem [#allocation20], 224
    %v3203 = vld [vmem:[%s3202] sm:$0xff]
    %v3204 = vld [vmem:[%s3202 + $0x8] sm:$0xff]
    %v3205 = vld [vmem:[%s3202 + $0x10] sm:$0xff]
    %v3206 = vld [vmem:[%s3202 + $0x18] sm:$0xff]
    %v3207 = vadd.f32 %v3184, %v3203
    %v3208 = vadd.f32 %v3189, %v3204
    %v3209 = vadd.f32 %v3194, %v3205
    %v3210 = vadd.f32 %v3199, %v3206
    %v3211 = vmax.f32 %v3207, 0.0
    %v3212 = vmax.f32 %v3208, 0.0
    %v3213 = vmax.f32 %v3209, 0.0
    %v3214 = vmax.f32 %v3210, 0.0
    %s3215 = scalar_lea.vmem [#allocation19], 480
    %v3216 = vld [vmem:[%s3215] sm:$0xff]
    %v3217 = vld [vmem:[%s3215 + $0x8] sm:$0xff]
    %v3218 = vld [vmem:[%s3215 + $0x10] sm:$0xff]
    %v3219 = vld [vmem:[%s3215 + $0x18] sm:$0xff]
    %v3221 = vsel %vm331, %v3216, 0
    %v3224 = vsel %vm331, %v3217, 0
    %v3227 = vsel %vm331, %v3218, 0
    %v3230 = vsel %vm331, %v3219, 0
    %3232 = vmatprep.subr.mxu0 0.0
    %3233 = vmatpush1.msra.mxu0 %v3211
    %3234 = vmatprep.subr.mxu0 0.0
    %3235 = vmatpush1.msra.mxu0 %v3212
    %3236 = vmatprep.subr.mxu0 0.0
    %3237 = vmatpush1.msra.mxu0 %v3213
    %3238 = vmatprep.subr.mxu0 0.0
    %3239 = vmatpush1.msra.mxu0 %v3214
    %3240 = vmatprep.subr.mxu0 0.0
    %3241 = vmatpush1.msra.mxu0 0.0
    %3242 = vmatprep.subr.mxu0 0.0
    %3243 = vmatpush1.msra.mxu0 0.0
    %3244 = vmatprep.subr.mxu0 0.0
    %3245 = vmatpush1.msra.mxu0 0.0
    %3246 = vmatprep.subr.mxu0 0.0
    %3247 = vmatpush1.msra.mxu0 0.0
    %3248 = vmatprep.subr.mxu0 0.0
    %3249 = vmatpush1.msra.mxu0 0.0
    %3250 = vmatprep.subr.mxu0 0.0
    %3251 = vmatpush1.msra.mxu0 0.0
    %3252 = vmatprep.subr.mxu0 0.0
    %3253 = vmatpush1.msra.mxu0 0.0
    %3254 = vmatprep.subr.mxu0 0.0
    %3255 = vmatpush1.msra.mxu0 0.0
    %3256 = vmatprep.subr.mxu0 0.0
    %3257 = vmatpush1.msra.mxu0 0.0
    %3258 = vmatprep.subr.mxu0 0.0
    %3259 = vmatpush1.msra.mxu0 0.0
    %3260 = vmatprep.subr.mxu0 0.0
    %3261 = vmatpush1.msra.mxu0 0.0
    %3262 = vmatprep.subr.mxu0 0.0
    %3263 = vmatpush1.msra.mxu0 0.0
    %3264 = vmatprep.subr.mxu0 0.0
    %3265 = vmatpush1.msra.mxu0 0.0
    %3266 = vmatprep.subr.mxu0 0.0
    %3267 = vmatpush1.msra.mxu0 0.0
    %3268 = vmatprep.subr.mxu0 0.0
    %3269 = vmatpush1.msra.mxu0 0.0
    %3270 = vmatprep.subr.mxu0 0.0
    %3271 = vmatpush1.msra.mxu0 0.0
    %3272 = vmatprep.subr.mxu0 0.0
    %3273 = vmatpush1.msra.mxu0 0.0
    %3274 = vmatprep.subr.mxu0 0.0
    %3275 = vmatpush1.msra.mxu0 0.0
    %3276 = vmatprep.subr.mxu0 0.0
    %3277 = vmatpush1.msra.mxu0 0.0
    %3278 = vmatprep.subr.mxu0 0.0
    %3279 = vmatpush1.msra.mxu0 0.0
    %3280 = vmatprep.subr.mxu0 0.0
    %3281 = vmatpush1.msra.mxu0 0.0
    %3282 = vmatprep.subr.mxu0 0.0
    %3283 = vmatpush1.msra.mxu0 0.0
    %3284 = vmatprep.subr.mxu0 0.0
    %3285 = vmatpush1.msra.mxu0 0.0
    %3286 = vmatprep.subr.mxu0 0.0
    %3287 = vmatpush1.msra.mxu0 0.0
    %3288 = vmatprep.subr.mxu0 0.0
    %3289 = vmatpush1.msra.mxu0 0.0
    %3290 = vmatprep.subr.mxu0 0.0
    %3291 = vmatpush1.msra.mxu0 0.0
    %3292 = vmatprep.subr.mxu0 0.0
    %3293 = vmatpush1.msra.mxu0 0.0
    %3294 = vmatprep.subr.mxu0 0.0
    %3295 = vmatpush1.msra.mxu0 0.0
    %3296 = vmatprep.mubr.f32.mxu0 0.0
    %3297 = vmatmul.mubr.f32.gmra.mrb[0].mxu0 %v3221
    %v3298 = vpop.f32.mrb[0].mxu0
    %v3299 = vadd.f32 0.0, %v3298
    %v3300 = vpop.f32.mrb[0].mxu0
    %3301 = vmatprep.mubr.f32.mxu0 0.0
    %3302 = vmatmul.mubr.f32.gmra.mrb[0].mxu0 %v3224
    %v3303 = vpop.f32.mrb[0].mxu0
    %v3304 = vadd.f32 0.0, %v3303
    %v3305 = vpop.f32.mrb[0].mxu0
    %3306 = vmatprep.mubr.f32.mxu0 0.0
    %3307 = vmatmul.mubr.f32.gmra.mrb[0].mxu0 %v3227
    %v3308 = vpop.f32.mrb[0].mxu0
    %v3309 = vadd.f32 0.0, %v3308
    %v3310 = vpop.f32.mrb[0].mxu0
    %3311 = vmatprep.mubr.f32.mxu0 0.0
    %3312 = vmatmul.mubr.f32.gmra.mrb[0].mxu0 %v3230
    %v3313 = vpop.f32.mrb[0].mxu0
    %v3314 = vadd.f32 0.0, %v3313
    %v3315 = vpop.f32.mrb[0].mxu0
    %3316 = vdwg.mxu0
    %s3317 = scalar_lea.vmem [#allocation19], 512
    %v3318 = vld [vmem:[%s3317] sm:$0xff]
    %v3319 = vld [vmem:[%s3317 + $0x8] sm:$0xff]
    %v3320 = vld [vmem:[%s3317 + $0x10] sm:$0xff]
    %v3321 = vld [vmem:[%s3317 + $0x18] sm:$0xff]
    %v3323 = vsel %vm331, %v3318, 0
    %v3326 = vsel %vm331, %v3319, 0
    %v3329 = vsel %vm331, %v3320, 0
    %v3332 = vsel %vm331, %v3321, 0
    %3334 = vmatprep.subr.mxu0 0.0
    %3335 = vmatpush1.msra.mxu0 %v3211
    %3336 = vmatprep.subr.mxu0 0.0
    %3337 = vmatpush1.msra.mxu0 %v3212
    %3338 = vmatprep.subr.mxu0 0.0
    %3339 = vmatpush1.msra.mxu0 %v3213
    %3340 = vmatprep.subr.mxu0 0.0
    %3341 = vmatpush1.msra.mxu0 %v3214
    %3342 = vmatprep.subr.mxu0 0.0
    %3343 = vmatpush1.msra.mxu0 0.0
    %3344 = vmatprep.subr.mxu0 0.0
    %3345 = vmatpush1.msra.mxu0 0.0
    %3346 = vmatprep.subr.mxu0 0.0
    %3347 = vmatpush1.msra.mxu0 0.0
    %3348 = vmatprep.subr.mxu0 0.0
    %3349 = vmatpush1.msra.mxu0 0.0
    %3350 = vmatprep.subr.mxu0 0.0
    %3351 = vmatpush1.msra.mxu0 0.0
    %3352 = vmatprep.subr.mxu0 0.0
    %3353 = vmatpush1.msra.mxu0 0.0
    %3354 = vmatprep.subr.mxu0 0.0
    %3355 = vmatpush1.msra.mxu0 0.0
    %3356 = vmatprep.subr.mxu0 0.0
    %3357 = vmatpush1.msra.mxu0 0.0
    %3358 = vmatprep.subr.mxu0 0.0
    %3359 = vmatpush1.msra.mxu0 0.0
    %3360 = vmatprep.subr.mxu0 0.0
    %3361 = vmatpush1.msra.mxu0 0.0
    %3362 = vmatprep.subr.mxu0 0.0
    %3363 = vmatpush1.msra.mxu0 0.0
    %3364 = vmatprep.subr.mxu0 0.0
    %3365 = vmatpush1.msra.mxu0 0.0
    %3366 = vmatprep.subr.mxu0 0.0
    %3367 = vmatpush1.msra.mxu0 0.0
    %3368 = vmatprep.subr.mxu0 0.0
    %3369 = vmatpush1.msra.mxu0 0.0
    %3370 = vmatprep.subr.mxu0 0.0
    %3371 = vmatpush1.msra.mxu0 0.0
    %3372 = vmatprep.subr.mxu0 0.0
    %3373 = vmatpush1.msra.mxu0 0.0
    %3374 = vmatprep.subr.mxu0 0.0
    %3375 = vmatpush1.msra.mxu0 0.0
    %3376 = vmatprep.subr.mxu0 0.0
    %3377 = vmatpush1.msra.mxu0 0.0
    %3378 = vmatprep.subr.mxu0 0.0
    %3379 = vmatpush1.msra.mxu0 0.0
    %3380 = vmatprep.subr.mxu0 0.0
    %3381 = vmatpush1.msra.mxu0 0.0
    %3382 = vmatprep.subr.mxu0 0.0
    %3383 = vmatpush1.msra.mxu0 0.0
    %3384 = vmatprep.subr.mxu0 0.0
    %3385 = vmatpush1.msra.mxu0 0.0
    %3386 = vmatprep.subr.mxu0 0.0
    %3387 = vmatpush1.msra.mxu0 0.0
    %3388 = vmatprep.subr.mxu0 0.0
    %3389 = vmatpush1.msra.mxu0 0.0
    %3390 = vmatprep.subr.mxu0 0.0
    %3391 = vmatpush1.msra.mxu0 0.0
    %3392 = vmatprep.subr.mxu0 0.0
    %3393 = vmatpush1.msra.mxu0 0.0
    %3394 = vmatprep.subr.mxu0 0.0
    %3395 = vmatpush1.msra.mxu0 0.0
    %3396 = vmatprep.subr.mxu0 0.0
    %3397 = vmatpush1.msra.mxu0 0.0
    %3398 = vmatprep.mubr.f32.mxu0 0.0
    %3399 = vmatmul.mubr.f32.gmra.mrb[0].mxu0 %v3323
    %v3400 = vpop.f32.mrb[0].mxu0
    %v3401 = vadd.f32 0.0, %v3400
    %v3402 = vpop.f32.mrb[0].mxu0
    %3403 = vmatprep.mubr.f32.mxu0 0.0
    %3404 = vmatmul.mubr.f32.gmra.mrb[0].mxu0 %v3326
    %v3405 = vpop.f32.mrb[0].mxu0
    %v3406 = vadd.f32 0.0, %v3405
    %v3407 = vpop.f32.mrb[0].mxu0
    %3408 = vmatprep.mubr.f32.mxu0 0.0
    %3409 = vmatmul.mubr.f32.gmra.mrb[0].mxu0 %v3329
    %v3410 = vpop.f32.mrb[0].mxu0
    %v3411 = vadd.f32 0.0, %v3410
    %v3412 = vpop.f32.mrb[0].mxu0
    %3413 = vmatprep.mubr.f32.mxu0 0.0
    %3414 = vmatmul.mubr.f32.gmra.mrb[0].mxu0 %v3332
    %v3415 = vpop.f32.mrb[0].mxu0
    %v3416 = vadd.f32 0.0, %v3415
    %v3417 = vpop.f32.mrb[0].mxu0
    %3418 = vdwg.mxu0
    %v3420 = vsel %vm3104, %v3299, 0
    %v3423 = vsel %vm3104, %v3304, 0
    %v3426 = vsel %vm3104, %v3309, 0
    %v3429 = vsel %vm3104, %v3314, 0
    %3431 = vmatprep.subr.mxu0 0.0
    %3432 = vmatpush1.msra.mxu0 %v3000
    %3433 = vmatprep.subr.mxu0 0.0
    %3434 = vmatpush1.msra.mxu0 %v3001
    %3435 = vmatprep.subr.mxu0 0.0
    %3436 = vmatpush1.msra.mxu0 0.0
    %3437 = vmatprep.subr.mxu0 0.0
    %3438 = vmatpush1.msra.mxu0 0.0
    %3439 = vmatprep.subr.mxu0 0.0
    %3440 = vmatpush1.msra.mxu0 0.0
    %3441 = vmatprep.subr.mxu0 0.0
    %3442 = vmatpush1.msra.mxu0 0.0
    %3443 = vmatprep.subr.mxu0 0.0
    %3444 = vmatpush1.msra.mxu0 0.0
    %3445 = vmatprep.subr.mxu0 0.0
    %3446 = vmatpush1.msra.mxu0 0.0
    %3447 = vmatprep.subr.mxu0 0.0
    %3448 = vmatpush1.msra.mxu0 0.0
    %3449 = vmatprep.subr.mxu0 0.0
    %3450 = vmatpush1.msra.mxu0 0.0
    %3451 = vmatprep.subr.mxu0 0.0
    %3452 = vmatpush1.msra.mxu0 0.0
    %3453 = vmatprep.subr.mxu0 0.0
    %3454 = vmatpush1.msra.mxu0 0.0
    %3455 = vmatprep.subr.mxu0 0.0
    %3456 = vmatpush1.msra.mxu0 0.0
    %3457 = vmatprep.subr.mxu0 0.0
    %3458 = vmatpush1.msra.mxu0 0.0
    %3459 = vmatprep.subr.mxu0 0.0
    %3460 = vmatpush1.msra.mxu0 0.0
    %3461 = vmatprep.subr.mxu0 0.0
    %3462 = vmatpush1.msra.mxu0 0.0
    %3463 = vmatprep.subr.mxu0 0.0
    %3464 = vmatpush1.msra.mxu0 0.0
    %3465 = vmatprep.subr.mxu0 0.0
    %3466 = vmatpush1.msra.mxu0 0.0
    %3467 = vmatprep.subr.mxu0 0.0
    %3468 = vmatpush1.msra.mxu0 0.0
    %3469 = vmatprep.subr.mxu0 0.0
    %3470 = vmatpush1.msra.mxu0 0.0
    %3471 = vmatprep.subr.mxu0 0.0
    %3472 = vmatpush1.msra.mxu0 0.0
    %3473 = vmatprep.subr.mxu0 0.0
    %3474 = vmatpush1.msra.mxu0 0.0
    %3475 = vmatprep.subr.mxu0 0.0
    %3476 = vmatpush1.msra.mxu0 0.0
    %3477 = vmatprep.subr.mxu0 0.0
    %3478 = vmatpush1.msra.mxu0 0.0
    %3479 = vmatprep.subr.mxu0 0.0
    %3480 = vmatpush1.msra.mxu0 0.0
    %3481 = vmatprep.subr.mxu0 0.0
    %3482 = vmatpush1.msra.mxu0 0.0
    %3483 = vmatprep.subr.mxu0 0.0
    %3484 = vmatpush1.msra.mxu0 0.0
    %3485 = vmatprep.subr.mxu0 0.0
    %3486 = vmatpush1.msra.mxu0 0.0
    %3487 = vmatprep.subr.mxu0 0.0
    %3488 = vmatpush1.msra.mxu0 0.0
    %3489 = vmatprep.subr.mxu0 0.0
    %3490 = vmatpush1.msra.mxu0 0.0
    %3491 = vmatprep.subr.mxu0 0.0
    %3492 = vmatpush1.msra.mxu0 0.0
    %3493 = vmatprep.subr.mxu0 0.0
    %3494 = vmatpush1.msra.mxu0 0.0
    %3495 = vmatprep.mubr.f32.mxu0 0.0
    %3496 = vmatmul.mubr.f32.gmra.mrb[0].mxu0 %v3420
    %v3497 = vpop.f32.mrb[0].mxu0
    %v3498 = vadd.f32 %v3401, %v3497
    %v3499 = vpop.f32.mrb[0].mxu0
    %3500 = vmatprep.mubr.f32.mxu0 0.0
    %3501 = vmatmul.mubr.f32.gmra.mrb[0].mxu0 %v3423
    %v3502 = vpop.f32.mrb[0].mxu0
    %v3503 = vadd.f32 %v3406, %v3502
    %v3504 = vpop.f32.mrb[0].mxu0
    %3505 = vmatprep.mubr.f32.mxu0 0.0
    %3506 = vmatmul.mubr.f32.gmra.mrb[0].mxu0 %v3426
    %v3507 = vpop.f32.mrb[0].mxu0
    %v3508 = vadd.f32 %v3411, %v3507
    %v3509 = vpop.f32.mrb[0].mxu0
    %3510 = vmatprep.mubr.f32.mxu0 0.0
    %3511 = vmatmul.mubr.f32.gmra.mrb[0].mxu0 %v3429
    %v3512 = vpop.f32.mrb[0].mxu0
    %v3513 = vadd.f32 %v3416, %v3512
    %v3514 = vpop.f32.mrb[0].mxu0
    %3515 = vdwg.mxu0
    %s3516 = scalar_lea.vmem [#allocation20], 256
    %v3517 = vld [vmem:[%s3516] sm:$0xff]
    %v3518 = vld [vmem:[%s3516 + $0x8] sm:$0xff]
    %v3519 = vld [vmem:[%s3516 + $0x10] sm:$0xff]
    %v3520 = vld [vmem:[%s3516 + $0x18] sm:$0xff]
    %v3521 = vadd.f32 %v3498, %v3517
    %v3522 = vadd.f32 %v3503, %v3518
    %v3523 = vadd.f32 %v3508, %v3519
    %v3524 = vadd.f32 %v3513, %v3520
    %v3525 = vmax.f32 %v3521, 0.0
    %v3526 = vmax.f32 %v3522, 0.0
    %v3527 = vmax.f32 %v3523, 0.0
    %v3528 = vmax.f32 %v3524, 0.0
    %s3529 = scalar_lea.vmem [#allocation19], 544
    %v3530 = vld [vmem:[%s3529] sm:$0xff]
    %v3531 = vld [vmem:[%s3529 + $0x8] sm:$0xff]
    %v3532 = vld [vmem:[%s3529 + $0x10] sm:$0xff]
    %v3533 = vld [vmem:[%s3529 + $0x18] sm:$0xff]
    %v3535 = vsel %vm331, %v3530, 0
    %v3538 = vsel %vm331, %v3531, 0
    %v3541 = vsel %vm331, %v3532, 0
    %v3544 = vsel %vm331, %v3533, 0
    %3546 = vmatprep.subr.mxu0 0.0
    %3547 = vmatpush1.msra.mxu0 %v3525
    %3548 = vmatprep.subr.mxu0 0.0
    %3549 = vmatpush1.msra.mxu0 %v3526
    %3550 = vmatprep.subr.mxu0 0.0
    %3551 = vmatpush1.msra.mxu0 %v3527
    %3552 = vmatprep.subr.mxu0 0.0
    %3553 = vmatpush1.msra.mxu0 %v3528
    %3554 = vmatprep.subr.mxu0 0.0
    %3555 = vmatpush1.msra.mxu0 0.0
    %3556 = vmatprep.subr.mxu0 0.0
    %3557 = vmatpush1.msra.mxu0 0.0
    %3558 = vmatprep.subr.mxu0 0.0
    %3559 = vmatpush1.msra.mxu0 0.0
    %3560 = vmatprep.subr.mxu0 0.0
    %3561 = vmatpush1.msra.mxu0 0.0
    %3562 = vmatprep.subr.mxu0 0.0
    %3563 = vmatpush1.msra.mxu0 0.0
    %3564 = vmatprep.subr.mxu0 0.0
    %3565 = vmatpush1.msra.mxu0 0.0
    %3566 = vmatprep.subr.mxu0 0.0
    %3567 = vmatpush1.msra.mxu0 0.0
    %3568 = vmatprep.subr.mxu0 0.0
    %3569 = vmatpush1.msra.mxu0 0.0
    %3570 = vmatprep.subr.mxu0 0.0
    %3571 = vmatpush1.msra.mxu0 0.0
    %3572 = vmatprep.subr.mxu0 0.0
    %3573 = vmatpush1.msra.mxu0 0.0
    %3574 = vmatprep.subr.mxu0 0.0
    %3575 = vmatpush1.msra.mxu0 0.0
    %3576 = vmatprep.subr.mxu0 0.0
    %3577 = vmatpush1.msra.mxu0 0.0
    %3578 = vmatprep.subr.mxu0 0.0
    %3579 = vmatpush1.msra.mxu0 0.0
    %3580 = vmatprep.subr.mxu0 0.0
    %3581 = vmatpush1.msra.mxu0 0.0
    %3582 = vmatprep.subr.mxu0 0.0
    %3583 = vmatpush1.msra.mxu0 0.0
    %3584 = vmatprep.subr.mxu0 0.0
    %3585 = vmatpush1.msra.mxu0 0.0
    %3586 = vmatprep.subr.mxu0 0.0
    %3587 = vmatpush1.msra.mxu0 0.0
    %3588 = vmatprep.subr.mxu0 0.0
    %3589 = vmatpush1.msra.mxu0 0.0
    %3590 = vmatprep.subr.mxu0 0.0
    %3591 = vmatpush1.msra.mxu0 0.0
    %3592 = vmatprep.subr.mxu0 0.0
    %3593 = vmatpush1.msra.mxu0 0.0
    %3594 = vmatprep.subr.mxu0 0.0
    %3595 = vmatpush1.msra.mxu0 0.0
    %3596 = vmatprep.subr.mxu0 0.0
    %3597 = vmatpush1.msra.mxu0 0.0
    %3598 = vmatprep.subr.mxu0 0.0
    %3599 = vmatpush1.msra.mxu0 0.0
    %3600 = vmatprep.subr.mxu0 0.0
    %3601 = vmatpush1.msra.mxu0 0.0
    %3602 = vmatprep.subr.mxu0 0.0
    %3603 = vmatpush1.msra.mxu0 0.0
    %3604 = vmatprep.subr.mxu0 0.0
    %3605 = vmatpush1.msra.mxu0 0.0
    %3606 = vmatprep.subr.mxu0 0.0
    %3607 = vmatpush1.msra.mxu0 0.0
    %3608 = vmatprep.subr.mxu0 0.0
    %3609 = vmatpush1.msra.mxu0 0.0
    %3610 = vmatprep.mubr.f32.mxu0 0.0
    %3611 = vmatmul.mubr.f32.gmra.mrb[0].mxu0 %v3535
    %v3612 = vpop.f32.mrb[0].mxu0
    %v3613 = vadd.f32 0.0, %v3612
    %v3614 = vpop.f32.mrb[0].mxu0
    %3615 = vmatprep.mubr.f32.mxu0 0.0
    %3616 = vmatmul.mubr.f32.gmra.mrb[0].mxu0 %v3538
    %v3617 = vpop.f32.mrb[0].mxu0
    %v3618 = vadd.f32 0.0, %v3617
    %v3619 = vpop.f32.mrb[0].mxu0
    %3620 = vmatprep.mubr.f32.mxu0 0.0
    %3621 = vmatmul.mubr.f32.gmra.mrb[0].mxu0 %v3541
    %v3622 = vpop.f32.mrb[0].mxu0
    %v3623 = vadd.f32 0.0, %v3622
    %v3624 = vpop.f32.mrb[0].mxu0
    %3625 = vmatprep.mubr.f32.mxu0 0.0
    %3626 = vmatmul.mubr.f32.gmra.mrb[0].mxu0 %v3544
    %v3627 = vpop.f32.mrb[0].mxu0
    %v3628 = vadd.f32 0.0, %v3627
    %v3629 = vpop.f32.mrb[0].mxu0
    %3630 = vdwg.mxu0
    %s3631 = scalar_lea.vmem [#allocation19], 576
    %v3632 = vld [vmem:[%s3631] sm:$0xff]
    %v3633 = vld [vmem:[%s3631 + $0x8] sm:$0xff]
    %v3634 = vld [vmem:[%s3631 + $0x10] sm:$0xff]
    %v3635 = vld [vmem:[%s3631 + $0x18] sm:$0xff]
    %v3637 = vsel %vm331, %v3632, 0
    %v3640 = vsel %vm331, %v3633, 0
    %v3643 = vsel %vm331, %v3634, 0
    %v3646 = vsel %vm331, %v3635, 0
    %3648 = vmatprep.subr.mxu0 0.0
    %3649 = vmatpush1.msra.mxu0 %v3525
    %3650 = vmatprep.subr.mxu0 0.0
    %3651 = vmatpush1.msra.mxu0 %v3526
    %3652 = vmatprep.subr.mxu0 0.0
    %3653 = vmatpush1.msra.mxu0 %v3527
    %3654 = vmatprep.subr.mxu0 0.0
    %3655 = vmatpush1.msra.mxu0 %v3528
    %3656 = vmatprep.subr.mxu0 0.0
    %3657 = vmatpush1.msra.mxu0 0.0
    %3658 = vmatprep.subr.mxu0 0.0
    %3659 = vmatpush1.msra.mxu0 0.0
    %3660 = vmatprep.subr.mxu0 0.0
    %3661 = vmatpush1.msra.mxu0 0.0
    %3662 = vmatprep.subr.mxu0 0.0
    %3663 = vmatpush1.msra.mxu0 0.0
    %3664 = vmatprep.subr.mxu0 0.0
    %3665 = vmatpush1.msra.mxu0 0.0
    %3666 = vmatprep.subr.mxu0 0.0
    %3667 = vmatpush1.msra.mxu0 0.0
    %3668 = vmatprep.subr.mxu0 0.0
    %3669 = vmatpush1.msra.mxu0 0.0
    %3670 = vmatprep.subr.mxu0 0.0
    %3671 = vmatpush1.msra.mxu0 0.0
    %3672 = vmatprep.subr.mxu0 0.0
    %3673 = vmatpush1.msra.mxu0 0.0
    %3674 = vmatprep.subr.mxu0 0.0
    %3675 = vmatpush1.msra.mxu0 0.0
    %3676 = vmatprep.subr.mxu0 0.0
    %3677 = vmatpush1.msra.mxu0 0.0
    %3678 = vmatprep.subr.mxu0 0.0
    %3679 = vmatpush1.msra.mxu0 0.0
    %3680 = vmatprep.subr.mxu0 0.0
    %3681 = vmatpush1.msra.mxu0 0.0
    %3682 = vmatprep.subr.mxu0 0.0
    %3683 = vmatpush1.msra.mxu0 0.0
    %3684 = vmatprep.subr.mxu0 0.0
    %3685 = vmatpush1.msra.mxu0 0.0
    %3686 = vmatprep.subr.mxu0 0.0
    %3687 = vmatpush1.msra.mxu0 0.0
    %3688 = vmatprep.subr.mxu0 0.0
    %3689 = vmatpush1.msra.mxu0 0.0
    %3690 = vmatprep.subr.mxu0 0.0
    %3691 = vmatpush1.msra.mxu0 0.0
    %3692 = vmatprep.subr.mxu0 0.0
    %3693 = vmatpush1.msra.mxu0 0.0
    %3694 = vmatprep.subr.mxu0 0.0
    %3695 = vmatpush1.msra.mxu0 0.0
    %3696 = vmatprep.subr.mxu0 0.0
    %3697 = vmatpush1.msra.mxu0 0.0
    %3698 = vmatprep.subr.mxu0 0.0
    %3699 = vmatpush1.msra.mxu0 0.0
    %3700 = vmatprep.subr.mxu0 0.0
    %3701 = vmatpush1.msra.mxu0 0.0
    %3702 = vmatprep.subr.mxu0 0.0
    %3703 = vmatpush1.msra.mxu0 0.0
    %3704 = vmatprep.subr.mxu0 0.0
    %3705 = vmatpush1.msra.mxu0 0.0
    %3706 = vmatprep.subr.mxu0 0.0
    %3707 = vmatpush1.msra.mxu0 0.0
    %3708 = vmatprep.subr.mxu0 0.0
    %3709 = vmatpush1.msra.mxu0 0.0
    %3710 = vmatprep.subr.mxu0 0.0
    %3711 = vmatpush1.msra.mxu0 0.0
    %3712 = vmatprep.mubr.f32.mxu0 0.0
    %3713 = vmatmul.mubr.f32.gmra.mrb[0].mxu0 %v3637
    %v3714 = vpop.f32.mrb[0].mxu0
    %v3715 = vadd.f32 0.0, %v3714
    %v3716 = vpop.f32.mrb[0].mxu0
    %3717 = vmatprep.mubr.f32.mxu0 0.0
    %3718 = vmatmul.mubr.f32.gmra.mrb[0].mxu0 %v3640
    %v3719 = vpop.f32.mrb[0].mxu0
    %v3720 = vadd.f32 0.0, %v3719
    %v3721 = vpop.f32.mrb[0].mxu0
    %3722 = vmatprep.mubr.f32.mxu0 0.0
    %3723 = vmatmul.mubr.f32.gmra.mrb[0].mxu0 %v3643
    %v3724 = vpop.f32.mrb[0].mxu0
    %v3725 = vadd.f32 0.0, %v3724
    %v3726 = vpop.f32.mrb[0].mxu0
    %3727 = vmatprep.mubr.f32.mxu0 0.0
    %3728 = vmatmul.mubr.f32.gmra.mrb[0].mxu0 %v3646
    %v3729 = vpop.f32.mrb[0].mxu0
    %v3730 = vadd.f32 0.0, %v3729
    %v3731 = vpop.f32.mrb[0].mxu0
    %3732 = vdwg.mxu0
    %v3734 = vsel %vm3104, %v3613, 0
    %v3737 = vsel %vm3104, %v3618, 0
    %v3740 = vsel %vm3104, %v3623, 0
    %v3743 = vsel %vm3104, %v3628, 0
    %3745 = vmatprep.subr.mxu0 0.0
    %3746 = vmatpush1.msra.mxu0 %v3000
    %3747 = vmatprep.subr.mxu0 0.0
    %3748 = vmatpush1.msra.mxu0 %v3001
    %3749 = vmatprep.subr.mxu0 0.0
    %3750 = vmatpush1.msra.mxu0 0.0
    %3751 = vmatprep.subr.mxu0 0.0
    %3752 = vmatpush1.msra.mxu0 0.0
    %3753 = vmatprep.subr.mxu0 0.0
    %3754 = vmatpush1.msra.mxu0 0.0
    %3755 = vmatprep.subr.mxu0 0.0
    %3756 = vmatpush1.msra.mxu0 0.0
    %3757 = vmatprep.subr.mxu0 0.0
    %3758 = vmatpush1.msra.mxu0 0.0
    %3759 = vmatprep.subr.mxu0 0.0
    %3760 = vmatpush1.msra.mxu0 0.0
    %3761 = vmatprep.subr.mxu0 0.0
    %3762 = vmatpush1.msra.mxu0 0.0
    %3763 = vmatprep.subr.mxu0 0.0
    %3764 = vmatpush1.msra.mxu0 0.0
    %3765 = vmatprep.subr.mxu0 0.0
    %3766 = vmatpush1.msra.mxu0 0.0
    %3767 = vmatprep.subr.mxu0 0.0
    %3768 = vmatpush1.msra.mxu0 0.0
    %3769 = vmatprep.subr.mxu0 0.0
    %3770 = vmatpush1.msra.mxu0 0.0
    %3771 = vmatprep.subr.mxu0 0.0
    %3772 = vmatpush1.msra.mxu0 0.0
    %3773 = vmatprep.subr.mxu0 0.0
    %3774 = vmatpush1.msra.mxu0 0.0
    %3775 = vmatprep.subr.mxu0 0.0
    %3776 = vmatpush1.msra.mxu0 0.0
    %3777 = vmatprep.subr.mxu0 0.0
    %3778 = vmatpush1.msra.mxu0 0.0
    %3779 = vmatprep.subr.mxu0 0.0
    %3780 = vmatpush1.msra.mxu0 0.0
    %3781 = vmatprep.subr.mxu0 0.0
    %3782 = vmatpush1.msra.mxu0 0.0
    %3783 = vmatprep.subr.mxu0 0.0
    %3784 = vmatpush1.msra.mxu0 0.0
    %3785 = vmatprep.subr.mxu0 0.0
    %3786 = vmatpush1.msra.mxu0 0.0
    %3787 = vmatprep.subr.mxu0 0.0
    %3788 = vmatpush1.msra.mxu0 0.0
    %3789 = vmatprep.subr.mxu0 0.0
    %3790 = vmatpush1.msra.mxu0 0.0
    %3791 = vmatprep.subr.mxu0 0.0
    %3792 = vmatpush1.msra.mxu0 0.0
    %3793 = vmatprep.subr.mxu0 0.0
    %3794 = vmatpush1.msra.mxu0 0.0
    %3795 = vmatprep.subr.mxu0 0.0
    %3796 = vmatpush1.msra.mxu0 0.0
    %3797 = vmatprep.subr.mxu0 0.0
    %3798 = vmatpush1.msra.mxu0 0.0
    %3799 = vmatprep.subr.mxu0 0.0
    %3800 = vmatpush1.msra.mxu0 0.0
    %3801 = vmatprep.subr.mxu0 0.0
    %3802 = vmatpush1.msra.mxu0 0.0
    %3803 = vmatprep.subr.mxu0 0.0
    %3804 = vmatpush1.msra.mxu0 0.0
    %3805 = vmatprep.subr.mxu0 0.0
    %3806 = vmatpush1.msra.mxu0 0.0
    %3807 = vmatprep.subr.mxu0 0.0
    %3808 = vmatpush1.msra.mxu0 0.0
    %3809 = vmatprep.mubr.f32.mxu0 0.0
    %3810 = vmatmul.mubr.f32.gmra.mrb[0].mxu0 %v3734
    %v3811 = vpop.f32.mrb[0].mxu0
    %v3812 = vadd.f32 %v3715, %v3811
    %v3813 = vpop.f32.mrb[0].mxu0
    %3814 = vmatprep.mubr.f32.mxu0 0.0
    %3815 = vmatmul.mubr.f32.gmra.mrb[0].mxu0 %v3737
    %v3816 = vpop.f32.mrb[0].mxu0
    %v3817 = vadd.f32 %v3720, %v3816
    %v3818 = vpop.f32.mrb[0].mxu0
    %3819 = vmatprep.mubr.f32.mxu0 0.0
    %3820 = vmatmul.mubr.f32.gmra.mrb[0].mxu0 %v3740
    %v3821 = vpop.f32.mrb[0].mxu0
    %v3822 = vadd.f32 %v3725, %v3821
    %v3823 = vpop.f32.mrb[0].mxu0
    %3824 = vmatprep.mubr.f32.mxu0 0.0
    %3825 = vmatmul.mubr.f32.gmra.mrb[0].mxu0 %v3743
    %v3826 = vpop.f32.mrb[0].mxu0
    %v3827 = vadd.f32 %v3730, %v3826
    %v3828 = vpop.f32.mrb[0].mxu0
    %3829 = vdwg.mxu0
    %s3830 = scalar_lea.vmem [#allocation20], 288
    %v3831 = vld [vmem:[%s3830] sm:$0xff]
    %v3832 = vld [vmem:[%s3830 + $0x8] sm:$0xff]
    %v3833 = vld [vmem:[%s3830 + $0x10] sm:$0xff]
    %v3834 = vld [vmem:[%s3830 + $0x18] sm:$0xff]
    %v3835 = vadd.f32 %v3812, %v3831
    %v3836 = vadd.f32 %v3817, %v3832
    %v3837 = vadd.f32 %v3822, %v3833
    %v3838 = vadd.f32 %v3827, %v3834
    %v3839 = vmax.f32 %v3835, 0.0
    %v3840 = vmax.f32 %v3836, 0.0
    %v3841 = vmax.f32 %v3837, 0.0
    %v3842 = vmax.f32 %v3838, 0.0
    %s3843 = scalar_lea.vmem [#allocation19], 608
    %v3844 = vld [vmem:[%s3843] sm:$0xff]
    %v3845 = vld [vmem:[%s3843 + $0x8] sm:$0xff]
    %v3846 = vld [vmem:[%s3843 + $0x10] sm:$0xff]
    %v3847 = vld [vmem:[%s3843 + $0x18] sm:$0xff]
    %v3849 = vsel %vm331, %v3844, 0
    %v3852 = vsel %vm331, %v3845, 0
    %v3855 = vsel %vm331, %v3846, 0
    %v3858 = vsel %vm331, %v3847, 0
    %3860 = vmatprep.subr.mxu0 0.0
    %3861 = vmatpush1.msra.mxu0 %v3839
    %3862 = vmatprep.subr.mxu0 0.0
    %3863 = vmatpush1.msra.mxu0 %v3840
    %3864 = vmatprep.subr.mxu0 0.0
    %3865 = vmatpush1.msra.mxu0 %v3841
    %3866 = vmatprep.subr.mxu0 0.0
    %3867 = vmatpush1.msra.mxu0 %v3842
    %3868 = vmatprep.subr.mxu0 0.0
    %3869 = vmatpush1.msra.mxu0 0.0
    %3870 = vmatprep.subr.mxu0 0.0
    %3871 = vmatpush1.msra.mxu0 0.0
    %3872 = vmatprep.subr.mxu0 0.0
    %3873 = vmatpush1.msra.mxu0 0.0
    %3874 = vmatprep.subr.mxu0 0.0
    %3875 = vmatpush1.msra.mxu0 0.0
    %3876 = vmatprep.subr.mxu0 0.0
    %3877 = vmatpush1.msra.mxu0 0.0
    %3878 = vmatprep.subr.mxu0 0.0
    %3879 = vmatpush1.msra.mxu0 0.0
    %3880 = vmatprep.subr.mxu0 0.0
    %3881 = vmatpush1.msra.mxu0 0.0
    %3882 = vmatprep.subr.mxu0 0.0
    %3883 = vmatpush1.msra.mxu0 0.0
    %3884 = vmatprep.subr.mxu0 0.0
    %3885 = vmatpush1.msra.mxu0 0.0
    %3886 = vmatprep.subr.mxu0 0.0
    %3887 = vmatpush1.msra.mxu0 0.0
    %3888 = vmatprep.subr.mxu0 0.0
    %3889 = vmatpush1.msra.mxu0 0.0
    %3890 = vmatprep.subr.mxu0 0.0
    %3891 = vmatpush1.msra.mxu0 0.0
    %3892 = vmatprep.subr.mxu0 0.0
    %3893 = vmatpush1.msra.mxu0 0.0
    %3894 = vmatprep.subr.mxu0 0.0
    %3895 = vmatpush1.msra.mxu0 0.0
    %3896 = vmatprep.subr.mxu0 0.0
    %3897 = vmatpush1.msra.mxu0 0.0
    %3898 = vmatprep.subr.mxu0 0.0
    %3899 = vmatpush1.msra.mxu0 0.0
    %3900 = vmatprep.subr.mxu0 0.0
    %3901 = vmatpush1.msra.mxu0 0.0
    %3902 = vmatprep.subr.mxu0 0.0
    %3903 = vmatpush1.msra.mxu0 0.0
    %3904 = vmatprep.subr.mxu0 0.0
    %3905 = vmatpush1.msra.mxu0 0.0
    %3906 = vmatprep.subr.mxu0 0.0
    %3907 = vmatpush1.msra.mxu0 0.0
    %3908 = vmatprep.subr.mxu0 0.0
    %3909 = vmatpush1.msra.mxu0 0.0
    %3910 = vmatprep.subr.mxu0 0.0
    %3911 = vmatpush1.msra.mxu0 0.0
    %3912 = vmatprep.subr.mxu0 0.0
    %3913 = vmatpush1.msra.mxu0 0.0
    %3914 = vmatprep.subr.mxu0 0.0
    %3915 = vmatpush1.msra.mxu0 0.0
    %3916 = vmatprep.subr.mxu0 0.0
    %3917 = vmatpush1.msra.mxu0 0.0
    %3918 = vmatprep.subr.mxu0 0.0
    %3919 = vmatpush1.msra.mxu0 0.0
    %3920 = vmatprep.subr.mxu0 0.0
    %3921 = vmatpush1.msra.mxu0 0.0
    %3922 = vmatprep.subr.mxu0 0.0
    %3923 = vmatpush1.msra.mxu0 0.0
    %3924 = vmatprep.mubr.f32.mxu0 0.0
    %3925 = vmatmul.mubr.f32.gmra.mrb[0].mxu0 %v3849
    %v3926 = vpop.f32.mrb[0].mxu0
    %v3927 = vadd.f32 0.0, %v3926
    %v3928 = vpop.f32.mrb[0].mxu0
    %3929 = vmatprep.mubr.f32.mxu0 0.0
    %3930 = vmatmul.mubr.f32.gmra.mrb[0].mxu0 %v3852
    %v3931 = vpop.f32.mrb[0].mxu0
    %v3932 = vadd.f32 0.0, %v3931
    %v3933 = vpop.f32.mrb[0].mxu0
    %3934 = vmatprep.mubr.f32.mxu0 0.0
    %3935 = vmatmul.mubr.f32.gmra.mrb[0].mxu0 %v3855
    %v3936 = vpop.f32.mrb[0].mxu0
    %v3937 = vadd.f32 0.0, %v3936
    %v3938 = vpop.f32.mrb[0].mxu0
    %3939 = vmatprep.mubr.f32.mxu0 0.0
    %3940 = vmatmul.mubr.f32.gmra.mrb[0].mxu0 %v3858
    %v3941 = vpop.f32.mrb[0].mxu0
    %v3942 = vadd.f32 0.0, %v3941
    %v3943 = vpop.f32.mrb[0].mxu0
    %3944 = vdwg.mxu0
    %s3945 = scalar_lea.vmem [#allocation19], 640
    %v3946 = vld [vmem:[%s3945] sm:$0xff]
    %v3947 = vld [vmem:[%s3945 + $0x8] sm:$0xff]
    %v3948 = vld [vmem:[%s3945 + $0x10] sm:$0xff]
    %v3949 = vld [vmem:[%s3945 + $0x18] sm:$0xff]
    %v3951 = vsel %vm331, %v3946, 0
    %v3954 = vsel %vm331, %v3947, 0
    %v3957 = vsel %vm331, %v3948, 0
    %v3960 = vsel %vm331, %v3949, 0
    %3962 = vmatprep.subr.mxu0 0.0
    %3963 = vmatpush1.msra.mxu0 %v3839
    %3964 = vmatprep.subr.mxu0 0.0
    %3965 = vmatpush1.msra.mxu0 %v3840
    %3966 = vmatprep.subr.mxu0 0.0
    %3967 = vmatpush1.msra.mxu0 %v3841
    %3968 = vmatprep.subr.mxu0 0.0
    %3969 = vmatpush1.msra.mxu0 %v3842
    %3970 = vmatprep.subr.mxu0 0.0
    %3971 = vmatpush1.msra.mxu0 0.0
    %3972 = vmatprep.subr.mxu0 0.0
    %3973 = vmatpush1.msra.mxu0 0.0
    %3974 = vmatprep.subr.mxu0 0.0
    %3975 = vmatpush1.msra.mxu0 0.0
    %3976 = vmatprep.subr.mxu0 0.0
    %3977 = vmatpush1.msra.mxu0 0.0
    %3978 = vmatprep.subr.mxu0 0.0
    %3979 = vmatpush1.msra.mxu0 0.0
    %3980 = vmatprep.subr.mxu0 0.0
    %3981 = vmatpush1.msra.mxu0 0.0
    %3982 = vmatprep.subr.mxu0 0.0
    %3983 = vmatpush1.msra.mxu0 0.0
    %3984 = vmatprep.subr.mxu0 0.0
    %3985 = vmatpush1.msra.mxu0 0.0
    %3986 = vmatprep.subr.mxu0 0.0
    %3987 = vmatpush1.msra.mxu0 0.0
    %3988 = vmatprep.subr.mxu0 0.0
    %3989 = vmatpush1.msra.mxu0 0.0
    %3990 = vmatprep.subr.mxu0 0.0
    %3991 = vmatpush1.msra.mxu0 0.0
    %3992 = vmatprep.subr.mxu0 0.0
    %3993 = vmatpush1.msra.mxu0 0.0
    %3994 = vmatprep.subr.mxu0 0.0
    %3995 = vmatpush1.msra.mxu0 0.0
    %3996 = vmatprep.subr.mxu0 0.0
    %3997 = vmatpush1.msra.mxu0 0.0
    %3998 = vmatprep.subr.mxu0 0.0
    %3999 = vmatpush1.msra.mxu0 0.0
    %4000 = vmatprep.subr.mxu0 0.0
    %4001 = vmatpush1.msra.mxu0 0.0
    %4002 = vmatprep.subr.mxu0 0.0
    %4003 = vmatpush1.msra.mxu0 0.0
    %4004 = vmatprep.subr.mxu0 0.0
    %4005 = vmatpush1.msra.mxu0 0.0
    %4006 = vmatprep.subr.mxu0 0.0
    %4007 = vmatpush1.msra.mxu0 0.0
    %4008 = vmatprep.subr.mxu0 0.0
    %4009 = vmatpush1.msra.mxu0 0.0
    %4010 = vmatprep.subr.mxu0 0.0
    %4011 = vmatpush1.msra.mxu0 0.0
    %4012 = vmatprep.subr.mxu0 0.0
    %4013 = vmatpush1.msra.mxu0 0.0
    %4014 = vmatprep.subr.mxu0 0.0
    %4015 = vmatpush1.msra.mxu0 0.0
    %4016 = vmatprep.subr.mxu0 0.0
    %4017 = vmatpush1.msra.mxu0 0.0
    %4018 = vmatprep.subr.mxu0 0.0
    %4019 = vmatpush1.msra.mxu0 0.0
    %4020 = vmatprep.subr.mxu0 0.0
    %4021 = vmatpush1.msra.mxu0 0.0
    %4022 = vmatprep.subr.mxu0 0.0
    %4023 = vmatpush1.msra.mxu0 0.0
    %4024 = vmatprep.subr.mxu0 0.0
    %4025 = vmatpush1.msra.mxu0 0.0
    %4026 = vmatprep.mubr.f32.mxu0 0.0
    %4027 = vmatmul.mubr.f32.gmra.mrb[0].mxu0 %v3951
    %v4028 = vpop.f32.mrb[0].mxu0
    %v4029 = vadd.f32 0.0, %v4028
    %v4030 = vpop.f32.mrb[0].mxu0
    %4031 = vmatprep.mubr.f32.mxu0 0.0
    %4032 = vmatmul.mubr.f32.gmra.mrb[0].mxu0 %v3954
    %v4033 = vpop.f32.mrb[0].mxu0
    %v4034 = vadd.f32 0.0, %v4033
    %v4035 = vpop.f32.mrb[0].mxu0
    %4036 = vmatprep.mubr.f32.mxu0 0.0
    %4037 = vmatmul.mubr.f32.gmra.mrb[0].mxu0 %v3957
    %v4038 = vpop.f32.mrb[0].mxu0
    %v4039 = vadd.f32 0.0, %v4038
    %v4040 = vpop.f32.mrb[0].mxu0
    %4041 = vmatprep.mubr.f32.mxu0 0.0
    %4042 = vmatmul.mubr.f32.gmra.mrb[0].mxu0 %v3960
    %v4043 = vpop.f32.mrb[0].mxu0
    %v4044 = vadd.f32 0.0, %v4043
    %v4045 = vpop.f32.mrb[0].mxu0
    %4046 = vdwg.mxu0
    %v4048 = vsel %vm3104, %v3927, 0
    %v4051 = vsel %vm3104, %v3932, 0
    %v4054 = vsel %vm3104, %v3937, 0
    %v4057 = vsel %vm3104, %v3942, 0
    %4059 = vmatprep.subr.mxu0 0.0
    %4060 = vmatpush1.msra.mxu0 %v3000
    %4061 = vmatprep.subr.mxu0 0.0
    %4062 = vmatpush1.msra.mxu0 %v3001
    %4063 = vmatprep.subr.mxu0 0.0
    %4064 = vmatpush1.msra.mxu0 0.0
    %4065 = vmatprep.subr.mxu0 0.0
    %4066 = vmatpush1.msra.mxu0 0.0
    %4067 = vmatprep.subr.mxu0 0.0
    %4068 = vmatpush1.msra.mxu0 0.0
    %4069 = vmatprep.subr.mxu0 0.0
    %4070 = vmatpush1.msra.mxu0 0.0
    %4071 = vmatprep.subr.mxu0 0.0
    %4072 = vmatpush1.msra.mxu0 0.0
    %4073 = vmatprep.subr.mxu0 0.0
    %4074 = vmatpush1.msra.mxu0 0.0
    %4075 = vmatprep.subr.mxu0 0.0
    %4076 = vmatpush1.msra.mxu0 0.0
    %4077 = vmatprep.subr.mxu0 0.0
    %4078 = vmatpush1.msra.mxu0 0.0
    %4079 = vmatprep.subr.mxu0 0.0
    %4080 = vmatpush1.msra.mxu0 0.0
    %4081 = vmatprep.subr.mxu0 0.0
    %4082 = vmatpush1.msra.mxu0 0.0
    %4083 = vmatprep.subr.mxu0 0.0
    %4084 = vmatpush1.msra.mxu0 0.0
    %4085 = vmatprep.subr.mxu0 0.0
    %4086 = vmatpush1.msra.mxu0 0.0
    %4087 = vmatprep.subr.mxu0 0.0
    %4088 = vmatpush1.msra.mxu0 0.0
    %4089 = vmatprep.subr.mxu0 0.0
    %4090 = vmatpush1.msra.mxu0 0.0
    %4091 = vmatprep.subr.mxu0 0.0
    %4092 = vmatpush1.msra.mxu0 0.0
    %4093 = vmatprep.subr.mxu0 0.0
    %4094 = vmatpush1.msra.mxu0 0.0
    %4095 = vmatprep.subr.mxu0 0.0
    %4096 = vmatpush1.msra.mxu0 0.0
    %4097 = vmatprep.subr.mxu0 0.0
    %4098 = vmatpush1.msra.mxu0 0.0
    %4099 = vmatprep.subr.mxu0 0.0
    %4100 = vmatpush1.msra.mxu0 0.0
    %4101 = vmatprep.subr.mxu0 0.0
    %4102 = vmatpush1.msra.mxu0 0.0
    %4103 = vmatprep.subr.mxu0 0.0
    %4104 = vmatpush1.msra.mxu0 0.0
    %4105 = vmatprep.subr.mxu0 0.0
    %4106 = vmatpush1.msra.mxu0 0.0
    %4107 = vmatprep.subr.mxu0 0.0
    %4108 = vmatpush1.msra.mxu0 0.0
    %4109 = vmatprep.subr.mxu0 0.0
    %4110 = vmatpush1.msra.mxu0 0.0
    %4111 = vmatprep.subr.mxu0 0.0
    %4112 = vmatpush1.msra.mxu0 0.0
    %4113 = vmatprep.subr.mxu0 0.0
    %4114 = vmatpush1.msra.mxu0 0.0
    %4115 = vmatprep.subr.mxu0 0.0
    %4116 = vmatpush1.msra.mxu0 0.0
    %4117 = vmatprep.subr.mxu0 0.0
    %4118 = vmatpush1.msra.mxu0 0.0
    %4119 = vmatprep.subr.mxu0 0.0
    %4120 = vmatpush1.msra.mxu0 0.0
    %4121 = vmatprep.subr.mxu0 0.0
    %4122 = vmatpush1.msra.mxu0 0.0
    %4123 = vmatprep.mubr.f32.mxu0 0.0
    %4124 = vmatmul.mubr.f32.gmra.mrb[0].mxu0 %v4048
    %v4125 = vpop.f32.mrb[0].mxu0
    %v4126 = vadd.f32 %v4029, %v4125
    %v4127 = vpop.f32.mrb[0].mxu0
    %4128 = vmatprep.mubr.f32.mxu0 0.0
    %4129 = vmatmul.mubr.f32.gmra.mrb[0].mxu0 %v4051
    %v4130 = vpop.f32.mrb[0].mxu0
    %v4131 = vadd.f32 %v4034, %v4130
    %v4132 = vpop.f32.mrb[0].mxu0
    %4133 = vmatprep.mubr.f32.mxu0 0.0
    %4134 = vmatmul.mubr.f32.gmra.mrb[0].mxu0 %v4054
    %v4135 = vpop.f32.mrb[0].mxu0
    %v4136 = vadd.f32 %v4039, %v4135
    %v4137 = vpop.f32.mrb[0].mxu0
    %4138 = vmatprep.mubr.f32.mxu0 0.0
    %4139 = vmatmul.mubr.f32.gmra.mrb[0].mxu0 %v4057
    %v4140 = vpop.f32.mrb[0].mxu0
    %v4141 = vadd.f32 %v4044, %v4140
    %v4142 = vpop.f32.mrb[0].mxu0
    %4143 = vdwg.mxu0
    %s4144 = scalar_lea.vmem [#allocation20], 320
    %v4145 = vld [vmem:[%s4144] sm:$0xff]
    %v4146 = vld [vmem:[%s4144 + $0x8] sm:$0xff]
    %v4147 = vld [vmem:[%s4144 + $0x10] sm:$0xff]
    %v4148 = vld [vmem:[%s4144 + $0x18] sm:$0xff]
    %v4149 = vadd.f32 %v4126, %v4145
    %v4150 = vadd.f32 %v4131, %v4146
    %v4151 = vadd.f32 %v4136, %v4147
    %v4152 = vadd.f32 %v4141, %v4148
    %v4153 = vmax.f32 %v4149, 0.0
    %v4154 = vmax.f32 %v4150, 0.0
    %v4155 = vmax.f32 %v4151, 0.0
    %v4156 = vmax.f32 %v4152, 0.0
    %v4157 = vld [vmem:[%s14] sm:$0xff]
    %v4158 = vld [vmem:[%s14 + $0x8] sm:$0xff]
    %v4160 = vsel %vm3104, %v4153, 0
    %v4163 = vsel %vm3104, %v4154, 0
    %v4166 = vsel %vm3104, %v4155, 0
    %v4169 = vsel %vm3104, %v4156, 0
    %4171 = vmatprep.subr.mxu0 0.0
    %4172 = vmatpush1.msra.mxu0 %v4157
    %4173 = vmatprep.subr.mxu0 0.0
    %4174 = vmatpush1.msra.mxu0 %v4158
    %4175 = vmatprep.subr.mxu0 0.0
    %4176 = vmatpush1.msra.mxu0 0.0
    %4177 = vmatprep.subr.mxu0 0.0
    %4178 = vmatpush1.msra.mxu0 0.0
    %4179 = vmatprep.subr.mxu0 0.0
    %4180 = vmatpush1.msra.mxu0 0.0
    %4181 = vmatprep.subr.mxu0 0.0
    %4182 = vmatpush1.msra.mxu0 0.0
    %4183 = vmatprep.subr.mxu0 0.0
    %4184 = vmatpush1.msra.mxu0 0.0
    %4185 = vmatprep.subr.mxu0 0.0
    %4186 = vmatpush1.msra.mxu0 0.0
    %4187 = vmatprep.subr.mxu0 0.0
    %4188 = vmatpush1.msra.mxu0 0.0
    %4189 = vmatprep.subr.mxu0 0.0
    %4190 = vmatpush1.msra.mxu0 0.0
    %4191 = vmatprep.subr.mxu0 0.0
    %4192 = vmatpush1.msra.mxu0 0.0
    %4193 = vmatprep.subr.mxu0 0.0
    %4194 = vmatpush1.msra.mxu0 0.0
    %4195 = vmatprep.subr.mxu0 0.0
    %4196 = vmatpush1.msra.mxu0 0.0
    %4197 = vmatprep.subr.mxu0 0.0
    %4198 = vmatpush1.msra.mxu0 0.0
    %4199 = vmatprep.subr.mxu0 0.0
    %4200 = vmatpush1.msra.mxu0 0.0
    %4201 = vmatprep.subr.mxu0 0.0
    %4202 = vmatpush1.msra.mxu0 0.0
    %4203 = vmatprep.subr.mxu0 0.0
    %4204 = vmatpush1.msra.mxu0 0.0
    %4205 = vmatprep.subr.mxu0 0.0
    %4206 = vmatpush1.msra.mxu0 0.0
    %4207 = vmatprep.subr.mxu0 0.0
    %4208 = vmatpush1.msra.mxu0 0.0
    %4209 = vmatprep.subr.mxu0 0.0
    %4210 = vmatpush1.msra.mxu0 0.0
    %4211 = vmatprep.subr.mxu0 0.0
    %4212 = vmatpush1.msra.mxu0 0.0
    %4213 = vmatprep.subr.mxu0 0.0
    %4214 = vmatpush1.msra.mxu0 0.0
    %4215 = vmatprep.subr.mxu0 0.0
    %4216 = vmatpush1.msra.mxu0 0.0
    %4217 = vmatprep.subr.mxu0 0.0
    %4218 = vmatpush1.msra.mxu0 0.0
    %4219 = vmatprep.subr.mxu0 0.0
    %4220 = vmatpush1.msra.mxu0 0.0
    %4221 = vmatprep.subr.mxu0 0.0
    %4222 = vmatpush1.msra.mxu0 0.0
    %4223 = vmatprep.subr.mxu0 0.0
    %4224 = vmatpush1.msra.mxu0 0.0
    %4225 = vmatprep.subr.mxu0 0.0
    %4226 = vmatpush1.msra.mxu0 0.0
    %4227 = vmatprep.subr.mxu0 0.0
    %4228 = vmatpush1.msra.mxu0 0.0
    %4229 = vmatprep.subr.mxu0 0.0
    %4230 = vmatpush1.msra.mxu0 0.0
    %4231 = vmatprep.subr.mxu0 0.0
    %4232 = vmatpush1.msra.mxu0 0.0
    %4233 = vmatprep.subr.mxu0 0.0
    %4234 = vmatpush1.msra.mxu0 0.0
    %4235 = vmatprep.mubr.f32.mxu0 0.0
    %4236 = vmatmul.mubr.f32.gmra.mrb[0].mxu0 %v4160
    %v4237 = vpop.f32.mrb[0].mxu0
    %v4238 = vadd.f32 0.0, %v4237
    %v4239 = vpop.f32.mrb[0].mxu0
    %4240 = vmatprep.mubr.f32.mxu0 0.0
    %4241 = vmatmul.mubr.f32.gmra.mrb[0].mxu0 %v4163
    %v4242 = vpop.f32.mrb[0].mxu0
    %v4243 = vadd.f32 0.0, %v4242
    %v4244 = vpop.f32.mrb[0].mxu0
    %4245 = vmatprep.mubr.f32.mxu0 0.0
    %4246 = vmatmul.mubr.f32.gmra.mrb[0].mxu0 %v4166
    %v4247 = vpop.f32.mrb[0].mxu0
    %v4248 = vadd.f32 0.0, %v4247
    %v4249 = vpop.f32.mrb[0].mxu0
    %4250 = vmatprep.mubr.f32.mxu0 0.0
    %4251 = vmatmul.mubr.f32.gmra.mrb[0].mxu0 %v4169
    %v4252 = vpop.f32.mrb[0].mxu0
    %v4253 = vadd.f32 0.0, %v4252
    %v4254 = vpop.f32.mrb[0].mxu0
    %4255 = vdwg.mxu0
    %v4256 = vsel %vm331, %v4238, 0.0
    %4257 = vadd.xlane.f32.xlu0 %v4256
    %v4258 = vpop.xlane.xlu0 %4257
    %v4259 = vsel %vm331, %v4243, 0.0
    %4260 = vadd.xlane.f32.xlu0 %v4259
    %v4261 = vpop.xlane.xlu0 %4260
    %v4262 = vsel %vm331, %v4248, 0.0
    %4263 = vadd.xlane.f32.xlu0 %v4262
    %v4264 = vpop.xlane.xlu0 %4263
    %v4265 = vsel %vm331, %v4253, 0.0
    %4266 = vadd.xlane.f32.xlu0 %v4265
    %v4267 = vpop.xlane.xlu0 %4266
    %v4268 = vmul.f32 %v4258, %v2756
    %v4269 = vmul.f32 %v4261, %v2756
    %v4270 = vmul.f32 %v4264, %v2756
    %v4271 = vmul.f32 %v4267, %v2756
    %v4272 = vsub.f32 %v4238, %v4268
    %v4273 = vsub.f32 %v4243, %v4269
    %v4274 = vsub.f32 %v4248, %v4270
    %v4275 = vsub.f32 %v4253, %v4271
    %v4276 = vmul.f32 %v4272, %v4272
    %v4277 = vmul.f32 %v4273, %v4273
    %v4278 = vmul.f32 %v4274, %v4274
    %v4279 = vmul.f32 %v4275, %v4275
    %v4280 = vsel %vm331, %v4276, 0.0
    %4281 = vadd.xlane.f32.xlu0 %v4280
    %v4282 = vpop.xlane.xlu0 %4281
    %v4283 = vsel %vm331, %v4277, 0.0
    %4284 = vadd.xlane.f32.xlu0 %v4283
    %v4285 = vpop.xlane.xlu0 %4284
    %v4286 = vsel %vm331, %v4278, 0.0
    %4287 = vadd.xlane.f32.xlu0 %v4286
    %v4288 = vpop.xlane.xlu0 %4287
    %v4289 = vsel %vm331, %v4279, 0.0
    %4290 = vadd.xlane.f32.xlu0 %v4289
    %v4291 = vpop.xlane.xlu0 %4290
    %v4292 = vmul.f32 %v4282, %v2756
    %v4293 = vmul.f32 %v4285, %v2756
    %v4294 = vmul.f32 %v4288, %v2756
    %v4295 = vmul.f32 %v4291, %v2756
    %v4296 = vadd.f32 %v4292, 1e-05
    %v4297 = vadd.f32 %v4293, 1e-05
    %v4298 = vadd.f32 %v4294, 1e-05
    %v4299 = vadd.f32 %v4295, 1e-05
    %v4300 = vrsqrt.pop %v4296
    %v4301 = vrsqrt.pop %v4297
    %v4302 = vrsqrt.pop %v4298
    %v4303 = vrsqrt.pop %v4299
    %v4304 = vmul.f32 %v4272, %v4300
    %v4305 = vmul.f32 %v4273, %v4301
    %v4306 = vmul.f32 %v4274, %v4302
    %v4307 = vmul.f32 %v4275, %v4303
    %s4308 = scalar_lea.vmem [#allocation19], 672
    %v4309 = vld [vmem:[%s4308] sm:$0xff]
    %v4310 = vld [vmem:[%s4308 + $0x8] sm:$0xff]
    %v4311 = vld [vmem:[%s4308 + $0x10] sm:$0xff]
    %v4312 = vld [vmem:[%s4308 + $0x18] sm:$0xff]
    %s4313 = scalar_lea.vmem [#allocation19], 704
    %v4314 = vld [vmem:[%s4313] sm:$0xff]
    %v4315 = vld [vmem:[%s4313 + $0x8] sm:$0xff]
    %v4316 = vld [vmem:[%s4313 + $0x10] sm:$0xff]
    %v4317 = vld [vmem:[%s4313 + $0x18] sm:$0xff]
    %v4319 = vsel %vm331, %v4314, 0
    %v4322 = vsel %vm331, %v4315, 0
    %v4325 = vsel %vm331, %v4316, 0
    %v4328 = vsel %vm331, %v4317, 0
    %4330 = vmatprep.subr.mxu0 0.0
    %4331 = vmatpush1.msra.mxu0 %v2793
    %4332 = vmatprep.subr.mxu0 0.0
    %4333 = vmatpush1.msra.mxu0 %v2794
    %4334 = vmatprep.subr.mxu0 0.0
    %4335 = vmatpush1.msra.mxu0 %v2795
    %4336 = vmatprep.subr.mxu0 0.0
    %4337 = vmatpush1.msra.mxu0 %v2796
    %4338 = vmatprep.subr.mxu0 0.0
    %4339 = vmatpush1.msra.mxu0 0.0
    %4340 = vmatprep.subr.mxu0 0.0
    %4341 = vmatpush1.msra.mxu0 0.0
    %4342 = vmatprep.subr.mxu0 0.0
    %4343 = vmatpush1.msra.mxu0 0.0
    %4344 = vmatprep.subr.mxu0 0.0
    %4345 = vmatpush1.msra.mxu0 0.0
    %4346 = vmatprep.subr.mxu0 0.0
    %4347 = vmatpush1.msra.mxu0 0.0
    %4348 = vmatprep.subr.mxu0 0.0
    %4349 = vmatpush1.msra.mxu0 0.0
    %4350 = vmatprep.subr.mxu0 0.0
    %4351 = vmatpush1.msra.mxu0 0.0
    %4352 = vmatprep.subr.mxu0 0.0
    %4353 = vmatpush1.msra.mxu0 0.0
    %4354 = vmatprep.subr.mxu0 0.0
    %4355 = vmatpush1.msra.mxu0 0.0
    %4356 = vmatprep.subr.mxu0 0.0
    %4357 = vmatpush1.msra.mxu0 0.0
    %4358 = vmatprep.subr.mxu0 0.0
    %4359 = vmatpush1.msra.mxu0 0.0
    %4360 = vmatprep.subr.mxu0 0.0
    %4361 = vmatpush1.msra.mxu0 0.0
    %4362 = vmatprep.subr.mxu0 0.0
    %4363 = vmatpush1.msra.mxu0 0.0
    %4364 = vmatprep.subr.mxu0 0.0
    %4365 = vmatpush1.msra.mxu0 0.0
    %4366 = vmatprep.subr.mxu0 0.0
    %4367 = vmatpush1.msra.mxu0 0.0
    %4368 = vmatprep.subr.mxu0 0.0
    %4369 = vmatpush1.msra.mxu0 0.0
    %4370 = vmatprep.subr.mxu0 0.0
    %4371 = vmatpush1.msra.mxu0 0.0
    %4372 = vmatprep.subr.mxu0 0.0
    %4373 = vmatpush1.msra.mxu0 0.0
    %4374 = vmatprep.subr.mxu0 0.0
    %4375 = vmatpush1.msra.mxu0 0.0
    %4376 = vmatprep.subr.mxu0 0.0
    %4377 = vmatpush1.msra.mxu0 0.0
    %4378 = vmatprep.subr.mxu0 0.0
    %4379 = vmatpush1.msra.mxu0 0.0
    %4380 = vmatprep.subr.mxu0 0.0
    %4381 = vmatpush1.msra.mxu0 0.0
    %4382 = vmatprep.subr.mxu0 0.0
    %4383 = vmatpush1.msra.mxu0 0.0
    %4384 = vmatprep.subr.mxu0 0.0
    %4385 = vmatpush1.msra.mxu0 0.0
    %4386 = vmatprep.subr.mxu0 0.0
    %4387 = vmatpush1.msra.mxu0 0.0
    %4388 = vmatprep.subr.mxu0 0.0
    %4389 = vmatpush1.msra.mxu0 0.0
    %4390 = vmatprep.subr.mxu0 0.0
    %4391 = vmatpush1.msra.mxu0 0.0
    %4392 = vmatprep.subr.mxu0 0.0
    %4393 = vmatpush1.msra.mxu0 0.0
    %4394 = vmatprep.mubr.f32.mxu0 0.0
    %4395 = vmatmul.mubr.f32.gmra.mrb[0].mxu0 %v4319
    %v4396 = vpop.f32.mrb[0].mxu0
    %v4397 = vadd.f32 0.0, %v4396
    %v4398 = vpop.f32.mrb[0].mxu0
    %4399 = vmatprep.mubr.f32.mxu0 0.0
    %4400 = vmatmul.mubr.f32.gmra.mrb[0].mxu0 %v4322
    %v4401 = vpop.f32.mrb[0].mxu0
    %v4402 = vadd.f32 0.0, %v4401
    %v4403 = vpop.f32.mrb[0].mxu0
    %4404 = vmatprep.mubr.f32.mxu0 0.0
    %4405 = vmatmul.mubr.f32.gmra.mrb[0].mxu0 %v4325
    %v4406 = vpop.f32.mrb[0].mxu0
    %v4407 = vadd.f32 0.0, %v4406
    %v4408 = vpop.f32.mrb[0].mxu0
    %4409 = vmatprep.mubr.f32.mxu0 0.0
    %4410 = vmatmul.mubr.f32.gmra.mrb[0].mxu0 %v4328
    %v4411 = vpop.f32.mrb[0].mxu0
    %v4412 = vadd.f32 0.0, %v4411
    %v4413 = vpop.f32.mrb[0].mxu0
    %4414 = vdwg.mxu0
    %v4416 = vsel %vm331, %v4309, 0
    %v4419 = vsel %vm331, %v4310, 0
    %v4422 = vsel %vm331, %v4311, 0
    %v4425 = vsel %vm331, %v4312, 0
    %4427 = vmatprep.subr.mxu0 0.0
    %4428 = vmatpush1.msra.mxu0 %v4304
    %4429 = vmatprep.subr.mxu0 0.0
    %4430 = vmatpush1.msra.mxu0 %v4305
    %4431 = vmatprep.subr.mxu0 0.0
    %4432 = vmatpush1.msra.mxu0 %v4306
    %4433 = vmatprep.subr.mxu0 0.0
    %4434 = vmatpush1.msra.mxu0 %v4307
    %4435 = vmatprep.subr.mxu0 0.0
    %4436 = vmatpush1.msra.mxu0 0.0
    %4437 = vmatprep.subr.mxu0 0.0
    %4438 = vmatpush1.msra.mxu0 0.0
    %4439 = vmatprep.subr.mxu0 0.0
    %4440 = vmatpush1.msra.mxu0 0.0
    %4441 = vmatprep.subr.mxu0 0.0
    %4442 = vmatpush1.msra.mxu0 0.0
    %4443 = vmatprep.subr.mxu0 0.0
    %4444 = vmatpush1.msra.mxu0 0.0
    %4445 = vmatprep.subr.mxu0 0.0
    %4446 = vmatpush1.msra.mxu0 0.0
    %4447 = vmatprep.subr.mxu0 0.0
    %4448 = vmatpush1.msra.mxu0 0.0
    %4449 = vmatprep.subr.mxu0 0.0
    %4450 = vmatpush1.msra.mxu0 0.0
    %4451 = vmatprep.subr.mxu0 0.0
    %4452 = vmatpush1.msra.mxu0 0.0
    %4453 = vmatprep.subr.mxu0 0.0
    %4454 = vmatpush1.msra.mxu0 0.0
    %4455 = vmatprep.subr.mxu0 0.0
    %4456 = vmatpush1.msra.mxu0 0.0
    %4457 = vmatprep.subr.mxu0 0.0
    %4458 = vmatpush1.msra.mxu0 0.0
    %4459 = vmatprep.subr.mxu0 0.0
    %4460 = vmatpush1.msra.mxu0 0.0
    %4461 = vmatprep.subr.mxu0 0.0
    %4462 = vmatpush1.msra.mxu0 0.0
    %4463 = vmatprep.subr.mxu0 0.0
    %4464 = vmatpush1.msra.mxu0 0.0
    %4465 = vmatprep.subr.mxu0 0.0
    %4466 = vmatpush1.msra.mxu0 0.0
    %4467 = vmatprep.subr.mxu0 0.0
    %4468 = vmatpush1.msra.mxu0 0.0
    %4469 = vmatprep.subr.mxu0 0.0
    %4470 = vmatpush1.msra.mxu0 0.0
    %4471 = vmatprep.subr.mxu0 0.0
    %4472 = vmatpush1.msra.mxu0 0.0
    %4473 = vmatprep.subr.mxu0 0.0
    %4474 = vmatpush1.msra.mxu0 0.0
    %4475 = vmatprep.subr.mxu0 0.0
    %4476 = vmatpush1.msra.mxu0 0.0
    %4477 = vmatprep.subr.mxu0 0.0
    %4478 = vmatpush1.msra.mxu0 0.0
    %4479 = vmatprep.subr.mxu0 0.0
    %4480 = vmatpush1.msra.mxu0 0.0
    %4481 = vmatprep.subr.mxu0 0.0
    %4482 = vmatpush1.msra.mxu0 0.0
    %4483 = vmatprep.subr.mxu0 0.0
    %4484 = vmatpush1.msra.mxu0 0.0
    %4485 = vmatprep.subr.mxu0 0.0
    %4486 = vmatpush1.msra.mxu0 0.0
    %4487 = vmatprep.subr.mxu0 0.0
    %4488 = vmatpush1.msra.mxu0 0.0
    %4489 = vmatprep.subr.mxu0 0.0
    %4490 = vmatpush1.msra.mxu0 0.0
    %4491 = vmatprep.mubr.f32.mxu0 0.0
    %4492 = vmatmul.mubr.f32.gmra.mrb[0].mxu0 %v4416
    %v4493 = vpop.f32.mrb[0].mxu0
    %v4494 = vadd.f32 %v4397, %v4493
    %v4495 = vpop.f32.mrb[0].mxu0
    %4496 = vmatprep.mubr.f32.mxu0 0.0
    %4497 = vmatmul.mubr.f32.gmra.mrb[0].mxu0 %v4419
    %v4498 = vpop.f32.mrb[0].mxu0
    %v4499 = vadd.f32 %v4402, %v4498
    %v4500 = vpop.f32.mrb[0].mxu0
    %4501 = vmatprep.mubr.f32.mxu0 0.0
    %4502 = vmatmul.mubr.f32.gmra.mrb[0].mxu0 %v4422
    %v4503 = vpop.f32.mrb[0].mxu0
    %v4504 = vadd.f32 %v4407, %v4503
    %v4505 = vpop.f32.mrb[0].mxu0
    %4506 = vmatprep.mubr.f32.mxu0 0.0
    %4507 = vmatmul.mubr.f32.gmra.mrb[0].mxu0 %v4425
    %v4508 = vpop.f32.mrb[0].mxu0
    %v4509 = vadd.f32 %v4412, %v4508
    %v4510 = vpop.f32.mrb[0].mxu0
    %4511 = vdwg.mxu0
    %s4512 = scalar_lea.vmem [#allocation19], 736
    %v4513 = vld [vmem:[%s4512] sm:$0xff]
    %v4514 = vld [vmem:[%s4512 + $0x8] sm:$0xff]
    %v4515 = vld [vmem:[%s4512 + $0x10] sm:$0xff]
    %v4516 = vld [vmem:[%s4512 + $0x18] sm:$0xff]
    %v4518 = vsel %vm331, %v4513, 0
    %v4521 = vsel %vm331, %v4514, 0
    %v4524 = vsel %vm331, %v4515, 0
    %v4527 = vsel %vm331, %v4516, 0
    %4529 = vmatprep.subr.mxu0 0.0
    %4530 = vmatpush1.msra.mxu0 %v4304
    %4531 = vmatprep.subr.mxu0 0.0
    %4532 = vmatpush1.msra.mxu0 %v4305
    %4533 = vmatprep.subr.mxu0 0.0
    %4534 = vmatpush1.msra.mxu0 %v4306
    %4535 = vmatprep.subr.mxu0 0.0
    %4536 = vmatpush1.msra.mxu0 %v4307
    %4537 = vmatprep.subr.mxu0 0.0
    %4538 = vmatpush1.msra.mxu0 0.0
    %4539 = vmatprep.subr.mxu0 0.0
    %4540 = vmatpush1.msra.mxu0 0.0
    %4541 = vmatprep.subr.mxu0 0.0
    %4542 = vmatpush1.msra.mxu0 0.0
    %4543 = vmatprep.subr.mxu0 0.0
    %4544 = vmatpush1.msra.mxu0 0.0
    %4545 = vmatprep.subr.mxu0 0.0
    %4546 = vmatpush1.msra.mxu0 0.0
    %4547 = vmatprep.subr.mxu0 0.0
    %4548 = vmatpush1.msra.mxu0 0.0
    %4549 = vmatprep.subr.mxu0 0.0
    %4550 = vmatpush1.msra.mxu0 0.0
    %4551 = vmatprep.subr.mxu0 0.0
    %4552 = vmatpush1.msra.mxu0 0.0
    %4553 = vmatprep.subr.mxu0 0.0
    %4554 = vmatpush1.msra.mxu0 0.0
    %4555 = vmatprep.subr.mxu0 0.0
    %4556 = vmatpush1.msra.mxu0 0.0
    %4557 = vmatprep.subr.mxu0 0.0
    %4558 = vmatpush1.msra.mxu0 0.0
    %4559 = vmatprep.subr.mxu0 0.0
    %4560 = vmatpush1.msra.mxu0 0.0
    %4561 = vmatprep.subr.mxu0 0.0
    %4562 = vmatpush1.msra.mxu0 0.0
    %4563 = vmatprep.subr.mxu0 0.0
    %4564 = vmatpush1.msra.mxu0 0.0
    %4565 = vmatprep.subr.mxu0 0.0
    %4566 = vmatpush1.msra.mxu0 0.0
    %4567 = vmatprep.subr.mxu0 0.0
    %4568 = vmatpush1.msra.mxu0 0.0
    %4569 = vmatprep.subr.mxu0 0.0
    %4570 = vmatpush1.msra.mxu0 0.0
    %4571 = vmatprep.subr.mxu0 0.0
    %4572 = vmatpush1.msra.mxu0 0.0
    %4573 = vmatprep.subr.mxu0 0.0
    %4574 = vmatpush1.msra.mxu0 0.0
    %4575 = vmatprep.subr.mxu0 0.0
    %4576 = vmatpush1.msra.mxu0 0.0
    %4577 = vmatprep.subr.mxu0 0.0
    %4578 = vmatpush1.msra.mxu0 0.0
    %4579 = vmatprep.subr.mxu0 0.0
    %4580 = vmatpush1.msra.mxu0 0.0
    %4581 = vmatprep.subr.mxu0 0.0
    %4582 = vmatpush1.msra.mxu0 0.0
    %4583 = vmatprep.subr.mxu0 0.0
    %4584 = vmatpush1.msra.mxu0 0.0
    %4585 = vmatprep.subr.mxu0 0.0
    %4586 = vmatpush1.msra.mxu0 0.0
    %4587 = vmatprep.subr.mxu0 0.0
    %4588 = vmatpush1.msra.mxu0 0.0
    %4589 = vmatprep.subr.mxu0 0.0
    %4590 = vmatpush1.msra.mxu0 0.0
    %4591 = vmatprep.subr.mxu0 0.0
    %4592 = vmatpush1.msra.mxu0 0.0
    %4593 = vmatprep.mubr.f32.mxu0 0.0
    %4594 = vmatmul.mubr.f32.gmra.mrb[0].mxu0 %v4518
    %v4595 = vpop.f32.mrb[0].mxu0
    %v4596 = vadd.f32 0.0, %v4595
    %v4597 = vpop.f32.mrb[0].mxu0
    %4598 = vmatprep.mubr.f32.mxu0 0.0
    %4599 = vmatmul.mubr.f32.gmra.mrb[0].mxu0 %v4521
    %v4600 = vpop.f32.mrb[0].mxu0
    %v4601 = vadd.f32 0.0, %v4600
    %v4602 = vpop.f32.mrb[0].mxu0
    %4603 = vmatprep.mubr.f32.mxu0 0.0
    %4604 = vmatmul.mubr.f32.gmra.mrb[0].mxu0 %v4524
    %v4605 = vpop.f32.mrb[0].mxu0
    %v4606 = vadd.f32 0.0, %v4605
    %v4607 = vpop.f32.mrb[0].mxu0
    %4608 = vmatprep.mubr.f32.mxu0 0.0
    %4609 = vmatmul.mubr.f32.gmra.mrb[0].mxu0 %v4527
    %v4610 = vpop.f32.mrb[0].mxu0
    %v4611 = vadd.f32 0.0, %v4610
    %v4612 = vpop.f32.mrb[0].mxu0
    %4613 = vdwg.mxu0
    %v4615 = vsel %vm331, %v4494, 0
    %v4618 = vsel %vm331, %v4499, 0
    %v4621 = vsel %vm331, %v4504, 0
    %v4624 = vsel %vm331, %v4509, 0
    %4626 = vmatprep.subr.mxu0 0.0
    %4627 = vmatpush1.msra.mxu0 %v2214
    %4628 = vmatprep.subr.mxu0 0.0
    %4629 = vmatpush1.msra.mxu0 %v2215
    %4630 = vmatprep.subr.mxu0 0.0
    %4631 = vmatpush1.msra.mxu0 %v2216
    %4632 = vmatprep.subr.mxu0 0.0
    %4633 = vmatpush1.msra.mxu0 %v2217
    %4634 = vmatprep.subr.mxu0 0.0
    %4635 = vmatpush1.msra.mxu0 0.0
    %4636 = vmatprep.subr.mxu0 0.0
    %4637 = vmatpush1.msra.mxu0 0.0
    %4638 = vmatprep.subr.mxu0 0.0
    %4639 = vmatpush1.msra.mxu0 0.0
    %4640 = vmatprep.subr.mxu0 0.0
    %4641 = vmatpush1.msra.mxu0 0.0
    %4642 = vmatprep.subr.mxu0 0.0
    %4643 = vmatpush1.msra.mxu0 0.0
    %4644 = vmatprep.subr.mxu0 0.0
    %4645 = vmatpush1.msra.mxu0 0.0
    %4646 = vmatprep.subr.mxu0 0.0
    %4647 = vmatpush1.msra.mxu0 0.0
    %4648 = vmatprep.subr.mxu0 0.0
    %4649 = vmatpush1.msra.mxu0 0.0
    %4650 = vmatprep.subr.mxu0 0.0
    %4651 = vmatpush1.msra.mxu0 0.0
    %4652 = vmatprep.subr.mxu0 0.0
    %4653 = vmatpush1.msra.mxu0 0.0
    %4654 = vmatprep.subr.mxu0 0.0
    %4655 = vmatpush1.msra.mxu0 0.0
    %4656 = vmatprep.subr.mxu0 0.0
    %4657 = vmatpush1.msra.mxu0 0.0
    %4658 = vmatprep.subr.mxu0 0.0
    %4659 = vmatpush1.msra.mxu0 0.0
    %4660 = vmatprep.subr.mxu0 0.0
    %4661 = vmatpush1.msra.mxu0 0.0
    %4662 = vmatprep.subr.mxu0 0.0
    %4663 = vmatpush1.msra.mxu0 0.0
    %4664 = vmatprep.subr.mxu0 0.0
    %4665 = vmatpush1.msra.mxu0 0.0
    %4666 = vmatprep.subr.mxu0 0.0
    %4667 = vmatpush1.msra.mxu0 0.0
    %4668 = vmatprep.subr.mxu0 0.0
    %4669 = vmatpush1.msra.mxu0 0.0
    %4670 = vmatprep.subr.mxu0 0.0
    %4671 = vmatpush1.msra.mxu0 0.0
    %4672 = vmatprep.subr.mxu0 0.0
    %4673 = vmatpush1.msra.mxu0 0.0
    %4674 = vmatprep.subr.mxu0 0.0
    %4675 = vmatpush1.msra.mxu0 0.0
    %4676 = vmatprep.subr.mxu0 0.0
    %4677 = vmatpush1.msra.mxu0 0.0
    %4678 = vmatprep.subr.mxu0 0.0
    %4679 = vmatpush1.msra.mxu0 0.0
    %4680 = vmatprep.subr.mxu0 0.0
    %4681 = vmatpush1.msra.mxu0 0.0
    %4682 = vmatprep.subr.mxu0 0.0
    %4683 = vmatpush1.msra.mxu0 0.0
    %4684 = vmatprep.subr.mxu0 0.0
    %4685 = vmatpush1.msra.mxu0 0.0
    %4686 = vmatprep.subr.mxu0 0.0
    %4687 = vmatpush1.msra.mxu0 0.0
    %4688 = vmatprep.subr.mxu0 0.0
    %4689 = vmatpush1.msra.mxu0 0.0
    %4690 = vmatprep.mubr.f32.mxu0 0.0
    %4691 = vmatmul.mubr.f32.gmra.mrb[0].mxu0 %v4615
    %v4692 = vpop.f32.mrb[0].mxu0
    %v4693 = vadd.f32 %v4596, %v4692
    %v4694 = vpop.f32.mrb[0].mxu0
    %4695 = vmatprep.mubr.f32.mxu0 0.0
    %4696 = vmatmul.mubr.f32.gmra.mrb[0].mxu0 %v4618
    %v4697 = vpop.f32.mrb[0].mxu0
    %v4698 = vadd.f32 %v4601, %v4697
    %v4699 = vpop.f32.mrb[0].mxu0
    %4700 = vmatprep.mubr.f32.mxu0 0.0
    %4701 = vmatmul.mubr.f32.gmra.mrb[0].mxu0 %v4621
    %v4702 = vpop.f32.mrb[0].mxu0
    %v4703 = vadd.f32 %v4606, %v4702
    %v4704 = vpop.f32.mrb[0].mxu0
    %4705 = vmatprep.mubr.f32.mxu0 0.0
    %4706 = vmatmul.mubr.f32.gmra.mrb[0].mxu0 %v4624
    %v4707 = vpop.f32.mrb[0].mxu0
    %v4708 = vadd.f32 %v4611, %v4707
    %v4709 = vpop.f32.mrb[0].mxu0
    %4710 = vdwg.mxu0
    %s4711 = scalar_lea.vmem [#allocation19], 768
    %v4712 = vld [vmem:[%s4711] sm:$0xff]
    %v4713 = vld [vmem:[%s4711 + $0x8] sm:$0xff]
    %v4714 = vld [vmem:[%s4711 + $0x10] sm:$0xff]
    %v4715 = vld [vmem:[%s4711 + $0x18] sm:$0xff]
    %v4717 = vsel %vm331, %v4712, 0
    %v4720 = vsel %vm331, %v4713, 0
    %v4723 = vsel %vm331, %v4714, 0
    %v4726 = vsel %vm331, %v4715, 0
    %4728 = vmatprep.subr.mxu0 0.0
    %4729 = vmatpush1.msra.mxu0 %v2793
    %4730 = vmatprep.subr.mxu0 0.0
    %4731 = vmatpush1.msra.mxu0 %v2794
    %4732 = vmatprep.subr.mxu0 0.0
    %4733 = vmatpush1.msra.mxu0 %v2795
    %4734 = vmatprep.subr.mxu0 0.0
    %4735 = vmatpush1.msra.mxu0 %v2796
    %4736 = vmatprep.subr.mxu0 0.0
    %4737 = vmatpush1.msra.mxu0 0.0
    %4738 = vmatprep.subr.mxu0 0.0
    %4739 = vmatpush1.msra.mxu0 0.0
    %4740 = vmatprep.subr.mxu0 0.0
    %4741 = vmatpush1.msra.mxu0 0.0
    %4742 = vmatprep.subr.mxu0 0.0
    %4743 = vmatpush1.msra.mxu0 0.0
    %4744 = vmatprep.subr.mxu0 0.0
    %4745 = vmatpush1.msra.mxu0 0.0
    %4746 = vmatprep.subr.mxu0 0.0
    %4747 = vmatpush1.msra.mxu0 0.0
    %4748 = vmatprep.subr.mxu0 0.0
    %4749 = vmatpush1.msra.mxu0 0.0
    %4750 = vmatprep.subr.mxu0 0.0
    %4751 = vmatpush1.msra.mxu0 0.0
    %4752 = vmatprep.subr.mxu0 0.0
    %4753 = vmatpush1.msra.mxu0 0.0
    %4754 = vmatprep.subr.mxu0 0.0
    %4755 = vmatpush1.msra.mxu0 0.0
    %4756 = vmatprep.subr.mxu0 0.0
    %4757 = vmatpush1.msra.mxu0 0.0
    %4758 = vmatprep.subr.mxu0 0.0
    %4759 = vmatpush1.msra.mxu0 0.0
    %4760 = vmatprep.subr.mxu0 0.0
    %4761 = vmatpush1.msra.mxu0 0.0
    %4762 = vmatprep.subr.mxu0 0.0
    %4763 = vmatpush1.msra.mxu0 0.0
    %4764 = vmatprep.subr.mxu0 0.0
    %4765 = vmatpush1.msra.mxu0 0.0
    %4766 = vmatprep.subr.mxu0 0.0
    %4767 = vmatpush1.msra.mxu0 0.0
    %4768 = vmatprep.subr.mxu0 0.0
    %4769 = vmatpush1.msra.mxu0 0.0
    %4770 = vmatprep.subr.mxu0 0.0
    %4771 = vmatpush1.msra.mxu0 0.0
    %4772 = vmatprep.subr.mxu0 0.0
    %4773 = vmatpush1.msra.mxu0 0.0
    %4774 = vmatprep.subr.mxu0 0.0
    %4775 = vmatpush1.msra.mxu0 0.0
    %4776 = vmatprep.subr.mxu0 0.0
    %4777 = vmatpush1.msra.mxu0 0.0
    %4778 = vmatprep.subr.mxu0 0.0
    %4779 = vmatpush1.msra.mxu0 0.0
    %4780 = vmatprep.subr.mxu0 0.0
    %4781 = vmatpush1.msra.mxu0 0.0
    %4782 = vmatprep.subr.mxu0 0.0
    %4783 = vmatpush1.msra.mxu0 0.0
    %4784 = vmatprep.subr.mxu0 0.0
    %4785 = vmatpush1.msra.mxu0 0.0
    %4786 = vmatprep.subr.mxu0 0.0
    %4787 = vmatpush1.msra.mxu0 0.0
    %4788 = vmatprep.subr.mxu0 0.0
    %4789 = vmatpush1.msra.mxu0 0.0
    %4790 = vmatprep.subr.mxu0 0.0
    %4791 = vmatpush1.msra.mxu0 0.0
    %4792 = vmatprep.mubr.f32.mxu0 0.0
    %4793 = vmatmul.mubr.f32.gmra.mrb[0].mxu0 %v4717
    %v4794 = vpop.f32.mrb[0].mxu0
    %v4795 = vadd.f32 0.0, %v4794
    %v4796 = vpop.f32.mrb[0].mxu0
    %4797 = vmatprep.mubr.f32.mxu0 0.0
    %4798 = vmatmul.mubr.f32.gmra.mrb[0].mxu0 %v4720
    %v4799 = vpop.f32.mrb[0].mxu0
    %v4800 = vadd.f32 0.0, %v4799
    %v4801 = vpop.f32.mrb[0].mxu0
    %4802 = vmatprep.mubr.f32.mxu0 0.0
    %4803 = vmatmul.mubr.f32.gmra.mrb[0].mxu0 %v4723
    %v4804 = vpop.f32.mrb[0].mxu0
    %v4805 = vadd.f32 0.0, %v4804
    %v4806 = vpop.f32.mrb[0].mxu0
    %4807 = vmatprep.mubr.f32.mxu0 0.0
    %4808 = vmatmul.mubr.f32.gmra.mrb[0].mxu0 %v4726
    %v4809 = vpop.f32.mrb[0].mxu0
    %v4810 = vadd.f32 0.0, %v4809
    %v4811 = vpop.f32.mrb[0].mxu0
    %4812 = vdwg.mxu0
    %v4813 = vadd.f32 %v4693, %v4795
    %v4814 = vadd.f32 %v4698, %v4800
    %v4815 = vadd.f32 %v4703, %v4805
    %v4816 = vadd.f32 %v4708, %v4810
    %s4817 = scalar_lea.vmem [#allocation20], 352
    %v4818 = vld [vmem:[%s4817] sm:$0xff]
    %v4819 = vld [vmem:[%s4817 + $0x8] sm:$0xff]
    %v4820 = vld [vmem:[%s4817 + $0x10] sm:$0xff]
    %v4821 = vld [vmem:[%s4817 + $0x18] sm:$0xff]
    %v4822 = vadd.f32 %v4813, %v4818
    %v4823 = vadd.f32 %v4814, %v4819
    %v4824 = vadd.f32 %v4815, %v4820
    %v4825 = vadd.f32 %v4816, %v4821
    %v4826 = vmax.f32 %v4822, 0.0
    %v4827 = vmax.f32 %v4823, 0.0
    %v4828 = vmax.f32 %v4824, 0.0
    %v4829 = vmax.f32 %v4825, 0.0
    %s4830 = scalar_lea.vmem [#allocation19], 800
    %v4831 = vld [vmem:[%s4830] sm:$0xff]
    %v4832 = vld [vmem:[%s4830 + $0x8] sm:$0xff]
    %v4833 = vld [vmem:[%s4830 + $0x10] sm:$0xff]
    %v4834 = vld [vmem:[%s4830 + $0x18] sm:$0xff]
    %v4836 = vsel %vm331, %v4831, 0
    %v4839 = vsel %vm331, %v4832, 0
    %v4842 = vsel %vm331, %v4833, 0
    %v4845 = vsel %vm331, %v4834, 0
    %4847 = vmatprep.subr.mxu0 0.0
    %4848 = vmatpush1.msra.mxu0 %v4826
    %4849 = vmatprep.subr.mxu0 0.0
    %4850 = vmatpush1.msra.mxu0 %v4827
    %4851 = vmatprep.subr.mxu0 0.0
    %4852 = vmatpush1.msra.mxu0 %v4828
    %4853 = vmatprep.subr.mxu0 0.0
    %4854 = vmatpush1.msra.mxu0 %v4829
    %4855 = vmatprep.subr.mxu0 0.0
    %4856 = vmatpush1.msra.mxu0 0.0
    %4857 = vmatprep.subr.mxu0 0.0
    %4858 = vmatpush1.msra.mxu0 0.0
    %4859 = vmatprep.subr.mxu0 0.0
    %4860 = vmatpush1.msra.mxu0 0.0
    %4861 = vmatprep.subr.mxu0 0.0
    %4862 = vmatpush1.msra.mxu0 0.0
    %4863 = vmatprep.subr.mxu0 0.0
    %4864 = vmatpush1.msra.mxu0 0.0
    %4865 = vmatprep.subr.mxu0 0.0
    %4866 = vmatpush1.msra.mxu0 0.0
    %4867 = vmatprep.subr.mxu0 0.0
    %4868 = vmatpush1.msra.mxu0 0.0
    %4869 = vmatprep.subr.mxu0 0.0
    %4870 = vmatpush1.msra.mxu0 0.0
    %4871 = vmatprep.subr.mxu0 0.0
    %4872 = vmatpush1.msra.mxu0 0.0
    %4873 = vmatprep.subr.mxu0 0.0
    %4874 = vmatpush1.msra.mxu0 0.0
    %4875 = vmatprep.subr.mxu0 0.0
    %4876 = vmatpush1.msra.mxu0 0.0
    %4877 = vmatprep.subr.mxu0 0.0
    %4878 = vmatpush1.msra.mxu0 0.0
    %4879 = vmatprep.subr.mxu0 0.0
    %4880 = vmatpush1.msra.mxu0 0.0
    %4881 = vmatprep.subr.mxu0 0.0
    %4882 = vmatpush1.msra.mxu0 0.0
    %4883 = vmatprep.subr.mxu0 0.0
    %4884 = vmatpush1.msra.mxu0 0.0
    %4885 = vmatprep.subr.mxu0 0.0
    %4886 = vmatpush1.msra.mxu0 0.0
    %4887 = vmatprep.subr.mxu0 0.0
    %4888 = vmatpush1.msra.mxu0 0.0
    %4889 = vmatprep.subr.mxu0 0.0
    %4890 = vmatpush1.msra.mxu0 0.0
    %4891 = vmatprep.subr.mxu0 0.0
    %4892 = vmatpush1.msra.mxu0 0.0
    %4893 = vmatprep.subr.mxu0 0.0
    %4894 = vmatpush1.msra.mxu0 0.0
    %4895 = vmatprep.subr.mxu0 0.0
    %4896 = vmatpush1.msra.mxu0 0.0
    %4897 = vmatprep.subr.mxu0 0.0
    %4898 = vmatpush1.msra.mxu0 0.0
    %4899 = vmatprep.subr.mxu0 0.0
    %4900 = vmatpush1.msra.mxu0 0.0
    %4901 = vmatprep.subr.mxu0 0.0
    %4902 = vmatpush1.msra.mxu0 0.0
    %4903 = vmatprep.subr.mxu0 0.0
    %4904 = vmatpush1.msra.mxu0 0.0
    %4905 = vmatprep.subr.mxu0 0.0
    %4906 = vmatpush1.msra.mxu0 0.0
    %4907 = vmatprep.subr.mxu0 0.0
    %4908 = vmatpush1.msra.mxu0 0.0
    %4909 = vmatprep.subr.mxu0 0.0
    %4910 = vmatpush1.msra.mxu0 0.0
    %4911 = vmatprep.mubr.f32.mxu0 0.0
    %4912 = vmatmul.mubr.f32.gmra.mrb[0].mxu0 %v4836
    %v4913 = vpop.f32.mrb[0].mxu0
    %v4914 = vadd.f32 0.0, %v4913
    %v4915 = vpop.f32.mrb[0].mxu0
    %4916 = vmatprep.mubr.f32.mxu0 0.0
    %4917 = vmatmul.mubr.f32.gmra.mrb[0].mxu0 %v4839
    %v4918 = vpop.f32.mrb[0].mxu0
    %v4919 = vadd.f32 0.0, %v4918
    %v4920 = vpop.f32.mrb[0].mxu0
    %4921 = vmatprep.mubr.f32.mxu0 0.0
    %4922 = vmatmul.mubr.f32.gmra.mrb[0].mxu0 %v4842
    %v4923 = vpop.f32.mrb[0].mxu0
    %v4924 = vadd.f32 0.0, %v4923
    %v4925 = vpop.f32.mrb[0].mxu0
    %4926 = vmatprep.mubr.f32.mxu0 0.0
    %4927 = vmatmul.mubr.f32.gmra.mrb[0].mxu0 %v4845
    %v4928 = vpop.f32.mrb[0].mxu0
    %v4929 = vadd.f32 0.0, %v4928
    %v4930 = vpop.f32.mrb[0].mxu0
    %4931 = vdwg.mxu0
    %s4932 = scalar_lea.vmem [#allocation19], 832
    %v4933 = vld [vmem:[%s4932] sm:$0xff]
    %v4934 = vld [vmem:[%s4932 + $0x8] sm:$0xff]
    %v4935 = vld [vmem:[%s4932 + $0x10] sm:$0xff]
    %v4936 = vld [vmem:[%s4932 + $0x18] sm:$0xff]
    %v4938 = vsel %vm331, %v4933, 0
    %v4941 = vsel %vm331, %v4934, 0
    %v4944 = vsel %vm331, %v4935, 0
    %v4947 = vsel %vm331, %v4936, 0
    %4949 = vmatprep.subr.mxu0 0.0
    %4950 = vmatpush1.msra.mxu0 %v4826
    %4951 = vmatprep.subr.mxu0 0.0
    %4952 = vmatpush1.msra.mxu0 %v4827
    %4953 = vmatprep.subr.mxu0 0.0
    %4954 = vmatpush1.msra.mxu0 %v4828
    %4955 = vmatprep.subr.mxu0 0.0
    %4956 = vmatpush1.msra.mxu0 %v4829
    %4957 = vmatprep.subr.mxu0 0.0
    %4958 = vmatpush1.msra.mxu0 0.0
    %4959 = vmatprep.subr.mxu0 0.0
    %4960 = vmatpush1.msra.mxu0 0.0
    %4961 = vmatprep.subr.mxu0 0.0
    %4962 = vmatpush1.msra.mxu0 0.0
    %4963 = vmatprep.subr.mxu0 0.0
    %4964 = vmatpush1.msra.mxu0 0.0
    %4965 = vmatprep.subr.mxu0 0.0
    %4966 = vmatpush1.msra.mxu0 0.0
    %4967 = vmatprep.subr.mxu0 0.0
    %4968 = vmatpush1.msra.mxu0 0.0
    %4969 = vmatprep.subr.mxu0 0.0
    %4970 = vmatpush1.msra.mxu0 0.0
    %4971 = vmatprep.subr.mxu0 0.0
    %4972 = vmatpush1.msra.mxu0 0.0
    %4973 = vmatprep.subr.mxu0 0.0
    %4974 = vmatpush1.msra.mxu0 0.0
    %4975 = vmatprep.subr.mxu0 0.0
    %4976 = vmatpush1.msra.mxu0 0.0
    %4977 = vmatprep.subr.mxu0 0.0
    %4978 = vmatpush1.msra.mxu0 0.0
    %4979 = vmatprep.subr.mxu0 0.0
    %4980 = vmatpush1.msra.mxu0 0.0
    %4981 = vmatprep.subr.mxu0 0.0
    %4982 = vmatpush1.msra.mxu0 0.0
    %4983 = vmatprep.subr.mxu0 0.0
    %4984 = vmatpush1.msra.mxu0 0.0
    %4985 = vmatprep.subr.mxu0 0.0
    %4986 = vmatpush1.msra.mxu0 0.0
    %4987 = vmatprep.subr.mxu0 0.0
    %4988 = vmatpush1.msra.mxu0 0.0
    %4989 = vmatprep.subr.mxu0 0.0
    %4990 = vmatpush1.msra.mxu0 0.0
    %4991 = vmatprep.subr.mxu0 0.0
    %4992 = vmatpush1.msra.mxu0 0.0
    %4993 = vmatprep.subr.mxu0 0.0
    %4994 = vmatpush1.msra.mxu0 0.0
    %4995 = vmatprep.subr.mxu0 0.0
    %4996 = vmatpush1.msra.mxu0 0.0
    %4997 = vmatprep.subr.mxu0 0.0
    %4998 = vmatpush1.msra.mxu0 0.0
    %4999 = vmatprep.subr.mxu0 0.0
    %5000 = vmatpush1.msra.mxu0 0.0
    %5001 = vmatprep.subr.mxu0 0.0
    %5002 = vmatpush1.msra.mxu0 0.0
    %5003 = vmatprep.subr.mxu0 0.0
    %5004 = vmatpush1.msra.mxu0 0.0
    %5005 = vmatprep.subr.mxu0 0.0
    %5006 = vmatpush1.msra.mxu0 0.0
    %5007 = vmatprep.subr.mxu0 0.0
    %5008 = vmatpush1.msra.mxu0 0.0
    %5009 = vmatprep.subr.mxu0 0.0
    %5010 = vmatpush1.msra.mxu0 0.0
    %5011 = vmatprep.subr.mxu0 0.0
    %5012 = vmatpush1.msra.mxu0 0.0
    %5013 = vmatprep.mubr.f32.mxu0 0.0
    %5014 = vmatmul.mubr.f32.gmra.mrb[0].mxu0 %v4938
    %v5015 = vpop.f32.mrb[0].mxu0
    %v5016 = vadd.f32 0.0, %v5015
    %v5017 = vpop.f32.mrb[0].mxu0
    %5018 = vmatprep.mubr.f32.mxu0 0.0
    %5019 = vmatmul.mubr.f32.gmra.mrb[0].mxu0 %v4941
    %v5020 = vpop.f32.mrb[0].mxu0
    %v5021 = vadd.f32 0.0, %v5020
    %v5022 = vpop.f32.mrb[0].mxu0
    %5023 = vmatprep.mubr.f32.mxu0 0.0
    %5024 = vmatmul.mubr.f32.gmra.mrb[0].mxu0 %v4944
    %v5025 = vpop.f32.mrb[0].mxu0
    %v5026 = vadd.f32 0.0, %v5025
    %v5027 = vpop.f32.mrb[0].mxu0
    %5028 = vmatprep.mubr.f32.mxu0 0.0
    %5029 = vmatmul.mubr.f32.gmra.mrb[0].mxu0 %v4947
    %v5030 = vpop.f32.mrb[0].mxu0
    %v5031 = vadd.f32 0.0, %v5030
    %v5032 = vpop.f32.mrb[0].mxu0
    %5033 = vdwg.mxu0
    %v5035 = vsel %vm331, %v4914, 0
    %v5038 = vsel %vm331, %v4919, 0
    %v5041 = vsel %vm331, %v4924, 0
    %v5044 = vsel %vm331, %v4929, 0
    %5046 = vmatprep.subr.mxu0 0.0
    %5047 = vmatpush1.msra.mxu0 %v2214
    %5048 = vmatprep.subr.mxu0 0.0
    %5049 = vmatpush1.msra.mxu0 %v2215
    %5050 = vmatprep.subr.mxu0 0.0
    %5051 = vmatpush1.msra.mxu0 %v2216
    %5052 = vmatprep.subr.mxu0 0.0
    %5053 = vmatpush1.msra.mxu0 %v2217
    %5054 = vmatprep.subr.mxu0 0.0
    %5055 = vmatpush1.msra.mxu0 0.0
    %5056 = vmatprep.subr.mxu0 0.0
    %5057 = vmatpush1.msra.mxu0 0.0
    %5058 = vmatprep.subr.mxu0 0.0
    %5059 = vmatpush1.msra.mxu0 0.0
    %5060 = vmatprep.subr.mxu0 0.0
    %5061 = vmatpush1.msra.mxu0 0.0
    %5062 = vmatprep.subr.mxu0 0.0
    %5063 = vmatpush1.msra.mxu0 0.0
    %5064 = vmatprep.subr.mxu0 0.0
    %5065 = vmatpush1.msra.mxu0 0.0
    %5066 = vmatprep.subr.mxu0 0.0
    %5067 = vmatpush1.msra.mxu0 0.0
    %5068 = vmatprep.subr.mxu0 0.0
    %5069 = vmatpush1.msra.mxu0 0.0
    %5070 = vmatprep.subr.mxu0 0.0
    %5071 = vmatpush1.msra.mxu0 0.0
    %5072 = vmatprep.subr.mxu0 0.0
    %5073 = vmatpush1.msra.mxu0 0.0
    %5074 = vmatprep.subr.mxu0 0.0
    %5075 = vmatpush1.msra.mxu0 0.0
    %5076 = vmatprep.subr.mxu0 0.0
    %5077 = vmatpush1.msra.mxu0 0.0
    %5078 = vmatprep.subr.mxu0 0.0
    %5079 = vmatpush1.msra.mxu0 0.0
    %5080 = vmatprep.subr.mxu0 0.0
    %5081 = vmatpush1.msra.mxu0 0.0
    %5082 = vmatprep.subr.mxu0 0.0
    %5083 = vmatpush1.msra.mxu0 0.0
    %5084 = vmatprep.subr.mxu0 0.0
    %5085 = vmatpush1.msra.mxu0 0.0
    %5086 = vmatprep.subr.mxu0 0.0
    %5087 = vmatpush1.msra.mxu0 0.0
    %5088 = vmatprep.subr.mxu0 0.0
    %5089 = vmatpush1.msra.mxu0 0.0
    %5090 = vmatprep.subr.mxu0 0.0
    %5091 = vmatpush1.msra.mxu0 0.0
    %5092 = vmatprep.subr.mxu0 0.0
    %5093 = vmatpush1.msra.mxu0 0.0
    %5094 = vmatprep.subr.mxu0 0.0
    %5095 = vmatpush1.msra.mxu0 0.0
    %5096 = vmatprep.subr.mxu0 0.0
    %5097 = vmatpush1.msra.mxu0 0.0
    %5098 = vmatprep.subr.mxu0 0.0
    %5099 = vmatpush1.msra.mxu0 0.0
    %5100 = vmatprep.subr.mxu0 0.0
    %5101 = vmatpush1.msra.mxu0 0.0
    %5102 = vmatprep.subr.mxu0 0.0
    %5103 = vmatpush1.msra.mxu0 0.0
    %5104 = vmatprep.subr.mxu0 0.0
    %5105 = vmatpush1.msra.mxu0 0.0
    %5106 = vmatprep.subr.mxu0 0.0
    %5107 = vmatpush1.msra.mxu0 0.0
    %5108 = vmatprep.subr.mxu0 0.0
    %5109 = vmatpush1.msra.mxu0 0.0
    %5110 = vmatprep.mubr.f32.mxu0 0.0
    %5111 = vmatmul.mubr.f32.gmra.mrb[0].mxu0 %v5035
    %v5112 = vpop.f32.mrb[0].mxu0
    %v5113 = vadd.f32 %v5016, %v5112
    %v5114 = vpop.f32.mrb[0].mxu0
    %5115 = vmatprep.mubr.f32.mxu0 0.0
    %5116 = vmatmul.mubr.f32.gmra.mrb[0].mxu0 %v5038
    %v5117 = vpop.f32.mrb[0].mxu0
    %v5118 = vadd.f32 %v5021, %v5117
    %v5119 = vpop.f32.mrb[0].mxu0
    %5120 = vmatprep.mubr.f32.mxu0 0.0
    %5121 = vmatmul.mubr.f32.gmra.mrb[0].mxu0 %v5041
    %v5122 = vpop.f32.mrb[0].mxu0
    %v5123 = vadd.f32 %v5026, %v5122
    %v5124 = vpop.f32.mrb[0].mxu0
    %5125 = vmatprep.mubr.f32.mxu0 0.0
    %5126 = vmatmul.mubr.f32.gmra.mrb[0].mxu0 %v5044
    %v5127 = vpop.f32.mrb[0].mxu0
    %v5128 = vadd.f32 %v5031, %v5127
    %v5129 = vpop.f32.mrb[0].mxu0
    %5130 = vdwg.mxu0
    %s5131 = scalar_lea.vmem [#allocation20], 384
    %v5132 = vld [vmem:[%s5131] sm:$0xff]
    %v5133 = vld [vmem:[%s5131 + $0x8] sm:$0xff]
    %v5134 = vld [vmem:[%s5131 + $0x10] sm:$0xff]
    %v5135 = vld [vmem:[%s5131 + $0x18] sm:$0xff]
    %v5136 = vadd.f32 %v5113, %v5132
    %v5137 = vadd.f32 %v5118, %v5133
    %v5138 = vadd.f32 %v5123, %v5134
    %v5139 = vadd.f32 %v5128, %v5135
    %v5140 = vmax.f32 %v5136, 0.0
    %v5141 = vmax.f32 %v5137, 0.0
    %v5142 = vmax.f32 %v5138, 0.0
    %v5143 = vmax.f32 %v5139, 0.0
    %v5144 = vld [vmem:[#allocation16] sm:$0xff]
    %v5145 = vld [vmem:[#allocation16 + $0x8] sm:$0xff]
    %v5146 = vld [vmem:[#allocation16 + $0x10] sm:$0xff]
    %v5147 = vld [vmem:[#allocation16 + $0x18] sm:$0xff]
    %v5149 = vsel %vm331, %v5140, 0
    %v5152 = vsel %vm331, %v5141, 0
    %v5155 = vsel %vm331, %v5142, 0
    %v5158 = vsel %vm331, %v5143, 0
    %5160 = vmatprep.subr.mxu0 0.0
    %5161 = vmatpush1.msra.mxu0 %v5144
    %5162 = vmatprep.subr.mxu0 0.0
    %5163 = vmatpush1.msra.mxu0 %v5145
    %5164 = vmatprep.subr.mxu0 0.0
    %5165 = vmatpush1.msra.mxu0 %v5146
    %5166 = vmatprep.subr.mxu0 0.0
    %5167 = vmatpush1.msra.mxu0 %v5147
    %5168 = vmatprep.subr.mxu0 0.0
    %5169 = vmatpush1.msra.mxu0 0.0
    %5170 = vmatprep.subr.mxu0 0.0
    %5171 = vmatpush1.msra.mxu0 0.0
    %5172 = vmatprep.subr.mxu0 0.0
    %5173 = vmatpush1.msra.mxu0 0.0
    %5174 = vmatprep.subr.mxu0 0.0
    %5175 = vmatpush1.msra.mxu0 0.0
    %5176 = vmatprep.subr.mxu0 0.0
    %5177 = vmatpush1.msra.mxu0 0.0
    %5178 = vmatprep.subr.mxu0 0.0
    %5179 = vmatpush1.msra.mxu0 0.0
    %5180 = vmatprep.subr.mxu0 0.0
    %5181 = vmatpush1.msra.mxu0 0.0
    %5182 = vmatprep.subr.mxu0 0.0
    %5183 = vmatpush1.msra.mxu0 0.0
    %5184 = vmatprep.subr.mxu0 0.0
    %5185 = vmatpush1.msra.mxu0 0.0
    %5186 = vmatprep.subr.mxu0 0.0
    %5187 = vmatpush1.msra.mxu0 0.0
    %5188 = vmatprep.subr.mxu0 0.0
    %5189 = vmatpush1.msra.mxu0 0.0
    %5190 = vmatprep.subr.mxu0 0.0
    %5191 = vmatpush1.msra.mxu0 0.0
    %5192 = vmatprep.subr.mxu0 0.0
    %5193 = vmatpush1.msra.mxu0 0.0
    %5194 = vmatprep.subr.mxu0 0.0
    %5195 = vmatpush1.msra.mxu0 0.0
    %5196 = vmatprep.subr.mxu0 0.0
    %5197 = vmatpush1.msra.mxu0 0.0
    %5198 = vmatprep.subr.mxu0 0.0
    %5199 = vmatpush1.msra.mxu0 0.0
    %5200 = vmatprep.subr.mxu0 0.0
    %5201 = vmatpush1.msra.mxu0 0.0
    %5202 = vmatprep.subr.mxu0 0.0
    %5203 = vmatpush1.msra.mxu0 0.0
    %5204 = vmatprep.subr.mxu0 0.0
    %5205 = vmatpush1.msra.mxu0 0.0
    %5206 = vmatprep.subr.mxu0 0.0
    %5207 = vmatpush1.msra.mxu0 0.0
    %5208 = vmatprep.subr.mxu0 0.0
    %5209 = vmatpush1.msra.mxu0 0.0
    %5210 = vmatprep.subr.mxu0 0.0
    %5211 = vmatpush1.msra.mxu0 0.0
    %5212 = vmatprep.subr.mxu0 0.0
    %5213 = vmatpush1.msra.mxu0 0.0
    %5214 = vmatprep.subr.mxu0 0.0
    %5215 = vmatpush1.msra.mxu0 0.0
    %5216 = vmatprep.subr.mxu0 0.0
    %5217 = vmatpush1.msra.mxu0 0.0
    %5218 = vmatprep.subr.mxu0 0.0
    %5219 = vmatpush1.msra.mxu0 0.0
    %5220 = vmatprep.subr.mxu0 0.0
    %5221 = vmatpush1.msra.mxu0 0.0
    %5222 = vmatprep.subr.mxu0 0.0
    %5223 = vmatpush1.msra.mxu0 0.0
    %5224 = vmatprep.mubr.f32.mxu0 0.0
    %5225 = vmatmul.mubr.f32.gmra.mrb[0].mxu0 %v5149
    %v5226 = vpop.f32.mrb[0].mxu0
    %v5227 = vadd.f32 0.0, %v5226
    %v5228 = vpop.f32.mrb[0].mxu0
    %5229 = vmatprep.mubr.f32.mxu0 0.0
    %5230 = vmatmul.mubr.f32.gmra.mrb[0].mxu0 %v5152
    %v5231 = vpop.f32.mrb[0].mxu0
    %v5232 = vadd.f32 0.0, %v5231
    %v5233 = vpop.f32.mrb[0].mxu0
    %5234 = vmatprep.mubr.f32.mxu0 0.0
    %5235 = vmatmul.mubr.f32.gmra.mrb[0].mxu0 %v5155
    %v5236 = vpop.f32.mrb[0].mxu0
    %v5237 = vadd.f32 0.0, %v5236
    %v5238 = vpop.f32.mrb[0].mxu0
    %5239 = vmatprep.mubr.f32.mxu0 0.0
    %5240 = vmatmul.mubr.f32.gmra.mrb[0].mxu0 %v5158
    %v5241 = vpop.f32.mrb[0].mxu0
    %v5242 = vadd.f32 0.0, %v5241
    %v5243 = vpop.f32.mrb[0].mxu0
    %5244 = vdwg.mxu0
    %v5245 = vsel %vm224, %v5227, 0.0
    %5246 = vadd.xlane.f32.xlu0 %v5245
    %v5247 = vpop.xlane.xlu0 %5246
    %v5248 = vsel %vm224, %v5232, 0.0
    %5249 = vadd.xlane.f32.xlu0 %v5248
    %v5250 = vpop.xlane.xlu0 %5249
    %v5251 = vsel %vm224, %v5237, 0.0
    %5252 = vadd.xlane.f32.xlu0 %v5251
    %v5253 = vpop.xlane.xlu0 %5252
    %v5254 = vsel %vm224, %v5242, 0.0
    %5255 = vadd.xlane.f32.xlu0 %v5254
    %v5256 = vpop.xlane.xlu0 %5255
    %v5257 = vmul.f32 %v5247, %v237
    %v5258 = vmul.f32 %v5250, %v237
    %v5259 = vmul.f32 %v5253, %v237
    %v5260 = vmul.f32 %v5256, %v237
    %v5261 = vsub.f32 %v5227, %v5257
    %v5262 = vsub.f32 %v5232, %v5258
    %v5263 = vsub.f32 %v5237, %v5259
    %v5264 = vsub.f32 %v5242, %v5260
    %v5265 = vmul.f32 %v5261, %v5261
    %v5266 = vmul.f32 %v5262, %v5262
    %v5267 = vmul.f32 %v5263, %v5263
    %v5268 = vmul.f32 %v5264, %v5264
    %v5269 = vsel %vm224, %v5265, 0.0
    %5270 = vadd.xlane.f32.xlu0 %v5269
    %v5271 = vpop.xlane.xlu0 %5270
    %v5272 = vsel %vm224, %v5266, 0.0
    %5273 = vadd.xlane.f32.xlu0 %v5272
    %v5274 = vpop.xlane.xlu0 %5273
    %v5275 = vsel %vm224, %v5267, 0.0
    %5276 = vadd.xlane.f32.xlu0 %v5275
    %v5277 = vpop.xlane.xlu0 %5276
    %v5278 = vsel %vm224, %v5268, 0.0
    %5279 = vadd.xlane.f32.xlu0 %v5278
    %v5280 = vpop.xlane.xlu0 %5279
    %v5281 = vmul.f32 %v5271, %v237
    %v5282 = vmul.f32 %v5274, %v237
    %v5283 = vmul.f32 %v5277, %v237
    %v5284 = vmul.f32 %v5280, %v237
    %v5285 = vadd.f32 %v5281, 1e-05
    %v5286 = vadd.f32 %v5282, 1e-05
    %v5287 = vadd.f32 %v5283, 1e-05
    %v5288 = vadd.f32 %v5284, 1e-05
    %v5289 = vrsqrt.pop %v5285
    %v5290 = vrsqrt.pop %v5286
    %v5291 = vrsqrt.pop %v5287
    %v5292 = vrsqrt.pop %v5288
    %v5293 = vmul.f32 %v5261, %v5289
    %v5294 = vmul.f32 %v5262, %v5290
    %v5295 = vmul.f32 %v5263, %v5291
    %v5296 = vmul.f32 %v5264, %v5292
    %s5297 = scalar_lea.vmem [#allocation19], 864
    %v5298 = vld [vmem:[%s5297] sm:$0xff]
    %v5299 = vld [vmem:[%s5297 + $0x8] sm:$0xff]
    %v5300 = vld [vmem:[%s5297 + $0x10] sm:$0xff]
    %v5301 = vld [vmem:[%s5297 + $0x18] sm:$0xff]
    %s5302 = scalar_lea.vmem [#allocation19], 896
    %v5303 = vld [vmem:[%s5302] sm:$0xff]
    %v5304 = vld [vmem:[%s5302 + $0x8] sm:$0xff]
    %v5305 = vld [vmem:[%s5302 + $0x10] sm:$0xff]
    %v5306 = vld [vmem:[%s5302 + $0x18] sm:$0xff]
    %v5308 = vsel %vm331, %v5303, 0
    %v5311 = vsel %vm331, %v5304, 0
    %v5314 = vsel %vm331, %v5305, 0
    %v5317 = vsel %vm331, %v5306, 0
    %5319 = vmatprep.subr.mxu0 0.0
    %5320 = vmatpush1.msra.mxu0 %v2003
    %5321 = vmatprep.subr.mxu0 0.0
    %5322 = vmatpush1.msra.mxu0 %v2004
    %5323 = vmatprep.subr.mxu0 0.0
    %5324 = vmatpush1.msra.mxu0 %v2005
    %5325 = vmatprep.subr.mxu0 0.0
    %5326 = vmatpush1.msra.mxu0 %v2006
    %5327 = vmatprep.subr.mxu0 0.0
    %5328 = vmatpush1.msra.mxu0 0.0
    %5329 = vmatprep.subr.mxu0 0.0
    %5330 = vmatpush1.msra.mxu0 0.0
    %5331 = vmatprep.subr.mxu0 0.0
    %5332 = vmatpush1.msra.mxu0 0.0
    %5333 = vmatprep.subr.mxu0 0.0
    %5334 = vmatpush1.msra.mxu0 0.0
    %5335 = vmatprep.subr.mxu0 0.0
    %5336 = vmatpush1.msra.mxu0 0.0
    %5337 = vmatprep.subr.mxu0 0.0
    %5338 = vmatpush1.msra.mxu0 0.0
    %5339 = vmatprep.subr.mxu0 0.0
    %5340 = vmatpush1.msra.mxu0 0.0
    %5341 = vmatprep.subr.mxu0 0.0
    %5342 = vmatpush1.msra.mxu0 0.0
    %5343 = vmatprep.subr.mxu0 0.0
    %5344 = vmatpush1.msra.mxu0 0.0
    %5345 = vmatprep.subr.mxu0 0.0
    %5346 = vmatpush1.msra.mxu0 0.0
    %5347 = vmatprep.subr.mxu0 0.0
    %5348 = vmatpush1.msra.mxu0 0.0
    %5349 = vmatprep.subr.mxu0 0.0
    %5350 = vmatpush1.msra.mxu0 0.0
    %5351 = vmatprep.subr.mxu0 0.0
    %5352 = vmatpush1.msra.mxu0 0.0
    %5353 = vmatprep.subr.mxu0 0.0
    %5354 = vmatpush1.msra.mxu0 0.0
    %5355 = vmatprep.subr.mxu0 0.0
    %5356 = vmatpush1.msra.mxu0 0.0
    %5357 = vmatprep.subr.mxu0 0.0
    %5358 = vmatpush1.msra.mxu0 0.0
    %5359 = vmatprep.subr.mxu0 0.0
    %5360 = vmatpush1.msra.mxu0 0.0
    %5361 = vmatprep.subr.mxu0 0.0
    %5362 = vmatpush1.msra.mxu0 0.0
    %5363 = vmatprep.subr.mxu0 0.0
    %5364 = vmatpush1.msra.mxu0 0.0
    %5365 = vmatprep.subr.mxu0 0.0
    %5366 = vmatpush1.msra.mxu0 0.0
    %5367 = vmatprep.subr.mxu0 0.0
    %5368 = vmatpush1.msra.mxu0 0.0
    %5369 = vmatprep.subr.mxu0 0.0
    %5370 = vmatpush1.msra.mxu0 0.0
    %5371 = vmatprep.subr.mxu0 0.0
    %5372 = vmatpush1.msra.mxu0 0.0
    %5373 = vmatprep.subr.mxu0 0.0
    %5374 = vmatpush1.msra.mxu0 0.0
    %5375 = vmatprep.subr.mxu0 0.0
    %5376 = vmatpush1.msra.mxu0 0.0
    %5377 = vmatprep.subr.mxu0 0.0
    %5378 = vmatpush1.msra.mxu0 0.0
    %5379 = vmatprep.subr.mxu0 0.0
    %5380 = vmatpush1.msra.mxu0 0.0
    %5381 = vmatprep.subr.mxu0 0.0
    %5382 = vmatpush1.msra.mxu0 0.0
    %5383 = vmatprep.mubr.f32.mxu0 0.0
    %5384 = vmatmul.mubr.f32.gmra.mrb[0].mxu0 %v5308
    %v5385 = vpop.f32.mrb[0].mxu0
    %v5386 = vadd.f32 0.0, %v5385
    %v5387 = vpop.f32.mrb[0].mxu0
    %5388 = vmatprep.mubr.f32.mxu0 0.0
    %5389 = vmatmul.mubr.f32.gmra.mrb[0].mxu0 %v5311
    %v5390 = vpop.f32.mrb[0].mxu0
    %v5391 = vadd.f32 0.0, %v5390
    %v5392 = vpop.f32.mrb[0].mxu0
    %5393 = vmatprep.mubr.f32.mxu0 0.0
    %5394 = vmatmul.mubr.f32.gmra.mrb[0].mxu0 %v5314
    %v5395 = vpop.f32.mrb[0].mxu0
    %v5396 = vadd.f32 0.0, %v5395
    %v5397 = vpop.f32.mrb[0].mxu0
    %5398 = vmatprep.mubr.f32.mxu0 0.0
    %5399 = vmatmul.mubr.f32.gmra.mrb[0].mxu0 %v5317
    %v5400 = vpop.f32.mrb[0].mxu0
    %v5401 = vadd.f32 0.0, %v5400
    %v5402 = vpop.f32.mrb[0].mxu0
    %5403 = vdwg.mxu0
    %v5405 = vsel %vm331, %v5298, 0
    %v5408 = vsel %vm331, %v5299, 0
    %v5411 = vsel %vm331, %v5300, 0
    %v5414 = vsel %vm331, %v5301, 0
    %5416 = vmatprep.subr.mxu0 0.0
    %5417 = vmatpush1.msra.mxu0 %v5293
    %5418 = vmatprep.subr.mxu0 0.0
    %5419 = vmatpush1.msra.mxu0 %v5294
    %5420 = vmatprep.subr.mxu0 0.0
    %5421 = vmatpush1.msra.mxu0 %v5295
    %5422 = vmatprep.subr.mxu0 0.0
    %5423 = vmatpush1.msra.mxu0 %v5296
    %5424 = vmatprep.subr.mxu0 0.0
    %5425 = vmatpush1.msra.mxu0 0.0
    %5426 = vmatprep.subr.mxu0 0.0
    %5427 = vmatpush1.msra.mxu0 0.0
    %5428 = vmatprep.subr.mxu0 0.0
    %5429 = vmatpush1.msra.mxu0 0.0
    %5430 = vmatprep.subr.mxu0 0.0
    %5431 = vmatpush1.msra.mxu0 0.0
    %5432 = vmatprep.subr.mxu0 0.0
    %5433 = vmatpush1.msra.mxu0 0.0
    %5434 = vmatprep.subr.mxu0 0.0
    %5435 = vmatpush1.msra.mxu0 0.0
    %5436 = vmatprep.subr.mxu0 0.0
    %5437 = vmatpush1.msra.mxu0 0.0
    %5438 = vmatprep.subr.mxu0 0.0
    %5439 = vmatpush1.msra.mxu0 0.0
    %5440 = vmatprep.subr.mxu0 0.0
    %5441 = vmatpush1.msra.mxu0 0.0
    %5442 = vmatprep.subr.mxu0 0.0
    %5443 = vmatpush1.msra.mxu0 0.0
    %5444 = vmatprep.subr.mxu0 0.0
    %5445 = vmatpush1.msra.mxu0 0.0
    %5446 = vmatprep.subr.mxu0 0.0
    %5447 = vmatpush1.msra.mxu0 0.0
    %5448 = vmatprep.subr.mxu0 0.0
    %5449 = vmatpush1.msra.mxu0 0.0
    %5450 = vmatprep.subr.mxu0 0.0
    %5451 = vmatpush1.msra.mxu0 0.0
    %5452 = vmatprep.subr.mxu0 0.0
    %5453 = vmatpush1.msra.mxu0 0.0
    %5454 = vmatprep.subr.mxu0 0.0
    %5455 = vmatpush1.msra.mxu0 0.0
    %5456 = vmatprep.subr.mxu0 0.0
    %5457 = vmatpush1.msra.mxu0 0.0
    %5458 = vmatprep.subr.mxu0 0.0
    %5459 = vmatpush1.msra.mxu0 0.0
    %5460 = vmatprep.subr.mxu0 0.0
    %5461 = vmatpush1.msra.mxu0 0.0
    %5462 = vmatprep.subr.mxu0 0.0
    %5463 = vmatpush1.msra.mxu0 0.0
    %5464 = vmatprep.subr.mxu0 0.0
    %5465 = vmatpush1.msra.mxu0 0.0
    %5466 = vmatprep.subr.mxu0 0.0
    %5467 = vmatpush1.msra.mxu0 0.0
    %5468 = vmatprep.subr.mxu0 0.0
    %5469 = vmatpush1.msra.mxu0 0.0
    %5470 = vmatprep.subr.mxu0 0.0
    %5471 = vmatpush1.msra.mxu0 0.0
    %5472 = vmatprep.subr.mxu0 0.0
    %5473 = vmatpush1.msra.mxu0 0.0
    %5474 = vmatprep.subr.mxu0 0.0
    %5475 = vmatpush1.msra.mxu0 0.0
    %5476 = vmatprep.subr.mxu0 0.0
    %5477 = vmatpush1.msra.mxu0 0.0
    %5478 = vmatprep.subr.mxu0 0.0
    %5479 = vmatpush1.msra.mxu0 0.0
    %5480 = vmatprep.mubr.f32.mxu0 0.0
    %5481 = vmatmul.mubr.f32.gmra.mrb[0].mxu0 %v5405
    %v5482 = vpop.f32.mrb[0].mxu0
    %v5483 = vadd.f32 %v5386, %v5482
    %v5484 = vpop.f32.mrb[0].mxu0
    %5485 = vmatprep.mubr.f32.mxu0 0.0
    %5486 = vmatmul.mubr.f32.gmra.mrb[0].mxu0 %v5408
    %v5487 = vpop.f32.mrb[0].mxu0
    %v5488 = vadd.f32 %v5391, %v5487
    %v5489 = vpop.f32.mrb[0].mxu0
    %5490 = vmatprep.mubr.f32.mxu0 0.0
    %5491 = vmatmul.mubr.f32.gmra.mrb[0].mxu0 %v5411
    %v5492 = vpop.f32.mrb[0].mxu0
    %v5493 = vadd.f32 %v5396, %v5492
    %v5494 = vpop.f32.mrb[0].mxu0
    %5495 = vmatprep.mubr.f32.mxu0 0.0
    %5496 = vmatmul.mubr.f32.gmra.mrb[0].mxu0 %v5414
    %v5497 = vpop.f32.mrb[0].mxu0
    %v5498 = vadd.f32 %v5401, %v5497
    %v5499 = vpop.f32.mrb[0].mxu0
    %5500 = vdwg.mxu0
    %s5501 = scalar_lea.vmem [#allocation19], 928
    %v5502 = vld [vmem:[%s5501] sm:$0xff]
    %v5503 = vld [vmem:[%s5501 + $0x8] sm:$0xff]
    %v5504 = vld [vmem:[%s5501 + $0x10] sm:$0xff]
    %v5505 = vld [vmem:[%s5501 + $0x18] sm:$0xff]
    %v5507 = vsel %vm331, %v5502, 0
    %v5510 = vsel %vm331, %v5503, 0
    %v5513 = vsel %vm331, %v5504, 0
    %v5516 = vsel %vm331, %v5505, 0
    %5518 = vmatprep.subr.mxu0 0.0
    %5519 = vmatpush1.msra.mxu0 %v5293
    %5520 = vmatprep.subr.mxu0 0.0
    %5521 = vmatpush1.msra.mxu0 %v5294
    %5522 = vmatprep.subr.mxu0 0.0
    %5523 = vmatpush1.msra.mxu0 %v5295
    %5524 = vmatprep.subr.mxu0 0.0
    %5525 = vmatpush1.msra.mxu0 %v5296
    %5526 = vmatprep.subr.mxu0 0.0
    %5527 = vmatpush1.msra.mxu0 0.0
    %5528 = vmatprep.subr.mxu0 0.0
    %5529 = vmatpush1.msra.mxu0 0.0
    %5530 = vmatprep.subr.mxu0 0.0
    %5531 = vmatpush1.msra.mxu0 0.0
    %5532 = vmatprep.subr.mxu0 0.0
    %5533 = vmatpush1.msra.mxu0 0.0
    %5534 = vmatprep.subr.mxu0 0.0
    %5535 = vmatpush1.msra.mxu0 0.0
    %5536 = vmatprep.subr.mxu0 0.0
    %5537 = vmatpush1.msra.mxu0 0.0
    %5538 = vmatprep.subr.mxu0 0.0
    %5539 = vmatpush1.msra.mxu0 0.0
    %5540 = vmatprep.subr.mxu0 0.0
    %5541 = vmatpush1.msra.mxu0 0.0
    %5542 = vmatprep.subr.mxu0 0.0
    %5543 = vmatpush1.msra.mxu0 0.0
    %5544 = vmatprep.subr.mxu0 0.0
    %5545 = vmatpush1.msra.mxu0 0.0
    %5546 = vmatprep.subr.mxu0 0.0
    %5547 = vmatpush1.msra.mxu0 0.0
    %5548 = vmatprep.subr.mxu0 0.0
    %5549 = vmatpush1.msra.mxu0 0.0
    %5550 = vmatprep.subr.mxu0 0.0
    %5551 = vmatpush1.msra.mxu0 0.0
    %5552 = vmatprep.subr.mxu0 0.0
    %5553 = vmatpush1.msra.mxu0 0.0
    %5554 = vmatprep.subr.mxu0 0.0
    %5555 = vmatpush1.msra.mxu0 0.0
    %5556 = vmatprep.subr.mxu0 0.0
    %5557 = vmatpush1.msra.mxu0 0.0
    %5558 = vmatprep.subr.mxu0 0.0
    %5559 = vmatpush1.msra.mxu0 0.0
    %5560 = vmatprep.subr.mxu0 0.0
    %5561 = vmatpush1.msra.mxu0 0.0
    %5562 = vmatprep.subr.mxu0 0.0
    %5563 = vmatpush1.msra.mxu0 0.0
    %5564 = vmatprep.subr.mxu0 0.0
    %5565 = vmatpush1.msra.mxu0 0.0
    %5566 = vmatprep.subr.mxu0 0.0
    %5567 = vmatpush1.msra.mxu0 0.0
    %5568 = vmatprep.subr.mxu0 0.0
    %5569 = vmatpush1.msra.mxu0 0.0
    %5570 = vmatprep.subr.mxu0 0.0
    %5571 = vmatpush1.msra.mxu0 0.0
    %5572 = vmatprep.subr.mxu0 0.0
    %5573 = vmatpush1.msra.mxu0 0.0
    %5574 = vmatprep.subr.mxu0 0.0
    %5575 = vmatpush1.msra.mxu0 0.0
    %5576 = vmatprep.subr.mxu0 0.0
    %5577 = vmatpush1.msra.mxu0 0.0
    %5578 = vmatprep.subr.mxu0 0.0
    %5579 = vmatpush1.msra.mxu0 0.0
    %5580 = vmatprep.subr.mxu0 0.0
    %5581 = vmatpush1.msra.mxu0 0.0
    %5582 = vmatprep.mubr.f32.mxu0 0.0
    %5583 = vmatmul.mubr.f32.gmra.mrb[0].mxu0 %v5507
    %v5584 = vpop.f32.mrb[0].mxu0
    %v5585 = vadd.f32 0.0, %v5584
    %v5586 = vpop.f32.mrb[0].mxu0
    %5587 = vmatprep.mubr.f32.mxu0 0.0
    %5588 = vmatmul.mubr.f32.gmra.mrb[0].mxu0 %v5510
    %v5589 = vpop.f32.mrb[0].mxu0
    %v5590 = vadd.f32 0.0, %v5589
    %v5591 = vpop.f32.mrb[0].mxu0
    %5592 = vmatprep.mubr.f32.mxu0 0.0
    %5593 = vmatmul.mubr.f32.gmra.mrb[0].mxu0 %v5513
    %v5594 = vpop.f32.mrb[0].mxu0
    %v5595 = vadd.f32 0.0, %v5594
    %v5596 = vpop.f32.mrb[0].mxu0
    %5597 = vmatprep.mubr.f32.mxu0 0.0
    %5598 = vmatmul.mubr.f32.gmra.mrb[0].mxu0 %v5516
    %v5599 = vpop.f32.mrb[0].mxu0
    %v5600 = vadd.f32 0.0, %v5599
    %v5601 = vpop.f32.mrb[0].mxu0
    %5602 = vdwg.mxu0
    %v5604 = vsel %vm224, %v5483, 0
    %v5607 = vsel %vm224, %v5488, 0
    %v5610 = vsel %vm224, %v5493, 0
    %v5613 = vsel %vm224, %v5498, 0
    %5615 = vmatprep.subr.mxu0 0.0
    %5616 = vmatpush1.msra.mxu0 %v1421
    %5617 = vmatprep.subr.mxu0 0.0
    %5618 = vmatpush1.msra.mxu0 %v1422
    %5619 = vmatprep.subr.mxu0 0.0
    %5620 = vmatpush1.msra.mxu0 %v1423
    %5621 = vmatprep.subr.mxu0 0.0
    %5622 = vmatpush1.msra.mxu0 %v1424
    %5623 = vmatprep.subr.mxu0 0.0
    %5624 = vmatpush1.msra.mxu0 %v1425
    %5625 = vmatprep.subr.mxu0 0.0
    %5626 = vmatpush1.msra.mxu0 %v1426
    %5627 = vmatprep.subr.mxu0 0.0
    %5628 = vmatpush1.msra.mxu0 %v1427
    %5629 = vmatprep.subr.mxu0 0.0
    %5630 = vmatpush1.msra.mxu0 %v1428
    %5631 = vmatprep.subr.mxu0 0.0
    %5632 = vmatpush1.msra.mxu0 0.0
    %5633 = vmatprep.subr.mxu0 0.0
    %5634 = vmatpush1.msra.mxu0 0.0
    %5635 = vmatprep.subr.mxu0 0.0
    %5636 = vmatpush1.msra.mxu0 0.0
    %5637 = vmatprep.subr.mxu0 0.0
    %5638 = vmatpush1.msra.mxu0 0.0
    %5639 = vmatprep.subr.mxu0 0.0
    %5640 = vmatpush1.msra.mxu0 0.0
    %5641 = vmatprep.subr.mxu0 0.0
    %5642 = vmatpush1.msra.mxu0 0.0
    %5643 = vmatprep.subr.mxu0 0.0
    %5644 = vmatpush1.msra.mxu0 0.0
    %5645 = vmatprep.subr.mxu0 0.0
    %5646 = vmatpush1.msra.mxu0 0.0
    %5647 = vmatprep.subr.mxu0 0.0
    %5648 = vmatpush1.msra.mxu0 0.0
    %5649 = vmatprep.subr.mxu0 0.0
    %5650 = vmatpush1.msra.mxu0 0.0
    %5651 = vmatprep.subr.mxu0 0.0
    %5652 = vmatpush1.msra.mxu0 0.0
    %5653 = vmatprep.subr.mxu0 0.0
    %5654 = vmatpush1.msra.mxu0 0.0
    %5655 = vmatprep.subr.mxu0 0.0
    %5656 = vmatpush1.msra.mxu0 0.0
    %5657 = vmatprep.subr.mxu0 0.0
    %5658 = vmatpush1.msra.mxu0 0.0
    %5659 = vmatprep.subr.mxu0 0.0
    %5660 = vmatpush1.msra.mxu0 0.0
    %5661 = vmatprep.subr.mxu0 0.0
    %5662 = vmatpush1.msra.mxu0 0.0
    %5663 = vmatprep.subr.mxu0 0.0
    %5664 = vmatpush1.msra.mxu0 0.0
    %5665 = vmatprep.subr.mxu0 0.0
    %5666 = vmatpush1.msra.mxu0 0.0
    %5667 = vmatprep.subr.mxu0 0.0
    %5668 = vmatpush1.msra.mxu0 0.0
    %5669 = vmatprep.subr.mxu0 0.0
    %5670 = vmatpush1.msra.mxu0 0.0
    %5671 = vmatprep.subr.mxu0 0.0
    %5672 = vmatpush1.msra.mxu0 0.0
    %5673 = vmatprep.subr.mxu0 0.0
    %5674 = vmatpush1.msra.mxu0 0.0
    %5675 = vmatprep.subr.mxu0 0.0
    %5676 = vmatpush1.msra.mxu0 0.0
    %5677 = vmatprep.subr.mxu0 0.0
    %5678 = vmatpush1.msra.mxu0 0.0
    %5679 = vmatprep.mubr.f32.mxu0 0.0
    %5680 = vmatmul.mubr.f32.gmra.mrb[0].mxu0 %v5604
    %v5681 = vpop.f32.mrb[0].mxu0
    %v5682 = vadd.f32 %v5585, %v5681
    %v5683 = vpop.f32.mrb[0].mxu0
    %5684 = vmatprep.mubr.f32.mxu0 0.0
    %5685 = vmatmul.mubr.f32.gmra.mrb[0].mxu0 %v5607
    %v5686 = vpop.f32.mrb[0].mxu0
    %v5687 = vadd.f32 %v5590, %v5686
    %v5688 = vpop.f32.mrb[0].mxu0
    %5689 = vmatprep.mubr.f32.mxu0 0.0
    %5690 = vmatmul.mubr.f32.gmra.mrb[0].mxu0 %v5610
    %v5691 = vpop.f32.mrb[0].mxu0
    %v5692 = vadd.f32 %v5595, %v5691
    %v5693 = vpop.f32.mrb[0].mxu0
    %5694 = vmatprep.mubr.f32.mxu0 0.0
    %5695 = vmatmul.mubr.f32.gmra.mrb[0].mxu0 %v5613
    %v5696 = vpop.f32.mrb[0].mxu0
    %v5697 = vadd.f32 %v5600, %v5696
    %v5698 = vpop.f32.mrb[0].mxu0
    %5699 = vdwg.mxu0
    %s5700 = scalar_lea.vmem [#allocation19], 960
    %v5701 = vld [vmem:[%s5700] sm:$0xff]
    %v5702 = vld [vmem:[%s5700 + $0x8] sm:$0xff]
    %v5703 = vld [vmem:[%s5700 + $0x10] sm:$0xff]
    %v5704 = vld [vmem:[%s5700 + $0x18] sm:$0xff]
    %v5706 = vsel %vm331, %v5701, 0
    %v5709 = vsel %vm331, %v5702, 0
    %v5712 = vsel %vm331, %v5703, 0
    %v5715 = vsel %vm331, %v5704, 0
    %5717 = vmatprep.subr.mxu0 0.0
    %5718 = vmatpush1.msra.mxu0 %v2003
    %5719 = vmatprep.subr.mxu0 0.0
    %5720 = vmatpush1.msra.mxu0 %v2004
    %5721 = vmatprep.subr.mxu0 0.0
    %5722 = vmatpush1.msra.mxu0 %v2005
    %5723 = vmatprep.subr.mxu0 0.0
    %5724 = vmatpush1.msra.mxu0 %v2006
    %5725 = vmatprep.subr.mxu0 0.0
    %5726 = vmatpush1.msra.mxu0 0.0
    %5727 = vmatprep.subr.mxu0 0.0
    %5728 = vmatpush1.msra.mxu0 0.0
    %5729 = vmatprep.subr.mxu0 0.0
    %5730 = vmatpush1.msra.mxu0 0.0
    %5731 = vmatprep.subr.mxu0 0.0
    %5732 = vmatpush1.msra.mxu0 0.0
    %5733 = vmatprep.subr.mxu0 0.0
    %5734 = vmatpush1.msra.mxu0 0.0
    %5735 = vmatprep.subr.mxu0 0.0
    %5736 = vmatpush1.msra.mxu0 0.0
    %5737 = vmatprep.subr.mxu0 0.0
    %5738 = vmatpush1.msra.mxu0 0.0
    %5739 = vmatprep.subr.mxu0 0.0
    %5740 = vmatpush1.msra.mxu0 0.0
    %5741 = vmatprep.subr.mxu0 0.0
    %5742 = vmatpush1.msra.mxu0 0.0
    %5743 = vmatprep.subr.mxu0 0.0
    %5744 = vmatpush1.msra.mxu0 0.0
    %5745 = vmatprep.subr.mxu0 0.0
    %5746 = vmatpush1.msra.mxu0 0.0
    %5747 = vmatprep.subr.mxu0 0.0
    %5748 = vmatpush1.msra.mxu0 0.0
    %5749 = vmatprep.subr.mxu0 0.0
    %5750 = vmatpush1.msra.mxu0 0.0
    %5751 = vmatprep.subr.mxu0 0.0
    %5752 = vmatpush1.msra.mxu0 0.0
    %5753 = vmatprep.subr.mxu0 0.0
    %5754 = vmatpush1.msra.mxu0 0.0
    %5755 = vmatprep.subr.mxu0 0.0
    %5756 = vmatpush1.msra.mxu0 0.0
    %5757 = vmatprep.subr.mxu0 0.0
    %5758 = vmatpush1.msra.mxu0 0.0
    %5759 = vmatprep.subr.mxu0 0.0
    %5760 = vmatpush1.msra.mxu0 0.0
    %5761 = vmatprep.subr.mxu0 0.0
    %5762 = vmatpush1.msra.mxu0 0.0
    %5763 = vmatprep.subr.mxu0 0.0
    %5764 = vmatpush1.msra.mxu0 0.0
    %5765 = vmatprep.subr.mxu0 0.0
    %5766 = vmatpush1.msra.mxu0 0.0
    %5767 = vmatprep.subr.mxu0 0.0
    %5768 = vmatpush1.msra.mxu0 0.0
    %5769 = vmatprep.subr.mxu0 0.0
    %5770 = vmatpush1.msra.mxu0 0.0
    %5771 = vmatprep.subr.mxu0 0.0
    %5772 = vmatpush1.msra.mxu0 0.0
    %5773 = vmatprep.subr.mxu0 0.0
    %5774 = vmatpush1.msra.mxu0 0.0
    %5775 = vmatprep.subr.mxu0 0.0
    %5776 = vmatpush1.msra.mxu0 0.0
    %5777 = vmatprep.subr.mxu0 0.0
    %5778 = vmatpush1.msra.mxu0 0.0
    %5779 = vmatprep.subr.mxu0 0.0
    %5780 = vmatpush1.msra.mxu0 0.0
    %5781 = vmatprep.mubr.f32.mxu0 0.0
    %5782 = vmatmul.mubr.f32.gmra.mrb[0].mxu0 %v5706
    %v5783 = vpop.f32.mrb[0].mxu0
    %v5784 = vadd.f32 0.0, %v5783
    %v5785 = vpop.f32.mrb[0].mxu0
    %5786 = vmatprep.mubr.f32.mxu0 0.0
    %5787 = vmatmul.mubr.f32.gmra.mrb[0].mxu0 %v5709
    %v5788 = vpop.f32.mrb[0].mxu0
    %v5789 = vadd.f32 0.0, %v5788
    %v5790 = vpop.f32.mrb[0].mxu0
    %5791 = vmatprep.mubr.f32.mxu0 0.0
    %5792 = vmatmul.mubr.f32.gmra.mrb[0].mxu0 %v5712
    %v5793 = vpop.f32.mrb[0].mxu0
    %v5794 = vadd.f32 0.0, %v5793
    %v5795 = vpop.f32.mrb[0].mxu0
    %5796 = vmatprep.mubr.f32.mxu0 0.0
    %5797 = vmatmul.mubr.f32.gmra.mrb[0].mxu0 %v5715
    %v5798 = vpop.f32.mrb[0].mxu0
    %v5799 = vadd.f32 0.0, %v5798
    %v5800 = vpop.f32.mrb[0].mxu0
    %5801 = vdwg.mxu0
    %v5802 = vadd.f32 %v5682, %v5784
    %v5803 = vadd.f32 %v5687, %v5789
    %v5804 = vadd.f32 %v5692, %v5794
    %v5805 = vadd.f32 %v5697, %v5799
    %s5806 = scalar_lea.vmem [#allocation20], 416
    %v5807 = vld [vmem:[%s5806] sm:$0xff]
    %v5808 = vld [vmem:[%s5806 + $0x8] sm:$0xff]
    %v5809 = vld [vmem:[%s5806 + $0x10] sm:$0xff]
    %v5810 = vld [vmem:[%s5806 + $0x18] sm:$0xff]
    %v5811 = vadd.f32 %v5802, %v5807
    %v5812 = vadd.f32 %v5803, %v5808
    %v5813 = vadd.f32 %v5804, %v5809
    %v5814 = vadd.f32 %v5805, %v5810
    %v5815 = vmax.f32 %v5811, 0.0
    %v5816 = vmax.f32 %v5812, 0.0
    %v5817 = vmax.f32 %v5813, 0.0
    %v5818 = vmax.f32 %v5814, 0.0
    %s5819 = scalar_lea.vmem [#allocation19], 992
    %v5820 = vld [vmem:[%s5819] sm:$0xff]
    %v5821 = vld [vmem:[%s5819 + $0x8] sm:$0xff]
    %v5822 = vld [vmem:[%s5819 + $0x10] sm:$0xff]
    %v5823 = vld [vmem:[%s5819 + $0x18] sm:$0xff]
    %v5825 = vsel %vm331, %v5820, 0
    %v5828 = vsel %vm331, %v5821, 0
    %v5831 = vsel %vm331, %v5822, 0
    %v5834 = vsel %vm331, %v5823, 0
    %5836 = vmatprep.subr.mxu0 0.0
    %5837 = vmatpush1.msra.mxu0 %v5815
    %5838 = vmatprep.subr.mxu0 0.0
    %5839 = vmatpush1.msra.mxu0 %v5816
    %5840 = vmatprep.subr.mxu0 0.0
    %5841 = vmatpush1.msra.mxu0 %v5817
    %5842 = vmatprep.subr.mxu0 0.0
    %5843 = vmatpush1.msra.mxu0 %v5818
    %5844 = vmatprep.subr.mxu0 0.0
    %5845 = vmatpush1.msra.mxu0 0.0
    %5846 = vmatprep.subr.mxu0 0.0
    %5847 = vmatpush1.msra.mxu0 0.0
    %5848 = vmatprep.subr.mxu0 0.0
    %5849 = vmatpush1.msra.mxu0 0.0
    %5850 = vmatprep.subr.mxu0 0.0
    %5851 = vmatpush1.msra.mxu0 0.0
    %5852 = vmatprep.subr.mxu0 0.0
    %5853 = vmatpush1.msra.mxu0 0.0
    %5854 = vmatprep.subr.mxu0 0.0
    %5855 = vmatpush1.msra.mxu0 0.0
    %5856 = vmatprep.subr.mxu0 0.0
    %5857 = vmatpush1.msra.mxu0 0.0
    %5858 = vmatprep.subr.mxu0 0.0
    %5859 = vmatpush1.msra.mxu0 0.0
    %5860 = vmatprep.subr.mxu0 0.0
    %5861 = vmatpush1.msra.mxu0 0.0
    %5862 = vmatprep.subr.mxu0 0.0
    %5863 = vmatpush1.msra.mxu0 0.0
    %5864 = vmatprep.subr.mxu0 0.0
    %5865 = vmatpush1.msra.mxu0 0.0
    %5866 = vmatprep.subr.mxu0 0.0
    %5867 = vmatpush1.msra.mxu0 0.0
    %5868 = vmatprep.subr.mxu0 0.0
    %5869 = vmatpush1.msra.mxu0 0.0
    %5870 = vmatprep.subr.mxu0 0.0
    %5871 = vmatpush1.msra.mxu0 0.0
    %5872 = vmatprep.subr.mxu0 0.0
    %5873 = vmatpush1.msra.mxu0 0.0
    %5874 = vmatprep.subr.mxu0 0.0
    %5875 = vmatpush1.msra.mxu0 0.0
    %5876 = vmatprep.subr.mxu0 0.0
    %5877 = vmatpush1.msra.mxu0 0.0
    %5878 = vmatprep.subr.mxu0 0.0
    %5879 = vmatpush1.msra.mxu0 0.0
    %5880 = vmatprep.subr.mxu0 0.0
    %5881 = vmatpush1.msra.mxu0 0.0
    %5882 = vmatprep.subr.mxu0 0.0
    %5883 = vmatpush1.msra.mxu0 0.0
    %5884 = vmatprep.subr.mxu0 0.0
    %5885 = vmatpush1.msra.mxu0 0.0
    %5886 = vmatprep.subr.mxu0 0.0
    %5887 = vmatpush1.msra.mxu0 0.0
    %5888 = vmatprep.subr.mxu0 0.0
    %5889 = vmatpush1.msra.mxu0 0.0
    %5890 = vmatprep.subr.mxu0 0.0
    %5891 = vmatpush1.msra.mxu0 0.0
    %5892 = vmatprep.subr.mxu0 0.0
    %5893 = vmatpush1.msra.mxu0 0.0
    %5894 = vmatprep.subr.mxu0 0.0
    %5895 = vmatpush1.msra.mxu0 0.0
    %5896 = vmatprep.subr.mxu0 0.0
    %5897 = vmatpush1.msra.mxu0 0.0
    %5898 = vmatprep.subr.mxu0 0.0
    %5899 = vmatpush1.msra.mxu0 0.0
    %5900 = vmatprep.mubr.f32.mxu0 0.0
    %5901 = vmatmul.mubr.f32.gmra.mrb[0].mxu0 %v5825
    %v5902 = vpop.f32.mrb[0].mxu0
    %v5903 = vadd.f32 0.0, %v5902
    %v5904 = vpop.f32.mrb[0].mxu0
    %5905 = vmatprep.mubr.f32.mxu0 0.0
    %5906 = vmatmul.mubr.f32.gmra.mrb[0].mxu0 %v5828
    %v5907 = vpop.f32.mrb[0].mxu0
    %v5908 = vadd.f32 0.0, %v5907
    %v5909 = vpop.f32.mrb[0].mxu0
    %5910 = vmatprep.mubr.f32.mxu0 0.0
    %5911 = vmatmul.mubr.f32.gmra.mrb[0].mxu0 %v5831
    %v5912 = vpop.f32.mrb[0].mxu0
    %v5913 = vadd.f32 0.0, %v5912
    %v5914 = vpop.f32.mrb[0].mxu0
    %5915 = vmatprep.mubr.f32.mxu0 0.0
    %5916 = vmatmul.mubr.f32.gmra.mrb[0].mxu0 %v5834
    %v5917 = vpop.f32.mrb[0].mxu0
    %v5918 = vadd.f32 0.0, %v5917
    %v5919 = vpop.f32.mrb[0].mxu0
    %5920 = vdwg.mxu0
    %s5921 = scalar_lea.vmem [#allocation19], 1024
    %v5922 = vld [vmem:[%s5921] sm:$0xff]
    %v5923 = vld [vmem:[%s5921 + $0x8] sm:$0xff]
    %v5924 = vld [vmem:[%s5921 + $0x10] sm:$0xff]
    %v5925 = vld [vmem:[%s5921 + $0x18] sm:$0xff]
    %v5927 = vsel %vm331, %v5922, 0
    %v5930 = vsel %vm331, %v5923, 0
    %v5933 = vsel %vm331, %v5924, 0
    %v5936 = vsel %vm331, %v5925, 0
    %5938 = vmatprep.subr.mxu0 0.0
    %5939 = vmatpush1.msra.mxu0 %v5815
    %5940 = vmatprep.subr.mxu0 0.0
    %5941 = vmatpush1.msra.mxu0 %v5816
    %5942 = vmatprep.subr.mxu0 0.0
    %5943 = vmatpush1.msra.mxu0 %v5817
    %5944 = vmatprep.subr.mxu0 0.0
    %5945 = vmatpush1.msra.mxu0 %v5818
    %5946 = vmatprep.subr.mxu0 0.0
    %5947 = vmatpush1.msra.mxu0 0.0
    %5948 = vmatprep.subr.mxu0 0.0
    %5949 = vmatpush1.msra.mxu0 0.0
    %5950 = vmatprep.subr.mxu0 0.0
    %5951 = vmatpush1.msra.mxu0 0.0
    %5952 = vmatprep.subr.mxu0 0.0
    %5953 = vmatpush1.msra.mxu0 0.0
    %5954 = vmatprep.subr.mxu0 0.0
    %5955 = vmatpush1.msra.mxu0 0.0
    %5956 = vmatprep.subr.mxu0 0.0
    %5957 = vmatpush1.msra.mxu0 0.0
    %5958 = vmatprep.subr.mxu0 0.0
    %5959 = vmatpush1.msra.mxu0 0.0
    %5960 = vmatprep.subr.mxu0 0.0
    %5961 = vmatpush1.msra.mxu0 0.0
    %5962 = vmatprep.subr.mxu0 0.0
    %5963 = vmatpush1.msra.mxu0 0.0
    %5964 = vmatprep.subr.mxu0 0.0
    %5965 = vmatpush1.msra.mxu0 0.0
    %5966 = vmatprep.subr.mxu0 0.0
    %5967 = vmatpush1.msra.mxu0 0.0
    %5968 = vmatprep.subr.mxu0 0.0
    %5969 = vmatpush1.msra.mxu0 0.0
    %5970 = vmatprep.subr.mxu0 0.0
    %5971 = vmatpush1.msra.mxu0 0.0
    %5972 = vmatprep.subr.mxu0 0.0
    %5973 = vmatpush1.msra.mxu0 0.0
    %5974 = vmatprep.subr.mxu0 0.0
    %5975 = vmatpush1.msra.mxu0 0.0
    %5976 = vmatprep.subr.mxu0 0.0
    %5977 = vmatpush1.msra.mxu0 0.0
    %5978 = vmatprep.subr.mxu0 0.0
    %5979 = vmatpush1.msra.mxu0 0.0
    %5980 = vmatprep.subr.mxu0 0.0
    %5981 = vmatpush1.msra.mxu0 0.0
    %5982 = vmatprep.subr.mxu0 0.0
    %5983 = vmatpush1.msra.mxu0 0.0
    %5984 = vmatprep.subr.mxu0 0.0
    %5985 = vmatpush1.msra.mxu0 0.0
    %5986 = vmatprep.subr.mxu0 0.0
    %5987 = vmatpush1.msra.mxu0 0.0
    %5988 = vmatprep.subr.mxu0 0.0
    %5989 = vmatpush1.msra.mxu0 0.0
    %5990 = vmatprep.subr.mxu0 0.0
    %5991 = vmatpush1.msra.mxu0 0.0
    %5992 = vmatprep.subr.mxu0 0.0
    %5993 = vmatpush1.msra.mxu0 0.0
    %5994 = vmatprep.subr.mxu0 0.0
    %5995 = vmatpush1.msra.mxu0 0.0
    %5996 = vmatprep.subr.mxu0 0.0
    %5997 = vmatpush1.msra.mxu0 0.0
    %5998 = vmatprep.subr.mxu0 0.0
    %5999 = vmatpush1.msra.mxu0 0.0
    %6000 = vmatprep.subr.mxu0 0.0
    %6001 = vmatpush1.msra.mxu0 0.0
    %6002 = vmatprep.mubr.f32.mxu0 0.0
    %6003 = vmatmul.mubr.f32.gmra.mrb[0].mxu0 %v5927
    %v6004 = vpop.f32.mrb[0].mxu0
    %v6005 = vadd.f32 0.0, %v6004
    %v6006 = vpop.f32.mrb[0].mxu0
    %6007 = vmatprep.mubr.f32.mxu0 0.0
    %6008 = vmatmul.mubr.f32.gmra.mrb[0].mxu0 %v5930
    %v6009 = vpop.f32.mrb[0].mxu0
    %v6010 = vadd.f32 0.0, %v6009
    %v6011 = vpop.f32.mrb[0].mxu0
    %6012 = vmatprep.mubr.f32.mxu0 0.0
    %6013 = vmatmul.mubr.f32.gmra.mrb[0].mxu0 %v5933
    %v6014 = vpop.f32.mrb[0].mxu0
    %v6015 = vadd.f32 0.0, %v6014
    %v6016 = vpop.f32.mrb[0].mxu0
    %6017 = vmatprep.mubr.f32.mxu0 0.0
    %6018 = vmatmul.mubr.f32.gmra.mrb[0].mxu0 %v5936
    %v6019 = vpop.f32.mrb[0].mxu0
    %v6020 = vadd.f32 0.0, %v6019
    %v6021 = vpop.f32.mrb[0].mxu0
    %6022 = vdwg.mxu0
    %v6024 = vsel %vm224, %v5903, 0
    %v6027 = vsel %vm224, %v5908, 0
    %v6030 = vsel %vm224, %v5913, 0
    %v6033 = vsel %vm224, %v5918, 0
    %6035 = vmatprep.subr.mxu0 0.0
    %6036 = vmatpush1.msra.mxu0 %v1421
    %6037 = vmatprep.subr.mxu0 0.0
    %6038 = vmatpush1.msra.mxu0 %v1422
    %6039 = vmatprep.subr.mxu0 0.0
    %6040 = vmatpush1.msra.mxu0 %v1423
    %6041 = vmatprep.subr.mxu0 0.0
    %6042 = vmatpush1.msra.mxu0 %v1424
    %6043 = vmatprep.subr.mxu0 0.0
    %6044 = vmatpush1.msra.mxu0 %v1425
    %6045 = vmatprep.subr.mxu0 0.0
    %6046 = vmatpush1.msra.mxu0 %v1426
    %6047 = vmatprep.subr.mxu0 0.0
    %6048 = vmatpush1.msra.mxu0 %v1427
    %6049 = vmatprep.subr.mxu0 0.0
    %6050 = vmatpush1.msra.mxu0 %v1428
    %6051 = vmatprep.subr.mxu0 0.0
    %6052 = vmatpush1.msra.mxu0 0.0
    %6053 = vmatprep.subr.mxu0 0.0
    %6054 = vmatpush1.msra.mxu0 0.0
    %6055 = vmatprep.subr.mxu0 0.0
    %6056 = vmatpush1.msra.mxu0 0.0
    %6057 = vmatprep.subr.mxu0 0.0
    %6058 = vmatpush1.msra.mxu0 0.0
    %6059 = vmatprep.subr.mxu0 0.0
    %6060 = vmatpush1.msra.mxu0 0.0
    %6061 = vmatprep.subr.mxu0 0.0
    %6062 = vmatpush1.msra.mxu0 0.0
    %6063 = vmatprep.subr.mxu0 0.0
    %6064 = vmatpush1.msra.mxu0 0.0
    %6065 = vmatprep.subr.mxu0 0.0
    %6066 = vmatpush1.msra.mxu0 0.0
    %6067 = vmatprep.subr.mxu0 0.0
    %6068 = vmatpush1.msra.mxu0 0.0
    %6069 = vmatprep.subr.mxu0 0.0
    %6070 = vmatpush1.msra.mxu0 0.0
    %6071 = vmatprep.subr.mxu0 0.0
    %6072 = vmatpush1.msra.mxu0 0.0
    %6073 = vmatprep.subr.mxu0 0.0
    %6074 = vmatpush1.msra.mxu0 0.0
    %6075 = vmatprep.subr.mxu0 0.0
    %6076 = vmatpush1.msra.mxu0 0.0
    %6077 = vmatprep.subr.mxu0 0.0
    %6078 = vmatpush1.msra.mxu0 0.0
    %6079 = vmatprep.subr.mxu0 0.0
    %6080 = vmatpush1.msra.mxu0 0.0
    %6081 = vmatprep.subr.mxu0 0.0
    %6082 = vmatpush1.msra.mxu0 0.0
    %6083 = vmatprep.subr.mxu0 0.0
    %6084 = vmatpush1.msra.mxu0 0.0
    %6085 = vmatprep.subr.mxu0 0.0
    %6086 = vmatpush1.msra.mxu0 0.0
    %6087 = vmatprep.subr.mxu0 0.0
    %6088 = vmatpush1.msra.mxu0 0.0
    %6089 = vmatprep.subr.mxu0 0.0
    %6090 = vmatpush1.msra.mxu0 0.0
    %6091 = vmatprep.subr.mxu0 0.0
    %6092 = vmatpush1.msra.mxu0 0.0
    %6093 = vmatprep.subr.mxu0 0.0
    %6094 = vmatpush1.msra.mxu0 0.0
    %6095 = vmatprep.subr.mxu0 0.0
    %6096 = vmatpush1.msra.mxu0 0.0
    %6097 = vmatprep.subr.mxu0 0.0
    %6098 = vmatpush1.msra.mxu0 0.0
    %6099 = vmatprep.mubr.f32.mxu0 0.0
    %6100 = vmatmul.mubr.f32.gmra.mrb[0].mxu0 %v6024
    %v6101 = vpop.f32.mrb[0].mxu0
    %v6102 = vadd.f32 %v6005, %v6101
    %v6103 = vpop.f32.mrb[0].mxu0
    %6104 = vmatprep.mubr.f32.mxu0 0.0
    %6105 = vmatmul.mubr.f32.gmra.mrb[0].mxu0 %v6027
    %v6106 = vpop.f32.mrb[0].mxu0
    %v6107 = vadd.f32 %v6010, %v6106
    %v6108 = vpop.f32.mrb[0].mxu0
    %6109 = vmatprep.mubr.f32.mxu0 0.0
    %6110 = vmatmul.mubr.f32.gmra.mrb[0].mxu0 %v6030
    %v6111 = vpop.f32.mrb[0].mxu0
    %v6112 = vadd.f32 %v6015, %v6111
    %v6113 = vpop.f32.mrb[0].mxu0
    %6114 = vmatprep.mubr.f32.mxu0 0.0
    %6115 = vmatmul.mubr.f32.gmra.mrb[0].mxu0 %v6033
    %v6116 = vpop.f32.mrb[0].mxu0
    %v6117 = vadd.f32 %v6020, %v6116
    %v6118 = vpop.f32.mrb[0].mxu0
    %6119 = vdwg.mxu0
    %s6120 = scalar_lea.vmem [#allocation20], 448
    %v6121 = vld [vmem:[%s6120] sm:$0xff]
    %v6122 = vld [vmem:[%s6120 + $0x8] sm:$0xff]
    %v6123 = vld [vmem:[%s6120 + $0x10] sm:$0xff]
    %v6124 = vld [vmem:[%s6120 + $0x18] sm:$0xff]
    %v6125 = vadd.f32 %v6102, %v6121
    %v6126 = vadd.f32 %v6107, %v6122
    %v6127 = vadd.f32 %v6112, %v6123
    %v6128 = vadd.f32 %v6117, %v6124
    %v6129 = vmax.f32 %v6125, 0.0
    %v6130 = vmax.f32 %v6126, 0.0
    %v6131 = vmax.f32 %v6127, 0.0
    %v6132 = vmax.f32 %v6128, 0.0
    %v6133 = vld [vmem:[%s10] sm:$0xff]
    %v6134 = vld [vmem:[%s10 + $0x8] sm:$0xff]
    %v6135 = vld [vmem:[%s10 + $0x10] sm:$0xff]
    %v6136 = vld [vmem:[%s10 + $0x18] sm:$0xff]
    %v6137 = vld [vmem:[%s10 + $0x20] sm:$0xff]
    %v6138 = vld [vmem:[%s10 + $0x28] sm:$0xff]
    %v6139 = vld [vmem:[%s10 + $0x30] sm:$0xff]
    %v6140 = vld [vmem:[%s10 + $0x38] sm:$0xff]
    %v6142 = vsel %vm224, %v6129, 0
    %v6145 = vsel %vm224, %v6130, 0
    %v6148 = vsel %vm224, %v6131, 0
    %v6151 = vsel %vm224, %v6132, 0
    %6153 = vmatprep.subr.mxu0 0.0
    %6154 = vmatpush1.msra.mxu0 %v6133
    %6155 = vmatprep.subr.mxu0 0.0
    %6156 = vmatpush1.msra.mxu0 %v6134
    %6157 = vmatprep.subr.mxu0 0.0
    %6158 = vmatpush1.msra.mxu0 %v6135
    %6159 = vmatprep.subr.mxu0 0.0
    %6160 = vmatpush1.msra.mxu0 %v6136
    %6161 = vmatprep.subr.mxu0 0.0
    %6162 = vmatpush1.msra.mxu0 %v6137
    %6163 = vmatprep.subr.mxu0 0.0
    %6164 = vmatpush1.msra.mxu0 %v6138
    %6165 = vmatprep.subr.mxu0 0.0
    %6166 = vmatpush1.msra.mxu0 %v6139
    %6167 = vmatprep.subr.mxu0 0.0
    %6168 = vmatpush1.msra.mxu0 %v6140
    %6169 = vmatprep.subr.mxu0 0.0
    %6170 = vmatpush1.msra.mxu0 0.0
    %6171 = vmatprep.subr.mxu0 0.0
    %6172 = vmatpush1.msra.mxu0 0.0
    %6173 = vmatprep.subr.mxu0 0.0
    %6174 = vmatpush1.msra.mxu0 0.0
    %6175 = vmatprep.subr.mxu0 0.0
    %6176 = vmatpush1.msra.mxu0 0.0
    %6177 = vmatprep.subr.mxu0 0.0
    %6178 = vmatpush1.msra.mxu0 0.0
    %6179 = vmatprep.subr.mxu0 0.0
    %6180 = vmatpush1.msra.mxu0 0.0
    %6181 = vmatprep.subr.mxu0 0.0
    %6182 = vmatpush1.msra.mxu0 0.0
    %6183 = vmatprep.subr.mxu0 0.0
    %6184 = vmatpush1.msra.mxu0 0.0
    %6185 = vmatprep.subr.mxu0 0.0
    %6186 = vmatpush1.msra.mxu0 0.0
    %6187 = vmatprep.subr.mxu0 0.0
    %6188 = vmatpush1.msra.mxu0 0.0
    %6189 = vmatprep.subr.mxu0 0.0
    %6190 = vmatpush1.msra.mxu0 0.0
    %6191 = vmatprep.subr.mxu0 0.0
    %6192 = vmatpush1.msra.mxu0 0.0
    %6193 = vmatprep.subr.mxu0 0.0
    %6194 = vmatpush1.msra.mxu0 0.0
    %6195 = vmatprep.subr.mxu0 0.0
    %6196 = vmatpush1.msra.mxu0 0.0
    %6197 = vmatprep.subr.mxu0 0.0
    %6198 = vmatpush1.msra.mxu0 0.0
    %6199 = vmatprep.subr.mxu0 0.0
    %6200 = vmatpush1.msra.mxu0 0.0
    %6201 = vmatprep.subr.mxu0 0.0
    %6202 = vmatpush1.msra.mxu0 0.0
    %6203 = vmatprep.subr.mxu0 0.0
    %6204 = vmatpush1.msra.mxu0 0.0
    %6205 = vmatprep.subr.mxu0 0.0
    %6206 = vmatpush1.msra.mxu0 0.0
    %6207 = vmatprep.subr.mxu0 0.0
    %6208 = vmatpush1.msra.mxu0 0.0
    %6209 = vmatprep.subr.mxu0 0.0
    %6210 = vmatpush1.msra.mxu0 0.0
    %6211 = vmatprep.subr.mxu0 0.0
    %6212 = vmatpush1.msra.mxu0 0.0
    %6213 = vmatprep.subr.mxu0 0.0
    %6214 = vmatpush1.msra.mxu0 0.0
    %6215 = vmatprep.subr.mxu0 0.0
    %6216 = vmatpush1.msra.mxu0 0.0
    %6217 = vmatprep.mubr.f32.mxu0 0.0
    %6218 = vmatmul.mubr.f32.gmra.mrb[0].mxu0 %v6142
    %v6219 = vpop.f32.mrb[0].mxu0
    %v6220 = vadd.f32 0.0, %v6219
    %v6221 = vpop.f32.mrb[0].mxu0
    %6222 = vmatprep.mubr.f32.mxu0 0.0
    %6223 = vmatmul.mubr.f32.gmra.mrb[0].mxu0 %v6145
    %v6224 = vpop.f32.mrb[0].mxu0
    %v6225 = vadd.f32 0.0, %v6224
    %v6226 = vpop.f32.mrb[0].mxu0
    %6227 = vmatprep.mubr.f32.mxu0 0.0
    %6228 = vmatmul.mubr.f32.gmra.mrb[0].mxu0 %v6148
    %v6229 = vpop.f32.mrb[0].mxu0
    %v6230 = vadd.f32 0.0, %v6229
    %v6231 = vpop.f32.mrb[0].mxu0
    %6232 = vmatprep.mubr.f32.mxu0 0.0
    %6233 = vmatmul.mubr.f32.gmra.mrb[0].mxu0 %v6151
    %v6234 = vpop.f32.mrb[0].mxu0
    %v6235 = vadd.f32 0.0, %v6234
    %v6236 = vpop.f32.mrb[0].mxu0
    %6237 = vdwg.mxu0
    %6238 = vadd.xlane.f32.xlu0 %v6220
    %v6239 = vpop.xlane.xlu0 %6238
    %6240 = vadd.xlane.f32.xlu0 %v6225
    %v6241 = vpop.xlane.xlu0 %6240
    %6242 = vadd.xlane.f32.xlu0 %v6230
    %v6243 = vpop.xlane.xlu0 %6242
    %6244 = vadd.xlane.f32.xlu0 %v6235
    %v6245 = vpop.xlane.xlu0 %6244
    %v6246 = vmul.f32 %v6239, %v290
    %v6247 = vmul.f32 %v6241, %v290
    %v6248 = vmul.f32 %v6243, %v290
    %v6249 = vmul.f32 %v6245, %v290
    %v6250 = vsub.f32 %v6220, %v6246
    %v6251 = vsub.f32 %v6225, %v6247
    %v6252 = vsub.f32 %v6230, %v6248
    %v6253 = vsub.f32 %v6235, %v6249
    %v6254 = vmul.f32 %v6250, %v6250
    %v6255 = vmul.f32 %v6251, %v6251
    %v6256 = vmul.f32 %v6252, %v6252
    %v6257 = vmul.f32 %v6253, %v6253
    %6258 = vadd.xlane.f32.xlu0 %v6254
    %v6259 = vpop.xlane.xlu0 %6258
    %6260 = vadd.xlane.f32.xlu0 %v6255
    %v6261 = vpop.xlane.xlu0 %6260
    %6262 = vadd.xlane.f32.xlu0 %v6256
    %v6263 = vpop.xlane.xlu0 %6262
    %6264 = vadd.xlane.f32.xlu0 %v6257
    %v6265 = vpop.xlane.xlu0 %6264
    %v6266 = vmul.f32 %v6259, %v290
    %v6267 = vmul.f32 %v6261, %v290
    %v6268 = vmul.f32 %v6263, %v290
    %v6269 = vmul.f32 %v6265, %v290
    %v6270 = vadd.f32 %v6266, 1e-05
    %v6271 = vadd.f32 %v6267, 1e-05
    %v6272 = vadd.f32 %v6268, 1e-05
    %v6273 = vadd.f32 %v6269, 1e-05
    %v6274 = vrsqrt.pop %v6270
    %v6275 = vrsqrt.pop %v6271
    %v6276 = vrsqrt.pop %v6272
    %v6277 = vrsqrt.pop %v6273
    %v6278 = vmul.f32 %v6250, %v6274
    %v6279 = vmul.f32 %v6251, %v6275
    %v6280 = vmul.f32 %v6252, %v6276
    %v6281 = vmul.f32 %v6253, %v6277
    %s6282 = scalar_lea.vmem [#allocation19], 1056
    %v6283 = vld [vmem:[%s6282] sm:$0xff]
    %v6284 = vld [vmem:[%s6282 + $0x8] sm:$0xff]
    %v6285 = vld [vmem:[%s6282 + $0x10] sm:$0xff]
    %v6286 = vld [vmem:[%s6282 + $0x18] sm:$0xff]
    %s6287 = scalar_lea.vmem [#allocation19], 1088
    %v6288 = vld [vmem:[%s6287] sm:$0xff]
    %v6289 = vld [vmem:[%s6287 + $0x8] sm:$0xff]
    %v6290 = vld [vmem:[%s6287 + $0x10] sm:$0xff]
    %v6291 = vld [vmem:[%s6287 + $0x18] sm:$0xff]
    %v6293 = vsel %vm331, %v6288, 0
    %v6296 = vsel %vm331, %v6289, 0
    %v6299 = vsel %vm331, %v6290, 0
    %v6302 = vsel %vm331, %v6291, 0
    %6304 = vmatprep.subr.mxu0 0.0
    %6305 = vmatpush1.msra.mxu0 %v1214
    %6306 = vmatprep.subr.mxu0 0.0
    %6307 = vmatpush1.msra.mxu0 %v1215
    %6308 = vmatprep.subr.mxu0 0.0
    %6309 = vmatpush1.msra.mxu0 %v1216
    %6310 = vmatprep.subr.mxu0 0.0
    %6311 = vmatpush1.msra.mxu0 %v1217
    %6312 = vmatprep.subr.mxu0 0.0
    %6313 = vmatpush1.msra.mxu0 0.0
    %6314 = vmatprep.subr.mxu0 0.0
    %6315 = vmatpush1.msra.mxu0 0.0
    %6316 = vmatprep.subr.mxu0 0.0
    %6317 = vmatpush1.msra.mxu0 0.0
    %6318 = vmatprep.subr.mxu0 0.0
    %6319 = vmatpush1.msra.mxu0 0.0
    %6320 = vmatprep.subr.mxu0 0.0
    %6321 = vmatpush1.msra.mxu0 0.0
    %6322 = vmatprep.subr.mxu0 0.0
    %6323 = vmatpush1.msra.mxu0 0.0
    %6324 = vmatprep.subr.mxu0 0.0
    %6325 = vmatpush1.msra.mxu0 0.0
    %6326 = vmatprep.subr.mxu0 0.0
    %6327 = vmatpush1.msra.mxu0 0.0
    %6328 = vmatprep.subr.mxu0 0.0
    %6329 = vmatpush1.msra.mxu0 0.0
    %6330 = vmatprep.subr.mxu0 0.0
    %6331 = vmatpush1.msra.mxu0 0.0
    %6332 = vmatprep.subr.mxu0 0.0
    %6333 = vmatpush1.msra.mxu0 0.0
    %6334 = vmatprep.subr.mxu0 0.0
    %6335 = vmatpush1.msra.mxu0 0.0
    %6336 = vmatprep.subr.mxu0 0.0
    %6337 = vmatpush1.msra.mxu0 0.0
    %6338 = vmatprep.subr.mxu0 0.0
    %6339 = vmatpush1.msra.mxu0 0.0
    %6340 = vmatprep.subr.mxu0 0.0
    %6341 = vmatpush1.msra.mxu0 0.0
    %6342 = vmatprep.subr.mxu0 0.0
    %6343 = vmatpush1.msra.mxu0 0.0
    %6344 = vmatprep.subr.mxu0 0.0
    %6345 = vmatpush1.msra.mxu0 0.0
    %6346 = vmatprep.subr.mxu0 0.0
    %6347 = vmatpush1.msra.mxu0 0.0
    %6348 = vmatprep.subr.mxu0 0.0
    %6349 = vmatpush1.msra.mxu0 0.0
    %6350 = vmatprep.subr.mxu0 0.0
    %6351 = vmatpush1.msra.mxu0 0.0
    %6352 = vmatprep.subr.mxu0 0.0
    %6353 = vmatpush1.msra.mxu0 0.0
    %6354 = vmatprep.subr.mxu0 0.0
    %6355 = vmatpush1.msra.mxu0 0.0
    %6356 = vmatprep.subr.mxu0 0.0
    %6357 = vmatpush1.msra.mxu0 0.0
    %6358 = vmatprep.subr.mxu0 0.0
    %6359 = vmatpush1.msra.mxu0 0.0
    %6360 = vmatprep.subr.mxu0 0.0
    %6361 = vmatpush1.msra.mxu0 0.0
    %6362 = vmatprep.subr.mxu0 0.0
    %6363 = vmatpush1.msra.mxu0 0.0
    %6364 = vmatprep.subr.mxu0 0.0
    %6365 = vmatpush1.msra.mxu0 0.0
    %6366 = vmatprep.subr.mxu0 0.0
    %6367 = vmatpush1.msra.mxu0 0.0
    %6368 = vmatprep.mubr.f32.mxu0 0.0
    %6369 = vmatmul.mubr.f32.gmra.mrb[0].mxu0 %v6293
    %v6370 = vpop.f32.mrb[0].mxu0
    %v6371 = vadd.f32 0.0, %v6370
    %v6372 = vpop.f32.mrb[0].mxu0
    %6373 = vmatprep.mubr.f32.mxu0 0.0
    %6374 = vmatmul.mubr.f32.gmra.mrb[0].mxu0 %v6296
    %v6375 = vpop.f32.mrb[0].mxu0
    %v6376 = vadd.f32 0.0, %v6375
    %v6377 = vpop.f32.mrb[0].mxu0
    %6378 = vmatprep.mubr.f32.mxu0 0.0
    %6379 = vmatmul.mubr.f32.gmra.mrb[0].mxu0 %v6299
    %v6380 = vpop.f32.mrb[0].mxu0
    %v6381 = vadd.f32 0.0, %v6380
    %v6382 = vpop.f32.mrb[0].mxu0
    %6383 = vmatprep.mubr.f32.mxu0 0.0
    %6384 = vmatmul.mubr.f32.gmra.mrb[0].mxu0 %v6302
    %v6385 = vpop.f32.mrb[0].mxu0
    %v6386 = vadd.f32 0.0, %v6385
    %v6387 = vpop.f32.mrb[0].mxu0
    %6388 = vdwg.mxu0
    %v6390 = vsel %vm331, %v6283, 0
    %v6393 = vsel %vm331, %v6284, 0
    %v6396 = vsel %vm331, %v6285, 0
    %v6399 = vsel %vm331, %v6286, 0
    %6401 = vmatprep.subr.mxu0 0.0
    %6402 = vmatpush1.msra.mxu0 %v6278
    %6403 = vmatprep.subr.mxu0 0.0
    %6404 = vmatpush1.msra.mxu0 %v6279
    %6405 = vmatprep.subr.mxu0 0.0
    %6406 = vmatpush1.msra.mxu0 %v6280
    %6407 = vmatprep.subr.mxu0 0.0
    %6408 = vmatpush1.msra.mxu0 %v6281
    %6409 = vmatprep.subr.mxu0 0.0
    %6410 = vmatpush1.msra.mxu0 0.0
    %6411 = vmatprep.subr.mxu0 0.0
    %6412 = vmatpush1.msra.mxu0 0.0
    %6413 = vmatprep.subr.mxu0 0.0
    %6414 = vmatpush1.msra.mxu0 0.0
    %6415 = vmatprep.subr.mxu0 0.0
    %6416 = vmatpush1.msra.mxu0 0.0
    %6417 = vmatprep.subr.mxu0 0.0
    %6418 = vmatpush1.msra.mxu0 0.0
    %6419 = vmatprep.subr.mxu0 0.0
    %6420 = vmatpush1.msra.mxu0 0.0
    %6421 = vmatprep.subr.mxu0 0.0
    %6422 = vmatpush1.msra.mxu0 0.0
    %6423 = vmatprep.subr.mxu0 0.0
    %6424 = vmatpush1.msra.mxu0 0.0
    %6425 = vmatprep.subr.mxu0 0.0
    %6426 = vmatpush1.msra.mxu0 0.0
    %6427 = vmatprep.subr.mxu0 0.0
    %6428 = vmatpush1.msra.mxu0 0.0
    %6429 = vmatprep.subr.mxu0 0.0
    %6430 = vmatpush1.msra.mxu0 0.0
    %6431 = vmatprep.subr.mxu0 0.0
    %6432 = vmatpush1.msra.mxu0 0.0
    %6433 = vmatprep.subr.mxu0 0.0
    %6434 = vmatpush1.msra.mxu0 0.0
    %6435 = vmatprep.subr.mxu0 0.0
    %6436 = vmatpush1.msra.mxu0 0.0
    %6437 = vmatprep.subr.mxu0 0.0
    %6438 = vmatpush1.msra.mxu0 0.0
    %6439 = vmatprep.subr.mxu0 0.0
    %6440 = vmatpush1.msra.mxu0 0.0
    %6441 = vmatprep.subr.mxu0 0.0
    %6442 = vmatpush1.msra.mxu0 0.0
    %6443 = vmatprep.subr.mxu0 0.0
    %6444 = vmatpush1.msra.mxu0 0.0
    %6445 = vmatprep.subr.mxu0 0.0
    %6446 = vmatpush1.msra.mxu0 0.0
    %6447 = vmatprep.subr.mxu0 0.0
    %6448 = vmatpush1.msra.mxu0 0.0
    %6449 = vmatprep.subr.mxu0 0.0
    %6450 = vmatpush1.msra.mxu0 0.0
    %6451 = vmatprep.subr.mxu0 0.0
    %6452 = vmatpush1.msra.mxu0 0.0
    %6453 = vmatprep.subr.mxu0 0.0
    %6454 = vmatpush1.msra.mxu0 0.0
    %6455 = vmatprep.subr.mxu0 0.0
    %6456 = vmatpush1.msra.mxu0 0.0
    %6457 = vmatprep.subr.mxu0 0.0
    %6458 = vmatpush1.msra.mxu0 0.0
    %6459 = vmatprep.subr.mxu0 0.0
    %6460 = vmatpush1.msra.mxu0 0.0
    %6461 = vmatprep.subr.mxu0 0.0
    %6462 = vmatpush1.msra.mxu0 0.0
    %6463 = vmatprep.subr.mxu0 0.0
    %6464 = vmatpush1.msra.mxu0 0.0
    %6465 = vmatprep.mubr.f32.mxu0 0.0
    %6466 = vmatmul.mubr.f32.gmra.mrb[0].mxu0 %v6390
    %v6467 = vpop.f32.mrb[0].mxu0
    %v6468 = vadd.f32 %v6371, %v6467
    %v6469 = vpop.f32.mrb[0].mxu0
    %6470 = vmatprep.mubr.f32.mxu0 0.0
    %6471 = vmatmul.mubr.f32.gmra.mrb[0].mxu0 %v6393
    %v6472 = vpop.f32.mrb[0].mxu0
    %v6473 = vadd.f32 %v6376, %v6472
    %v6474 = vpop.f32.mrb[0].mxu0
    %6475 = vmatprep.mubr.f32.mxu0 0.0
    %6476 = vmatmul.mubr.f32.gmra.mrb[0].mxu0 %v6396
    %v6477 = vpop.f32.mrb[0].mxu0
    %v6478 = vadd.f32 %v6381, %v6477
    %v6479 = vpop.f32.mrb[0].mxu0
    %6480 = vmatprep.mubr.f32.mxu0 0.0
    %6481 = vmatmul.mubr.f32.gmra.mrb[0].mxu0 %v6399
    %v6482 = vpop.f32.mrb[0].mxu0
    %v6483 = vadd.f32 %v6386, %v6482
    %v6484 = vpop.f32.mrb[0].mxu0
    %6485 = vdwg.mxu0
    %s6486 = scalar_lea.vmem [#allocation19], 1120
    %v6487 = vld [vmem:[%s6486] sm:$0xff]
    %v6488 = vld [vmem:[%s6486 + $0x8] sm:$0xff]
    %v6489 = vld [vmem:[%s6486 + $0x10] sm:$0xff]
    %v6490 = vld [vmem:[%s6486 + $0x18] sm:$0xff]
    %v6492 = vsel %vm331, %v6487, 0
    %v6495 = vsel %vm331, %v6488, 0
    %v6498 = vsel %vm331, %v6489, 0
    %v6501 = vsel %vm331, %v6490, 0
    %6503 = vmatprep.subr.mxu0 0.0
    %6504 = vmatpush1.msra.mxu0 %v6278
    %6505 = vmatprep.subr.mxu0 0.0
    %6506 = vmatpush1.msra.mxu0 %v6279
    %6507 = vmatprep.subr.mxu0 0.0
    %6508 = vmatpush1.msra.mxu0 %v6280
    %6509 = vmatprep.subr.mxu0 0.0
    %6510 = vmatpush1.msra.mxu0 %v6281
    %6511 = vmatprep.subr.mxu0 0.0
    %6512 = vmatpush1.msra.mxu0 0.0
    %6513 = vmatprep.subr.mxu0 0.0
    %6514 = vmatpush1.msra.mxu0 0.0
    %6515 = vmatprep.subr.mxu0 0.0
    %6516 = vmatpush1.msra.mxu0 0.0
    %6517 = vmatprep.subr.mxu0 0.0
    %6518 = vmatpush1.msra.mxu0 0.0
    %6519 = vmatprep.subr.mxu0 0.0
    %6520 = vmatpush1.msra.mxu0 0.0
    %6521 = vmatprep.subr.mxu0 0.0
    %6522 = vmatpush1.msra.mxu0 0.0
    %6523 = vmatprep.subr.mxu0 0.0
    %6524 = vmatpush1.msra.mxu0 0.0
    %6525 = vmatprep.subr.mxu0 0.0
    %6526 = vmatpush1.msra.mxu0 0.0
    %6527 = vmatprep.subr.mxu0 0.0
    %6528 = vmatpush1.msra.mxu0 0.0
    %6529 = vmatprep.subr.mxu0 0.0
    %6530 = vmatpush1.msra.mxu0 0.0
    %6531 = vmatprep.subr.mxu0 0.0
    %6532 = vmatpush1.msra.mxu0 0.0
    %6533 = vmatprep.subr.mxu0 0.0
    %6534 = vmatpush1.msra.mxu0 0.0
    %6535 = vmatprep.subr.mxu0 0.0
    %6536 = vmatpush1.msra.mxu0 0.0
    %6537 = vmatprep.subr.mxu0 0.0
    %6538 = vmatpush1.msra.mxu0 0.0
    %6539 = vmatprep.subr.mxu0 0.0
    %6540 = vmatpush1.msra.mxu0 0.0
    %6541 = vmatprep.subr.mxu0 0.0
    %6542 = vmatpush1.msra.mxu0 0.0
    %6543 = vmatprep.subr.mxu0 0.0
    %6544 = vmatpush1.msra.mxu0 0.0
    %6545 = vmatprep.subr.mxu0 0.0
    %6546 = vmatpush1.msra.mxu0 0.0
    %6547 = vmatprep.subr.mxu0 0.0
    %6548 = vmatpush1.msra.mxu0 0.0
    %6549 = vmatprep.subr.mxu0 0.0
    %6550 = vmatpush1.msra.mxu0 0.0
    %6551 = vmatprep.subr.mxu0 0.0
    %6552 = vmatpush1.msra.mxu0 0.0
    %6553 = vmatprep.subr.mxu0 0.0
    %6554 = vmatpush1.msra.mxu0 0.0
    %6555 = vmatprep.subr.mxu0 0.0
    %6556 = vmatpush1.msra.mxu0 0.0
    %6557 = vmatprep.subr.mxu0 0.0
    %6558 = vmatpush1.msra.mxu0 0.0
    %6559 = vmatprep.subr.mxu0 0.0
    %6560 = vmatpush1.msra.mxu0 0.0
    %6561 = vmatprep.subr.mxu0 0.0
    %6562 = vmatpush1.msra.mxu0 0.0
    %6563 = vmatprep.subr.mxu0 0.0
    %6564 = vmatpush1.msra.mxu0 0.0
    %6565 = vmatprep.subr.mxu0 0.0
    %6566 = vmatpush1.msra.mxu0 0.0
    %6567 = vmatprep.mubr.f32.mxu0 0.0
    %6568 = vmatmul.mubr.f32.gmra.mrb[0].mxu0 %v6492
    %v6569 = vpop.f32.mrb[0].mxu0
    %v6570 = vadd.f32 0.0, %v6569
    %v6571 = vpop.f32.mrb[0].mxu0
    %6572 = vmatprep.mubr.f32.mxu0 0.0
    %6573 = vmatmul.mubr.f32.gmra.mrb[0].mxu0 %v6495
    %v6574 = vpop.f32.mrb[0].mxu0
    %v6575 = vadd.f32 0.0, %v6574
    %v6576 = vpop.f32.mrb[0].mxu0
    %6577 = vmatprep.mubr.f32.mxu0 0.0
    %6578 = vmatmul.mubr.f32.gmra.mrb[0].mxu0 %v6498
    %v6579 = vpop.f32.mrb[0].mxu0
    %v6580 = vadd.f32 0.0, %v6579
    %v6581 = vpop.f32.mrb[0].mxu0
    %6582 = vmatprep.mubr.f32.mxu0 0.0
    %6583 = vmatmul.mubr.f32.gmra.mrb[0].mxu0 %v6501
    %v6584 = vpop.f32.mrb[0].mxu0
    %v6585 = vadd.f32 0.0, %v6584
    %v6586 = vpop.f32.mrb[0].mxu0
    %6587 = vdwg.mxu0
    %6588 = vmatprep.subr.mxu0 0.0
    %6589 = vmatpush1.msra.mxu0 %v958
    %6590 = vmatprep.subr.mxu0 0.0
    %6591 = vmatpush1.msra.mxu0 %v959
    %6592 = vmatprep.subr.mxu0 0.0
    %6593 = vmatpush1.msra.mxu0 %v960
    %6594 = vmatprep.subr.mxu0 0.0
    %6595 = vmatpush1.msra.mxu0 %v961
    %6596 = vmatprep.subr.mxu0 0.0
    %6597 = vmatpush1.msra.mxu0 %v962
    %6598 = vmatprep.subr.mxu0 0.0
    %6599 = vmatpush1.msra.mxu0 %v963
    %6600 = vmatprep.subr.mxu0 0.0
    %6601 = vmatpush1.msra.mxu0 %v964
    %6602 = vmatprep.subr.mxu0 0.0
    %6603 = vmatpush1.msra.mxu0 %v965
    %6604 = vmatprep.subr.mxu0 0.0
    %6605 = vmatpush1.msra.mxu0 %v966
    %6606 = vmatprep.subr.mxu0 0.0
    %6607 = vmatpush1.msra.mxu0 %v967
    %6608 = vmatprep.subr.mxu0 0.0
    %6609 = vmatpush1.msra.mxu0 %v968
    %6610 = vmatprep.subr.mxu0 0.0
    %6611 = vmatpush1.msra.mxu0 %v969
    %6612 = vmatprep.subr.mxu0 0.0
    %6613 = vmatpush1.msra.mxu0 %v970
    %6614 = vmatprep.subr.mxu0 0.0
    %6615 = vmatpush1.msra.mxu0 %v971
    %6616 = vmatprep.subr.mxu0 0.0
    %6617 = vmatpush1.msra.mxu0 %v972
    %6618 = vmatprep.subr.mxu0 0.0
    %6619 = vmatpush1.msra.mxu0 %v973
    %6620 = vmatprep.subr.mxu0 0.0
    %6621 = vmatpush1.msra.mxu0 0.0
    %6622 = vmatprep.subr.mxu0 0.0
    %6623 = vmatpush1.msra.mxu0 0.0
    %6624 = vmatprep.subr.mxu0 0.0
    %6625 = vmatpush1.msra.mxu0 0.0
    %6626 = vmatprep.subr.mxu0 0.0
    %6627 = vmatpush1.msra.mxu0 0.0
    %6628 = vmatprep.subr.mxu0 0.0
    %6629 = vmatpush1.msra.mxu0 0.0
    %6630 = vmatprep.subr.mxu0 0.0
    %6631 = vmatpush1.msra.mxu0 0.0
    %6632 = vmatprep.subr.mxu0 0.0
    %6633 = vmatpush1.msra.mxu0 0.0
    %6634 = vmatprep.subr.mxu0 0.0
    %6635 = vmatpush1.msra.mxu0 0.0
    %6636 = vmatprep.subr.mxu0 0.0
    %6637 = vmatpush1.msra.mxu0 0.0
    %6638 = vmatprep.subr.mxu0 0.0
    %6639 = vmatpush1.msra.mxu0 0.0
    %6640 = vmatprep.subr.mxu0 0.0
    %6641 = vmatpush1.msra.mxu0 0.0
    %6642 = vmatprep.subr.mxu0 0.0
    %6643 = vmatpush1.msra.mxu0 0.0
    %6644 = vmatprep.subr.mxu0 0.0
    %6645 = vmatpush1.msra.mxu0 0.0
    %6646 = vmatprep.subr.mxu0 0.0
    %6647 = vmatpush1.msra.mxu0 0.0
    %6648 = vmatprep.subr.mxu0 0.0
    %6649 = vmatpush1.msra.mxu0 0.0
    %6650 = vmatprep.subr.mxu0 0.0
    %6651 = vmatpush1.msra.mxu0 0.0
    %6652 = vmatprep.mubr.f32.mxu0 0.0
    %6653 = vmatmul.mubr.f32.gmra.mrb[0].mxu0 %v6468
    %v6654 = vpop.f32.mrb[0].mxu0
    %v6655 = vadd.f32 %v6570, %v6654
    %v6656 = vpop.f32.mrb[0].mxu0
    %6657 = vmatprep.mubr.f32.mxu0 0.0
    %6658 = vmatmul.mubr.f32.gmra.mrb[0].mxu0 %v6473
    %v6659 = vpop.f32.mrb[0].mxu0
    %v6660 = vadd.f32 %v6575, %v6659
    %v6661 = vpop.f32.mrb[0].mxu0
    %6662 = vmatprep.mubr.f32.mxu0 0.0
    %6663 = vmatmul.mubr.f32.gmra.mrb[0].mxu0 %v6478
    %v6664 = vpop.f32.mrb[0].mxu0
    %v6665 = vadd.f32 %v6580, %v6664
    %v6666 = vpop.f32.mrb[0].mxu0
    %6667 = vmatprep.mubr.f32.mxu0 0.0
    %6668 = vmatmul.mubr.f32.gmra.mrb[0].mxu0 %v6483
    %v6669 = vpop.f32.mrb[0].mxu0
    %v6670 = vadd.f32 %v6585, %v6669
    %v6671 = vpop.f32.mrb[0].mxu0
    %6672 = vdwg.mxu0
    %s6673 = scalar_lea.vmem [#allocation19], 1152
    %v6674 = vld [vmem:[%s6673] sm:$0xff]
    %v6675 = vld [vmem:[%s6673 + $0x8] sm:$0xff]
    %v6676 = vld [vmem:[%s6673 + $0x10] sm:$0xff]
    %v6677 = vld [vmem:[%s6673 + $0x18] sm:$0xff]
    %v6679 = vsel %vm331, %v6674, 0
    %v6682 = vsel %vm331, %v6675, 0
    %v6685 = vsel %vm331, %v6676, 0
    %v6688 = vsel %vm331, %v6677, 0
    %6690 = vmatprep.subr.mxu0 0.0
    %6691 = vmatpush1.msra.mxu0 %v1214
    %6692 = vmatprep.subr.mxu0 0.0
    %6693 = vmatpush1.msra.mxu0 %v1215
    %6694 = vmatprep.subr.mxu0 0.0
    %6695 = vmatpush1.msra.mxu0 %v1216
    %6696 = vmatprep.subr.mxu0 0.0
    %6697 = vmatpush1.msra.mxu0 %v1217
    %6698 = vmatprep.subr.mxu0 0.0
    %6699 = vmatpush1.msra.mxu0 0.0
    %6700 = vmatprep.subr.mxu0 0.0
    %6701 = vmatpush1.msra.mxu0 0.0
    %6702 = vmatprep.subr.mxu0 0.0
    %6703 = vmatpush1.msra.mxu0 0.0
    %6704 = vmatprep.subr.mxu0 0.0
    %6705 = vmatpush1.msra.mxu0 0.0
    %6706 = vmatprep.subr.mxu0 0.0
    %6707 = vmatpush1.msra.mxu0 0.0
    %6708 = vmatprep.subr.mxu0 0.0
    %6709 = vmatpush1.msra.mxu0 0.0
    %6710 = vmatprep.subr.mxu0 0.0
    %6711 = vmatpush1.msra.mxu0 0.0
    %6712 = vmatprep.subr.mxu0 0.0
    %6713 = vmatpush1.msra.mxu0 0.0
    %6714 = vmatprep.subr.mxu0 0.0
    %6715 = vmatpush1.msra.mxu0 0.0
    %6716 = vmatprep.subr.mxu0 0.0
    %6717 = vmatpush1.msra.mxu0 0.0
    %6718 = vmatprep.subr.mxu0 0.0
    %6719 = vmatpush1.msra.mxu0 0.0
    %6720 = vmatprep.subr.mxu0 0.0
    %6721 = vmatpush1.msra.mxu0 0.0
    %6722 = vmatprep.subr.mxu0 0.0
    %6723 = vmatpush1.msra.mxu0 0.0
    %6724 = vmatprep.subr.mxu0 0.0
    %6725 = vmatpush1.msra.mxu0 0.0
    %6726 = vmatprep.subr.mxu0 0.0
    %6727 = vmatpush1.msra.mxu0 0.0
    %6728 = vmatprep.subr.mxu0 0.0
    %6729 = vmatpush1.msra.mxu0 0.0
    %6730 = vmatprep.subr.mxu0 0.0
    %6731 = vmatpush1.msra.mxu0 0.0
    %6732 = vmatprep.subr.mxu0 0.0
    %6733 = vmatpush1.msra.mxu0 0.0
    %6734 = vmatprep.subr.mxu0 0.0
    %6735 = vmatpush1.msra.mxu0 0.0
    %6736 = vmatprep.subr.mxu0 0.0
    %6737 = vmatpush1.msra.mxu0 0.0
    %6738 = vmatprep.subr.mxu0 0.0
    %6739 = vmatpush1.msra.mxu0 0.0
    %6740 = vmatprep.subr.mxu0 0.0
    %6741 = vmatpush1.msra.mxu0 0.0
    %6742 = vmatprep.subr.mxu0 0.0
    %6743 = vmatpush1.msra.mxu0 0.0
    %6744 = vmatprep.subr.mxu0 0.0
    %6745 = vmatpush1.msra.mxu0 0.0
    %6746 = vmatprep.subr.mxu0 0.0
    %6747 = vmatpush1.msra.mxu0 0.0
    %6748 = vmatprep.subr.mxu0 0.0
    %6749 = vmatpush1.msra.mxu0 0.0
    %6750 = vmatprep.subr.mxu0 0.0
    %6751 = vmatpush1.msra.mxu0 0.0
    %6752 = vmatprep.subr.mxu0 0.0
    %6753 = vmatpush1.msra.mxu0 0.0
    %6754 = vmatprep.mubr.f32.mxu0 0.0
    %6755 = vmatmul.mubr.f32.gmra.mrb[0].mxu0 %v6679
    %v6756 = vpop.f32.mrb[0].mxu0
    %v6757 = vadd.f32 0.0, %v6756
    %v6758 = vpop.f32.mrb[0].mxu0
    %6759 = vmatprep.mubr.f32.mxu0 0.0
    %6760 = vmatmul.mubr.f32.gmra.mrb[0].mxu0 %v6682
    %v6761 = vpop.f32.mrb[0].mxu0
    %v6762 = vadd.f32 0.0, %v6761
    %v6763 = vpop.f32.mrb[0].mxu0
    %6764 = vmatprep.mubr.f32.mxu0 0.0
    %6765 = vmatmul.mubr.f32.gmra.mrb[0].mxu0 %v6685
    %v6766 = vpop.f32.mrb[0].mxu0
    %v6767 = vadd.f32 0.0, %v6766
    %v6768 = vpop.f32.mrb[0].mxu0
    %6769 = vmatprep.mubr.f32.mxu0 0.0
    %6770 = vmatmul.mubr.f32.gmra.mrb[0].mxu0 %v6688
    %v6771 = vpop.f32.mrb[0].mxu0
    %v6772 = vadd.f32 0.0, %v6771
    %v6773 = vpop.f32.mrb[0].mxu0
    %6774 = vdwg.mxu0
    %v6775 = vadd.f32 %v6655, %v6757
    %v6776 = vadd.f32 %v6660, %v6762
    %v6777 = vadd.f32 %v6665, %v6767
    %v6778 = vadd.f32 %v6670, %v6772
    %s6779 = scalar_lea.vmem [#allocation20], 480
    %v6780 = vld [vmem:[%s6779] sm:$0xff]
    %v6781 = vld [vmem:[%s6779 + $0x8] sm:$0xff]
    %v6782 = vld [vmem:[%s6779 + $0x10] sm:$0xff]
    %v6783 = vld [vmem:[%s6779 + $0x18] sm:$0xff]
    %v6784 = vadd.f32 %v6775, %v6780
    %v6785 = vadd.f32 %v6776, %v6781
    %v6786 = vadd.f32 %v6777, %v6782
    %v6787 = vadd.f32 %v6778, %v6783
    %v6788 = vmax.f32 %v6784, 0.0
    %v6789 = vmax.f32 %v6785, 0.0
    %v6790 = vmax.f32 %v6786, 0.0
    %v6791 = vmax.f32 %v6787, 0.0
    %s6792 = scalar_lea.vmem [#allocation19], 1184
    %v6793 = vld [vmem:[%s6792] sm:$0xff]
    %v6794 = vld [vmem:[%s6792 + $0x8] sm:$0xff]
    %v6795 = vld [vmem:[%s6792 + $0x10] sm:$0xff]
    %v6796 = vld [vmem:[%s6792 + $0x18] sm:$0xff]
    %v6798 = vsel %vm331, %v6793, 0
    %v6801 = vsel %vm331, %v6794, 0
    %v6804 = vsel %vm331, %v6795, 0
    %v6807 = vsel %vm331, %v6796, 0
    %6809 = vmatprep.subr.mxu0 0.0
    %6810 = vmatpush1.msra.mxu0 %v6788
    %6811 = vmatprep.subr.mxu0 0.0
    %6812 = vmatpush1.msra.mxu0 %v6789
    %6813 = vmatprep.subr.mxu0 0.0
    %6814 = vmatpush1.msra.mxu0 %v6790
    %6815 = vmatprep.subr.mxu0 0.0
    %6816 = vmatpush1.msra.mxu0 %v6791
    %6817 = vmatprep.subr.mxu0 0.0
    %6818 = vmatpush1.msra.mxu0 0.0
    %6819 = vmatprep.subr.mxu0 0.0
    %6820 = vmatpush1.msra.mxu0 0.0
    %6821 = vmatprep.subr.mxu0 0.0
    %6822 = vmatpush1.msra.mxu0 0.0
    %6823 = vmatprep.subr.mxu0 0.0
    %6824 = vmatpush1.msra.mxu0 0.0
    %6825 = vmatprep.subr.mxu0 0.0
    %6826 = vmatpush1.msra.mxu0 0.0
    %6827 = vmatprep.subr.mxu0 0.0
    %6828 = vmatpush1.msra.mxu0 0.0
    %6829 = vmatprep.subr.mxu0 0.0
    %6830 = vmatpush1.msra.mxu0 0.0
    %6831 = vmatprep.subr.mxu0 0.0
    %6832 = vmatpush1.msra.mxu0 0.0
    %6833 = vmatprep.subr.mxu0 0.0
    %6834 = vmatpush1.msra.mxu0 0.0
    %6835 = vmatprep.subr.mxu0 0.0
    %6836 = vmatpush1.msra.mxu0 0.0
    %6837 = vmatprep.subr.mxu0 0.0
    %6838 = vmatpush1.msra.mxu0 0.0
    %6839 = vmatprep.subr.mxu0 0.0
    %6840 = vmatpush1.msra.mxu0 0.0
    %6841 = vmatprep.subr.mxu0 0.0
    %6842 = vmatpush1.msra.mxu0 0.0
    %6843 = vmatprep.subr.mxu0 0.0
    %6844 = vmatpush1.msra.mxu0 0.0
    %6845 = vmatprep.subr.mxu0 0.0
    %6846 = vmatpush1.msra.mxu0 0.0
    %6847 = vmatprep.subr.mxu0 0.0
    %6848 = vmatpush1.msra.mxu0 0.0
    %6849 = vmatprep.subr.mxu0 0.0
    %6850 = vmatpush1.msra.mxu0 0.0
    %6851 = vmatprep.subr.mxu0 0.0
    %6852 = vmatpush1.msra.mxu0 0.0
    %6853 = vmatprep.subr.mxu0 0.0
    %6854 = vmatpush1.msra.mxu0 0.0
    %6855 = vmatprep.subr.mxu0 0.0
    %6856 = vmatpush1.msra.mxu0 0.0
    %6857 = vmatprep.subr.mxu0 0.0
    %6858 = vmatpush1.msra.mxu0 0.0
    %6859 = vmatprep.subr.mxu0 0.0
    %6860 = vmatpush1.msra.mxu0 0.0
    %6861 = vmatprep.subr.mxu0 0.0
    %6862 = vmatpush1.msra.mxu0 0.0
    %6863 = vmatprep.subr.mxu0 0.0
    %6864 = vmatpush1.msra.mxu0 0.0
    %6865 = vmatprep.subr.mxu0 0.0
    %6866 = vmatpush1.msra.mxu0 0.0
    %6867 = vmatprep.subr.mxu0 0.0
    %6868 = vmatpush1.msra.mxu0 0.0
    %6869 = vmatprep.subr.mxu0 0.0
    %6870 = vmatpush1.msra.mxu0 0.0
    %6871 = vmatprep.subr.mxu0 0.0
    %6872 = vmatpush1.msra.mxu0 0.0
    %6873 = vmatprep.mubr.f32.mxu0 0.0
    %6874 = vmatmul.mubr.f32.gmra.mrb[0].mxu0 %v6798
    %v6875 = vpop.f32.mrb[0].mxu0
    %v6876 = vadd.f32 0.0, %v6875
    %v6877 = vpop.f32.mrb[0].mxu0
    %6878 = vmatprep.mubr.f32.mxu0 0.0
    %6879 = vmatmul.mubr.f32.gmra.mrb[0].mxu0 %v6801
    %v6880 = vpop.f32.mrb[0].mxu0
    %v6881 = vadd.f32 0.0, %v6880
    %v6882 = vpop.f32.mrb[0].mxu0
    %6883 = vmatprep.mubr.f32.mxu0 0.0
    %6884 = vmatmul.mubr.f32.gmra.mrb[0].mxu0 %v6804
    %v6885 = vpop.f32.mrb[0].mxu0
    %v6886 = vadd.f32 0.0, %v6885
    %v6887 = vpop.f32.mrb[0].mxu0
    %6888 = vmatprep.mubr.f32.mxu0 0.0
    %6889 = vmatmul.mubr.f32.gmra.mrb[0].mxu0 %v6807
    %v6890 = vpop.f32.mrb[0].mxu0
    %v6891 = vadd.f32 0.0, %v6890
    %v6892 = vpop.f32.mrb[0].mxu0
    %6893 = vdwg.mxu0
    %v6894 = vld [vmem:[#allocation7] sm:$0xff]
    %v6895 = vld [vmem:[#allocation7 + $0x8] sm:$0xff]
    %v6896 = vld [vmem:[#allocation7 + $0x10] sm:$0xff]
    %v6897 = vld [vmem:[#allocation7 + $0x18] sm:$0xff]
    %v6898 = vld [vmem:[#allocation7 + $0x20] sm:$0xff]
    %v6899 = vld [vmem:[#allocation7 + $0x28] sm:$0xff]
    %v6900 = vld [vmem:[#allocation7 + $0x30] sm:$0xff]
    %v6901 = vld [vmem:[#allocation7 + $0x38] sm:$0xff]
    %v6902 = vld [vmem:[#allocation7 + $0x40] sm:$0xff]
    %v6903 = vld [vmem:[#allocation7 + $0x48] sm:$0xff]
    %v6904 = vld [vmem:[#allocation7 + $0x50] sm:$0xff]
    %v6905 = vld [vmem:[#allocation7 + $0x58] sm:$0xff]
    %v6906 = vld [vmem:[#allocation7 + $0x60] sm:$0xff]
    %v6907 = vld [vmem:[#allocation7 + $0x68] sm:$0xff]
    %v6908 = vld [vmem:[#allocation7 + $0x70] sm:$0xff]
    %v6909 = vld [vmem:[#allocation7 + $0x78] sm:$0xff]
    %s6910 = scalar_lea.vmem [#allocation20], 512
    %v6911 = vld [vmem:[%s6910] sm:$0xff]
    %v6912 = vld [vmem:[%s6910 + $0x8] sm:$0xff]
    %v6913 = vld [vmem:[%s6910 + $0x10] sm:$0xff]
    %v6914 = vld [vmem:[%s6910 + $0x18] sm:$0xff]
    %6915 = vmatprep.subr.mxu0 0.0
    %6916 = vmatpush1.msra.mxu0 %v6894
    %6917 = vmatprep.subr.mxu0 0.0
    %6918 = vmatpush1.msra.mxu0 %v6895
    %6919 = vmatprep.subr.mxu0 0.0
    %6920 = vmatpush1.msra.mxu0 %v6896
    %6921 = vmatprep.subr.mxu0 0.0
    %6922 = vmatpush1.msra.mxu0 %v6897
    %6923 = vmatprep.subr.mxu0 0.0
    %6924 = vmatpush1.msra.mxu0 %v6898
    %6925 = vmatprep.subr.mxu0 0.0
    %6926 = vmatpush1.msra.mxu0 %v6899
    %6927 = vmatprep.subr.mxu0 0.0
    %6928 = vmatpush1.msra.mxu0 %v6900
    %6929 = vmatprep.subr.mxu0 0.0
    %6930 = vmatpush1.msra.mxu0 %v6901
    %6931 = vmatprep.subr.mxu0 0.0
    %6932 = vmatpush1.msra.mxu0 %v6902
    %6933 = vmatprep.subr.mxu0 0.0
    %6934 = vmatpush1.msra.mxu0 %v6903
    %6935 = vmatprep.subr.mxu0 0.0
    %6936 = vmatpush1.msra.mxu0 %v6904
    %6937 = vmatprep.subr.mxu0 0.0
    %6938 = vmatpush1.msra.mxu0 %v6905
    %6939 = vmatprep.subr.mxu0 0.0
    %6940 = vmatpush1.msra.mxu0 %v6906
    %6941 = vmatprep.subr.mxu0 0.0
    %6942 = vmatpush1.msra.mxu0 %v6907
    %6943 = vmatprep.subr.mxu0 0.0
    %6944 = vmatpush1.msra.mxu0 %v6908
    %6945 = vmatprep.subr.mxu0 0.0
    %6946 = vmatpush1.msra.mxu0 %v6909
    %6947 = vmatprep.subr.mxu0 0.0
    %6948 = vmatpush1.msra.mxu0 0.0
    %6949 = vmatprep.subr.mxu0 0.0
    %6950 = vmatpush1.msra.mxu0 0.0
    %6951 = vmatprep.subr.mxu0 0.0
    %6952 = vmatpush1.msra.mxu0 0.0
    %6953 = vmatprep.subr.mxu0 0.0
    %6954 = vmatpush1.msra.mxu0 0.0
    %6955 = vmatprep.subr.mxu0 0.0
    %6956 = vmatpush1.msra.mxu0 0.0
    %6957 = vmatprep.subr.mxu0 0.0
    %6958 = vmatpush1.msra.mxu0 0.0
    %6959 = vmatprep.subr.mxu0 0.0
    %6960 = vmatpush1.msra.mxu0 0.0
    %6961 = vmatprep.subr.mxu0 0.0
    %6962 = vmatpush1.msra.mxu0 0.0
    %6963 = vmatprep.subr.mxu0 0.0
    %6964 = vmatpush1.msra.mxu0 0.0
    %6965 = vmatprep.subr.mxu0 0.0
    %6966 = vmatpush1.msra.mxu0 0.0
    %6967 = vmatprep.subr.mxu0 0.0
    %6968 = vmatpush1.msra.mxu0 0.0
    %6969 = vmatprep.subr.mxu0 0.0
    %6970 = vmatpush1.msra.mxu0 0.0
    %6971 = vmatprep.subr.mxu0 0.0
    %6972 = vmatpush1.msra.mxu0 0.0
    %6973 = vmatprep.subr.mxu0 0.0
    %6974 = vmatpush1.msra.mxu0 0.0
    %6975 = vmatprep.subr.mxu0 0.0
    %6976 = vmatpush1.msra.mxu0 0.0
    %6977 = vmatprep.subr.mxu0 0.0
    %6978 = vmatpush1.msra.mxu0 0.0
    %6979 = vmatprep.mubr.f32.mxu0 0.0
    %6980 = vmatmul.mubr.f32.gmra.mrb[0].mxu0 %v6876
    %v6981 = vpop.f32.mrb[0].mxu0
    %v6982 = vadd.f32 %v6911, %v6981
    %v6983 = vpop.f32.mrb[0].mxu0
    %6984 = vmatprep.mubr.f32.mxu0 0.0
    %6985 = vmatmul.mubr.f32.gmra.mrb[0].mxu0 %v6881
    %v6986 = vpop.f32.mrb[0].mxu0
    %v6987 = vadd.f32 %v6912, %v6986
    %v6988 = vpop.f32.mrb[0].mxu0
    %6989 = vmatprep.mubr.f32.mxu0 0.0
    %6990 = vmatmul.mubr.f32.gmra.mrb[0].mxu0 %v6886
    %v6991 = vpop.f32.mrb[0].mxu0
    %v6992 = vadd.f32 %v6913, %v6991
    %v6993 = vpop.f32.mrb[0].mxu0
    %6994 = vmatprep.mubr.f32.mxu0 0.0
    %6995 = vmatmul.mubr.f32.gmra.mrb[0].mxu0 %v6891
    %v6996 = vpop.f32.mrb[0].mxu0
    %v6997 = vadd.f32 %v6914, %v6996
    %v6998 = vpop.f32.mrb[0].mxu0
    %6999 = vdwg.mxu0
    %v7000 = vmax.f32 %v6982, 0.0
    %v7001 = vmax.f32 %v6987, 0.0
    %v7002 = vmax.f32 %v6992, 0.0
    %v7003 = vmax.f32 %v6997, 0.0
    %s7004 = scalar_lea.vmem [#allocation19], 1216
    %v7005 = vld [vmem:[%s7004] sm:$0xff]
    %v7006 = vld [vmem:[%s7004 + $0x8] sm:$0xff]
    %v7007 = vld [vmem:[%s7004 + $0x10] sm:$0xff]
    %v7008 = vld [vmem:[%s7004 + $0x18] sm:$0xff]
    %s7009 = scalar_lea.vmem [#allocation20], 544
    %v7010 = vld [vmem:[%s7009] sm:$0xff]
    %v7012 = vsel %vm331, %v7005, 0
    %v7015 = vsel %vm331, %v7006, 0
    %v7018 = vsel %vm331, %v7007, 0
    %v7021 = vsel %vm331, %v7008, 0
    %7023 = vmatprep.subr.mxu0 0.0
    %7024 = vmatpush1.msra.mxu0 %v7000
    %7025 = vmatprep.subr.mxu0 0.0
    %7026 = vmatpush1.msra.mxu0 %v7001
    %7027 = vmatprep.subr.mxu0 0.0
    %7028 = vmatpush1.msra.mxu0 %v7002
    %7029 = vmatprep.subr.mxu0 0.0
    %7030 = vmatpush1.msra.mxu0 %v7003
    %7031 = vmatprep.subr.mxu0 0.0
    %7032 = vmatpush1.msra.mxu0 0.0
    %7033 = vmatprep.subr.mxu0 0.0
    %7034 = vmatpush1.msra.mxu0 0.0
    %7035 = vmatprep.subr.mxu0 0.0
    %7036 = vmatpush1.msra.mxu0 0.0
    %7037 = vmatprep.subr.mxu0 0.0
    %7038 = vmatpush1.msra.mxu0 0.0
    %7039 = vmatprep.subr.mxu0 0.0
    %7040 = vmatpush1.msra.mxu0 0.0
    %7041 = vmatprep.subr.mxu0 0.0
    %7042 = vmatpush1.msra.mxu0 0.0
    %7043 = vmatprep.subr.mxu0 0.0
    %7044 = vmatpush1.msra.mxu0 0.0
    %7045 = vmatprep.subr.mxu0 0.0
    %7046 = vmatpush1.msra.mxu0 0.0
    %7047 = vmatprep.subr.mxu0 0.0
    %7048 = vmatpush1.msra.mxu0 0.0
    %7049 = vmatprep.subr.mxu0 0.0
    %7050 = vmatpush1.msra.mxu0 0.0
    %7051 = vmatprep.subr.mxu0 0.0
    %7052 = vmatpush1.msra.mxu0 0.0
    %7053 = vmatprep.subr.mxu0 0.0
    %7054 = vmatpush1.msra.mxu0 0.0
    %7055 = vmatprep.subr.mxu0 0.0
    %7056 = vmatpush1.msra.mxu0 0.0
    %7057 = vmatprep.subr.mxu0 0.0
    %7058 = vmatpush1.msra.mxu0 0.0
    %7059 = vmatprep.subr.mxu0 0.0
    %7060 = vmatpush1.msra.mxu0 0.0
    %7061 = vmatprep.subr.mxu0 0.0
    %7062 = vmatpush1.msra.mxu0 0.0
    %7063 = vmatprep.subr.mxu0 0.0
    %7064 = vmatpush1.msra.mxu0 0.0
    %7065 = vmatprep.subr.mxu0 0.0
    %7066 = vmatpush1.msra.mxu0 0.0
    %7067 = vmatprep.subr.mxu0 0.0
    %7068 = vmatpush1.msra.mxu0 0.0
    %7069 = vmatprep.subr.mxu0 0.0
    %7070 = vmatpush1.msra.mxu0 0.0
    %7071 = vmatprep.subr.mxu0 0.0
    %7072 = vmatpush1.msra.mxu0 0.0
    %7073 = vmatprep.subr.mxu0 0.0
    %7074 = vmatpush1.msra.mxu0 0.0
    %7075 = vmatprep.subr.mxu0 0.0
    %7076 = vmatpush1.msra.mxu0 0.0
    %7077 = vmatprep.subr.mxu0 0.0
    %7078 = vmatpush1.msra.mxu0 0.0
    %7079 = vmatprep.subr.mxu0 0.0
    %7080 = vmatpush1.msra.mxu0 0.0
    %7081 = vmatprep.subr.mxu0 0.0
    %7082 = vmatpush1.msra.mxu0 0.0
    %7083 = vmatprep.subr.mxu0 0.0
    %7084 = vmatpush1.msra.mxu0 0.0
    %7085 = vmatprep.subr.mxu0 0.0
    %7086 = vmatpush1.msra.mxu0 0.0
    %7087 = vmatprep.mubr.f32.mxu0 0.0
    %7088 = vmatmul.mubr.f32.gmra.mrb[0].mxu0 %v7012
    %v7089 = vpop.f32.mrb[0].mxu0
    %v7090 = vadd.f32 %v7010, %v7089
    %v7091 = vpop.f32.mrb[0].mxu0
    %7092 = vmatprep.mubr.f32.mxu0 0.0
    %7093 = vmatmul.mubr.f32.gmra.mrb[0].mxu0 %v7015
    %v7094 = vpop.f32.mrb[0].mxu0
    %v7095 = vpop.f32.mrb[0].mxu0
    %7096 = vmatprep.mubr.f32.mxu0 0.0
    %7097 = vmatmul.mubr.f32.gmra.mrb[0].mxu0 %v7018
    %v7098 = vpop.f32.mrb[0].mxu0
    %v7099 = vpop.f32.mrb[0].mxu0
    %7100 = vmatprep.mubr.f32.mxu0 0.0
    %7101 = vmatmul.mubr.f32.gmra.mrb[0].mxu0 %v7021
    %v7102 = vpop.f32.mrb[0].mxu0
    %v7103 = vpop.f32.mrb[0].mxu0
    %7104 = vdwg.mxu0
    %vm7105 = vcmask 517120
    %7106 = vst.msk [vmem:[#allocation22] sm:$0x3] %vm7105, %v7090
    // Predicated region
    $region118: #{_lambda_.1} parent=1 // pred_check
      _
    $region119: #{_lambda_.1} parent=1 // pred_check_branch
      %7108 = sbr.rel (0) target = $region121
    $region120: #{_lambda_.1} parent=1 // pred_region
      %s7110 = ssub.s32 32, 32
      %7111 = vsyncadd [#allocation4], %s7110
      %s7113 = sshll.u32 [#allocation22], 4
      %s7114 = int_to_ptr.vmem [resolvable:$true] %s7113
      %7116 = dma.vmem_to_hbm [thread:$0]  %s7114, 32, %s17, [#allocation4]
    $region121: #{_lambda_.1} parent=1 // pred_fallthru
      _
    // Predicated region
    $region122: #{_lambda_.1} parent=1 // pred_check
      _
    $region123: #{_lambda_.1} parent=1 // pred_check_branch
      %7118 = sbr.rel (0) target = $region125
    $region124: #{_lambda_.1} parent=1 // pred_region
      %7119 = dma.done [#allocation4], 32
    $region125: #{_lambda_.1} parent=1 // pred_fallthru
      _
    %7120 = vsyncpa [#allocation3], 1
    %7121 = vsyncpa [#allocation6], 1
    %7122 = vsyncpa [#allocation9], 1
    %7123 = vsyncpa [#allocation12], 1
    %7124 = vsyncpa [#allocation15], 1
    %7125 = vsyncpa [#allocation18], 1
    %7126 = vsyncpa [#allocation21], 1
    %7127 = vsyncpa [#allocation4], 1

</llo_original>
